<compile_context>
chip_gen: v7x
topology: tpu7x:2x2x1
jax: 0.10.0
libtpu: 0.0.40
codegen_flags: <defaults>
</compile_context>

<pallas_src>
import math

import jax
import jax.numpy as jnp
import numpy as np
from jax.experimental import pallas as pl
from jax.experimental.pallas import tpu as pltpu


# ----------------------------------------------------------------------------
# Module "parameters" (derived exactly like the PyTorch __init__)
# ----------------------------------------------------------------------------
MAX_RES = 15.0
MIN_RES = 15.0 / 2000.0
DIV_FACTOR = 4

N_FREQUENCIES = int(math.log(MAX_RES / MIN_RES, DIV_FACTOR)) + 1          # = 6
EMB_DIM = 2 * N_FREQUENCIES                                                # = 12

_FREQUENCIES = tuple(
    2.0 * math.pi * (DIV_FACTOR ** k) / MAX_RES for k in range(N_FREQUENCIES)
)

_LANES = 128
_WIDE = _LANES * EMB_DIM    # 1536 = lane-dense output width per 128 input rows


def _build_tables():
    """Constant tables passed as kernel INPUTS (not captured constants).

    expand : (128, 1536) one-hot; expand[l, c] = 1.0 iff c // 12 == l.
             xs(BR,128) @ expand broadcasts each input lane to its 12 output
             lanes.  Entries are exactly 1.0, so the MXU pass-through is exact.
    pattern: (1, 1536) signed frequencies: +freqs[c % 6] on sin lanes
             (c % 12 < 6), -freqs[c % 6] on cos lanes.  cos is even, so the
             sign only serves as the sin/cos selector.
    """
    c = np.arange(_WIDE)
    l = np.arange(_LANES)
    expand = (c[None, :] // EMB_DIM == l[:, None]).astype(np.float32)
    freqs = np.asarray(_FREQUENCIES, dtype=np.float32)
    sign = np.where((c % EMB_DIM) < N_FREQUENCIES,
                    np.float32(1.0), np.float32(-1.0))
    pattern = (sign * freqs[c % N_FREQUENCIES]).astype(np.float32)[None, :]
    return expand, pattern


_EXPAND_NP, _PATTERN_NP = _build_tables()


# ----------------------------------------------------------------------------
# Kernel: full-vreg sqrt -> MXU one-hot lane broadcast -> VPU scale -> sin/cos
# ----------------------------------------------------------------------------
def _sinusoids_kernel(x_ref, expand_ref, pattern_ref, o_ref):
    # x_ref:       (BR, 128)   f32   squared distances, lane-dense
    # expand_ref:  (128, 1536) f32   one-hot broadcast matrix
    # pattern_ref: (1, 1536)   f32   +freq (sin lanes) / -freq (cos lanes)
    # o_ref:       (BR, 1536)  f32   == (BR*128, 12) row-major
    xs = jnp.sqrt(x_ref[...] + 1e-8)                         # full-vreg EUP
    xb = jnp.dot(xs, expand_ref[...],
                 preferred_element_type=jnp.float32,
                 precision=jax.lax.Precision.HIGHEST)        # exact pass-through
    pat = jnp.broadcast_to(pattern_ref[...], xb.shape)       # sublane broadcast
    emb = xb * pat                                           # +/- xs * freq
    o_ref[...] = jnp.where(pat > 0.0, jnp.sin(emb), jnp.cos(emb))


def sinusoids_embedding(x: jax.Array, *, rows_per_block: int = 256) -> jax.Array:
    """x: (N, 1) float32 squared distances -> (N, 12) float32 [sin | cos]."""
    assert x.ndim == 2 and x.shape[1] == 1, "expected (N, 1) squared distances"
    n = x.shape[0]
    x = x.astype(jnp.float32)

    # rows_per_block counts rows-of-128 (sublanes of a block); keep it 8-aligned.
    rows_per_block = max(8, (rows_per_block // 8) * 8)

    n_row128 = -(-max(n, 1) // _LANES)        # cdiv(N, 128)
    n_row128 = -(-n_row128 // 8) * 8          # round up to a sublane multiple
    if n_row128 <= rows_per_block:
        block_rows = n_row128                 # single grid step
    else:
        block_rows = rows_per_block
        n_row128 = -(-n_row128 // block_rows) * block_rows
    grid_steps = n_row128 // block_rows
    n_pad = n_row128 * _LANES

    # Lane-dense input view: (N,1) -> pad -> (n_row128, 128).  Zero padding is
    # harmless (sqrt(1e-8), sin, cos are finite) and sliced off below.
    x_dense = jnp.pad(x[:, 0], (0, n_pad - n)).reshape(n_row128, _LANES)

    out_wide = pl.pallas_call(
        _sinusoids_kernel,
        out_shape=jax.ShapeDtypeStruct((n_row128, _WIDE), jnp.float32),
        grid=(grid_steps,),
        in_specs=[
            pl.BlockSpec((block_rows, _LANES), lambda i: (i, 0)),
            pl.BlockSpec((_LANES, _WIDE), lambda i: (0, 0)),   # constant block
            pl.BlockSpec((1, _WIDE), lambda i: (0, 0)),        # constant block
        ],
        out_specs=pl.BlockSpec((block_rows, _WIDE), lambda i: (i, 0)),
        compiler_params=pltpu.CompilerParams(
            dimension_semantics=("parallel",),
            vmem_limit_bytes=32 * 1024 * 1024,
        ),
    )(x_dense, jnp.asarray(_EXPAND_NP), jnp.asarray(_PATTERN_NP))

    # (n_row128, 1536) row-major is bit-identical to (n_pad, 12): free reshape.
    return out_wide.reshape(n_pad, EMB_DIM)[:n]


# Pure-JAX reference mirroring the PyTorch module exactly.
def sinusoids_embedding_ref(x: jax.Array) -> jax.Array:
    freqs = jnp.asarray(_FREQUENCIES, dtype=jnp.float32)
    xs = jnp.sqrt(x.astype(jnp.float32) + 1e-8)
    emb = xs * freqs[None, :]
    return jnp.concatenate((jnp.sin(emb), jnp.cos(emb)), axis=-1)


if __name__ == "__main__":
    key0, key1 = jax.random.split(jax.random.PRNGKey(0))

    # Small, realistic edge count; deliberately not a multiple of 128 so the
    # padding / bit-exact-reshape / slicing path is exercised.
    n1 = 200
    x1 = jax.random.uniform(key0, (n1, 1), jnp.float32, minval=0.0, maxval=9.0)
    ref1 = sinusoids_embedding_ref(x1)
    out1 = jax.block_until_ready(sinusoids_embedding(x1))
    assert out1.shape == (n1, EMB_DIM)
    assert out1.dtype == jnp.float32
    assert jnp.allclose(out1, ref1, atol=1e-3, rtol=1e-3)

    # Larger input with a small tile to force a multi-step (pipelined,
    # megacore-shardable) grid.
    n2 = 3000
    x2 = jax.random.uniform(key1, (n2, 1), jnp.float32, minval=0.0, maxval=9.0)
    ref2 = sinusoids_embedding_ref(x2)
    out2 = jax.block_until_ready(sinusoids_embedding(x2, rows_per_block=8))
    assert out2.shape == (n2, EMB_DIM)
    assert jnp.allclose(out2, ref2, atol=1e-3, rtol=1e-3)

    print("KERNEL_OK")
</pallas_src>

<mosaic_0001>
module attributes {stable_mosaic.version = 11 : i64} {
  func.func @_sinusoids_kernel(%arg0: i32, %arg1: memref<8x128xf32, #tpu.memory_space<vmem>>, %arg2: memref<128x1536xf32, #tpu.memory_space<vmem>>, %arg3: memref<1x1536xf32, #tpu.memory_space<vmem>>, %arg4: memref<8x1536xf32, #tpu.memory_space<vmem>>) attributes {dimension_semantics = [#tpu.dimension_semantics<parallel>], iteration_bounds = array<i64: 1>, scalar_prefetch = 0 : i64, scratch_operands = 0 : i64, tpu.core_type = #tpu.core_type<tc>, window_params = [{transform_indices = @transform_0, window_bounds = array<i64: 8, 128>}, {pipeline_mode = #tpu.pipeline_mode<synchronous>, transform_indices = @transform_1, window_bounds = array<i64: 128, 1536>}, {pipeline_mode = #tpu.pipeline_mode<synchronous>, transform_indices = @transform_2, window_bounds = array<i64: 1, 1536>}, {transform_indices = @transform_3, window_bounds = array<i64: 8, 1536>}]} {
    %c0 = arith.constant 0 : index
    %c0_0 = arith.constant 0 : index
    %0 = vector.load %arg1[%c0, %c0_0] : memref<8x128xf32, #tpu.memory_space<vmem>>, vector<8x128xf32>
    %cst = arith.constant 9.99999993E-9 : f32
    %1 = vector.broadcast %cst : f32 to vector<8x128xf32>
    %2 = arith.addf %0, %1 : vector<8x128xf32>
    %3 = math.sqrt %2 : vector<8x128xf32>
    %c0_1 = arith.constant 0 : index
    %c0_2 = arith.constant 0 : index
    %4 = vector.load %arg2[%c0_1, %c0_2] : memref<128x1536xf32, #tpu.memory_space<vmem>>, vector<128x1536xf32>
    %cst_3 = arith.constant dense<0.000000e+00> : vector<8x1536xf32>
    %5 = tpu.matmul %3, %4, %cst_3 {dimension_numbers = #tpu.dot_dimension_numbers<[1], [0], [0], [1], [0, 0, 1, 1], [], []>, precision = #tpu.contract_precision<fp32>} : vector<8x128xf32>, vector<128x1536xf32>, vector<8x1536xf32> -> vector<8x1536xf32>
    %c0_4 = arith.constant 0 : index
    %c0_5 = arith.constant 0 : index
    %6 = vector.load %arg3[%c0_4, %c0_5] : memref<1x1536xf32, #tpu.memory_space<vmem>>, vector<1x1536xf32>
    %7 = vector.shape_cast %6 : vector<1x1536xf32> to vector<1x1536xf32>
    %8 = vector.broadcast %7 : vector<1x1536xf32> to vector<8x1536xf32>
    %9 = arith.mulf %5, %8 : vector<8x1536xf32>
    %cst_6 = arith.constant 0.000000e+00 : f32
    %10 = vector.broadcast %cst_6 : f32 to vector<8x1536xf32>
    %11 = arith.cmpf ogt, %8, %10 : vector<8x1536xf32>
    %12 = math.sin %9 : vector<8x1536xf32>
    %13 = math.cos %9 : vector<8x1536xf32>
    %14 = arith.select %11, %12, %13 : vector<8x1536xi1>, vector<8x1536xf32>
    %c0_7 = arith.constant 0 : index
    %c0_8 = arith.constant 0 : index
    %15 = vector.load %arg4[%c0_7, %c0_8] : memref<8x1536xf32, #tpu.memory_space<vmem>>, vector<8x1536xf32>
    tpu.vector_store %arg4[%c0_7, %c0_8], %14 {strides = array<i32>} : memref<8x1536xf32, #tpu.memory_space<vmem>>, vector<8x1536xf32>,
    return
  }
  func.func @transform_0(%arg0: i32) -> (i32, i32) {
    %c0_i32 = arith.constant 0 : i32
    %c0_i32_0 = arith.constant 0 : i32
    return %arg0, %c0_i32 : i32, i32
  }
  func.func @transform_1(%arg0: i32) -> (i32, i32) {
    %c0_i32 = arith.constant 0 : i32
    %c0_i32_0 = arith.constant 0 : i32
    %c0_i32_1 = arith.constant 0 : i32
    return %c0_i32, %c0_i32_0 : i32, i32
  }
  func.func @transform_2(%arg0: i32) -> (i32, i32) {
    %c0_i32 = arith.constant 0 : i32
    %c0_i32_0 = arith.constant 0 : i32
    %c0_i32_1 = arith.constant 0 : i32
    return %c0_i32, %c0_i32_0 : i32, i32
  }
  func.func @transform_3(%arg0: i32) -> (i32, i32) {
    %c0_i32 = arith.constant 0 : i32
    %c0_i32_0 = arith.constant 0 : i32
    return %arg0, %c0_i32 : i32, i32
  }
}

</mosaic_0001>

<llo_original>
// kernel: tpu_custom_call.1
$region0: #{tpu_custom_call.1}
  #allocation0 [shape = 'u32[]', space=smem, size = 0x4, offset = 0x4, fixed_abs, tag = 'smem constant byte address 0x4 - core index']
  #allocation1 [shape = 'u32[144,128]{1,0:T(1,128)}', space=vmem, size = 0x12000, scoped, tag = 'internal scratch']
  %s0 = inlined_call_operand.hbm [shape: f32[8,128], index: 0, kind: input, shape index: {}]
  %s1 = inlined_call_operand.hbm [shape: f32[128,1536], index: 1, kind: input, shape index: {}]
  %s2 = inlined_call_operand.hbm [shape: f32[1,1536], index: 2, kind: input, shape index: {}]
  %s3 = inlined_call_operand.hbm [shape: f32[8,1536], index: 3, kind: output, shape index: {}]
  %s4 = sld [smem:[#allocation0]]
  $region34: #{tpu_custom_call.1} parent=0
    _
  %s6 = ssub.s32 1, %s4
  %s7 = scalar_select 0, %s6, %s4
  $region1: #{tpu_custom_call.1} parent=0
    #allocation2 [shape = 'u8[4096]{0}', space=vmem, size = 0x1000, scoped, tag = 'input window, operand 0, single buffered']
    #allocation3 [shape = 's32[1]{0}', space=sflag, size = 0x4, scoped, tag = 'scoped memory for tpu_custom_call.1']
    #allocation4 [shape = 's32[1]{0}', space=sflag, size = 0x4, scoped, tag = 'scoped memory for tpu_custom_call.1']
    #allocation5 [shape = 'u8[786432]{0}', space=vmem, size = 0xc0000, scoped, tag = 'input window, operand 1, single buffered']
    #allocation6 [shape = 's32[1]{0}', space=sflag, size = 0x4, scoped, tag = 'scoped memory for tpu_custom_call.1']
    #allocation7 [shape = 'u8[6144]{0}', space=vmem, size = 0x1800, scoped, tag = 'input window, operand 2, single buffered']
    #allocation8 [shape = 'u8[49152]{0}', space=vmem, size = 0xc000, scoped, tag = 'output window, operand 0, single buffered']
    %8 = vsyncpa [#allocation3], 0
    %9 = vsyncpa [#allocation6], 0
    %10 = vsyncpa [#allocation4], 0
    // Predicated region
    $region2: #{tpu_custom_call.1} parent=1 // pred_check
      _
    $region3: #{tpu_custom_call.1} parent=1 // pred_check_branch
      %12 = sbr.rel (0) target = $region5
    $region4: #{tpu_custom_call.1} parent=1 // pred_region
      %s14 = ssub.s32 128, 128
      %15 = vsyncadd [#allocation3], %s14
      %s17 = sshll.u32 [#allocation2], 4
      %s18 = int_to_ptr.vmem [resolvable:$true] %s17
      %20 = dma.hbm_to_vmem [thread:$0]  %s0, 128, %s18, [#allocation3]
    $region5: #{tpu_custom_call.1} parent=1 // pred_fallthru
      _
    // Predicated region
    $region6: #{tpu_custom_call.1} parent=1 // pred_check
      _
    $region7: #{tpu_custom_call.1} parent=1 // pred_check_branch
      %22 = sbr.rel (0) target = $region9
    $region8: #{tpu_custom_call.1} parent=1 // pred_region
      %s24 = ssub.s32 24576, 24576
      %25 = vsyncadd [#allocation6], %s24
      %s26 = sshll.u32 [#allocation5], 4
      %s27 = int_to_ptr.vmem [resolvable:$true] %s26
      %32 = dma.hbm_to_vmem [thread:$0]  %s1, 24576, %s27, [#allocation6], 1536, 1536, 96
    $region9: #{tpu_custom_call.1} parent=1 // pred_fallthru
      _
    // Predicated region
    $region10: #{tpu_custom_call.1} parent=1 // pred_check
      _
    $region11: #{tpu_custom_call.1} parent=1 // pred_check_branch
      %34 = sbr.rel (0) target = $region13
    $region12: #{tpu_custom_call.1} parent=1 // pred_region
      %s36 = ssub.s32 192, 192
      %37 = vsyncadd [#allocation6], %s36
      %s39 = sshll.u32 [#allocation7], 4
      %s40 = int_to_ptr.vmem [resolvable:$true] %s39
      %42 = dma.hbm_to_vmem [thread:$0]  %s2, 192, %s40, [#allocation6]
    $region13: #{tpu_custom_call.1} parent=1 // pred_fallthru
      _
    // Predicated region
    $region14: #{tpu_custom_call.1} parent=1 // pred_check
      _
    $region15: #{tpu_custom_call.1} parent=1 // pred_check_branch
      %44 = sbr.rel (0) target = $region17
    $region16: #{tpu_custom_call.1} parent=1 // pred_region
      %45 = dma.done [#allocation3], 128
    $region17: #{tpu_custom_call.1} parent=1 // pred_fallthru
      _
    // Predicated region
    $region18: #{tpu_custom_call.1} parent=1 // pred_check
      _
    $region19: #{tpu_custom_call.1} parent=1 // pred_check_branch
      %47 = sbr.rel (0) target = $region21
    $region20: #{tpu_custom_call.1} parent=1 // pred_region
      %48 = dma.done [#allocation6], 24576
    $region21: #{tpu_custom_call.1} parent=1 // pred_fallthru
      _
    // Predicated region
    $region22: #{tpu_custom_call.1} parent=1 // pred_check
      _
    $region23: #{tpu_custom_call.1} parent=1 // pred_check_branch
      %50 = sbr.rel (0) target = $region25
    $region24: #{tpu_custom_call.1} parent=1 // pred_region
      %51 = dma.done [#allocation6], 192
    $region25: #{tpu_custom_call.1} parent=1 // pred_fallthru
      _
    %v52 = vld [vmem:[#allocation2] sm:$0xff]
    %v53 = vadd.f32 %v52, 1e-08
    %v54 = vrsqrt.pop %v53
    %v55 = vmul.f32 %v53, %v54
    %vm56 = vcmp.eq.f32.partialorder %v53, inf
    %v57 = vsel %vm56, %v53, %v55
    %vm58 = vcmp.eq.f32.partialorder %v53, 0.0
    %v59 = vand.u32 %v53, 2147483648
    %v60 = vsel %vm58, %v59, %v57
    %v61 = vld [vmem:[#allocation5] sm:$0xff]
    %v62 = vld [vmem:[#allocation5 + $0x8] sm:$0xff]
    %v63 = vld [vmem:[#allocation5 + $0x10] sm:$0xff]
    %v64 = vld [vmem:[#allocation5 + $0x18] sm:$0xff]
    %v65 = vld [vmem:[#allocation5 + $0x20] sm:$0xff]
    %v66 = vld [vmem:[#allocation5 + $0x28] sm:$0xff]
    %v67 = vld [vmem:[#allocation5 + $0x30] sm:$0xff]
    %v68 = vld [vmem:[#allocation5 + $0x38] sm:$0xff]
    %v69 = vld [vmem:[#allocation5 + $0x40] sm:$0xff]
    %v70 = vld [vmem:[#allocation5 + $0x48] sm:$0xff]
    %v71 = vld [vmem:[#allocation5 + $0x50] sm:$0xff]
    %v72 = vld [vmem:[#allocation5 + $0x58] sm:$0xff]
    %v73 = vld [vmem:[#allocation5 + $0x60] sm:$0xff]
    %v74 = vld [vmem:[#allocation5 + $0x68] sm:$0xff]
    %v75 = vld [vmem:[#allocation5 + $0x70] sm:$0xff]
    %v76 = vld [vmem:[#allocation5 + $0x78] sm:$0xff]
    %v77 = vld [vmem:[#allocation5 + $0x80] sm:$0xff]
    %v78 = vld [vmem:[#allocation5 + $0x88] sm:$0xff]
    %v79 = vld [vmem:[#allocation5 + $0x90] sm:$0xff]
    %v80 = vld [vmem:[#allocation5 + $0x98] sm:$0xff]
    %v81 = vld [vmem:[#allocation5 + $0xa0] sm:$0xff]
    %v82 = vld [vmem:[#allocation5 + $0xa8] sm:$0xff]
    %v83 = vld [vmem:[#allocation5 + $0xb0] sm:$0xff]
    %v84 = vld [vmem:[#allocation5 + $0xb8] sm:$0xff]
    %v85 = vld [vmem:[#allocation5 + $0xc0] sm:$0xff]
    %v86 = vld [vmem:[#allocation5 + $0xc8] sm:$0xff]
    %v87 = vld [vmem:[#allocation5 + $0xd0] sm:$0xff]
    %v88 = vld [vmem:[#allocation5 + $0xd8] sm:$0xff]
    %v89 = vld [vmem:[#allocation5 + $0xe0] sm:$0xff]
    %v90 = vld [vmem:[#allocation5 + $0xe8] sm:$0xff]
    %v91 = vld [vmem:[#allocation5 + $0xf0] sm:$0xff]
    %v92 = vld [vmem:[#allocation5 + $0xf8] sm:$0xff]
    %v93 = vld [vmem:[#allocation5 + $0x100] sm:$0xff]
    %v94 = vld [vmem:[#allocation5 + $0x108] sm:$0xff]
    %v95 = vld [vmem:[#allocation5 + $0x110] sm:$0xff]
    %v96 = vld [vmem:[#allocation5 + $0x118] sm:$0xff]
    %v97 = vld [vmem:[#allocation5 + $0x120] sm:$0xff]
    %v98 = vld [vmem:[#allocation5 + $0x128] sm:$0xff]
    %v99 = vld [vmem:[#allocation5 + $0x130] sm:$0xff]
    %v100 = vld [vmem:[#allocation5 + $0x138] sm:$0xff]
    %v101 = vld [vmem:[#allocation5 + $0x140] sm:$0xff]
    %v102 = vld [vmem:[#allocation5 + $0x148] sm:$0xff]
    %v103 = vld [vmem:[#allocation5 + $0x150] sm:$0xff]
    %v104 = vld [vmem:[#allocation5 + $0x158] sm:$0xff]
    %v105 = vld [vmem:[#allocation5 + $0x160] sm:$0xff]
    %v106 = vld [vmem:[#allocation5 + $0x168] sm:$0xff]
    %v107 = vld [vmem:[#allocation5 + $0x170] sm:$0xff]
    %v108 = vld [vmem:[#allocation5 + $0x178] sm:$0xff]
    %v109 = vld [vmem:[#allocation5 + $0x180] sm:$0xff]
    %v110 = vld [vmem:[#allocation5 + $0x188] sm:$0xff]
    %v111 = vld [vmem:[#allocation5 + $0x190] sm:$0xff]
    %v112 = vld [vmem:[#allocation5 + $0x198] sm:$0xff]
    %v113 = vld [vmem:[#allocation5 + $0x1a0] sm:$0xff]
    %v114 = vld [vmem:[#allocation5 + $0x1a8] sm:$0xff]
    %v115 = vld [vmem:[#allocation5 + $0x1b0] sm:$0xff]
    %v116 = vld [vmem:[#allocation5 + $0x1b8] sm:$0xff]
    %v117 = vld [vmem:[#allocation5 + $0x1c0] sm:$0xff]
    %v118 = vld [vmem:[#allocation5 + $0x1c8] sm:$0xff]
    %v119 = vld [vmem:[#allocation5 + $0x1d0] sm:$0xff]
    %v120 = vld [vmem:[#allocation5 + $0x1d8] sm:$0xff]
    %v121 = vld [vmem:[#allocation5 + $0x1e0] sm:$0xff]
    %v122 = vld [vmem:[#allocation5 + $0x1e8] sm:$0xff]
    %v123 = vld [vmem:[#allocation5 + $0x1f0] sm:$0xff]
    %v124 = vld [vmem:[#allocation5 + $0x1f8] sm:$0xff]
    %v125 = vld [vmem:[#allocation5 + $0x200] sm:$0xff]
    %v126 = vld [vmem:[#allocation5 + $0x208] sm:$0xff]
    %v127 = vld [vmem:[#allocation5 + $0x210] sm:$0xff]
    %v128 = vld [vmem:[#allocation5 + $0x218] sm:$0xff]
    %v129 = vld [vmem:[#allocation5 + $0x220] sm:$0xff]
    %v130 = vld [vmem:[#allocation5 + $0x228] sm:$0xff]
    %v131 = vld [vmem:[#allocation5 + $0x230] sm:$0xff]
    %v132 = vld [vmem:[#allocation5 + $0x238] sm:$0xff]
    %v133 = vld [vmem:[#allocation5 + $0x240] sm:$0xff]
    %v134 = vld [vmem:[#allocation5 + $0x248] sm:$0xff]
    %v135 = vld [vmem:[#allocation5 + $0x250] sm:$0xff]
    %v136 = vld [vmem:[#allocation5 + $0x258] sm:$0xff]
    %v137 = vld [vmem:[#allocation5 + $0x260] sm:$0xff]
    %v138 = vld [vmem:[#allocation5 + $0x268] sm:$0xff]
    %v139 = vld [vmem:[#allocation5 + $0x270] sm:$0xff]
    %v140 = vld [vmem:[#allocation5 + $0x278] sm:$0xff]
    %v141 = vld [vmem:[#allocation5 + $0x280] sm:$0xff]
    %v142 = vld [vmem:[#allocation5 + $0x288] sm:$0xff]
    %v143 = vld [vmem:[#allocation5 + $0x290] sm:$0xff]
    %v144 = vld [vmem:[#allocation5 + $0x298] sm:$0xff]
    %v145 = vld [vmem:[#allocation5 + $0x2a0] sm:$0xff]
    %v146 = vld [vmem:[#allocation5 + $0x2a8] sm:$0xff]
    %v147 = vld [vmem:[#allocation5 + $0x2b0] sm:$0xff]
    %v148 = vld [vmem:[#allocation5 + $0x2b8] sm:$0xff]
    %v149 = vld [vmem:[#allocation5 + $0x2c0] sm:$0xff]
    %v150 = vld [vmem:[#allocation5 + $0x2c8] sm:$0xff]
    %v151 = vld [vmem:[#allocation5 + $0x2d0] sm:$0xff]
    %v152 = vld [vmem:[#allocation5 + $0x2d8] sm:$0xff]
    %v153 = vld [vmem:[#allocation5 + $0x2e0] sm:$0xff]
    %v154 = vld [vmem:[#allocation5 + $0x2e8] sm:$0xff]
    %v155 = vld [vmem:[#allocation5 + $0x2f0] sm:$0xff]
    %v156 = vld [vmem:[#allocation5 + $0x2f8] sm:$0xff]
    %v157 = vld [vmem:[#allocation5 + $0x300] sm:$0xff]
    %v158 = vld [vmem:[#allocation5 + $0x308] sm:$0xff]
    %v159 = vld [vmem:[#allocation5 + $0x310] sm:$0xff]
    %v160 = vld [vmem:[#allocation5 + $0x318] sm:$0xff]
    %v161 = vld [vmem:[#allocation5 + $0x320] sm:$0xff]
    %v162 = vld [vmem:[#allocation5 + $0x328] sm:$0xff]
    %v163 = vld [vmem:[#allocation5 + $0x330] sm:$0xff]
    %v164 = vld [vmem:[#allocation5 + $0x338] sm:$0xff]
    %v165 = vld [vmem:[#allocation5 + $0x340] sm:$0xff]
    %v166 = vld [vmem:[#allocation5 + $0x348] sm:$0xff]
    %v167 = vld [vmem:[#allocation5 + $0x350] sm:$0xff]
    %v168 = vld [vmem:[#allocation5 + $0x358] sm:$0xff]
    %v169 = vld [vmem:[#allocation5 + $0x360] sm:$0xff]
    %v170 = vld [vmem:[#allocation5 + $0x368] sm:$0xff]
    %v171 = vld [vmem:[#allocation5 + $0x370] sm:$0xff]
    %v172 = vld [vmem:[#allocation5 + $0x378] sm:$0xff]
    %v173 = vld [vmem:[#allocation5 + $0x380] sm:$0xff]
    %v174 = vld [vmem:[#allocation5 + $0x388] sm:$0xff]
    %v175 = vld [vmem:[#allocation5 + $0x390] sm:$0xff]
    %v176 = vld [vmem:[#allocation5 + $0x398] sm:$0xff]
    %v177 = vld [vmem:[#allocation5 + $0x3a0] sm:$0xff]
    %v178 = vld [vmem:[#allocation5 + $0x3a8] sm:$0xff]
    %v179 = vld [vmem:[#allocation5 + $0x3b0] sm:$0xff]
    %v180 = vld [vmem:[#allocation5 + $0x3b8] sm:$0xff]
    %v181 = vld [vmem:[#allocation5 + $0x3c0] sm:$0xff]
    %v182 = vld [vmem:[#allocation5 + $0x3c8] sm:$0xff]
    %v183 = vld [vmem:[#allocation5 + $0x3d0] sm:$0xff]
    %v184 = vld [vmem:[#allocation5 + $0x3d8] sm:$0xff]
    %v185 = vld [vmem:[#allocation5 + $0x3e0] sm:$0xff]
    %v186 = vld [vmem:[#allocation5 + $0x3e8] sm:$0xff]
    %v187 = vld [vmem:[#allocation5 + $0x3f0] sm:$0xff]
    %v188 = vld [vmem:[#allocation5 + $0x3f8] sm:$0xff]
    %v189 = vld [vmem:[#allocation5 + $0x400] sm:$0xff]
    %v190 = vld [vmem:[#allocation5 + $0x408] sm:$0xff]
    %v191 = vld [vmem:[#allocation5 + $0x410] sm:$0xff]
    %v192 = vld [vmem:[#allocation5 + $0x418] sm:$0xff]
    %v193 = vld [vmem:[#allocation5 + $0x420] sm:$0xff]
    %v194 = vld [vmem:[#allocation5 + $0x428] sm:$0xff]
    %v195 = vld [vmem:[#allocation5 + $0x430] sm:$0xff]
    %v196 = vld [vmem:[#allocation5 + $0x438] sm:$0xff]
    %v197 = vld [vmem:[#allocation5 + $0x440] sm:$0xff]
    %v198 = vld [vmem:[#allocation5 + $0x448] sm:$0xff]
    %v199 = vld [vmem:[#allocation5 + $0x450] sm:$0xff]
    %v200 = vld [vmem:[#allocation5 + $0x458] sm:$0xff]
    %v201 = vld [vmem:[#allocation5 + $0x460] sm:$0xff]
    %v202 = vld [vmem:[#allocation5 + $0x468] sm:$0xff]
    %v203 = vld [vmem:[#allocation5 + $0x470] sm:$0xff]
    %v204 = vld [vmem:[#allocation5 + $0x478] sm:$0xff]
    %v205 = vld [vmem:[#allocation5 + $0x480] sm:$0xff]
    %v206 = vld [vmem:[#allocation5 + $0x488] sm:$0xff]
    %v207 = vld [vmem:[#allocation5 + $0x490] sm:$0xff]
    %v208 = vld [vmem:[#allocation5 + $0x498] sm:$0xff]
    %v209 = vld [vmem:[#allocation5 + $0x4a0] sm:$0xff]
    %v210 = vld [vmem:[#allocation5 + $0x4a8] sm:$0xff]
    %v211 = vld [vmem:[#allocation5 + $0x4b0] sm:$0xff]
    %v212 = vld [vmem:[#allocation5 + $0x4b8] sm:$0xff]
    %v213 = vld [vmem:[#allocation5 + $0x4c0] sm:$0xff]
    %v214 = vld [vmem:[#allocation5 + $0x4c8] sm:$0xff]
    %v215 = vld [vmem:[#allocation5 + $0x4d0] sm:$0xff]
    %v216 = vld [vmem:[#allocation5 + $0x4d8] sm:$0xff]
    %v217 = vld [vmem:[#allocation5 + $0x4e0] sm:$0xff]
    %v218 = vld [vmem:[#allocation5 + $0x4e8] sm:$0xff]
    %v219 = vld [vmem:[#allocation5 + $0x4f0] sm:$0xff]
    %v220 = vld [vmem:[#allocation5 + $0x4f8] sm:$0xff]
    %v221 = vld [vmem:[#allocation5 + $0x500] sm:$0xff]
    %v222 = vld [vmem:[#allocation5 + $0x508] sm:$0xff]
    %v223 = vld [vmem:[#allocation5 + $0x510] sm:$0xff]
    %v224 = vld [vmem:[#allocation5 + $0x518] sm:$0xff]
    %v225 = vld [vmem:[#allocation5 + $0x520] sm:$0xff]
    %v226 = vld [vmem:[#allocation5 + $0x528] sm:$0xff]
    %v227 = vld [vmem:[#allocation5 + $0x530] sm:$0xff]
    %v228 = vld [vmem:[#allocation5 + $0x538] sm:$0xff]
    %v229 = vld [vmem:[#allocation5 + $0x540] sm:$0xff]
    %v230 = vld [vmem:[#allocation5 + $0x548] sm:$0xff]
    %v231 = vld [vmem:[#allocation5 + $0x550] sm:$0xff]
    %v232 = vld [vmem:[#allocation5 + $0x558] sm:$0xff]
    %v233 = vld [vmem:[#allocation5 + $0x560] sm:$0xff]
    %v234 = vld [vmem:[#allocation5 + $0x568] sm:$0xff]
    %v235 = vld [vmem:[#allocation5 + $0x570] sm:$0xff]
    %v236 = vld [vmem:[#allocation5 + $0x578] sm:$0xff]
    %v237 = vld [vmem:[#allocation5 + $0x580] sm:$0xff]
    %v238 = vld [vmem:[#allocation5 + $0x588] sm:$0xff]
    %v239 = vld [vmem:[#allocation5 + $0x590] sm:$0xff]
    %v240 = vld [vmem:[#allocation5 + $0x598] sm:$0xff]
    %v241 = vld [vmem:[#allocation5 + $0x5a0] sm:$0xff]
    %v242 = vld [vmem:[#allocation5 + $0x5a8] sm:$0xff]
    %v243 = vld [vmem:[#allocation5 + $0x5b0] sm:$0xff]
    %v244 = vld [vmem:[#allocation5 + $0x5b8] sm:$0xff]
    %v245 = vld [vmem:[#allocation5 + $0x5c0] sm:$0xff]
    %v246 = vld [vmem:[#allocation5 + $0x5c8] sm:$0xff]
    %v247 = vld [vmem:[#allocation5 + $0x5d0] sm:$0xff]
    %v248 = vld [vmem:[#allocation5 + $0x5d8] sm:$0xff]
    %v249 = vld [vmem:[#allocation5 + $0x5e0] sm:$0xff]
    %v250 = vld [vmem:[#allocation5 + $0x5e8] sm:$0xff]
    %v251 = vld [vmem:[#allocation5 + $0x5f0] sm:$0xff]
    %v252 = vld [vmem:[#allocation5 + $0x5f8] sm:$0xff]
    %v253 = vand.u32 %v62, 4294901760
    %254 = vmatprep.subr.mxu0 %v253
    %v255 = vand.u32 %v61, 4294901760
    %256 = vmatpush1.msra.mxu0 %v255
    %v257 = vand.u32 %v74, 4294901760
    %258 = vmatprep.subr.mxu0 %v257
    %v259 = vand.u32 %v73, 4294901760
    %260 = vmatpush1.msra.mxu0 %v259
    %v261 = vand.u32 %v86, 4294901760
    %262 = vmatprep.subr.mxu0 %v261
    %v263 = vand.u32 %v85, 4294901760
    %264 = vmatpush1.msra.mxu0 %v263
    %v265 = vand.u32 %v98, 4294901760
    %266 = vmatprep.subr.mxu0 %v265
    %v267 = vand.u32 %v97, 4294901760
    %268 = vmatpush1.msra.mxu0 %v267
    %v269 = vand.u32 %v110, 4294901760
    %270 = vmatprep.subr.mxu0 %v269
    %v271 = vand.u32 %v109, 4294901760
    %272 = vmatpush1.msra.mxu0 %v271
    %v273 = vand.u32 %v122, 4294901760
    %274 = vmatprep.subr.mxu0 %v273
    %v275 = vand.u32 %v121, 4294901760
    %276 = vmatpush1.msra.mxu0 %v275
    %v277 = vand.u32 %v134, 4294901760
    %278 = vmatprep.subr.mxu0 %v277
    %v279 = vand.u32 %v133, 4294901760
    %280 = vmatpush1.msra.mxu0 %v279
    %v281 = vand.u32 %v146, 4294901760
    %282 = vmatprep.subr.mxu0 %v281
    %v283 = vand.u32 %v145, 4294901760
    %284 = vmatpush1.msra.mxu0 %v283
    %v285 = vand.u32 %v158, 4294901760
    %286 = vmatprep.subr.mxu0 %v285
    %v287 = vand.u32 %v157, 4294901760
    %288 = vmatpush1.msra.mxu0 %v287
    %v289 = vand.u32 %v170, 4294901760
    %290 = vmatprep.subr.mxu0 %v289
    %v291 = vand.u32 %v169, 4294901760
    %292 = vmatpush1.msra.mxu0 %v291
    %v293 = vand.u32 %v182, 4294901760
    %294 = vmatprep.subr.mxu0 %v293
    %v295 = vand.u32 %v181, 4294901760
    %296 = vmatpush1.msra.mxu0 %v295
    %v297 = vand.u32 %v194, 4294901760
    %298 = vmatprep.subr.mxu0 %v297
    %v299 = vand.u32 %v193, 4294901760
    %300 = vmatpush1.msra.mxu0 %v299
    %v301 = vand.u32 %v206, 4294901760
    %302 = vmatprep.subr.mxu0 %v301
    %v303 = vand.u32 %v205, 4294901760
    %304 = vmatpush1.msra.mxu0 %v303
    %v305 = vand.u32 %v218, 4294901760
    %306 = vmatprep.subr.mxu0 %v305
    %v307 = vand.u32 %v217, 4294901760
    %308 = vmatpush1.msra.mxu0 %v307
    %v309 = vand.u32 %v230, 4294901760
    %310 = vmatprep.subr.mxu0 %v309
    %v311 = vand.u32 %v229, 4294901760
    %312 = vmatpush1.msra.mxu0 %v311
    %v313 = vand.u32 %v242, 4294901760
    %314 = vmatprep.subr.mxu0 %v313
    %v315 = vand.u32 %v241, 4294901760
    %316 = vmatpush1.msra.mxu0 %v315
    %317 = vmatprep.subr.mxu0 0.0
    %318 = vmatpush1.msra.mxu0 0.0
    %319 = vmatprep.subr.mxu0 0.0
    %320 = vmatpush1.msra.mxu0 0.0
    %321 = vmatprep.subr.mxu0 0.0
    %322 = vmatpush1.msra.mxu0 0.0
    %323 = vmatprep.subr.mxu0 0.0
    %324 = vmatpush1.msra.mxu0 0.0
    %325 = vmatprep.subr.mxu0 0.0
    %326 = vmatpush1.msra.mxu0 0.0
    %327 = vmatprep.subr.mxu0 0.0
    %328 = vmatpush1.msra.mxu0 0.0
    %329 = vmatprep.subr.mxu0 0.0
    %330 = vmatpush1.msra.mxu0 0.0
    %331 = vmatprep.subr.mxu0 0.0
    %332 = vmatpush1.msra.mxu0 0.0
    %333 = vmatprep.subr.mxu0 0.0
    %334 = vmatpush1.msra.mxu0 0.0
    %335 = vmatprep.subr.mxu0 0.0
    %336 = vmatpush1.msra.mxu0 0.0
    %337 = vmatprep.subr.mxu0 0.0
    %338 = vmatpush1.msra.mxu0 0.0
    %339 = vmatprep.subr.mxu0 0.0
    %340 = vmatpush1.msra.mxu0 0.0
    %341 = vmatprep.subr.mxu0 0.0
    %342 = vmatpush1.msra.mxu0 0.0
    %343 = vmatprep.subr.mxu0 0.0
    %344 = vmatpush1.msra.mxu0 0.0
    %345 = vmatprep.subr.mxu0 0.0
    %346 = vmatpush1.msra.mxu0 0.0
    %347 = vmatprep.subr.mxu0 0.0
    %348 = vmatpush1.msra.mxu0 0.0
    %349 = vmatprep.mubr.f32.mxu0 0.0
    %v350 = vand.u32 %v60, 4294901760
    %v351 = vsub.f32 %v60, %v350
    %v352 = vand.u32 %v351, 4294901760
    %v353 = vsub.f32 %v351, %v352
    %v354 = vand.u32 %v353, 4294901760
    %355 = vmatmul.mubr.f32.gmra.mrb[0].mxu0 %v354
    %v356 = vpop.f32.mrb[0].mxu0
    %v357 = vadd.f32 0.0, %v356
    %v358 = vpop.f32.mrb[0].mxu0
    %v359 = vadd.f32 0.0, %v358
    %360 = vdwg.mxu0
    %v361 = vand.u32 %v62, 4294901760
    %v362 = vsub.f32 %v62, %v361
    %v363 = vand.u32 %v362, 4294901760
    %v364 = vsub.f32 %v362, %v363
    %v365 = vand.u32 %v364, 4294901760
    %366 = vmatprep.subr.mxu0 %v365
    %v367 = vand.u32 %v61, 4294901760
    %v368 = vsub.f32 %v61, %v367
    %v369 = vand.u32 %v368, 4294901760
    %v370 = vsub.f32 %v368, %v369
    %v371 = vand.u32 %v370, 4294901760
    %372 = vmatpush1.msra.mxu0 %v371
    %v373 = vand.u32 %v74, 4294901760
    %v374 = vsub.f32 %v74, %v373
    %v375 = vand.u32 %v374, 4294901760
    %v376 = vsub.f32 %v374, %v375
    %v377 = vand.u32 %v376, 4294901760
    %378 = vmatprep.subr.mxu0 %v377
    %v379 = vand.u32 %v73, 4294901760
    %v380 = vsub.f32 %v73, %v379
    %v381 = vand.u32 %v380, 4294901760
    %v382 = vsub.f32 %v380, %v381
    %v383 = vand.u32 %v382, 4294901760
    %384 = vmatpush1.msra.mxu0 %v383
    %v385 = vand.u32 %v86, 4294901760
    %v386 = vsub.f32 %v86, %v385
    %v387 = vand.u32 %v386, 4294901760
    %v388 = vsub.f32 %v386, %v387
    %v389 = vand.u32 %v388, 4294901760
    %390 = vmatprep.subr.mxu0 %v389
    %v391 = vand.u32 %v85, 4294901760
    %v392 = vsub.f32 %v85, %v391
    %v393 = vand.u32 %v392, 4294901760
    %v394 = vsub.f32 %v392, %v393
    %v395 = vand.u32 %v394, 4294901760
    %396 = vmatpush1.msra.mxu0 %v395
    %v397 = vand.u32 %v98, 4294901760
    %v398 = vsub.f32 %v98, %v397
    %v399 = vand.u32 %v398, 4294901760
    %v400 = vsub.f32 %v398, %v399
    %v401 = vand.u32 %v400, 4294901760
    %402 = vmatprep.subr.mxu0 %v401
    %v403 = vand.u32 %v97, 4294901760
    %v404 = vsub.f32 %v97, %v403
    %v405 = vand.u32 %v404, 4294901760
    %v406 = vsub.f32 %v404, %v405
    %v407 = vand.u32 %v406, 4294901760
    %408 = vmatpush1.msra.mxu0 %v407
    %v409 = vand.u32 %v110, 4294901760
    %v410 = vsub.f32 %v110, %v409
    %v411 = vand.u32 %v410, 4294901760
    %v412 = vsub.f32 %v410, %v411
    %v413 = vand.u32 %v412, 4294901760
    %414 = vmatprep.subr.mxu0 %v413
    %v415 = vand.u32 %v109, 4294901760
    %v416 = vsub.f32 %v109, %v415
    %v417 = vand.u32 %v416, 4294901760
    %v418 = vsub.f32 %v416, %v417
    %v419 = vand.u32 %v418, 4294901760
    %420 = vmatpush1.msra.mxu0 %v419
    %v421 = vand.u32 %v122, 4294901760
    %v422 = vsub.f32 %v122, %v421
    %v423 = vand.u32 %v422, 4294901760
    %v424 = vsub.f32 %v422, %v423
    %v425 = vand.u32 %v424, 4294901760
    %426 = vmatprep.subr.mxu0 %v425
    %v427 = vand.u32 %v121, 4294901760
    %v428 = vsub.f32 %v121, %v427
    %v429 = vand.u32 %v428, 4294901760
    %v430 = vsub.f32 %v428, %v429
    %v431 = vand.u32 %v430, 4294901760
    %432 = vmatpush1.msra.mxu0 %v431
    %v433 = vand.u32 %v134, 4294901760
    %v434 = vsub.f32 %v134, %v433
    %v435 = vand.u32 %v434, 4294901760
    %v436 = vsub.f32 %v434, %v435
    %v437 = vand.u32 %v436, 4294901760
    %438 = vmatprep.subr.mxu0 %v437
    %v439 = vand.u32 %v133, 4294901760
    %v440 = vsub.f32 %v133, %v439
    %v441 = vand.u32 %v440, 4294901760
    %v442 = vsub.f32 %v440, %v441
    %v443 = vand.u32 %v442, 4294901760
    %444 = vmatpush1.msra.mxu0 %v443
    %v445 = vand.u32 %v146, 4294901760
    %v446 = vsub.f32 %v146, %v445
    %v447 = vand.u32 %v446, 4294901760
    %v448 = vsub.f32 %v446, %v447
    %v449 = vand.u32 %v448, 4294901760
    %450 = vmatprep.subr.mxu0 %v449
    %v451 = vand.u32 %v145, 4294901760
    %v452 = vsub.f32 %v145, %v451
    %v453 = vand.u32 %v452, 4294901760
    %v454 = vsub.f32 %v452, %v453
    %v455 = vand.u32 %v454, 4294901760
    %456 = vmatpush1.msra.mxu0 %v455
    %v457 = vand.u32 %v158, 4294901760
    %v458 = vsub.f32 %v158, %v457
    %v459 = vand.u32 %v458, 4294901760
    %v460 = vsub.f32 %v458, %v459
    %v461 = vand.u32 %v460, 4294901760
    %462 = vmatprep.subr.mxu0 %v461
    %v463 = vand.u32 %v157, 4294901760
    %v464 = vsub.f32 %v157, %v463
    %v465 = vand.u32 %v464, 4294901760
    %v466 = vsub.f32 %v464, %v465
    %v467 = vand.u32 %v466, 4294901760
    %468 = vmatpush1.msra.mxu0 %v467
    %v469 = vand.u32 %v170, 4294901760
    %v470 = vsub.f32 %v170, %v469
    %v471 = vand.u32 %v470, 4294901760
    %v472 = vsub.f32 %v470, %v471
    %v473 = vand.u32 %v472, 4294901760
    %474 = vmatprep.subr.mxu0 %v473
    %v475 = vand.u32 %v169, 4294901760
    %v476 = vsub.f32 %v169, %v475
    %v477 = vand.u32 %v476, 4294901760
    %v478 = vsub.f32 %v476, %v477
    %v479 = vand.u32 %v478, 4294901760
    %480 = vmatpush1.msra.mxu0 %v479
    %v481 = vand.u32 %v182, 4294901760
    %v482 = vsub.f32 %v182, %v481
    %v483 = vand.u32 %v482, 4294901760
    %v484 = vsub.f32 %v482, %v483
    %v485 = vand.u32 %v484, 4294901760
    %486 = vmatprep.subr.mxu0 %v485
    %v487 = vand.u32 %v181, 4294901760
    %v488 = vsub.f32 %v181, %v487
    %v489 = vand.u32 %v488, 4294901760
    %v490 = vsub.f32 %v488, %v489
    %v491 = vand.u32 %v490, 4294901760
    %492 = vmatpush1.msra.mxu0 %v491
    %v493 = vand.u32 %v194, 4294901760
    %v494 = vsub.f32 %v194, %v493
    %v495 = vand.u32 %v494, 4294901760
    %v496 = vsub.f32 %v494, %v495
    %v497 = vand.u32 %v496, 4294901760
    %498 = vmatprep.subr.mxu0 %v497
    %v499 = vand.u32 %v193, 4294901760
    %v500 = vsub.f32 %v193, %v499
    %v501 = vand.u32 %v500, 4294901760
    %v502 = vsub.f32 %v500, %v501
    %v503 = vand.u32 %v502, 4294901760
    %504 = vmatpush1.msra.mxu0 %v503
    %v505 = vand.u32 %v206, 4294901760
    %v506 = vsub.f32 %v206, %v505
    %v507 = vand.u32 %v506, 4294901760
    %v508 = vsub.f32 %v506, %v507
    %v509 = vand.u32 %v508, 4294901760
    %510 = vmatprep.subr.mxu0 %v509
    %v511 = vand.u32 %v205, 4294901760
    %v512 = vsub.f32 %v205, %v511
    %v513 = vand.u32 %v512, 4294901760
    %v514 = vsub.f32 %v512, %v513
    %v515 = vand.u32 %v514, 4294901760
    %516 = vmatpush1.msra.mxu0 %v515
    %v517 = vand.u32 %v218, 4294901760
    %v518 = vsub.f32 %v218, %v517
    %v519 = vand.u32 %v518, 4294901760
    %v520 = vsub.f32 %v518, %v519
    %v521 = vand.u32 %v520, 4294901760
    %522 = vmatprep.subr.mxu0 %v521
    %v523 = vand.u32 %v217, 4294901760
    %v524 = vsub.f32 %v217, %v523
    %v525 = vand.u32 %v524, 4294901760
    %v526 = vsub.f32 %v524, %v525
    %v527 = vand.u32 %v526, 4294901760
    %528 = vmatpush1.msra.mxu0 %v527
    %v529 = vand.u32 %v230, 4294901760
    %v530 = vsub.f32 %v230, %v529
    %v531 = vand.u32 %v530, 4294901760
    %v532 = vsub.f32 %v530, %v531
    %v533 = vand.u32 %v532, 4294901760
    %534 = vmatprep.subr.mxu0 %v533
    %v535 = vand.u32 %v229, 4294901760
    %v536 = vsub.f32 %v229, %v535
    %v537 = vand.u32 %v536, 4294901760
    %v538 = vsub.f32 %v536, %v537
    %v539 = vand.u32 %v538, 4294901760
    %540 = vmatpush1.msra.mxu0 %v539
    %v541 = vand.u32 %v242, 4294901760
    %v542 = vsub.f32 %v242, %v541
    %v543 = vand.u32 %v542, 4294901760
    %v544 = vsub.f32 %v542, %v543
    %v545 = vand.u32 %v544, 4294901760
    %546 = vmatprep.subr.mxu0 %v545
    %v547 = vand.u32 %v241, 4294901760
    %v548 = vsub.f32 %v241, %v547
    %v549 = vand.u32 %v548, 4294901760
    %v550 = vsub.f32 %v548, %v549
    %v551 = vand.u32 %v550, 4294901760
    %552 = vmatpush1.msra.mxu0 %v551
    %553 = vmatprep.subr.mxu0 0.0
    %554 = vmatpush1.msra.mxu0 0.0
    %555 = vmatprep.subr.mxu0 0.0
    %556 = vmatpush1.msra.mxu0 0.0
    %557 = vmatprep.subr.mxu0 0.0
    %558 = vmatpush1.msra.mxu0 0.0
    %559 = vmatprep.subr.mxu0 0.0
    %560 = vmatpush1.msra.mxu0 0.0
    %561 = vmatprep.subr.mxu0 0.0
    %562 = vmatpush1.msra.mxu0 0.0
    %563 = vmatprep.subr.mxu0 0.0
    %564 = vmatpush1.msra.mxu0 0.0
    %565 = vmatprep.subr.mxu0 0.0
    %566 = vmatpush1.msra.mxu0 0.0
    %567 = vmatprep.subr.mxu0 0.0
    %568 = vmatpush1.msra.mxu0 0.0
    %569 = vmatprep.subr.mxu0 0.0
    %570 = vmatpush1.msra.mxu0 0.0
    %571 = vmatprep.subr.mxu0 0.0
    %572 = vmatpush1.msra.mxu0 0.0
    %573 = vmatprep.subr.mxu0 0.0
    %574 = vmatpush1.msra.mxu0 0.0
    %575 = vmatprep.subr.mxu0 0.0
    %576 = vmatpush1.msra.mxu0 0.0
    %577 = vmatprep.subr.mxu0 0.0
    %578 = vmatpush1.msra.mxu0 0.0
    %579 = vmatprep.subr.mxu0 0.0
    %580 = vmatpush1.msra.mxu0 0.0
    %581 = vmatprep.subr.mxu0 0.0
    %582 = vmatpush1.msra.mxu0 0.0
    %583 = vmatprep.subr.mxu0 0.0
    %584 = vmatpush1.msra.mxu0 0.0
    %585 = vmatprep.mubr.f32.mxu0 0.0
    %v586 = vand.u32 %v60, 4294901760
    %587 = vmatmul.mubr.f32.gmra.mrb[0].mxu0 %v586
    %v588 = vpop.f32.mrb[0].mxu0
    %v589 = vadd.f32 %v357, %v588
    %v590 = vpop.f32.mrb[0].mxu0
    %v591 = vadd.f32 %v359, %v590
    %592 = vdwg.mxu0
    %v593 = vand.u32 %v62, 4294901760
    %v594 = vsub.f32 %v62, %v593
    %595 = vmatprep.subr.mxu0 %v594
    %v596 = vand.u32 %v61, 4294901760
    %v597 = vsub.f32 %v61, %v596
    %598 = vmatpush1.msra.mxu0 %v597
    %v599 = vand.u32 %v74, 4294901760
    %v600 = vsub.f32 %v74, %v599
    %601 = vmatprep.subr.mxu0 %v600
    %v602 = vand.u32 %v73, 4294901760
    %v603 = vsub.f32 %v73, %v602
    %604 = vmatpush1.msra.mxu0 %v603
    %v605 = vand.u32 %v86, 4294901760
    %v606 = vsub.f32 %v86, %v605
    %607 = vmatprep.subr.mxu0 %v606
    %v608 = vand.u32 %v85, 4294901760
    %v609 = vsub.f32 %v85, %v608
    %610 = vmatpush1.msra.mxu0 %v609
    %v611 = vand.u32 %v98, 4294901760
    %v612 = vsub.f32 %v98, %v611
    %613 = vmatprep.subr.mxu0 %v612
    %v614 = vand.u32 %v97, 4294901760
    %v615 = vsub.f32 %v97, %v614
    %616 = vmatpush1.msra.mxu0 %v615
    %v617 = vand.u32 %v110, 4294901760
    %v618 = vsub.f32 %v110, %v617
    %619 = vmatprep.subr.mxu0 %v618
    %v620 = vand.u32 %v109, 4294901760
    %v621 = vsub.f32 %v109, %v620
    %622 = vmatpush1.msra.mxu0 %v621
    %v623 = vand.u32 %v122, 4294901760
    %v624 = vsub.f32 %v122, %v623
    %625 = vmatprep.subr.mxu0 %v624
    %v626 = vand.u32 %v121, 4294901760
    %v627 = vsub.f32 %v121, %v626
    %628 = vmatpush1.msra.mxu0 %v627
    %v629 = vand.u32 %v134, 4294901760
    %v630 = vsub.f32 %v134, %v629
    %631 = vmatprep.subr.mxu0 %v630
    %v632 = vand.u32 %v133, 4294901760
    %v633 = vsub.f32 %v133, %v632
    %634 = vmatpush1.msra.mxu0 %v633
    %v635 = vand.u32 %v146, 4294901760
    %v636 = vsub.f32 %v146, %v635
    %637 = vmatprep.subr.mxu0 %v636
    %v638 = vand.u32 %v145, 4294901760
    %v639 = vsub.f32 %v145, %v638
    %640 = vmatpush1.msra.mxu0 %v639
    %v641 = vand.u32 %v158, 4294901760
    %v642 = vsub.f32 %v158, %v641
    %643 = vmatprep.subr.mxu0 %v642
    %v644 = vand.u32 %v157, 4294901760
    %v645 = vsub.f32 %v157, %v644
    %646 = vmatpush1.msra.mxu0 %v645
    %v647 = vand.u32 %v170, 4294901760
    %v648 = vsub.f32 %v170, %v647
    %649 = vmatprep.subr.mxu0 %v648
    %v650 = vand.u32 %v169, 4294901760
    %v651 = vsub.f32 %v169, %v650
    %652 = vmatpush1.msra.mxu0 %v651
    %v653 = vand.u32 %v182, 4294901760
    %v654 = vsub.f32 %v182, %v653
    %655 = vmatprep.subr.mxu0 %v654
    %v656 = vand.u32 %v181, 4294901760
    %v657 = vsub.f32 %v181, %v656
    %658 = vmatpush1.msra.mxu0 %v657
    %v659 = vand.u32 %v194, 4294901760
    %v660 = vsub.f32 %v194, %v659
    %661 = vmatprep.subr.mxu0 %v660
    %v662 = vand.u32 %v193, 4294901760
    %v663 = vsub.f32 %v193, %v662
    %664 = vmatpush1.msra.mxu0 %v663
    %v665 = vand.u32 %v206, 4294901760
    %v666 = vsub.f32 %v206, %v665
    %667 = vmatprep.subr.mxu0 %v666
    %v668 = vand.u32 %v205, 4294901760
    %v669 = vsub.f32 %v205, %v668
    %670 = vmatpush1.msra.mxu0 %v669
    %v671 = vand.u32 %v218, 4294901760
    %v672 = vsub.f32 %v218, %v671
    %673 = vmatprep.subr.mxu0 %v672
    %v674 = vand.u32 %v217, 4294901760
    %v675 = vsub.f32 %v217, %v674
    %676 = vmatpush1.msra.mxu0 %v675
    %v677 = vand.u32 %v230, 4294901760
    %v678 = vsub.f32 %v230, %v677
    %679 = vmatprep.subr.mxu0 %v678
    %v680 = vand.u32 %v229, 4294901760
    %v681 = vsub.f32 %v229, %v680
    %682 = vmatpush1.msra.mxu0 %v681
    %v683 = vand.u32 %v242, 4294901760
    %v684 = vsub.f32 %v242, %v683
    %685 = vmatprep.subr.mxu0 %v684
    %v686 = vand.u32 %v241, 4294901760
    %v687 = vsub.f32 %v241, %v686
    %688 = vmatpush1.msra.mxu0 %v687
    %689 = vmatprep.subr.mxu0 0.0
    %690 = vmatpush1.msra.mxu0 0.0
    %691 = vmatprep.subr.mxu0 0.0
    %692 = vmatpush1.msra.mxu0 0.0
    %693 = vmatprep.subr.mxu0 0.0
    %694 = vmatpush1.msra.mxu0 0.0
    %695 = vmatprep.subr.mxu0 0.0
    %696 = vmatpush1.msra.mxu0 0.0
    %697 = vmatprep.subr.mxu0 0.0
    %698 = vmatpush1.msra.mxu0 0.0
    %699 = vmatprep.subr.mxu0 0.0
    %700 = vmatpush1.msra.mxu0 0.0
    %701 = vmatprep.subr.mxu0 0.0
    %702 = vmatpush1.msra.mxu0 0.0
    %703 = vmatprep.subr.mxu0 0.0
    %704 = vmatpush1.msra.mxu0 0.0
    %705 = vmatprep.subr.mxu0 0.0
    %706 = vmatpush1.msra.mxu0 0.0
    %707 = vmatprep.subr.mxu0 0.0
    %708 = vmatpush1.msra.mxu0 0.0
    %709 = vmatprep.subr.mxu0 0.0
    %710 = vmatpush1.msra.mxu0 0.0
    %711 = vmatprep.subr.mxu0 0.0
    %712 = vmatpush1.msra.mxu0 0.0
    %713 = vmatprep.subr.mxu0 0.0
    %714 = vmatpush1.msra.mxu0 0.0
    %715 = vmatprep.subr.mxu0 0.0
    %716 = vmatpush1.msra.mxu0 0.0
    %717 = vmatprep.subr.mxu0 0.0
    %718 = vmatpush1.msra.mxu0 0.0
    %719 = vmatprep.subr.mxu0 0.0
    %720 = vmatpush1.msra.mxu0 0.0
    %721 = vmatprep.mubr.f32.mxu0 0.0
    %v722 = vand.u32 %v60, 4294901760
    %v723 = vsub.f32 %v60, %v722
    %724 = vmatmul.mubr.f32.gmra.mrb[0].mxu0 %v723
    %v725 = vpop.f32.mrb[0].mxu0
    %v726 = vadd.f32 %v589, %v725
    %v727 = vpop.f32.mrb[0].mxu0
    %v728 = vadd.f32 %v591, %v727
    %729 = vdwg.mxu0
    %v730 = vand.u32 %v62, 4294901760
    %731 = vmatprep.subr.mxu0 %v730
    %v732 = vand.u32 %v61, 4294901760
    %733 = vmatpush1.msra.mxu0 %v732
    %v734 = vand.u32 %v74, 4294901760
    %735 = vmatprep.subr.mxu0 %v734
    %v736 = vand.u32 %v73, 4294901760
    %737 = vmatpush1.msra.mxu0 %v736
    %v738 = vand.u32 %v86, 4294901760
    %739 = vmatprep.subr.mxu0 %v738
    %v740 = vand.u32 %v85, 4294901760
    %741 = vmatpush1.msra.mxu0 %v740
    %v742 = vand.u32 %v98, 4294901760
    %743 = vmatprep.subr.mxu0 %v742
    %v744 = vand.u32 %v97, 4294901760
    %745 = vmatpush1.msra.mxu0 %v744
    %v746 = vand.u32 %v110, 4294901760
    %747 = vmatprep.subr.mxu0 %v746
    %v748 = vand.u32 %v109, 4294901760
    %749 = vmatpush1.msra.mxu0 %v748
    %v750 = vand.u32 %v122, 4294901760
    %751 = vmatprep.subr.mxu0 %v750
    %v752 = vand.u32 %v121, 4294901760
    %753 = vmatpush1.msra.mxu0 %v752
    %v754 = vand.u32 %v134, 4294901760
    %755 = vmatprep.subr.mxu0 %v754
    %v756 = vand.u32 %v133, 4294901760
    %757 = vmatpush1.msra.mxu0 %v756
    %v758 = vand.u32 %v146, 4294901760
    %759 = vmatprep.subr.mxu0 %v758
    %v760 = vand.u32 %v145, 4294901760
    %761 = vmatpush1.msra.mxu0 %v760
    %v762 = vand.u32 %v158, 4294901760
    %763 = vmatprep.subr.mxu0 %v762
    %v764 = vand.u32 %v157, 4294901760
    %765 = vmatpush1.msra.mxu0 %v764
    %v766 = vand.u32 %v170, 4294901760
    %767 = vmatprep.subr.mxu0 %v766
    %v768 = vand.u32 %v169, 4294901760
    %769 = vmatpush1.msra.mxu0 %v768
    %v770 = vand.u32 %v182, 4294901760
    %771 = vmatprep.subr.mxu0 %v770
    %v772 = vand.u32 %v181, 4294901760
    %773 = vmatpush1.msra.mxu0 %v772
    %v774 = vand.u32 %v194, 4294901760
    %775 = vmatprep.subr.mxu0 %v774
    %v776 = vand.u32 %v193, 4294901760
    %777 = vmatpush1.msra.mxu0 %v776
    %v778 = vand.u32 %v206, 4294901760
    %779 = vmatprep.subr.mxu0 %v778
    %v780 = vand.u32 %v205, 4294901760
    %781 = vmatpush1.msra.mxu0 %v780
    %v782 = vand.u32 %v218, 4294901760
    %783 = vmatprep.subr.mxu0 %v782
    %v784 = vand.u32 %v217, 4294901760
    %785 = vmatpush1.msra.mxu0 %v784
    %v786 = vand.u32 %v230, 4294901760
    %787 = vmatprep.subr.mxu0 %v786
    %v788 = vand.u32 %v229, 4294901760
    %789 = vmatpush1.msra.mxu0 %v788
    %v790 = vand.u32 %v242, 4294901760
    %791 = vmatprep.subr.mxu0 %v790
    %v792 = vand.u32 %v241, 4294901760
    %793 = vmatpush1.msra.mxu0 %v792
    %794 = vmatprep.subr.mxu0 0.0
    %795 = vmatpush1.msra.mxu0 0.0
    %796 = vmatprep.subr.mxu0 0.0
    %797 = vmatpush1.msra.mxu0 0.0
    %798 = vmatprep.subr.mxu0 0.0
    %799 = vmatpush1.msra.mxu0 0.0
    %800 = vmatprep.subr.mxu0 0.0
    %801 = vmatpush1.msra.mxu0 0.0
    %802 = vmatprep.subr.mxu0 0.0
    %803 = vmatpush1.msra.mxu0 0.0
    %804 = vmatprep.subr.mxu0 0.0
    %805 = vmatpush1.msra.mxu0 0.0
    %806 = vmatprep.subr.mxu0 0.0
    %807 = vmatpush1.msra.mxu0 0.0
    %808 = vmatprep.subr.mxu0 0.0
    %809 = vmatpush1.msra.mxu0 0.0
    %810 = vmatprep.subr.mxu0 0.0
    %811 = vmatpush1.msra.mxu0 0.0
    %812 = vmatprep.subr.mxu0 0.0
    %813 = vmatpush1.msra.mxu0 0.0
    %814 = vmatprep.subr.mxu0 0.0
    %815 = vmatpush1.msra.mxu0 0.0
    %816 = vmatprep.subr.mxu0 0.0
    %817 = vmatpush1.msra.mxu0 0.0
    %818 = vmatprep.subr.mxu0 0.0
    %819 = vmatpush1.msra.mxu0 0.0
    %820 = vmatprep.subr.mxu0 0.0
    %821 = vmatpush1.msra.mxu0 0.0
    %822 = vmatprep.subr.mxu0 0.0
    %823 = vmatpush1.msra.mxu0 0.0
    %824 = vmatprep.subr.mxu0 0.0
    %825 = vmatpush1.msra.mxu0 0.0
    %826 = vmatprep.mubr.f32.mxu0 0.0
    %v827 = vand.u32 %v60, 4294901760
    %v828 = vsub.f32 %v60, %v827
    %v829 = vand.u32 %v828, 4294901760
    %830 = vmatmul.mubr.f32.gmra.mrb[0].mxu0 %v829
    %v831 = vpop.f32.mrb[0].mxu0
    %v832 = vadd.f32 %v726, %v831
    %v833 = vpop.f32.mrb[0].mxu0
    %v834 = vadd.f32 %v728, %v833
    %835 = vdwg.mxu0
    %v836 = vand.u32 %v62, 4294901760
    %v837 = vsub.f32 %v62, %v836
    %v838 = vand.u32 %v837, 4294901760
    %839 = vmatprep.subr.mxu0 %v838
    %v840 = vand.u32 %v61, 4294901760
    %v841 = vsub.f32 %v61, %v840
    %v842 = vand.u32 %v841, 4294901760
    %843 = vmatpush1.msra.mxu0 %v842
    %v844 = vand.u32 %v74, 4294901760
    %v845 = vsub.f32 %v74, %v844
    %v846 = vand.u32 %v845, 4294901760
    %847 = vmatprep.subr.mxu0 %v846
    %v848 = vand.u32 %v73, 4294901760
    %v849 = vsub.f32 %v73, %v848
    %v850 = vand.u32 %v849, 4294901760
    %851 = vmatpush1.msra.mxu0 %v850
    %v852 = vand.u32 %v86, 4294901760
    %v853 = vsub.f32 %v86, %v852
    %v854 = vand.u32 %v853, 4294901760
    %855 = vmatprep.subr.mxu0 %v854
    %v856 = vand.u32 %v85, 4294901760
    %v857 = vsub.f32 %v85, %v856
    %v858 = vand.u32 %v857, 4294901760
    %859 = vmatpush1.msra.mxu0 %v858
    %v860 = vand.u32 %v98, 4294901760
    %v861 = vsub.f32 %v98, %v860
    %v862 = vand.u32 %v861, 4294901760
    %863 = vmatprep.subr.mxu0 %v862
    %v864 = vand.u32 %v97, 4294901760
    %v865 = vsub.f32 %v97, %v864
    %v866 = vand.u32 %v865, 4294901760
    %867 = vmatpush1.msra.mxu0 %v866
    %v868 = vand.u32 %v110, 4294901760
    %v869 = vsub.f32 %v110, %v868
    %v870 = vand.u32 %v869, 4294901760
    %871 = vmatprep.subr.mxu0 %v870
    %v872 = vand.u32 %v109, 4294901760
    %v873 = vsub.f32 %v109, %v872
    %v874 = vand.u32 %v873, 4294901760
    %875 = vmatpush1.msra.mxu0 %v874
    %v876 = vand.u32 %v122, 4294901760
    %v877 = vsub.f32 %v122, %v876
    %v878 = vand.u32 %v877, 4294901760
    %879 = vmatprep.subr.mxu0 %v878
    %v880 = vand.u32 %v121, 4294901760
    %v881 = vsub.f32 %v121, %v880
    %v882 = vand.u32 %v881, 4294901760
    %883 = vmatpush1.msra.mxu0 %v882
    %v884 = vand.u32 %v134, 4294901760
    %v885 = vsub.f32 %v134, %v884
    %v886 = vand.u32 %v885, 4294901760
    %887 = vmatprep.subr.mxu0 %v886
    %v888 = vand.u32 %v133, 4294901760
    %v889 = vsub.f32 %v133, %v888
    %v890 = vand.u32 %v889, 4294901760
    %891 = vmatpush1.msra.mxu0 %v890
    %v892 = vand.u32 %v146, 4294901760
    %v893 = vsub.f32 %v146, %v892
    %v894 = vand.u32 %v893, 4294901760
    %895 = vmatprep.subr.mxu0 %v894
    %v896 = vand.u32 %v145, 4294901760
    %v897 = vsub.f32 %v145, %v896
    %v898 = vand.u32 %v897, 4294901760
    %899 = vmatpush1.msra.mxu0 %v898
    %v900 = vand.u32 %v158, 4294901760
    %v901 = vsub.f32 %v158, %v900
    %v902 = vand.u32 %v901, 4294901760
    %903 = vmatprep.subr.mxu0 %v902
    %v904 = vand.u32 %v157, 4294901760
    %v905 = vsub.f32 %v157, %v904
    %v906 = vand.u32 %v905, 4294901760
    %907 = vmatpush1.msra.mxu0 %v906
    %v908 = vand.u32 %v170, 4294901760
    %v909 = vsub.f32 %v170, %v908
    %v910 = vand.u32 %v909, 4294901760
    %911 = vmatprep.subr.mxu0 %v910
    %v912 = vand.u32 %v169, 4294901760
    %v913 = vsub.f32 %v169, %v912
    %v914 = vand.u32 %v913, 4294901760
    %915 = vmatpush1.msra.mxu0 %v914
    %v916 = vand.u32 %v182, 4294901760
    %v917 = vsub.f32 %v182, %v916
    %v918 = vand.u32 %v917, 4294901760
    %919 = vmatprep.subr.mxu0 %v918
    %v920 = vand.u32 %v181, 4294901760
    %v921 = vsub.f32 %v181, %v920
    %v922 = vand.u32 %v921, 4294901760
    %923 = vmatpush1.msra.mxu0 %v922
    %v924 = vand.u32 %v194, 4294901760
    %v925 = vsub.f32 %v194, %v924
    %v926 = vand.u32 %v925, 4294901760
    %927 = vmatprep.subr.mxu0 %v926
    %v928 = vand.u32 %v193, 4294901760
    %v929 = vsub.f32 %v193, %v928
    %v930 = vand.u32 %v929, 4294901760
    %931 = vmatpush1.msra.mxu0 %v930
    %v932 = vand.u32 %v206, 4294901760
    %v933 = vsub.f32 %v206, %v932
    %v934 = vand.u32 %v933, 4294901760
    %935 = vmatprep.subr.mxu0 %v934
    %v936 = vand.u32 %v205, 4294901760
    %v937 = vsub.f32 %v205, %v936
    %v938 = vand.u32 %v937, 4294901760
    %939 = vmatpush1.msra.mxu0 %v938
    %v940 = vand.u32 %v218, 4294901760
    %v941 = vsub.f32 %v218, %v940
    %v942 = vand.u32 %v941, 4294901760
    %943 = vmatprep.subr.mxu0 %v942
    %v944 = vand.u32 %v217, 4294901760
    %v945 = vsub.f32 %v217, %v944
    %v946 = vand.u32 %v945, 4294901760
    %947 = vmatpush1.msra.mxu0 %v946
    %v948 = vand.u32 %v230, 4294901760
    %v949 = vsub.f32 %v230, %v948
    %v950 = vand.u32 %v949, 4294901760
    %951 = vmatprep.subr.mxu0 %v950
    %v952 = vand.u32 %v229, 4294901760
    %v953 = vsub.f32 %v229, %v952
    %v954 = vand.u32 %v953, 4294901760
    %955 = vmatpush1.msra.mxu0 %v954
    %v956 = vand.u32 %v242, 4294901760
    %v957 = vsub.f32 %v242, %v956
    %v958 = vand.u32 %v957, 4294901760
    %959 = vmatprep.subr.mxu0 %v958
    %v960 = vand.u32 %v241, 4294901760
    %v961 = vsub.f32 %v241, %v960
    %v962 = vand.u32 %v961, 4294901760
    %963 = vmatpush1.msra.mxu0 %v962
    %964 = vmatprep.subr.mxu0 0.0
    %965 = vmatpush1.msra.mxu0 0.0
    %966 = vmatprep.subr.mxu0 0.0
    %967 = vmatpush1.msra.mxu0 0.0
    %968 = vmatprep.subr.mxu0 0.0
    %969 = vmatpush1.msra.mxu0 0.0
    %970 = vmatprep.subr.mxu0 0.0
    %971 = vmatpush1.msra.mxu0 0.0
    %972 = vmatprep.subr.mxu0 0.0
    %973 = vmatpush1.msra.mxu0 0.0
    %974 = vmatprep.subr.mxu0 0.0
    %975 = vmatpush1.msra.mxu0 0.0
    %976 = vmatprep.subr.mxu0 0.0
    %977 = vmatpush1.msra.mxu0 0.0
    %978 = vmatprep.subr.mxu0 0.0
    %979 = vmatpush1.msra.mxu0 0.0
    %980 = vmatprep.subr.mxu0 0.0
    %981 = vmatpush1.msra.mxu0 0.0
    %982 = vmatprep.subr.mxu0 0.0
    %983 = vmatpush1.msra.mxu0 0.0
    %984 = vmatprep.subr.mxu0 0.0
    %985 = vmatpush1.msra.mxu0 0.0
    %986 = vmatprep.subr.mxu0 0.0
    %987 = vmatpush1.msra.mxu0 0.0
    %988 = vmatprep.subr.mxu0 0.0
    %989 = vmatpush1.msra.mxu0 0.0
    %990 = vmatprep.subr.mxu0 0.0
    %991 = vmatpush1.msra.mxu0 0.0
    %992 = vmatprep.subr.mxu0 0.0
    %993 = vmatpush1.msra.mxu0 0.0
    %994 = vmatprep.subr.mxu0 0.0
    %995 = vmatpush1.msra.mxu0 0.0
    %996 = vmatprep.mubr.f32.mxu0 0.0
    %v997 = vand.u32 %v60, 4294901760
    %998 = vmatmul.mubr.f32.gmra.mrb[0].mxu0 %v997
    %v999 = vpop.f32.mrb[0].mxu0
    %v1000 = vadd.f32 %v832, %v999
    %v1001 = vpop.f32.mrb[0].mxu0
    %v1002 = vadd.f32 %v834, %v1001
    %1003 = vdwg.mxu0
    %v1004 = vand.u32 %v62, 4294901760
    %1005 = vmatprep.subr.mxu0 %v1004
    %v1006 = vand.u32 %v61, 4294901760
    %1007 = vmatpush1.msra.mxu0 %v1006
    %v1008 = vand.u32 %v74, 4294901760
    %1009 = vmatprep.subr.mxu0 %v1008
    %v1010 = vand.u32 %v73, 4294901760
    %1011 = vmatpush1.msra.mxu0 %v1010
    %v1012 = vand.u32 %v86, 4294901760
    %1013 = vmatprep.subr.mxu0 %v1012
    %v1014 = vand.u32 %v85, 4294901760
    %1015 = vmatpush1.msra.mxu0 %v1014
    %v1016 = vand.u32 %v98, 4294901760
    %1017 = vmatprep.subr.mxu0 %v1016
    %v1018 = vand.u32 %v97, 4294901760
    %1019 = vmatpush1.msra.mxu0 %v1018
    %v1020 = vand.u32 %v110, 4294901760
    %1021 = vmatprep.subr.mxu0 %v1020
    %v1022 = vand.u32 %v109, 4294901760
    %1023 = vmatpush1.msra.mxu0 %v1022
    %v1024 = vand.u32 %v122, 4294901760
    %1025 = vmatprep.subr.mxu0 %v1024
    %v1026 = vand.u32 %v121, 4294901760
    %1027 = vmatpush1.msra.mxu0 %v1026
    %v1028 = vand.u32 %v134, 4294901760
    %1029 = vmatprep.subr.mxu0 %v1028
    %v1030 = vand.u32 %v133, 4294901760
    %1031 = vmatpush1.msra.mxu0 %v1030
    %v1032 = vand.u32 %v146, 4294901760
    %1033 = vmatprep.subr.mxu0 %v1032
    %v1034 = vand.u32 %v145, 4294901760
    %1035 = vmatpush1.msra.mxu0 %v1034
    %v1036 = vand.u32 %v158, 4294901760
    %1037 = vmatprep.subr.mxu0 %v1036
    %v1038 = vand.u32 %v157, 4294901760
    %1039 = vmatpush1.msra.mxu0 %v1038
    %v1040 = vand.u32 %v170, 4294901760
    %1041 = vmatprep.subr.mxu0 %v1040
    %v1042 = vand.u32 %v169, 4294901760
    %1043 = vmatpush1.msra.mxu0 %v1042
    %v1044 = vand.u32 %v182, 4294901760
    %1045 = vmatprep.subr.mxu0 %v1044
    %v1046 = vand.u32 %v181, 4294901760
    %1047 = vmatpush1.msra.mxu0 %v1046
    %v1048 = vand.u32 %v194, 4294901760
    %1049 = vmatprep.subr.mxu0 %v1048
    %v1050 = vand.u32 %v193, 4294901760
    %1051 = vmatpush1.msra.mxu0 %v1050
    %v1052 = vand.u32 %v206, 4294901760
    %1053 = vmatprep.subr.mxu0 %v1052
    %v1054 = vand.u32 %v205, 4294901760
    %1055 = vmatpush1.msra.mxu0 %v1054
    %v1056 = vand.u32 %v218, 4294901760
    %1057 = vmatprep.subr.mxu0 %v1056
    %v1058 = vand.u32 %v217, 4294901760
    %1059 = vmatpush1.msra.mxu0 %v1058
    %v1060 = vand.u32 %v230, 4294901760
    %1061 = vmatprep.subr.mxu0 %v1060
    %v1062 = vand.u32 %v229, 4294901760
    %1063 = vmatpush1.msra.mxu0 %v1062
    %v1064 = vand.u32 %v242, 4294901760
    %1065 = vmatprep.subr.mxu0 %v1064
    %v1066 = vand.u32 %v241, 4294901760
    %1067 = vmatpush1.msra.mxu0 %v1066
    %1068 = vmatprep.subr.mxu0 0.0
    %1069 = vmatpush1.msra.mxu0 0.0
    %1070 = vmatprep.subr.mxu0 0.0
    %1071 = vmatpush1.msra.mxu0 0.0
    %1072 = vmatprep.subr.mxu0 0.0
    %1073 = vmatpush1.msra.mxu0 0.0
    %1074 = vmatprep.subr.mxu0 0.0
    %1075 = vmatpush1.msra.mxu0 0.0
    %1076 = vmatprep.subr.mxu0 0.0
    %1077 = vmatpush1.msra.mxu0 0.0
    %1078 = vmatprep.subr.mxu0 0.0
    %1079 = vmatpush1.msra.mxu0 0.0
    %1080 = vmatprep.subr.mxu0 0.0
    %1081 = vmatpush1.msra.mxu0 0.0
    %1082 = vmatprep.subr.mxu0 0.0
    %1083 = vmatpush1.msra.mxu0 0.0
    %1084 = vmatprep.subr.mxu0 0.0
    %1085 = vmatpush1.msra.mxu0 0.0
    %1086 = vmatprep.subr.mxu0 0.0
    %1087 = vmatpush1.msra.mxu0 0.0
    %1088 = vmatprep.subr.mxu0 0.0
    %1089 = vmatpush1.msra.mxu0 0.0
    %1090 = vmatprep.subr.mxu0 0.0
    %1091 = vmatpush1.msra.mxu0 0.0
    %1092 = vmatprep.subr.mxu0 0.0
    %1093 = vmatpush1.msra.mxu0 0.0
    %1094 = vmatprep.subr.mxu0 0.0
    %1095 = vmatpush1.msra.mxu0 0.0
    %1096 = vmatprep.subr.mxu0 0.0
    %1097 = vmatpush1.msra.mxu0 0.0
    %1098 = vmatprep.subr.mxu0 0.0
    %1099 = vmatpush1.msra.mxu0 0.0
    %1100 = vmatprep.mubr.f32.mxu0 0.0
    %v1101 = vand.u32 %v60, 4294901760
    %1102 = vmatmul.mubr.f32.gmra.mrb[0].mxu0 %v1101
    %v1103 = vpop.f32.mrb[0].mxu0
    %v1104 = vadd.f32 %v1000, %v1103
    %v1105 = vpop.f32.mrb[0].mxu0
    %v1106 = vadd.f32 %v1002, %v1105
    %1107 = vdwg.mxu0
    %v1108 = vand.u32 %v64, 4294901760
    %1109 = vmatprep.subr.mxu0 %v1108
    %v1110 = vand.u32 %v63, 4294901760
    %1111 = vmatpush1.msra.mxu0 %v1110
    %v1112 = vand.u32 %v76, 4294901760
    %1113 = vmatprep.subr.mxu0 %v1112
    %v1114 = vand.u32 %v75, 4294901760
    %1115 = vmatpush1.msra.mxu0 %v1114
    %v1116 = vand.u32 %v88, 4294901760
    %1117 = vmatprep.subr.mxu0 %v1116
    %v1118 = vand.u32 %v87, 4294901760
    %1119 = vmatpush1.msra.mxu0 %v1118
    %v1120 = vand.u32 %v100, 4294901760
    %1121 = vmatprep.subr.mxu0 %v1120
    %v1122 = vand.u32 %v99, 4294901760
    %1123 = vmatpush1.msra.mxu0 %v1122
    %v1124 = vand.u32 %v112, 4294901760
    %1125 = vmatprep.subr.mxu0 %v1124
    %v1126 = vand.u32 %v111, 4294901760
    %1127 = vmatpush1.msra.mxu0 %v1126
    %v1128 = vand.u32 %v124, 4294901760
    %1129 = vmatprep.subr.mxu0 %v1128
    %v1130 = vand.u32 %v123, 4294901760
    %1131 = vmatpush1.msra.mxu0 %v1130
    %v1132 = vand.u32 %v136, 4294901760
    %1133 = vmatprep.subr.mxu0 %v1132
    %v1134 = vand.u32 %v135, 4294901760
    %1135 = vmatpush1.msra.mxu0 %v1134
    %v1136 = vand.u32 %v148, 4294901760
    %1137 = vmatprep.subr.mxu0 %v1136
    %v1138 = vand.u32 %v147, 4294901760
    %1139 = vmatpush1.msra.mxu0 %v1138
    %v1140 = vand.u32 %v160, 4294901760
    %1141 = vmatprep.subr.mxu0 %v1140
    %v1142 = vand.u32 %v159, 4294901760
    %1143 = vmatpush1.msra.mxu0 %v1142
    %v1144 = vand.u32 %v172, 4294901760
    %1145 = vmatprep.subr.mxu0 %v1144
    %v1146 = vand.u32 %v171, 4294901760
    %1147 = vmatpush1.msra.mxu0 %v1146
    %v1148 = vand.u32 %v184, 4294901760
    %1149 = vmatprep.subr.mxu0 %v1148
    %v1150 = vand.u32 %v183, 4294901760
    %1151 = vmatpush1.msra.mxu0 %v1150
    %v1152 = vand.u32 %v196, 4294901760
    %1153 = vmatprep.subr.mxu0 %v1152
    %v1154 = vand.u32 %v195, 4294901760
    %1155 = vmatpush1.msra.mxu0 %v1154
    %v1156 = vand.u32 %v208, 4294901760
    %1157 = vmatprep.subr.mxu0 %v1156
    %v1158 = vand.u32 %v207, 4294901760
    %1159 = vmatpush1.msra.mxu0 %v1158
    %v1160 = vand.u32 %v220, 4294901760
    %1161 = vmatprep.subr.mxu0 %v1160
    %v1162 = vand.u32 %v219, 4294901760
    %1163 = vmatpush1.msra.mxu0 %v1162
    %v1164 = vand.u32 %v232, 4294901760
    %1165 = vmatprep.subr.mxu0 %v1164
    %v1166 = vand.u32 %v231, 4294901760
    %1167 = vmatpush1.msra.mxu0 %v1166
    %v1168 = vand.u32 %v244, 4294901760
    %1169 = vmatprep.subr.mxu0 %v1168
    %v1170 = vand.u32 %v243, 4294901760
    %1171 = vmatpush1.msra.mxu0 %v1170
    %1172 = vmatprep.subr.mxu0 0.0
    %1173 = vmatpush1.msra.mxu0 0.0
    %1174 = vmatprep.subr.mxu0 0.0
    %1175 = vmatpush1.msra.mxu0 0.0
    %1176 = vmatprep.subr.mxu0 0.0
    %1177 = vmatpush1.msra.mxu0 0.0
    %1178 = vmatprep.subr.mxu0 0.0
    %1179 = vmatpush1.msra.mxu0 0.0
    %1180 = vmatprep.subr.mxu0 0.0
    %1181 = vmatpush1.msra.mxu0 0.0
    %1182 = vmatprep.subr.mxu0 0.0
    %1183 = vmatpush1.msra.mxu0 0.0
    %1184 = vmatprep.subr.mxu0 0.0
    %1185 = vmatpush1.msra.mxu0 0.0
    %1186 = vmatprep.subr.mxu0 0.0
    %1187 = vmatpush1.msra.mxu0 0.0
    %1188 = vmatprep.subr.mxu0 0.0
    %1189 = vmatpush1.msra.mxu0 0.0
    %1190 = vmatprep.subr.mxu0 0.0
    %1191 = vmatpush1.msra.mxu0 0.0
    %1192 = vmatprep.subr.mxu0 0.0
    %1193 = vmatpush1.msra.mxu0 0.0
    %1194 = vmatprep.subr.mxu0 0.0
    %1195 = vmatpush1.msra.mxu0 0.0
    %1196 = vmatprep.subr.mxu0 0.0
    %1197 = vmatpush1.msra.mxu0 0.0
    %1198 = vmatprep.subr.mxu0 0.0
    %1199 = vmatpush1.msra.mxu0 0.0
    %1200 = vmatprep.subr.mxu0 0.0
    %1201 = vmatpush1.msra.mxu0 0.0
    %1202 = vmatprep.subr.mxu0 0.0
    %1203 = vmatpush1.msra.mxu0 0.0
    %1204 = vmatprep.mubr.f32.mxu0 0.0
    %v1205 = vand.u32 %v60, 4294901760
    %v1206 = vsub.f32 %v60, %v1205
    %v1207 = vand.u32 %v1206, 4294901760
    %v1208 = vsub.f32 %v1206, %v1207
    %v1209 = vand.u32 %v1208, 4294901760
    %1210 = vmatmul.mubr.f32.gmra.mrb[0].mxu0 %v1209
    %v1211 = vpop.f32.mrb[0].mxu0
    %v1212 = vadd.f32 0.0, %v1211
    %v1213 = vpop.f32.mrb[0].mxu0
    %v1214 = vadd.f32 0.0, %v1213
    %1215 = vdwg.mxu0
    %v1216 = vand.u32 %v64, 4294901760
    %v1217 = vsub.f32 %v64, %v1216
    %v1218 = vand.u32 %v1217, 4294901760
    %v1219 = vsub.f32 %v1217, %v1218
    %v1220 = vand.u32 %v1219, 4294901760
    %1221 = vmatprep.subr.mxu0 %v1220
    %v1222 = vand.u32 %v63, 4294901760
    %v1223 = vsub.f32 %v63, %v1222
    %v1224 = vand.u32 %v1223, 4294901760
    %v1225 = vsub.f32 %v1223, %v1224
    %v1226 = vand.u32 %v1225, 4294901760
    %1227 = vmatpush1.msra.mxu0 %v1226
    %v1228 = vand.u32 %v76, 4294901760
    %v1229 = vsub.f32 %v76, %v1228
    %v1230 = vand.u32 %v1229, 4294901760
    %v1231 = vsub.f32 %v1229, %v1230
    %v1232 = vand.u32 %v1231, 4294901760
    %1233 = vmatprep.subr.mxu0 %v1232
    %v1234 = vand.u32 %v75, 4294901760
    %v1235 = vsub.f32 %v75, %v1234
    %v1236 = vand.u32 %v1235, 4294901760
    %v1237 = vsub.f32 %v1235, %v1236
    %v1238 = vand.u32 %v1237, 4294901760
    %1239 = vmatpush1.msra.mxu0 %v1238
    %v1240 = vand.u32 %v88, 4294901760
    %v1241 = vsub.f32 %v88, %v1240
    %v1242 = vand.u32 %v1241, 4294901760
    %v1243 = vsub.f32 %v1241, %v1242
    %v1244 = vand.u32 %v1243, 4294901760
    %1245 = vmatprep.subr.mxu0 %v1244
    %v1246 = vand.u32 %v87, 4294901760
    %v1247 = vsub.f32 %v87, %v1246
    %v1248 = vand.u32 %v1247, 4294901760
    %v1249 = vsub.f32 %v1247, %v1248
    %v1250 = vand.u32 %v1249, 4294901760
    %1251 = vmatpush1.msra.mxu0 %v1250
    %v1252 = vand.u32 %v100, 4294901760
    %v1253 = vsub.f32 %v100, %v1252
    %v1254 = vand.u32 %v1253, 4294901760
    %v1255 = vsub.f32 %v1253, %v1254
    %v1256 = vand.u32 %v1255, 4294901760
    %1257 = vmatprep.subr.mxu0 %v1256
    %v1258 = vand.u32 %v99, 4294901760
    %v1259 = vsub.f32 %v99, %v1258
    %v1260 = vand.u32 %v1259, 4294901760
    %v1261 = vsub.f32 %v1259, %v1260
    %v1262 = vand.u32 %v1261, 4294901760
    %1263 = vmatpush1.msra.mxu0 %v1262
    %v1264 = vand.u32 %v112, 4294901760
    %v1265 = vsub.f32 %v112, %v1264
    %v1266 = vand.u32 %v1265, 4294901760
    %v1267 = vsub.f32 %v1265, %v1266
    %v1268 = vand.u32 %v1267, 4294901760
    %1269 = vmatprep.subr.mxu0 %v1268
    %v1270 = vand.u32 %v111, 4294901760
    %v1271 = vsub.f32 %v111, %v1270
    %v1272 = vand.u32 %v1271, 4294901760
    %v1273 = vsub.f32 %v1271, %v1272
    %v1274 = vand.u32 %v1273, 4294901760
    %1275 = vmatpush1.msra.mxu0 %v1274
    %v1276 = vand.u32 %v124, 4294901760
    %v1277 = vsub.f32 %v124, %v1276
    %v1278 = vand.u32 %v1277, 4294901760
    %v1279 = vsub.f32 %v1277, %v1278
    %v1280 = vand.u32 %v1279, 4294901760
    %1281 = vmatprep.subr.mxu0 %v1280
    %v1282 = vand.u32 %v123, 4294901760
    %v1283 = vsub.f32 %v123, %v1282
    %v1284 = vand.u32 %v1283, 4294901760
    %v1285 = vsub.f32 %v1283, %v1284
    %v1286 = vand.u32 %v1285, 4294901760
    %1287 = vmatpush1.msra.mxu0 %v1286
    %v1288 = vand.u32 %v136, 4294901760
    %v1289 = vsub.f32 %v136, %v1288
    %v1290 = vand.u32 %v1289, 4294901760
    %v1291 = vsub.f32 %v1289, %v1290
    %v1292 = vand.u32 %v1291, 4294901760
    %1293 = vmatprep.subr.mxu0 %v1292
    %v1294 = vand.u32 %v135, 4294901760
    %v1295 = vsub.f32 %v135, %v1294
    %v1296 = vand.u32 %v1295, 4294901760
    %v1297 = vsub.f32 %v1295, %v1296
    %v1298 = vand.u32 %v1297, 4294901760
    %1299 = vmatpush1.msra.mxu0 %v1298
    %v1300 = vand.u32 %v148, 4294901760
    %v1301 = vsub.f32 %v148, %v1300
    %v1302 = vand.u32 %v1301, 4294901760
    %v1303 = vsub.f32 %v1301, %v1302
    %v1304 = vand.u32 %v1303, 4294901760
    %1305 = vmatprep.subr.mxu0 %v1304
    %v1306 = vand.u32 %v147, 4294901760
    %v1307 = vsub.f32 %v147, %v1306
    %v1308 = vand.u32 %v1307, 4294901760
    %v1309 = vsub.f32 %v1307, %v1308
    %v1310 = vand.u32 %v1309, 4294901760
    %1311 = vmatpush1.msra.mxu0 %v1310
    %v1312 = vand.u32 %v160, 4294901760
    %v1313 = vsub.f32 %v160, %v1312
    %v1314 = vand.u32 %v1313, 4294901760
    %v1315 = vsub.f32 %v1313, %v1314
    %v1316 = vand.u32 %v1315, 4294901760
    %1317 = vmatprep.subr.mxu0 %v1316
    %v1318 = vand.u32 %v159, 4294901760
    %v1319 = vsub.f32 %v159, %v1318
    %v1320 = vand.u32 %v1319, 4294901760
    %v1321 = vsub.f32 %v1319, %v1320
    %v1322 = vand.u32 %v1321, 4294901760
    %1323 = vmatpush1.msra.mxu0 %v1322
    %v1324 = vand.u32 %v172, 4294901760
    %v1325 = vsub.f32 %v172, %v1324
    %v1326 = vand.u32 %v1325, 4294901760
    %v1327 = vsub.f32 %v1325, %v1326
    %v1328 = vand.u32 %v1327, 4294901760
    %1329 = vmatprep.subr.mxu0 %v1328
    %v1330 = vand.u32 %v171, 4294901760
    %v1331 = vsub.f32 %v171, %v1330
    %v1332 = vand.u32 %v1331, 4294901760
    %v1333 = vsub.f32 %v1331, %v1332
    %v1334 = vand.u32 %v1333, 4294901760
    %1335 = vmatpush1.msra.mxu0 %v1334
    %v1336 = vand.u32 %v184, 4294901760
    %v1337 = vsub.f32 %v184, %v1336
    %v1338 = vand.u32 %v1337, 4294901760
    %v1339 = vsub.f32 %v1337, %v1338
    %v1340 = vand.u32 %v1339, 4294901760
    %1341 = vmatprep.subr.mxu0 %v1340
    %v1342 = vand.u32 %v183, 4294901760
    %v1343 = vsub.f32 %v183, %v1342
    %v1344 = vand.u32 %v1343, 4294901760
    %v1345 = vsub.f32 %v1343, %v1344
    %v1346 = vand.u32 %v1345, 4294901760
    %1347 = vmatpush1.msra.mxu0 %v1346
    %v1348 = vand.u32 %v196, 4294901760
    %v1349 = vsub.f32 %v196, %v1348
    %v1350 = vand.u32 %v1349, 4294901760
    %v1351 = vsub.f32 %v1349, %v1350
    %v1352 = vand.u32 %v1351, 4294901760
    %1353 = vmatprep.subr.mxu0 %v1352
    %v1354 = vand.u32 %v195, 4294901760
    %v1355 = vsub.f32 %v195, %v1354
    %v1356 = vand.u32 %v1355, 4294901760
    %v1357 = vsub.f32 %v1355, %v1356
    %v1358 = vand.u32 %v1357, 4294901760
    %1359 = vmatpush1.msra.mxu0 %v1358
    %v1360 = vand.u32 %v208, 4294901760
    %v1361 = vsub.f32 %v208, %v1360
    %v1362 = vand.u32 %v1361, 4294901760
    %v1363 = vsub.f32 %v1361, %v1362
    %v1364 = vand.u32 %v1363, 4294901760
    %1365 = vmatprep.subr.mxu0 %v1364
    %v1366 = vand.u32 %v207, 4294901760
    %v1367 = vsub.f32 %v207, %v1366
    %v1368 = vand.u32 %v1367, 4294901760
    %v1369 = vsub.f32 %v1367, %v1368
    %v1370 = vand.u32 %v1369, 4294901760
    %1371 = vmatpush1.msra.mxu0 %v1370
    %v1372 = vand.u32 %v220, 4294901760
    %v1373 = vsub.f32 %v220, %v1372
    %v1374 = vand.u32 %v1373, 4294901760
    %v1375 = vsub.f32 %v1373, %v1374
    %v1376 = vand.u32 %v1375, 4294901760
    %1377 = vmatprep.subr.mxu0 %v1376
    %v1378 = vand.u32 %v219, 4294901760
    %v1379 = vsub.f32 %v219, %v1378
    %v1380 = vand.u32 %v1379, 4294901760
    %v1381 = vsub.f32 %v1379, %v1380
    %v1382 = vand.u32 %v1381, 4294901760
    %1383 = vmatpush1.msra.mxu0 %v1382
    %v1384 = vand.u32 %v232, 4294901760
    %v1385 = vsub.f32 %v232, %v1384
    %v1386 = vand.u32 %v1385, 4294901760
    %v1387 = vsub.f32 %v1385, %v1386
    %v1388 = vand.u32 %v1387, 4294901760
    %1389 = vmatprep.subr.mxu0 %v1388
    %v1390 = vand.u32 %v231, 4294901760
    %v1391 = vsub.f32 %v231, %v1390
    %v1392 = vand.u32 %v1391, 4294901760
    %v1393 = vsub.f32 %v1391, %v1392
    %v1394 = vand.u32 %v1393, 4294901760
    %1395 = vmatpush1.msra.mxu0 %v1394
    %v1396 = vand.u32 %v244, 4294901760
    %v1397 = vsub.f32 %v244, %v1396
    %v1398 = vand.u32 %v1397, 4294901760
    %v1399 = vsub.f32 %v1397, %v1398
    %v1400 = vand.u32 %v1399, 4294901760
    %1401 = vmatprep.subr.mxu0 %v1400
    %v1402 = vand.u32 %v243, 4294901760
    %v1403 = vsub.f32 %v243, %v1402
    %v1404 = vand.u32 %v1403, 4294901760
    %v1405 = vsub.f32 %v1403, %v1404
    %v1406 = vand.u32 %v1405, 4294901760
    %1407 = vmatpush1.msra.mxu0 %v1406
    %1408 = vmatprep.subr.mxu0 0.0
    %1409 = vmatpush1.msra.mxu0 0.0
    %1410 = vmatprep.subr.mxu0 0.0
    %1411 = vmatpush1.msra.mxu0 0.0
    %1412 = vmatprep.subr.mxu0 0.0
    %1413 = vmatpush1.msra.mxu0 0.0
    %1414 = vmatprep.subr.mxu0 0.0
    %1415 = vmatpush1.msra.mxu0 0.0
    %1416 = vmatprep.subr.mxu0 0.0
    %1417 = vmatpush1.msra.mxu0 0.0
    %1418 = vmatprep.subr.mxu0 0.0
    %1419 = vmatpush1.msra.mxu0 0.0
    %1420 = vmatprep.subr.mxu0 0.0
    %1421 = vmatpush1.msra.mxu0 0.0
    %1422 = vmatprep.subr.mxu0 0.0
    %1423 = vmatpush1.msra.mxu0 0.0
    %1424 = vmatprep.subr.mxu0 0.0
    %1425 = vmatpush1.msra.mxu0 0.0
    %1426 = vmatprep.subr.mxu0 0.0
    %1427 = vmatpush1.msra.mxu0 0.0
    %1428 = vmatprep.subr.mxu0 0.0
    %1429 = vmatpush1.msra.mxu0 0.0
    %1430 = vmatprep.subr.mxu0 0.0
    %1431 = vmatpush1.msra.mxu0 0.0
    %1432 = vmatprep.subr.mxu0 0.0
    %1433 = vmatpush1.msra.mxu0 0.0
    %1434 = vmatprep.subr.mxu0 0.0
    %1435 = vmatpush1.msra.mxu0 0.0
    %1436 = vmatprep.subr.mxu0 0.0
    %1437 = vmatpush1.msra.mxu0 0.0
    %1438 = vmatprep.subr.mxu0 0.0
    %1439 = vmatpush1.msra.mxu0 0.0
    %1440 = vmatprep.mubr.f32.mxu0 0.0
    %v1441 = vand.u32 %v60, 4294901760
    %1442 = vmatmul.mubr.f32.gmra.mrb[0].mxu0 %v1441
    %v1443 = vpop.f32.mrb[0].mxu0
    %v1444 = vadd.f32 %v1212, %v1443
    %v1445 = vpop.f32.mrb[0].mxu0
    %v1446 = vadd.f32 %v1214, %v1445
    %1447 = vdwg.mxu0
    %v1448 = vand.u32 %v64, 4294901760
    %v1449 = vsub.f32 %v64, %v1448
    %1450 = vmatprep.subr.mxu0 %v1449
    %v1451 = vand.u32 %v63, 4294901760
    %v1452 = vsub.f32 %v63, %v1451
    %1453 = vmatpush1.msra.mxu0 %v1452
    %v1454 = vand.u32 %v76, 4294901760
    %v1455 = vsub.f32 %v76, %v1454
    %1456 = vmatprep.subr.mxu0 %v1455
    %v1457 = vand.u32 %v75, 4294901760
    %v1458 = vsub.f32 %v75, %v1457
    %1459 = vmatpush1.msra.mxu0 %v1458
    %v1460 = vand.u32 %v88, 4294901760
    %v1461 = vsub.f32 %v88, %v1460
    %1462 = vmatprep.subr.mxu0 %v1461
    %v1463 = vand.u32 %v87, 4294901760
    %v1464 = vsub.f32 %v87, %v1463
    %1465 = vmatpush1.msra.mxu0 %v1464
    %v1466 = vand.u32 %v100, 4294901760
    %v1467 = vsub.f32 %v100, %v1466
    %1468 = vmatprep.subr.mxu0 %v1467
    %v1469 = vand.u32 %v99, 4294901760
    %v1470 = vsub.f32 %v99, %v1469
    %1471 = vmatpush1.msra.mxu0 %v1470
    %v1472 = vand.u32 %v112, 4294901760
    %v1473 = vsub.f32 %v112, %v1472
    %1474 = vmatprep.subr.mxu0 %v1473
    %v1475 = vand.u32 %v111, 4294901760
    %v1476 = vsub.f32 %v111, %v1475
    %1477 = vmatpush1.msra.mxu0 %v1476
    %v1478 = vand.u32 %v124, 4294901760
    %v1479 = vsub.f32 %v124, %v1478
    %1480 = vmatprep.subr.mxu0 %v1479
    %v1481 = vand.u32 %v123, 4294901760
    %v1482 = vsub.f32 %v123, %v1481
    %1483 = vmatpush1.msra.mxu0 %v1482
    %v1484 = vand.u32 %v136, 4294901760
    %v1485 = vsub.f32 %v136, %v1484
    %1486 = vmatprep.subr.mxu0 %v1485
    %v1487 = vand.u32 %v135, 4294901760
    %v1488 = vsub.f32 %v135, %v1487
    %1489 = vmatpush1.msra.mxu0 %v1488
    %v1490 = vand.u32 %v148, 4294901760
    %v1491 = vsub.f32 %v148, %v1490
    %1492 = vmatprep.subr.mxu0 %v1491
    %v1493 = vand.u32 %v147, 4294901760
    %v1494 = vsub.f32 %v147, %v1493
    %1495 = vmatpush1.msra.mxu0 %v1494
    %v1496 = vand.u32 %v160, 4294901760
    %v1497 = vsub.f32 %v160, %v1496
    %1498 = vmatprep.subr.mxu0 %v1497
    %v1499 = vand.u32 %v159, 4294901760
    %v1500 = vsub.f32 %v159, %v1499
    %1501 = vmatpush1.msra.mxu0 %v1500
    %v1502 = vand.u32 %v172, 4294901760
    %v1503 = vsub.f32 %v172, %v1502
    %1504 = vmatprep.subr.mxu0 %v1503
    %v1505 = vand.u32 %v171, 4294901760
    %v1506 = vsub.f32 %v171, %v1505
    %1507 = vmatpush1.msra.mxu0 %v1506
    %v1508 = vand.u32 %v184, 4294901760
    %v1509 = vsub.f32 %v184, %v1508
    %1510 = vmatprep.subr.mxu0 %v1509
    %v1511 = vand.u32 %v183, 4294901760
    %v1512 = vsub.f32 %v183, %v1511
    %1513 = vmatpush1.msra.mxu0 %v1512
    %v1514 = vand.u32 %v196, 4294901760
    %v1515 = vsub.f32 %v196, %v1514
    %1516 = vmatprep.subr.mxu0 %v1515
    %v1517 = vand.u32 %v195, 4294901760
    %v1518 = vsub.f32 %v195, %v1517
    %1519 = vmatpush1.msra.mxu0 %v1518
    %v1520 = vand.u32 %v208, 4294901760
    %v1521 = vsub.f32 %v208, %v1520
    %1522 = vmatprep.subr.mxu0 %v1521
    %v1523 = vand.u32 %v207, 4294901760
    %v1524 = vsub.f32 %v207, %v1523
    %1525 = vmatpush1.msra.mxu0 %v1524
    %v1526 = vand.u32 %v220, 4294901760
    %v1527 = vsub.f32 %v220, %v1526
    %1528 = vmatprep.subr.mxu0 %v1527
    %v1529 = vand.u32 %v219, 4294901760
    %v1530 = vsub.f32 %v219, %v1529
    %1531 = vmatpush1.msra.mxu0 %v1530
    %v1532 = vand.u32 %v232, 4294901760
    %v1533 = vsub.f32 %v232, %v1532
    %1534 = vmatprep.subr.mxu0 %v1533
    %v1535 = vand.u32 %v231, 4294901760
    %v1536 = vsub.f32 %v231, %v1535
    %1537 = vmatpush1.msra.mxu0 %v1536
    %v1538 = vand.u32 %v244, 4294901760
    %v1539 = vsub.f32 %v244, %v1538
    %1540 = vmatprep.subr.mxu0 %v1539
    %v1541 = vand.u32 %v243, 4294901760
    %v1542 = vsub.f32 %v243, %v1541
    %1543 = vmatpush1.msra.mxu0 %v1542
    %1544 = vmatprep.subr.mxu0 0.0
    %1545 = vmatpush1.msra.mxu0 0.0
    %1546 = vmatprep.subr.mxu0 0.0
    %1547 = vmatpush1.msra.mxu0 0.0
    %1548 = vmatprep.subr.mxu0 0.0
    %1549 = vmatpush1.msra.mxu0 0.0
    %1550 = vmatprep.subr.mxu0 0.0
    %1551 = vmatpush1.msra.mxu0 0.0
    %1552 = vmatprep.subr.mxu0 0.0
    %1553 = vmatpush1.msra.mxu0 0.0
    %1554 = vmatprep.subr.mxu0 0.0
    %1555 = vmatpush1.msra.mxu0 0.0
    %1556 = vmatprep.subr.mxu0 0.0
    %1557 = vmatpush1.msra.mxu0 0.0
    %1558 = vmatprep.subr.mxu0 0.0
    %1559 = vmatpush1.msra.mxu0 0.0
    %1560 = vmatprep.subr.mxu0 0.0
    %1561 = vmatpush1.msra.mxu0 0.0
    %1562 = vmatprep.subr.mxu0 0.0
    %1563 = vmatpush1.msra.mxu0 0.0
    %1564 = vmatprep.subr.mxu0 0.0
    %1565 = vmatpush1.msra.mxu0 0.0
    %1566 = vmatprep.subr.mxu0 0.0
    %1567 = vmatpush1.msra.mxu0 0.0
    %1568 = vmatprep.subr.mxu0 0.0
    %1569 = vmatpush1.msra.mxu0 0.0
    %1570 = vmatprep.subr.mxu0 0.0
    %1571 = vmatpush1.msra.mxu0 0.0
    %1572 = vmatprep.subr.mxu0 0.0
    %1573 = vmatpush1.msra.mxu0 0.0
    %1574 = vmatprep.subr.mxu0 0.0
    %1575 = vmatpush1.msra.mxu0 0.0
    %1576 = vmatprep.mubr.f32.mxu0 0.0
    %v1577 = vand.u32 %v60, 4294901760
    %v1578 = vsub.f32 %v60, %v1577
    %1579 = vmatmul.mubr.f32.gmra.mrb[0].mxu0 %v1578
    %v1580 = vpop.f32.mrb[0].mxu0
    %v1581 = vadd.f32 %v1444, %v1580
    %v1582 = vpop.f32.mrb[0].mxu0
    %v1583 = vadd.f32 %v1446, %v1582
    %1584 = vdwg.mxu0
    %v1585 = vand.u32 %v64, 4294901760
    %1586 = vmatprep.subr.mxu0 %v1585
    %v1587 = vand.u32 %v63, 4294901760
    %1588 = vmatpush1.msra.mxu0 %v1587
    %v1589 = vand.u32 %v76, 4294901760
    %1590 = vmatprep.subr.mxu0 %v1589
    %v1591 = vand.u32 %v75, 4294901760
    %1592 = vmatpush1.msra.mxu0 %v1591
    %v1593 = vand.u32 %v88, 4294901760
    %1594 = vmatprep.subr.mxu0 %v1593
    %v1595 = vand.u32 %v87, 4294901760
    %1596 = vmatpush1.msra.mxu0 %v1595
    %v1597 = vand.u32 %v100, 4294901760
    %1598 = vmatprep.subr.mxu0 %v1597
    %v1599 = vand.u32 %v99, 4294901760
    %1600 = vmatpush1.msra.mxu0 %v1599
    %v1601 = vand.u32 %v112, 4294901760
    %1602 = vmatprep.subr.mxu0 %v1601
    %v1603 = vand.u32 %v111, 4294901760
    %1604 = vmatpush1.msra.mxu0 %v1603
    %v1605 = vand.u32 %v124, 4294901760
    %1606 = vmatprep.subr.mxu0 %v1605
    %v1607 = vand.u32 %v123, 4294901760
    %1608 = vmatpush1.msra.mxu0 %v1607
    %v1609 = vand.u32 %v136, 4294901760
    %1610 = vmatprep.subr.mxu0 %v1609
    %v1611 = vand.u32 %v135, 4294901760
    %1612 = vmatpush1.msra.mxu0 %v1611
    %v1613 = vand.u32 %v148, 4294901760
    %1614 = vmatprep.subr.mxu0 %v1613
    %v1615 = vand.u32 %v147, 4294901760
    %1616 = vmatpush1.msra.mxu0 %v1615
    %v1617 = vand.u32 %v160, 4294901760
    %1618 = vmatprep.subr.mxu0 %v1617
    %v1619 = vand.u32 %v159, 4294901760
    %1620 = vmatpush1.msra.mxu0 %v1619
    %v1621 = vand.u32 %v172, 4294901760
    %1622 = vmatprep.subr.mxu0 %v1621
    %v1623 = vand.u32 %v171, 4294901760
    %1624 = vmatpush1.msra.mxu0 %v1623
    %v1625 = vand.u32 %v184, 4294901760
    %1626 = vmatprep.subr.mxu0 %v1625
    %v1627 = vand.u32 %v183, 4294901760
    %1628 = vmatpush1.msra.mxu0 %v1627
    %v1629 = vand.u32 %v196, 4294901760
    %1630 = vmatprep.subr.mxu0 %v1629
    %v1631 = vand.u32 %v195, 4294901760
    %1632 = vmatpush1.msra.mxu0 %v1631
    %v1633 = vand.u32 %v208, 4294901760
    %1634 = vmatprep.subr.mxu0 %v1633
    %v1635 = vand.u32 %v207, 4294901760
    %1636 = vmatpush1.msra.mxu0 %v1635
    %v1637 = vand.u32 %v220, 4294901760
    %1638 = vmatprep.subr.mxu0 %v1637
    %v1639 = vand.u32 %v219, 4294901760
    %1640 = vmatpush1.msra.mxu0 %v1639
    %v1641 = vand.u32 %v232, 4294901760
    %1642 = vmatprep.subr.mxu0 %v1641
    %v1643 = vand.u32 %v231, 4294901760
    %1644 = vmatpush1.msra.mxu0 %v1643
    %v1645 = vand.u32 %v244, 4294901760
    %1646 = vmatprep.subr.mxu0 %v1645
    %v1647 = vand.u32 %v243, 4294901760
    %1648 = vmatpush1.msra.mxu0 %v1647
    %1649 = vmatprep.subr.mxu0 0.0
    %1650 = vmatpush1.msra.mxu0 0.0
    %1651 = vmatprep.subr.mxu0 0.0
    %1652 = vmatpush1.msra.mxu0 0.0
    %1653 = vmatprep.subr.mxu0 0.0
    %1654 = vmatpush1.msra.mxu0 0.0
    %1655 = vmatprep.subr.mxu0 0.0
    %1656 = vmatpush1.msra.mxu0 0.0
    %1657 = vmatprep.subr.mxu0 0.0
    %1658 = vmatpush1.msra.mxu0 0.0
    %1659 = vmatprep.subr.mxu0 0.0
    %1660 = vmatpush1.msra.mxu0 0.0
    %1661 = vmatprep.subr.mxu0 0.0
    %1662 = vmatpush1.msra.mxu0 0.0
    %1663 = vmatprep.subr.mxu0 0.0
    %1664 = vmatpush1.msra.mxu0 0.0
    %1665 = vmatprep.subr.mxu0 0.0
    %1666 = vmatpush1.msra.mxu0 0.0
    %1667 = vmatprep.subr.mxu0 0.0
    %1668 = vmatpush1.msra.mxu0 0.0
    %1669 = vmatprep.subr.mxu0 0.0
    %1670 = vmatpush1.msra.mxu0 0.0
    %1671 = vmatprep.subr.mxu0 0.0
    %1672 = vmatpush1.msra.mxu0 0.0
    %1673 = vmatprep.subr.mxu0 0.0
    %1674 = vmatpush1.msra.mxu0 0.0
    %1675 = vmatprep.subr.mxu0 0.0
    %1676 = vmatpush1.msra.mxu0 0.0
    %1677 = vmatprep.subr.mxu0 0.0
    %1678 = vmatpush1.msra.mxu0 0.0
    %1679 = vmatprep.subr.mxu0 0.0
    %1680 = vmatpush1.msra.mxu0 0.0
    %1681 = vmatprep.mubr.f32.mxu0 0.0
    %v1682 = vand.u32 %v60, 4294901760
    %v1683 = vsub.f32 %v60, %v1682
    %v1684 = vand.u32 %v1683, 4294901760
    %1685 = vmatmul.mubr.f32.gmra.mrb[0].mxu0 %v1684
    %v1686 = vpop.f32.mrb[0].mxu0
    %v1687 = vadd.f32 %v1581, %v1686
    %v1688 = vpop.f32.mrb[0].mxu0
    %v1689 = vadd.f32 %v1583, %v1688
    %1690 = vdwg.mxu0
    %v1691 = vand.u32 %v64, 4294901760
    %v1692 = vsub.f32 %v64, %v1691
    %v1693 = vand.u32 %v1692, 4294901760
    %1694 = vmatprep.subr.mxu0 %v1693
    %v1695 = vand.u32 %v63, 4294901760
    %v1696 = vsub.f32 %v63, %v1695
    %v1697 = vand.u32 %v1696, 4294901760
    %1698 = vmatpush1.msra.mxu0 %v1697
    %v1699 = vand.u32 %v76, 4294901760
    %v1700 = vsub.f32 %v76, %v1699
    %v1701 = vand.u32 %v1700, 4294901760
    %1702 = vmatprep.subr.mxu0 %v1701
    %v1703 = vand.u32 %v75, 4294901760
    %v1704 = vsub.f32 %v75, %v1703
    %v1705 = vand.u32 %v1704, 4294901760
    %1706 = vmatpush1.msra.mxu0 %v1705
    %v1707 = vand.u32 %v88, 4294901760
    %v1708 = vsub.f32 %v88, %v1707
    %v1709 = vand.u32 %v1708, 4294901760
    %1710 = vmatprep.subr.mxu0 %v1709
    %v1711 = vand.u32 %v87, 4294901760
    %v1712 = vsub.f32 %v87, %v1711
    %v1713 = vand.u32 %v1712, 4294901760
    %1714 = vmatpush1.msra.mxu0 %v1713
    %v1715 = vand.u32 %v100, 4294901760
    %v1716 = vsub.f32 %v100, %v1715
    %v1717 = vand.u32 %v1716, 4294901760
    %1718 = vmatprep.subr.mxu0 %v1717
    %v1719 = vand.u32 %v99, 4294901760
    %v1720 = vsub.f32 %v99, %v1719
    %v1721 = vand.u32 %v1720, 4294901760
    %1722 = vmatpush1.msra.mxu0 %v1721
    %v1723 = vand.u32 %v112, 4294901760
    %v1724 = vsub.f32 %v112, %v1723
    %v1725 = vand.u32 %v1724, 4294901760
    %1726 = vmatprep.subr.mxu0 %v1725
    %v1727 = vand.u32 %v111, 4294901760
    %v1728 = vsub.f32 %v111, %v1727
    %v1729 = vand.u32 %v1728, 4294901760
    %1730 = vmatpush1.msra.mxu0 %v1729
    %v1731 = vand.u32 %v124, 4294901760
    %v1732 = vsub.f32 %v124, %v1731
    %v1733 = vand.u32 %v1732, 4294901760
    %1734 = vmatprep.subr.mxu0 %v1733
    %v1735 = vand.u32 %v123, 4294901760
    %v1736 = vsub.f32 %v123, %v1735
    %v1737 = vand.u32 %v1736, 4294901760
    %1738 = vmatpush1.msra.mxu0 %v1737
    %v1739 = vand.u32 %v136, 4294901760
    %v1740 = vsub.f32 %v136, %v1739
    %v1741 = vand.u32 %v1740, 4294901760
    %1742 = vmatprep.subr.mxu0 %v1741
    %v1743 = vand.u32 %v135, 4294901760
    %v1744 = vsub.f32 %v135, %v1743
    %v1745 = vand.u32 %v1744, 4294901760
    %1746 = vmatpush1.msra.mxu0 %v1745
    %v1747 = vand.u32 %v148, 4294901760
    %v1748 = vsub.f32 %v148, %v1747
    %v1749 = vand.u32 %v1748, 4294901760
    %1750 = vmatprep.subr.mxu0 %v1749
    %v1751 = vand.u32 %v147, 4294901760
    %v1752 = vsub.f32 %v147, %v1751
    %v1753 = vand.u32 %v1752, 4294901760
    %1754 = vmatpush1.msra.mxu0 %v1753
    %v1755 = vand.u32 %v160, 4294901760
    %v1756 = vsub.f32 %v160, %v1755
    %v1757 = vand.u32 %v1756, 4294901760
    %1758 = vmatprep.subr.mxu0 %v1757
    %v1759 = vand.u32 %v159, 4294901760
    %v1760 = vsub.f32 %v159, %v1759
    %v1761 = vand.u32 %v1760, 4294901760
    %1762 = vmatpush1.msra.mxu0 %v1761
    %v1763 = vand.u32 %v172, 4294901760
    %v1764 = vsub.f32 %v172, %v1763
    %v1765 = vand.u32 %v1764, 4294901760
    %1766 = vmatprep.subr.mxu0 %v1765
    %v1767 = vand.u32 %v171, 4294901760
    %v1768 = vsub.f32 %v171, %v1767
    %v1769 = vand.u32 %v1768, 4294901760
    %1770 = vmatpush1.msra.mxu0 %v1769
    %v1771 = vand.u32 %v184, 4294901760
    %v1772 = vsub.f32 %v184, %v1771
    %v1773 = vand.u32 %v1772, 4294901760
    %1774 = vmatprep.subr.mxu0 %v1773
    %v1775 = vand.u32 %v183, 4294901760
    %v1776 = vsub.f32 %v183, %v1775
    %v1777 = vand.u32 %v1776, 4294901760
    %1778 = vmatpush1.msra.mxu0 %v1777
    %v1779 = vand.u32 %v196, 4294901760
    %v1780 = vsub.f32 %v196, %v1779
    %v1781 = vand.u32 %v1780, 4294901760
    %1782 = vmatprep.subr.mxu0 %v1781
    %v1783 = vand.u32 %v195, 4294901760
    %v1784 = vsub.f32 %v195, %v1783
    %v1785 = vand.u32 %v1784, 4294901760
    %1786 = vmatpush1.msra.mxu0 %v1785
    %v1787 = vand.u32 %v208, 4294901760
    %v1788 = vsub.f32 %v208, %v1787
    %v1789 = vand.u32 %v1788, 4294901760
    %1790 = vmatprep.subr.mxu0 %v1789
    %v1791 = vand.u32 %v207, 4294901760
    %v1792 = vsub.f32 %v207, %v1791
    %v1793 = vand.u32 %v1792, 4294901760
    %1794 = vmatpush1.msra.mxu0 %v1793
    %v1795 = vand.u32 %v220, 4294901760
    %v1796 = vsub.f32 %v220, %v1795
    %v1797 = vand.u32 %v1796, 4294901760
    %1798 = vmatprep.subr.mxu0 %v1797
    %v1799 = vand.u32 %v219, 4294901760
    %v1800 = vsub.f32 %v219, %v1799
    %v1801 = vand.u32 %v1800, 4294901760
    %1802 = vmatpush1.msra.mxu0 %v1801
    %v1803 = vand.u32 %v232, 4294901760
    %v1804 = vsub.f32 %v232, %v1803
    %v1805 = vand.u32 %v1804, 4294901760
    %1806 = vmatprep.subr.mxu0 %v1805
    %v1807 = vand.u32 %v231, 4294901760
    %v1808 = vsub.f32 %v231, %v1807
    %v1809 = vand.u32 %v1808, 4294901760
    %1810 = vmatpush1.msra.mxu0 %v1809
    %v1811 = vand.u32 %v244, 4294901760
    %v1812 = vsub.f32 %v244, %v1811
    %v1813 = vand.u32 %v1812, 4294901760
    %1814 = vmatprep.subr.mxu0 %v1813
    %v1815 = vand.u32 %v243, 4294901760
    %v1816 = vsub.f32 %v243, %v1815
    %v1817 = vand.u32 %v1816, 4294901760
    %1818 = vmatpush1.msra.mxu0 %v1817
    %1819 = vmatprep.subr.mxu0 0.0
    %1820 = vmatpush1.msra.mxu0 0.0
    %1821 = vmatprep.subr.mxu0 0.0
    %1822 = vmatpush1.msra.mxu0 0.0
    %1823 = vmatprep.subr.mxu0 0.0
    %1824 = vmatpush1.msra.mxu0 0.0
    %1825 = vmatprep.subr.mxu0 0.0
    %1826 = vmatpush1.msra.mxu0 0.0
    %1827 = vmatprep.subr.mxu0 0.0
    %1828 = vmatpush1.msra.mxu0 0.0
    %1829 = vmatprep.subr.mxu0 0.0
    %1830 = vmatpush1.msra.mxu0 0.0
    %1831 = vmatprep.subr.mxu0 0.0
    %1832 = vmatpush1.msra.mxu0 0.0
    %1833 = vmatprep.subr.mxu0 0.0
    %1834 = vmatpush1.msra.mxu0 0.0
    %1835 = vmatprep.subr.mxu0 0.0
    %1836 = vmatpush1.msra.mxu0 0.0
    %1837 = vmatprep.subr.mxu0 0.0
    %1838 = vmatpush1.msra.mxu0 0.0
    %1839 = vmatprep.subr.mxu0 0.0
    %1840 = vmatpush1.msra.mxu0 0.0
    %1841 = vmatprep.subr.mxu0 0.0
    %1842 = vmatpush1.msra.mxu0 0.0
    %1843 = vmatprep.subr.mxu0 0.0
    %1844 = vmatpush1.msra.mxu0 0.0
    %1845 = vmatprep.subr.mxu0 0.0
    %1846 = vmatpush1.msra.mxu0 0.0
    %1847 = vmatprep.subr.mxu0 0.0
    %1848 = vmatpush1.msra.mxu0 0.0
    %1849 = vmatprep.subr.mxu0 0.0
    %1850 = vmatpush1.msra.mxu0 0.0
    %1851 = vmatprep.mubr.f32.mxu0 0.0
    %v1852 = vand.u32 %v60, 4294901760
    %1853 = vmatmul.mubr.f32.gmra.mrb[0].mxu0 %v1852
    %v1854 = vpop.f32.mrb[0].mxu0
    %v1855 = vadd.f32 %v1687, %v1854
    %v1856 = vpop.f32.mrb[0].mxu0
    %v1857 = vadd.f32 %v1689, %v1856
    %1858 = vdwg.mxu0
    %v1859 = vand.u32 %v64, 4294901760
    %1860 = vmatprep.subr.mxu0 %v1859
    %v1861 = vand.u32 %v63, 4294901760
    %1862 = vmatpush1.msra.mxu0 %v1861
    %v1863 = vand.u32 %v76, 4294901760
    %1864 = vmatprep.subr.mxu0 %v1863
    %v1865 = vand.u32 %v75, 4294901760
    %1866 = vmatpush1.msra.mxu0 %v1865
    %v1867 = vand.u32 %v88, 4294901760
    %1868 = vmatprep.subr.mxu0 %v1867
    %v1869 = vand.u32 %v87, 4294901760
    %1870 = vmatpush1.msra.mxu0 %v1869
    %v1871 = vand.u32 %v100, 4294901760
    %1872 = vmatprep.subr.mxu0 %v1871
    %v1873 = vand.u32 %v99, 4294901760
    %1874 = vmatpush1.msra.mxu0 %v1873
    %v1875 = vand.u32 %v112, 4294901760
    %1876 = vmatprep.subr.mxu0 %v1875
    %v1877 = vand.u32 %v111, 4294901760
    %1878 = vmatpush1.msra.mxu0 %v1877
    %v1879 = vand.u32 %v124, 4294901760
    %1880 = vmatprep.subr.mxu0 %v1879
    %v1881 = vand.u32 %v123, 4294901760
    %1882 = vmatpush1.msra.mxu0 %v1881
    %v1883 = vand.u32 %v136, 4294901760
    %1884 = vmatprep.subr.mxu0 %v1883
    %v1885 = vand.u32 %v135, 4294901760
    %1886 = vmatpush1.msra.mxu0 %v1885
    %v1887 = vand.u32 %v148, 4294901760
    %1888 = vmatprep.subr.mxu0 %v1887
    %v1889 = vand.u32 %v147, 4294901760
    %1890 = vmatpush1.msra.mxu0 %v1889
    %v1891 = vand.u32 %v160, 4294901760
    %1892 = vmatprep.subr.mxu0 %v1891
    %v1893 = vand.u32 %v159, 4294901760
    %1894 = vmatpush1.msra.mxu0 %v1893
    %v1895 = vand.u32 %v172, 4294901760
    %1896 = vmatprep.subr.mxu0 %v1895
    %v1897 = vand.u32 %v171, 4294901760
    %1898 = vmatpush1.msra.mxu0 %v1897
    %v1899 = vand.u32 %v184, 4294901760
    %1900 = vmatprep.subr.mxu0 %v1899
    %v1901 = vand.u32 %v183, 4294901760
    %1902 = vmatpush1.msra.mxu0 %v1901
    %v1903 = vand.u32 %v196, 4294901760
    %1904 = vmatprep.subr.mxu0 %v1903
    %v1905 = vand.u32 %v195, 4294901760
    %1906 = vmatpush1.msra.mxu0 %v1905
    %v1907 = vand.u32 %v208, 4294901760
    %1908 = vmatprep.subr.mxu0 %v1907
    %v1909 = vand.u32 %v207, 4294901760
    %1910 = vmatpush1.msra.mxu0 %v1909
    %v1911 = vand.u32 %v220, 4294901760
    %1912 = vmatprep.subr.mxu0 %v1911
    %v1913 = vand.u32 %v219, 4294901760
    %1914 = vmatpush1.msra.mxu0 %v1913
    %v1915 = vand.u32 %v232, 4294901760
    %1916 = vmatprep.subr.mxu0 %v1915
    %v1917 = vand.u32 %v231, 4294901760
    %1918 = vmatpush1.msra.mxu0 %v1917
    %v1919 = vand.u32 %v244, 4294901760
    %1920 = vmatprep.subr.mxu0 %v1919
    %v1921 = vand.u32 %v243, 4294901760
    %1922 = vmatpush1.msra.mxu0 %v1921
    %1923 = vmatprep.subr.mxu0 0.0
    %1924 = vmatpush1.msra.mxu0 0.0
    %1925 = vmatprep.subr.mxu0 0.0
    %1926 = vmatpush1.msra.mxu0 0.0
    %1927 = vmatprep.subr.mxu0 0.0
    %1928 = vmatpush1.msra.mxu0 0.0
    %1929 = vmatprep.subr.mxu0 0.0
    %1930 = vmatpush1.msra.mxu0 0.0
    %1931 = vmatprep.subr.mxu0 0.0
    %1932 = vmatpush1.msra.mxu0 0.0
    %1933 = vmatprep.subr.mxu0 0.0
    %1934 = vmatpush1.msra.mxu0 0.0
    %1935 = vmatprep.subr.mxu0 0.0
    %1936 = vmatpush1.msra.mxu0 0.0
    %1937 = vmatprep.subr.mxu0 0.0
    %1938 = vmatpush1.msra.mxu0 0.0
    %1939 = vmatprep.subr.mxu0 0.0
    %1940 = vmatpush1.msra.mxu0 0.0
    %1941 = vmatprep.subr.mxu0 0.0
    %1942 = vmatpush1.msra.mxu0 0.0
    %1943 = vmatprep.subr.mxu0 0.0
    %1944 = vmatpush1.msra.mxu0 0.0
    %1945 = vmatprep.subr.mxu0 0.0
    %1946 = vmatpush1.msra.mxu0 0.0
    %1947 = vmatprep.subr.mxu0 0.0
    %1948 = vmatpush1.msra.mxu0 0.0
    %1949 = vmatprep.subr.mxu0 0.0
    %1950 = vmatpush1.msra.mxu0 0.0
    %1951 = vmatprep.subr.mxu0 0.0
    %1952 = vmatpush1.msra.mxu0 0.0
    %1953 = vmatprep.subr.mxu0 0.0
    %1954 = vmatpush1.msra.mxu0 0.0
    %1955 = vmatprep.mubr.f32.mxu0 0.0
    %v1956 = vand.u32 %v60, 4294901760
    %1957 = vmatmul.mubr.f32.gmra.mrb[0].mxu0 %v1956
    %v1958 = vpop.f32.mrb[0].mxu0
    %v1959 = vadd.f32 %v1855, %v1958
    %v1960 = vpop.f32.mrb[0].mxu0
    %v1961 = vadd.f32 %v1857, %v1960
    %1962 = vdwg.mxu0
    %v1963 = vand.u32 %v66, 4294901760
    %1964 = vmatprep.subr.mxu0 %v1963
    %v1965 = vand.u32 %v65, 4294901760
    %1966 = vmatpush1.msra.mxu0 %v1965
    %v1967 = vand.u32 %v78, 4294901760
    %1968 = vmatprep.subr.mxu0 %v1967
    %v1969 = vand.u32 %v77, 4294901760
    %1970 = vmatpush1.msra.mxu0 %v1969
    %v1971 = vand.u32 %v90, 4294901760
    %1972 = vmatprep.subr.mxu0 %v1971
    %v1973 = vand.u32 %v89, 4294901760
    %1974 = vmatpush1.msra.mxu0 %v1973
    %v1975 = vand.u32 %v102, 4294901760
    %1976 = vmatprep.subr.mxu0 %v1975
    %v1977 = vand.u32 %v101, 4294901760
    %1978 = vmatpush1.msra.mxu0 %v1977
    %v1979 = vand.u32 %v114, 4294901760
    %1980 = vmatprep.subr.mxu0 %v1979
    %v1981 = vand.u32 %v113, 4294901760
    %1982 = vmatpush1.msra.mxu0 %v1981
    %v1983 = vand.u32 %v126, 4294901760
    %1984 = vmatprep.subr.mxu0 %v1983
    %v1985 = vand.u32 %v125, 4294901760
    %1986 = vmatpush1.msra.mxu0 %v1985
    %v1987 = vand.u32 %v138, 4294901760
    %1988 = vmatprep.subr.mxu0 %v1987
    %v1989 = vand.u32 %v137, 4294901760
    %1990 = vmatpush1.msra.mxu0 %v1989
    %v1991 = vand.u32 %v150, 4294901760
    %1992 = vmatprep.subr.mxu0 %v1991
    %v1993 = vand.u32 %v149, 4294901760
    %1994 = vmatpush1.msra.mxu0 %v1993
    %v1995 = vand.u32 %v162, 4294901760
    %1996 = vmatprep.subr.mxu0 %v1995
    %v1997 = vand.u32 %v161, 4294901760
    %1998 = vmatpush1.msra.mxu0 %v1997
    %v1999 = vand.u32 %v174, 4294901760
    %2000 = vmatprep.subr.mxu0 %v1999
    %v2001 = vand.u32 %v173, 4294901760
    %2002 = vmatpush1.msra.mxu0 %v2001
    %v2003 = vand.u32 %v186, 4294901760
    %2004 = vmatprep.subr.mxu0 %v2003
    %v2005 = vand.u32 %v185, 4294901760
    %2006 = vmatpush1.msra.mxu0 %v2005
    %v2007 = vand.u32 %v198, 4294901760
    %2008 = vmatprep.subr.mxu0 %v2007
    %v2009 = vand.u32 %v197, 4294901760
    %2010 = vmatpush1.msra.mxu0 %v2009
    %v2011 = vand.u32 %v210, 4294901760
    %2012 = vmatprep.subr.mxu0 %v2011
    %v2013 = vand.u32 %v209, 4294901760
    %2014 = vmatpush1.msra.mxu0 %v2013
    %v2015 = vand.u32 %v222, 4294901760
    %2016 = vmatprep.subr.mxu0 %v2015
    %v2017 = vand.u32 %v221, 4294901760
    %2018 = vmatpush1.msra.mxu0 %v2017
    %v2019 = vand.u32 %v234, 4294901760
    %2020 = vmatprep.subr.mxu0 %v2019
    %v2021 = vand.u32 %v233, 4294901760
    %2022 = vmatpush1.msra.mxu0 %v2021
    %v2023 = vand.u32 %v246, 4294901760
    %2024 = vmatprep.subr.mxu0 %v2023
    %v2025 = vand.u32 %v245, 4294901760
    %2026 = vmatpush1.msra.mxu0 %v2025
    %2027 = vmatprep.subr.mxu0 0.0
    %2028 = vmatpush1.msra.mxu0 0.0
    %2029 = vmatprep.subr.mxu0 0.0
    %2030 = vmatpush1.msra.mxu0 0.0
    %2031 = vmatprep.subr.mxu0 0.0
    %2032 = vmatpush1.msra.mxu0 0.0
    %2033 = vmatprep.subr.mxu0 0.0
    %2034 = vmatpush1.msra.mxu0 0.0
    %2035 = vmatprep.subr.mxu0 0.0
    %2036 = vmatpush1.msra.mxu0 0.0
    %2037 = vmatprep.subr.mxu0 0.0
    %2038 = vmatpush1.msra.mxu0 0.0
    %2039 = vmatprep.subr.mxu0 0.0
    %2040 = vmatpush1.msra.mxu0 0.0
    %2041 = vmatprep.subr.mxu0 0.0
    %2042 = vmatpush1.msra.mxu0 0.0
    %2043 = vmatprep.subr.mxu0 0.0
    %2044 = vmatpush1.msra.mxu0 0.0
    %2045 = vmatprep.subr.mxu0 0.0
    %2046 = vmatpush1.msra.mxu0 0.0
    %2047 = vmatprep.subr.mxu0 0.0
    %2048 = vmatpush1.msra.mxu0 0.0
    %2049 = vmatprep.subr.mxu0 0.0
    %2050 = vmatpush1.msra.mxu0 0.0
    %2051 = vmatprep.subr.mxu0 0.0
    %2052 = vmatpush1.msra.mxu0 0.0
    %2053 = vmatprep.subr.mxu0 0.0
    %2054 = vmatpush1.msra.mxu0 0.0
    %2055 = vmatprep.subr.mxu0 0.0
    %2056 = vmatpush1.msra.mxu0 0.0
    %2057 = vmatprep.subr.mxu0 0.0
    %2058 = vmatpush1.msra.mxu0 0.0
    %2059 = vmatprep.mubr.f32.mxu0 0.0
    %v2060 = vand.u32 %v60, 4294901760
    %v2061 = vsub.f32 %v60, %v2060
    %v2062 = vand.u32 %v2061, 4294901760
    %v2063 = vsub.f32 %v2061, %v2062
    %v2064 = vand.u32 %v2063, 4294901760
    %2065 = vmatmul.mubr.f32.gmra.mrb[0].mxu0 %v2064
    %v2066 = vpop.f32.mrb[0].mxu0
    %v2067 = vadd.f32 0.0, %v2066
    %v2068 = vpop.f32.mrb[0].mxu0
    %v2069 = vadd.f32 0.0, %v2068
    %2070 = vdwg.mxu0
    %v2071 = vand.u32 %v66, 4294901760
    %v2072 = vsub.f32 %v66, %v2071
    %v2073 = vand.u32 %v2072, 4294901760
    %v2074 = vsub.f32 %v2072, %v2073
    %v2075 = vand.u32 %v2074, 4294901760
    %2076 = vmatprep.subr.mxu0 %v2075
    %v2077 = vand.u32 %v65, 4294901760
    %v2078 = vsub.f32 %v65, %v2077
    %v2079 = vand.u32 %v2078, 4294901760
    %v2080 = vsub.f32 %v2078, %v2079
    %v2081 = vand.u32 %v2080, 4294901760
    %2082 = vmatpush1.msra.mxu0 %v2081
    %v2083 = vand.u32 %v78, 4294901760
    %v2084 = vsub.f32 %v78, %v2083
    %v2085 = vand.u32 %v2084, 4294901760
    %v2086 = vsub.f32 %v2084, %v2085
    %v2087 = vand.u32 %v2086, 4294901760
    %2088 = vmatprep.subr.mxu0 %v2087
    %v2089 = vand.u32 %v77, 4294901760
    %v2090 = vsub.f32 %v77, %v2089
    %v2091 = vand.u32 %v2090, 4294901760
    %v2092 = vsub.f32 %v2090, %v2091
    %v2093 = vand.u32 %v2092, 4294901760
    %2094 = vmatpush1.msra.mxu0 %v2093
    %v2095 = vand.u32 %v90, 4294901760
    %v2096 = vsub.f32 %v90, %v2095
    %v2097 = vand.u32 %v2096, 4294901760
    %v2098 = vsub.f32 %v2096, %v2097
    %v2099 = vand.u32 %v2098, 4294901760
    %2100 = vmatprep.subr.mxu0 %v2099
    %v2101 = vand.u32 %v89, 4294901760
    %v2102 = vsub.f32 %v89, %v2101
    %v2103 = vand.u32 %v2102, 4294901760
    %v2104 = vsub.f32 %v2102, %v2103
    %v2105 = vand.u32 %v2104, 4294901760
    %2106 = vmatpush1.msra.mxu0 %v2105
    %v2107 = vand.u32 %v102, 4294901760
    %v2108 = vsub.f32 %v102, %v2107
    %v2109 = vand.u32 %v2108, 4294901760
    %v2110 = vsub.f32 %v2108, %v2109
    %v2111 = vand.u32 %v2110, 4294901760
    %2112 = vmatprep.subr.mxu0 %v2111
    %v2113 = vand.u32 %v101, 4294901760
    %v2114 = vsub.f32 %v101, %v2113
    %v2115 = vand.u32 %v2114, 4294901760
    %v2116 = vsub.f32 %v2114, %v2115
    %v2117 = vand.u32 %v2116, 4294901760
    %2118 = vmatpush1.msra.mxu0 %v2117
    %v2119 = vand.u32 %v114, 4294901760
    %v2120 = vsub.f32 %v114, %v2119
    %v2121 = vand.u32 %v2120, 4294901760
    %v2122 = vsub.f32 %v2120, %v2121
    %v2123 = vand.u32 %v2122, 4294901760
    %2124 = vmatprep.subr.mxu0 %v2123
    %v2125 = vand.u32 %v113, 4294901760
    %v2126 = vsub.f32 %v113, %v2125
    %v2127 = vand.u32 %v2126, 4294901760
    %v2128 = vsub.f32 %v2126, %v2127
    %v2129 = vand.u32 %v2128, 4294901760
    %2130 = vmatpush1.msra.mxu0 %v2129
    %v2131 = vand.u32 %v126, 4294901760
    %v2132 = vsub.f32 %v126, %v2131
    %v2133 = vand.u32 %v2132, 4294901760
    %v2134 = vsub.f32 %v2132, %v2133
    %v2135 = vand.u32 %v2134, 4294901760
    %2136 = vmatprep.subr.mxu0 %v2135
    %v2137 = vand.u32 %v125, 4294901760
    %v2138 = vsub.f32 %v125, %v2137
    %v2139 = vand.u32 %v2138, 4294901760
    %v2140 = vsub.f32 %v2138, %v2139
    %v2141 = vand.u32 %v2140, 4294901760
    %2142 = vmatpush1.msra.mxu0 %v2141
    %v2143 = vand.u32 %v138, 4294901760
    %v2144 = vsub.f32 %v138, %v2143
    %v2145 = vand.u32 %v2144, 4294901760
    %v2146 = vsub.f32 %v2144, %v2145
    %v2147 = vand.u32 %v2146, 4294901760
    %2148 = vmatprep.subr.mxu0 %v2147
    %v2149 = vand.u32 %v137, 4294901760
    %v2150 = vsub.f32 %v137, %v2149
    %v2151 = vand.u32 %v2150, 4294901760
    %v2152 = vsub.f32 %v2150, %v2151
    %v2153 = vand.u32 %v2152, 4294901760
    %2154 = vmatpush1.msra.mxu0 %v2153
    %v2155 = vand.u32 %v150, 4294901760
    %v2156 = vsub.f32 %v150, %v2155
    %v2157 = vand.u32 %v2156, 4294901760
    %v2158 = vsub.f32 %v2156, %v2157
    %v2159 = vand.u32 %v2158, 4294901760
    %2160 = vmatprep.subr.mxu0 %v2159
    %v2161 = vand.u32 %v149, 4294901760
    %v2162 = vsub.f32 %v149, %v2161
    %v2163 = vand.u32 %v2162, 4294901760
    %v2164 = vsub.f32 %v2162, %v2163
    %v2165 = vand.u32 %v2164, 4294901760
    %2166 = vmatpush1.msra.mxu0 %v2165
    %v2167 = vand.u32 %v162, 4294901760
    %v2168 = vsub.f32 %v162, %v2167
    %v2169 = vand.u32 %v2168, 4294901760
    %v2170 = vsub.f32 %v2168, %v2169
    %v2171 = vand.u32 %v2170, 4294901760
    %2172 = vmatprep.subr.mxu0 %v2171
    %v2173 = vand.u32 %v161, 4294901760
    %v2174 = vsub.f32 %v161, %v2173
    %v2175 = vand.u32 %v2174, 4294901760
    %v2176 = vsub.f32 %v2174, %v2175
    %v2177 = vand.u32 %v2176, 4294901760
    %2178 = vmatpush1.msra.mxu0 %v2177
    %v2179 = vand.u32 %v174, 4294901760
    %v2180 = vsub.f32 %v174, %v2179
    %v2181 = vand.u32 %v2180, 4294901760
    %v2182 = vsub.f32 %v2180, %v2181
    %v2183 = vand.u32 %v2182, 4294901760
    %2184 = vmatprep.subr.mxu0 %v2183
    %v2185 = vand.u32 %v173, 4294901760
    %v2186 = vsub.f32 %v173, %v2185
    %v2187 = vand.u32 %v2186, 4294901760
    %v2188 = vsub.f32 %v2186, %v2187
    %v2189 = vand.u32 %v2188, 4294901760
    %2190 = vmatpush1.msra.mxu0 %v2189
    %v2191 = vand.u32 %v186, 4294901760
    %v2192 = vsub.f32 %v186, %v2191
    %v2193 = vand.u32 %v2192, 4294901760
    %v2194 = vsub.f32 %v2192, %v2193
    %v2195 = vand.u32 %v2194, 4294901760
    %2196 = vmatprep.subr.mxu0 %v2195
    %v2197 = vand.u32 %v185, 4294901760
    %v2198 = vsub.f32 %v185, %v2197
    %v2199 = vand.u32 %v2198, 4294901760
    %v2200 = vsub.f32 %v2198, %v2199
    %v2201 = vand.u32 %v2200, 4294901760
    %2202 = vmatpush1.msra.mxu0 %v2201
    %v2203 = vand.u32 %v198, 4294901760
    %v2204 = vsub.f32 %v198, %v2203
    %v2205 = vand.u32 %v2204, 4294901760
    %v2206 = vsub.f32 %v2204, %v2205
    %v2207 = vand.u32 %v2206, 4294901760
    %2208 = vmatprep.subr.mxu0 %v2207
    %v2209 = vand.u32 %v197, 4294901760
    %v2210 = vsub.f32 %v197, %v2209
    %v2211 = vand.u32 %v2210, 4294901760
    %v2212 = vsub.f32 %v2210, %v2211
    %v2213 = vand.u32 %v2212, 4294901760
    %2214 = vmatpush1.msra.mxu0 %v2213
    %v2215 = vand.u32 %v210, 4294901760
    %v2216 = vsub.f32 %v210, %v2215
    %v2217 = vand.u32 %v2216, 4294901760
    %v2218 = vsub.f32 %v2216, %v2217
    %v2219 = vand.u32 %v2218, 4294901760
    %2220 = vmatprep.subr.mxu0 %v2219
    %v2221 = vand.u32 %v209, 4294901760
    %v2222 = vsub.f32 %v209, %v2221
    %v2223 = vand.u32 %v2222, 4294901760
    %v2224 = vsub.f32 %v2222, %v2223
    %v2225 = vand.u32 %v2224, 4294901760
    %2226 = vmatpush1.msra.mxu0 %v2225
    %v2227 = vand.u32 %v222, 4294901760
    %v2228 = vsub.f32 %v222, %v2227
    %v2229 = vand.u32 %v2228, 4294901760
    %v2230 = vsub.f32 %v2228, %v2229
    %v2231 = vand.u32 %v2230, 4294901760
    %2232 = vmatprep.subr.mxu0 %v2231
    %v2233 = vand.u32 %v221, 4294901760
    %v2234 = vsub.f32 %v221, %v2233
    %v2235 = vand.u32 %v2234, 4294901760
    %v2236 = vsub.f32 %v2234, %v2235
    %v2237 = vand.u32 %v2236, 4294901760
    %2238 = vmatpush1.msra.mxu0 %v2237
    %v2239 = vand.u32 %v234, 4294901760
    %v2240 = vsub.f32 %v234, %v2239
    %v2241 = vand.u32 %v2240, 4294901760
    %v2242 = vsub.f32 %v2240, %v2241
    %v2243 = vand.u32 %v2242, 4294901760
    %2244 = vmatprep.subr.mxu0 %v2243
    %v2245 = vand.u32 %v233, 4294901760
    %v2246 = vsub.f32 %v233, %v2245
    %v2247 = vand.u32 %v2246, 4294901760
    %v2248 = vsub.f32 %v2246, %v2247
    %v2249 = vand.u32 %v2248, 4294901760
    %2250 = vmatpush1.msra.mxu0 %v2249
    %v2251 = vand.u32 %v246, 4294901760
    %v2252 = vsub.f32 %v246, %v2251
    %v2253 = vand.u32 %v2252, 4294901760
    %v2254 = vsub.f32 %v2252, %v2253
    %v2255 = vand.u32 %v2254, 4294901760
    %2256 = vmatprep.subr.mxu0 %v2255
    %v2257 = vand.u32 %v245, 4294901760
    %v2258 = vsub.f32 %v245, %v2257
    %v2259 = vand.u32 %v2258, 4294901760
    %v2260 = vsub.f32 %v2258, %v2259
    %v2261 = vand.u32 %v2260, 4294901760
    %2262 = vmatpush1.msra.mxu0 %v2261
    %2263 = vmatprep.subr.mxu0 0.0
    %2264 = vmatpush1.msra.mxu0 0.0
    %2265 = vmatprep.subr.mxu0 0.0
    %2266 = vmatpush1.msra.mxu0 0.0
    %2267 = vmatprep.subr.mxu0 0.0
    %2268 = vmatpush1.msra.mxu0 0.0
    %2269 = vmatprep.subr.mxu0 0.0
    %2270 = vmatpush1.msra.mxu0 0.0
    %2271 = vmatprep.subr.mxu0 0.0
    %2272 = vmatpush1.msra.mxu0 0.0
    %2273 = vmatprep.subr.mxu0 0.0
    %2274 = vmatpush1.msra.mxu0 0.0
    %2275 = vmatprep.subr.mxu0 0.0
    %2276 = vmatpush1.msra.mxu0 0.0
    %2277 = vmatprep.subr.mxu0 0.0
    %2278 = vmatpush1.msra.mxu0 0.0
    %2279 = vmatprep.subr.mxu0 0.0
    %2280 = vmatpush1.msra.mxu0 0.0
    %2281 = vmatprep.subr.mxu0 0.0
    %2282 = vmatpush1.msra.mxu0 0.0
    %2283 = vmatprep.subr.mxu0 0.0
    %2284 = vmatpush1.msra.mxu0 0.0
    %2285 = vmatprep.subr.mxu0 0.0
    %2286 = vmatpush1.msra.mxu0 0.0
    %2287 = vmatprep.subr.mxu0 0.0
    %2288 = vmatpush1.msra.mxu0 0.0
    %2289 = vmatprep.subr.mxu0 0.0
    %2290 = vmatpush1.msra.mxu0 0.0
    %2291 = vmatprep.subr.mxu0 0.0
    %2292 = vmatpush1.msra.mxu0 0.0
    %2293 = vmatprep.subr.mxu0 0.0
    %2294 = vmatpush1.msra.mxu0 0.0
    %2295 = vmatprep.mubr.f32.mxu0 0.0
    %v2296 = vand.u32 %v60, 4294901760
    %2297 = vmatmul.mubr.f32.gmra.mrb[0].mxu0 %v2296
    %v2298 = vpop.f32.mrb[0].mxu0
    %v2299 = vadd.f32 %v2067, %v2298
    %v2300 = vpop.f32.mrb[0].mxu0
    %v2301 = vadd.f32 %v2069, %v2300
    %2302 = vdwg.mxu0
    %v2303 = vand.u32 %v66, 4294901760
    %v2304 = vsub.f32 %v66, %v2303
    %2305 = vmatprep.subr.mxu0 %v2304
    %v2306 = vand.u32 %v65, 4294901760
    %v2307 = vsub.f32 %v65, %v2306
    %2308 = vmatpush1.msra.mxu0 %v2307
    %v2309 = vand.u32 %v78, 4294901760
    %v2310 = vsub.f32 %v78, %v2309
    %2311 = vmatprep.subr.mxu0 %v2310
    %v2312 = vand.u32 %v77, 4294901760
    %v2313 = vsub.f32 %v77, %v2312
    %2314 = vmatpush1.msra.mxu0 %v2313
    %v2315 = vand.u32 %v90, 4294901760
    %v2316 = vsub.f32 %v90, %v2315
    %2317 = vmatprep.subr.mxu0 %v2316
    %v2318 = vand.u32 %v89, 4294901760
    %v2319 = vsub.f32 %v89, %v2318
    %2320 = vmatpush1.msra.mxu0 %v2319
    %v2321 = vand.u32 %v102, 4294901760
    %v2322 = vsub.f32 %v102, %v2321
    %2323 = vmatprep.subr.mxu0 %v2322
    %v2324 = vand.u32 %v101, 4294901760
    %v2325 = vsub.f32 %v101, %v2324
    %2326 = vmatpush1.msra.mxu0 %v2325
    %v2327 = vand.u32 %v114, 4294901760
    %v2328 = vsub.f32 %v114, %v2327
    %2329 = vmatprep.subr.mxu0 %v2328
    %v2330 = vand.u32 %v113, 4294901760
    %v2331 = vsub.f32 %v113, %v2330
    %2332 = vmatpush1.msra.mxu0 %v2331
    %v2333 = vand.u32 %v126, 4294901760
    %v2334 = vsub.f32 %v126, %v2333
    %2335 = vmatprep.subr.mxu0 %v2334
    %v2336 = vand.u32 %v125, 4294901760
    %v2337 = vsub.f32 %v125, %v2336
    %2338 = vmatpush1.msra.mxu0 %v2337
    %v2339 = vand.u32 %v138, 4294901760
    %v2340 = vsub.f32 %v138, %v2339
    %2341 = vmatprep.subr.mxu0 %v2340
    %v2342 = vand.u32 %v137, 4294901760
    %v2343 = vsub.f32 %v137, %v2342
    %2344 = vmatpush1.msra.mxu0 %v2343
    %v2345 = vand.u32 %v150, 4294901760
    %v2346 = vsub.f32 %v150, %v2345
    %2347 = vmatprep.subr.mxu0 %v2346
    %v2348 = vand.u32 %v149, 4294901760
    %v2349 = vsub.f32 %v149, %v2348
    %2350 = vmatpush1.msra.mxu0 %v2349
    %v2351 = vand.u32 %v162, 4294901760
    %v2352 = vsub.f32 %v162, %v2351
    %2353 = vmatprep.subr.mxu0 %v2352
    %v2354 = vand.u32 %v161, 4294901760
    %v2355 = vsub.f32 %v161, %v2354
    %2356 = vmatpush1.msra.mxu0 %v2355
    %v2357 = vand.u32 %v174, 4294901760
    %v2358 = vsub.f32 %v174, %v2357
    %2359 = vmatprep.subr.mxu0 %v2358
    %v2360 = vand.u32 %v173, 4294901760
    %v2361 = vsub.f32 %v173, %v2360
    %2362 = vmatpush1.msra.mxu0 %v2361
    %v2363 = vand.u32 %v186, 4294901760
    %v2364 = vsub.f32 %v186, %v2363
    %2365 = vmatprep.subr.mxu0 %v2364
    %v2366 = vand.u32 %v185, 4294901760
    %v2367 = vsub.f32 %v185, %v2366
    %2368 = vmatpush1.msra.mxu0 %v2367
    %v2369 = vand.u32 %v198, 4294901760
    %v2370 = vsub.f32 %v198, %v2369
    %2371 = vmatprep.subr.mxu0 %v2370
    %v2372 = vand.u32 %v197, 4294901760
    %v2373 = vsub.f32 %v197, %v2372
    %2374 = vmatpush1.msra.mxu0 %v2373
    %v2375 = vand.u32 %v210, 4294901760
    %v2376 = vsub.f32 %v210, %v2375
    %2377 = vmatprep.subr.mxu0 %v2376
    %v2378 = vand.u32 %v209, 4294901760
    %v2379 = vsub.f32 %v209, %v2378
    %2380 = vmatpush1.msra.mxu0 %v2379
    %v2381 = vand.u32 %v222, 4294901760
    %v2382 = vsub.f32 %v222, %v2381
    %2383 = vmatprep.subr.mxu0 %v2382
    %v2384 = vand.u32 %v221, 4294901760
    %v2385 = vsub.f32 %v221, %v2384
    %2386 = vmatpush1.msra.mxu0 %v2385
    %v2387 = vand.u32 %v234, 4294901760
    %v2388 = vsub.f32 %v234, %v2387
    %2389 = vmatprep.subr.mxu0 %v2388
    %v2390 = vand.u32 %v233, 4294901760
    %v2391 = vsub.f32 %v233, %v2390
    %2392 = vmatpush1.msra.mxu0 %v2391
    %v2393 = vand.u32 %v246, 4294901760
    %v2394 = vsub.f32 %v246, %v2393
    %2395 = vmatprep.subr.mxu0 %v2394
    %v2396 = vand.u32 %v245, 4294901760
    %v2397 = vsub.f32 %v245, %v2396
    %2398 = vmatpush1.msra.mxu0 %v2397
    %2399 = vmatprep.subr.mxu0 0.0
    %2400 = vmatpush1.msra.mxu0 0.0
    %2401 = vmatprep.subr.mxu0 0.0
    %2402 = vmatpush1.msra.mxu0 0.0
    %2403 = vmatprep.subr.mxu0 0.0
    %2404 = vmatpush1.msra.mxu0 0.0
    %2405 = vmatprep.subr.mxu0 0.0
    %2406 = vmatpush1.msra.mxu0 0.0
    %2407 = vmatprep.subr.mxu0 0.0
    %2408 = vmatpush1.msra.mxu0 0.0
    %2409 = vmatprep.subr.mxu0 0.0
    %2410 = vmatpush1.msra.mxu0 0.0
    %2411 = vmatprep.subr.mxu0 0.0
    %2412 = vmatpush1.msra.mxu0 0.0
    %2413 = vmatprep.subr.mxu0 0.0
    %2414 = vmatpush1.msra.mxu0 0.0
    %2415 = vmatprep.subr.mxu0 0.0
    %2416 = vmatpush1.msra.mxu0 0.0
    %2417 = vmatprep.subr.mxu0 0.0
    %2418 = vmatpush1.msra.mxu0 0.0
    %2419 = vmatprep.subr.mxu0 0.0
    %2420 = vmatpush1.msra.mxu0 0.0
    %2421 = vmatprep.subr.mxu0 0.0
    %2422 = vmatpush1.msra.mxu0 0.0
    %2423 = vmatprep.subr.mxu0 0.0
    %2424 = vmatpush1.msra.mxu0 0.0
    %2425 = vmatprep.subr.mxu0 0.0
    %2426 = vmatpush1.msra.mxu0 0.0
    %2427 = vmatprep.subr.mxu0 0.0
    %2428 = vmatpush1.msra.mxu0 0.0
    %2429 = vmatprep.subr.mxu0 0.0
    %2430 = vmatpush1.msra.mxu0 0.0
    %2431 = vmatprep.mubr.f32.mxu0 0.0
    %v2432 = vand.u32 %v60, 4294901760
    %v2433 = vsub.f32 %v60, %v2432
    %2434 = vmatmul.mubr.f32.gmra.mrb[0].mxu0 %v2433
    %v2435 = vpop.f32.mrb[0].mxu0
    %v2436 = vadd.f32 %v2299, %v2435
    %v2437 = vpop.f32.mrb[0].mxu0
    %v2438 = vadd.f32 %v2301, %v2437
    %2439 = vdwg.mxu0
    %v2440 = vand.u32 %v66, 4294901760
    %2441 = vmatprep.subr.mxu0 %v2440
    %v2442 = vand.u32 %v65, 4294901760
    %2443 = vmatpush1.msra.mxu0 %v2442
    %v2444 = vand.u32 %v78, 4294901760
    %2445 = vmatprep.subr.mxu0 %v2444
    %v2446 = vand.u32 %v77, 4294901760
    %2447 = vmatpush1.msra.mxu0 %v2446
    %v2448 = vand.u32 %v90, 4294901760
    %2449 = vmatprep.subr.mxu0 %v2448
    %v2450 = vand.u32 %v89, 4294901760
    %2451 = vmatpush1.msra.mxu0 %v2450
    %v2452 = vand.u32 %v102, 4294901760
    %2453 = vmatprep.subr.mxu0 %v2452
    %v2454 = vand.u32 %v101, 4294901760
    %2455 = vmatpush1.msra.mxu0 %v2454
    %v2456 = vand.u32 %v114, 4294901760
    %2457 = vmatprep.subr.mxu0 %v2456
    %v2458 = vand.u32 %v113, 4294901760
    %2459 = vmatpush1.msra.mxu0 %v2458
    %v2460 = vand.u32 %v126, 4294901760
    %2461 = vmatprep.subr.mxu0 %v2460
    %v2462 = vand.u32 %v125, 4294901760
    %2463 = vmatpush1.msra.mxu0 %v2462
    %v2464 = vand.u32 %v138, 4294901760
    %2465 = vmatprep.subr.mxu0 %v2464
    %v2466 = vand.u32 %v137, 4294901760
    %2467 = vmatpush1.msra.mxu0 %v2466
    %v2468 = vand.u32 %v150, 4294901760
    %2469 = vmatprep.subr.mxu0 %v2468
    %v2470 = vand.u32 %v149, 4294901760
    %2471 = vmatpush1.msra.mxu0 %v2470
    %v2472 = vand.u32 %v162, 4294901760
    %2473 = vmatprep.subr.mxu0 %v2472
    %v2474 = vand.u32 %v161, 4294901760
    %2475 = vmatpush1.msra.mxu0 %v2474
    %v2476 = vand.u32 %v174, 4294901760
    %2477 = vmatprep.subr.mxu0 %v2476
    %v2478 = vand.u32 %v173, 4294901760
    %2479 = vmatpush1.msra.mxu0 %v2478
    %v2480 = vand.u32 %v186, 4294901760
    %2481 = vmatprep.subr.mxu0 %v2480
    %v2482 = vand.u32 %v185, 4294901760
    %2483 = vmatpush1.msra.mxu0 %v2482
    %v2484 = vand.u32 %v198, 4294901760
    %2485 = vmatprep.subr.mxu0 %v2484
    %v2486 = vand.u32 %v197, 4294901760
    %2487 = vmatpush1.msra.mxu0 %v2486
    %v2488 = vand.u32 %v210, 4294901760
    %2489 = vmatprep.subr.mxu0 %v2488
    %v2490 = vand.u32 %v209, 4294901760
    %2491 = vmatpush1.msra.mxu0 %v2490
    %v2492 = vand.u32 %v222, 4294901760
    %2493 = vmatprep.subr.mxu0 %v2492
    %v2494 = vand.u32 %v221, 4294901760
    %2495 = vmatpush1.msra.mxu0 %v2494
    %v2496 = vand.u32 %v234, 4294901760
    %2497 = vmatprep.subr.mxu0 %v2496
    %v2498 = vand.u32 %v233, 4294901760
    %2499 = vmatpush1.msra.mxu0 %v2498
    %v2500 = vand.u32 %v246, 4294901760
    %2501 = vmatprep.subr.mxu0 %v2500
    %v2502 = vand.u32 %v245, 4294901760
    %2503 = vmatpush1.msra.mxu0 %v2502
    %2504 = vmatprep.subr.mxu0 0.0
    %2505 = vmatpush1.msra.mxu0 0.0
    %2506 = vmatprep.subr.mxu0 0.0
    %2507 = vmatpush1.msra.mxu0 0.0
    %2508 = vmatprep.subr.mxu0 0.0
    %2509 = vmatpush1.msra.mxu0 0.0
    %2510 = vmatprep.subr.mxu0 0.0
    %2511 = vmatpush1.msra.mxu0 0.0
    %2512 = vmatprep.subr.mxu0 0.0
    %2513 = vmatpush1.msra.mxu0 0.0
    %2514 = vmatprep.subr.mxu0 0.0
    %2515 = vmatpush1.msra.mxu0 0.0
    %2516 = vmatprep.subr.mxu0 0.0
    %2517 = vmatpush1.msra.mxu0 0.0
    %2518 = vmatprep.subr.mxu0 0.0
    %2519 = vmatpush1.msra.mxu0 0.0
    %2520 = vmatprep.subr.mxu0 0.0
    %2521 = vmatpush1.msra.mxu0 0.0
    %2522 = vmatprep.subr.mxu0 0.0
    %2523 = vmatpush1.msra.mxu0 0.0
    %2524 = vmatprep.subr.mxu0 0.0
    %2525 = vmatpush1.msra.mxu0 0.0
    %2526 = vmatprep.subr.mxu0 0.0
    %2527 = vmatpush1.msra.mxu0 0.0
    %2528 = vmatprep.subr.mxu0 0.0
    %2529 = vmatpush1.msra.mxu0 0.0
    %2530 = vmatprep.subr.mxu0 0.0
    %2531 = vmatpush1.msra.mxu0 0.0
    %2532 = vmatprep.subr.mxu0 0.0
    %2533 = vmatpush1.msra.mxu0 0.0
    %2534 = vmatprep.subr.mxu0 0.0
    %2535 = vmatpush1.msra.mxu0 0.0
    %2536 = vmatprep.mubr.f32.mxu0 0.0
    %v2537 = vand.u32 %v60, 4294901760
    %v2538 = vsub.f32 %v60, %v2537
    %v2539 = vand.u32 %v2538, 4294901760
    %2540 = vmatmul.mubr.f32.gmra.mrb[0].mxu0 %v2539
    %v2541 = vpop.f32.mrb[0].mxu0
    %v2542 = vadd.f32 %v2436, %v2541
    %v2543 = vpop.f32.mrb[0].mxu0
    %v2544 = vadd.f32 %v2438, %v2543
    %2545 = vdwg.mxu0
    %v2546 = vand.u32 %v66, 4294901760
    %v2547 = vsub.f32 %v66, %v2546
    %v2548 = vand.u32 %v2547, 4294901760
    %2549 = vmatprep.subr.mxu0 %v2548
    %v2550 = vand.u32 %v65, 4294901760
    %v2551 = vsub.f32 %v65, %v2550
    %v2552 = vand.u32 %v2551, 4294901760
    %2553 = vmatpush1.msra.mxu0 %v2552
    %v2554 = vand.u32 %v78, 4294901760
    %v2555 = vsub.f32 %v78, %v2554
    %v2556 = vand.u32 %v2555, 4294901760
    %2557 = vmatprep.subr.mxu0 %v2556
    %v2558 = vand.u32 %v77, 4294901760
    %v2559 = vsub.f32 %v77, %v2558
    %v2560 = vand.u32 %v2559, 4294901760
    %2561 = vmatpush1.msra.mxu0 %v2560
    %v2562 = vand.u32 %v90, 4294901760
    %v2563 = vsub.f32 %v90, %v2562
    %v2564 = vand.u32 %v2563, 4294901760
    %2565 = vmatprep.subr.mxu0 %v2564
    %v2566 = vand.u32 %v89, 4294901760
    %v2567 = vsub.f32 %v89, %v2566
    %v2568 = vand.u32 %v2567, 4294901760
    %2569 = vmatpush1.msra.mxu0 %v2568
    %v2570 = vand.u32 %v102, 4294901760
    %v2571 = vsub.f32 %v102, %v2570
    %v2572 = vand.u32 %v2571, 4294901760
    %2573 = vmatprep.subr.mxu0 %v2572
    %v2574 = vand.u32 %v101, 4294901760
    %v2575 = vsub.f32 %v101, %v2574
    %v2576 = vand.u32 %v2575, 4294901760
    %2577 = vmatpush1.msra.mxu0 %v2576
    %v2578 = vand.u32 %v114, 4294901760
    %v2579 = vsub.f32 %v114, %v2578
    %v2580 = vand.u32 %v2579, 4294901760
    %2581 = vmatprep.subr.mxu0 %v2580
    %v2582 = vand.u32 %v113, 4294901760
    %v2583 = vsub.f32 %v113, %v2582
    %v2584 = vand.u32 %v2583, 4294901760
    %2585 = vmatpush1.msra.mxu0 %v2584
    %v2586 = vand.u32 %v126, 4294901760
    %v2587 = vsub.f32 %v126, %v2586
    %v2588 = vand.u32 %v2587, 4294901760
    %2589 = vmatprep.subr.mxu0 %v2588
    %v2590 = vand.u32 %v125, 4294901760
    %v2591 = vsub.f32 %v125, %v2590
    %v2592 = vand.u32 %v2591, 4294901760
    %2593 = vmatpush1.msra.mxu0 %v2592
    %v2594 = vand.u32 %v138, 4294901760
    %v2595 = vsub.f32 %v138, %v2594
    %v2596 = vand.u32 %v2595, 4294901760
    %2597 = vmatprep.subr.mxu0 %v2596
    %v2598 = vand.u32 %v137, 4294901760
    %v2599 = vsub.f32 %v137, %v2598
    %v2600 = vand.u32 %v2599, 4294901760
    %2601 = vmatpush1.msra.mxu0 %v2600
    %v2602 = vand.u32 %v150, 4294901760
    %v2603 = vsub.f32 %v150, %v2602
    %v2604 = vand.u32 %v2603, 4294901760
    %2605 = vmatprep.subr.mxu0 %v2604
    %v2606 = vand.u32 %v149, 4294901760
    %v2607 = vsub.f32 %v149, %v2606
    %v2608 = vand.u32 %v2607, 4294901760
    %2609 = vmatpush1.msra.mxu0 %v2608
    %v2610 = vand.u32 %v162, 4294901760
    %v2611 = vsub.f32 %v162, %v2610
    %v2612 = vand.u32 %v2611, 4294901760
    %2613 = vmatprep.subr.mxu0 %v2612
    %v2614 = vand.u32 %v161, 4294901760
    %v2615 = vsub.f32 %v161, %v2614
    %v2616 = vand.u32 %v2615, 4294901760
    %2617 = vmatpush1.msra.mxu0 %v2616
    %v2618 = vand.u32 %v174, 4294901760
    %v2619 = vsub.f32 %v174, %v2618
    %v2620 = vand.u32 %v2619, 4294901760
    %2621 = vmatprep.subr.mxu0 %v2620
    %v2622 = vand.u32 %v173, 4294901760
    %v2623 = vsub.f32 %v173, %v2622
    %v2624 = vand.u32 %v2623, 4294901760
    %2625 = vmatpush1.msra.mxu0 %v2624
    %v2626 = vand.u32 %v186, 4294901760
    %v2627 = vsub.f32 %v186, %v2626
    %v2628 = vand.u32 %v2627, 4294901760
    %2629 = vmatprep.subr.mxu0 %v2628
    %v2630 = vand.u32 %v185, 4294901760
    %v2631 = vsub.f32 %v185, %v2630
    %v2632 = vand.u32 %v2631, 4294901760
    %2633 = vmatpush1.msra.mxu0 %v2632
    %v2634 = vand.u32 %v198, 4294901760
    %v2635 = vsub.f32 %v198, %v2634
    %v2636 = vand.u32 %v2635, 4294901760
    %2637 = vmatprep.subr.mxu0 %v2636
    %v2638 = vand.u32 %v197, 4294901760
    %v2639 = vsub.f32 %v197, %v2638
    %v2640 = vand.u32 %v2639, 4294901760
    %2641 = vmatpush1.msra.mxu0 %v2640
    %v2642 = vand.u32 %v210, 4294901760
    %v2643 = vsub.f32 %v210, %v2642
    %v2644 = vand.u32 %v2643, 4294901760
    %2645 = vmatprep.subr.mxu0 %v2644
    %v2646 = vand.u32 %v209, 4294901760
    %v2647 = vsub.f32 %v209, %v2646
    %v2648 = vand.u32 %v2647, 4294901760
    %2649 = vmatpush1.msra.mxu0 %v2648
    %v2650 = vand.u32 %v222, 4294901760
    %v2651 = vsub.f32 %v222, %v2650
    %v2652 = vand.u32 %v2651, 4294901760
    %2653 = vmatprep.subr.mxu0 %v2652
    %v2654 = vand.u32 %v221, 4294901760
    %v2655 = vsub.f32 %v221, %v2654
    %v2656 = vand.u32 %v2655, 4294901760
    %2657 = vmatpush1.msra.mxu0 %v2656
    %v2658 = vand.u32 %v234, 4294901760
    %v2659 = vsub.f32 %v234, %v2658
    %v2660 = vand.u32 %v2659, 4294901760
    %2661 = vmatprep.subr.mxu0 %v2660
    %v2662 = vand.u32 %v233, 4294901760
    %v2663 = vsub.f32 %v233, %v2662
    %v2664 = vand.u32 %v2663, 4294901760
    %2665 = vmatpush1.msra.mxu0 %v2664
    %v2666 = vand.u32 %v246, 4294901760
    %v2667 = vsub.f32 %v246, %v2666
    %v2668 = vand.u32 %v2667, 4294901760
    %2669 = vmatprep.subr.mxu0 %v2668
    %v2670 = vand.u32 %v245, 4294901760
    %v2671 = vsub.f32 %v245, %v2670
    %v2672 = vand.u32 %v2671, 4294901760
    %2673 = vmatpush1.msra.mxu0 %v2672
    %2674 = vmatprep.subr.mxu0 0.0
    %2675 = vmatpush1.msra.mxu0 0.0
    %2676 = vmatprep.subr.mxu0 0.0
    %2677 = vmatpush1.msra.mxu0 0.0
    %2678 = vmatprep.subr.mxu0 0.0
    %2679 = vmatpush1.msra.mxu0 0.0
    %2680 = vmatprep.subr.mxu0 0.0
    %2681 = vmatpush1.msra.mxu0 0.0
    %2682 = vmatprep.subr.mxu0 0.0
    %2683 = vmatpush1.msra.mxu0 0.0
    %2684 = vmatprep.subr.mxu0 0.0
    %2685 = vmatpush1.msra.mxu0 0.0
    %2686 = vmatprep.subr.mxu0 0.0
    %2687 = vmatpush1.msra.mxu0 0.0
    %2688 = vmatprep.subr.mxu0 0.0
    %2689 = vmatpush1.msra.mxu0 0.0
    %2690 = vmatprep.subr.mxu0 0.0
    %2691 = vmatpush1.msra.mxu0 0.0
    %2692 = vmatprep.subr.mxu0 0.0
    %2693 = vmatpush1.msra.mxu0 0.0
    %2694 = vmatprep.subr.mxu0 0.0
    %2695 = vmatpush1.msra.mxu0 0.0
    %2696 = vmatprep.subr.mxu0 0.0
    %2697 = vmatpush1.msra.mxu0 0.0
    %2698 = vmatprep.subr.mxu0 0.0
    %2699 = vmatpush1.msra.mxu0 0.0
    %2700 = vmatprep.subr.mxu0 0.0
    %2701 = vmatpush1.msra.mxu0 0.0
    %2702 = vmatprep.subr.mxu0 0.0
    %2703 = vmatpush1.msra.mxu0 0.0
    %2704 = vmatprep.subr.mxu0 0.0
    %2705 = vmatpush1.msra.mxu0 0.0
    %2706 = vmatprep.mubr.f32.mxu0 0.0
    %v2707 = vand.u32 %v60, 4294901760
    %2708 = vmatmul.mubr.f32.gmra.mrb[0].mxu0 %v2707
    %v2709 = vpop.f32.mrb[0].mxu0
    %v2710 = vadd.f32 %v2542, %v2709
    %v2711 = vpop.f32.mrb[0].mxu0
    %v2712 = vadd.f32 %v2544, %v2711
    %2713 = vdwg.mxu0
    %v2714 = vand.u32 %v66, 4294901760
    %2715 = vmatprep.subr.mxu0 %v2714
    %v2716 = vand.u32 %v65, 4294901760
    %2717 = vmatpush1.msra.mxu0 %v2716
    %v2718 = vand.u32 %v78, 4294901760
    %2719 = vmatprep.subr.mxu0 %v2718
    %v2720 = vand.u32 %v77, 4294901760
    %2721 = vmatpush1.msra.mxu0 %v2720
    %v2722 = vand.u32 %v90, 4294901760
    %2723 = vmatprep.subr.mxu0 %v2722
    %v2724 = vand.u32 %v89, 4294901760
    %2725 = vmatpush1.msra.mxu0 %v2724
    %v2726 = vand.u32 %v102, 4294901760
    %2727 = vmatprep.subr.mxu0 %v2726
    %v2728 = vand.u32 %v101, 4294901760
    %2729 = vmatpush1.msra.mxu0 %v2728
    %v2730 = vand.u32 %v114, 4294901760
    %2731 = vmatprep.subr.mxu0 %v2730
    %v2732 = vand.u32 %v113, 4294901760
    %2733 = vmatpush1.msra.mxu0 %v2732
    %v2734 = vand.u32 %v126, 4294901760
    %2735 = vmatprep.subr.mxu0 %v2734
    %v2736 = vand.u32 %v125, 4294901760
    %2737 = vmatpush1.msra.mxu0 %v2736
    %v2738 = vand.u32 %v138, 4294901760
    %2739 = vmatprep.subr.mxu0 %v2738
    %v2740 = vand.u32 %v137, 4294901760
    %2741 = vmatpush1.msra.mxu0 %v2740
    %v2742 = vand.u32 %v150, 4294901760
    %2743 = vmatprep.subr.mxu0 %v2742
    %v2744 = vand.u32 %v149, 4294901760
    %2745 = vmatpush1.msra.mxu0 %v2744
    %v2746 = vand.u32 %v162, 4294901760
    %2747 = vmatprep.subr.mxu0 %v2746
    %v2748 = vand.u32 %v161, 4294901760
    %2749 = vmatpush1.msra.mxu0 %v2748
    %v2750 = vand.u32 %v174, 4294901760
    %2751 = vmatprep.subr.mxu0 %v2750
    %v2752 = vand.u32 %v173, 4294901760
    %2753 = vmatpush1.msra.mxu0 %v2752
    %v2754 = vand.u32 %v186, 4294901760
    %2755 = vmatprep.subr.mxu0 %v2754
    %v2756 = vand.u32 %v185, 4294901760
    %2757 = vmatpush1.msra.mxu0 %v2756
    %v2758 = vand.u32 %v198, 4294901760
    %2759 = vmatprep.subr.mxu0 %v2758
    %v2760 = vand.u32 %v197, 4294901760
    %2761 = vmatpush1.msra.mxu0 %v2760
    %v2762 = vand.u32 %v210, 4294901760
    %2763 = vmatprep.subr.mxu0 %v2762
    %v2764 = vand.u32 %v209, 4294901760
    %2765 = vmatpush1.msra.mxu0 %v2764
    %v2766 = vand.u32 %v222, 4294901760
    %2767 = vmatprep.subr.mxu0 %v2766
    %v2768 = vand.u32 %v221, 4294901760
    %2769 = vmatpush1.msra.mxu0 %v2768
    %v2770 = vand.u32 %v234, 4294901760
    %2771 = vmatprep.subr.mxu0 %v2770
    %v2772 = vand.u32 %v233, 4294901760
    %2773 = vmatpush1.msra.mxu0 %v2772
    %v2774 = vand.u32 %v246, 4294901760
    %2775 = vmatprep.subr.mxu0 %v2774
    %v2776 = vand.u32 %v245, 4294901760
    %2777 = vmatpush1.msra.mxu0 %v2776
    %2778 = vmatprep.subr.mxu0 0.0
    %2779 = vmatpush1.msra.mxu0 0.0
    %2780 = vmatprep.subr.mxu0 0.0
    %2781 = vmatpush1.msra.mxu0 0.0
    %2782 = vmatprep.subr.mxu0 0.0
    %2783 = vmatpush1.msra.mxu0 0.0
    %2784 = vmatprep.subr.mxu0 0.0
    %2785 = vmatpush1.msra.mxu0 0.0
    %2786 = vmatprep.subr.mxu0 0.0
    %2787 = vmatpush1.msra.mxu0 0.0
    %2788 = vmatprep.subr.mxu0 0.0
    %2789 = vmatpush1.msra.mxu0 0.0
    %2790 = vmatprep.subr.mxu0 0.0
    %2791 = vmatpush1.msra.mxu0 0.0
    %2792 = vmatprep.subr.mxu0 0.0
    %2793 = vmatpush1.msra.mxu0 0.0
    %2794 = vmatprep.subr.mxu0 0.0
    %2795 = vmatpush1.msra.mxu0 0.0
    %2796 = vmatprep.subr.mxu0 0.0
    %2797 = vmatpush1.msra.mxu0 0.0
    %2798 = vmatprep.subr.mxu0 0.0
    %2799 = vmatpush1.msra.mxu0 0.0
    %2800 = vmatprep.subr.mxu0 0.0
    %2801 = vmatpush1.msra.mxu0 0.0
    %2802 = vmatprep.subr.mxu0 0.0
    %2803 = vmatpush1.msra.mxu0 0.0
    %2804 = vmatprep.subr.mxu0 0.0
    %2805 = vmatpush1.msra.mxu0 0.0
    %2806 = vmatprep.subr.mxu0 0.0
    %2807 = vmatpush1.msra.mxu0 0.0
    %2808 = vmatprep.subr.mxu0 0.0
    %2809 = vmatpush1.msra.mxu0 0.0
    %2810 = vmatprep.mubr.f32.mxu0 0.0
    %v2811 = vand.u32 %v60, 4294901760
    %2812 = vmatmul.mubr.f32.gmra.mrb[0].mxu0 %v2811
    %v2813 = vpop.f32.mrb[0].mxu0
    %v2814 = vadd.f32 %v2710, %v2813
    %v2815 = vpop.f32.mrb[0].mxu0
    %v2816 = vadd.f32 %v2712, %v2815
    %2817 = vdwg.mxu0
    %v2818 = vand.u32 %v68, 4294901760
    %2819 = vmatprep.subr.mxu0 %v2818
    %v2820 = vand.u32 %v67, 4294901760
    %2821 = vmatpush1.msra.mxu0 %v2820
    %v2822 = vand.u32 %v80, 4294901760
    %2823 = vmatprep.subr.mxu0 %v2822
    %v2824 = vand.u32 %v79, 4294901760
    %2825 = vmatpush1.msra.mxu0 %v2824
    %v2826 = vand.u32 %v92, 4294901760
    %2827 = vmatprep.subr.mxu0 %v2826
    %v2828 = vand.u32 %v91, 4294901760
    %2829 = vmatpush1.msra.mxu0 %v2828
    %v2830 = vand.u32 %v104, 4294901760
    %2831 = vmatprep.subr.mxu0 %v2830
    %v2832 = vand.u32 %v103, 4294901760
    %2833 = vmatpush1.msra.mxu0 %v2832
    %v2834 = vand.u32 %v116, 4294901760
    %2835 = vmatprep.subr.mxu0 %v2834
    %v2836 = vand.u32 %v115, 4294901760
    %2837 = vmatpush1.msra.mxu0 %v2836
    %v2838 = vand.u32 %v128, 4294901760
    %2839 = vmatprep.subr.mxu0 %v2838
    %v2840 = vand.u32 %v127, 4294901760
    %2841 = vmatpush1.msra.mxu0 %v2840
    %v2842 = vand.u32 %v140, 4294901760
    %2843 = vmatprep.subr.mxu0 %v2842
    %v2844 = vand.u32 %v139, 4294901760
    %2845 = vmatpush1.msra.mxu0 %v2844
    %v2846 = vand.u32 %v152, 4294901760
    %2847 = vmatprep.subr.mxu0 %v2846
    %v2848 = vand.u32 %v151, 4294901760
    %2849 = vmatpush1.msra.mxu0 %v2848
    %v2850 = vand.u32 %v164, 4294901760
    %2851 = vmatprep.subr.mxu0 %v2850
    %v2852 = vand.u32 %v163, 4294901760
    %2853 = vmatpush1.msra.mxu0 %v2852
    %v2854 = vand.u32 %v176, 4294901760
    %2855 = vmatprep.subr.mxu0 %v2854
    %v2856 = vand.u32 %v175, 4294901760
    %2857 = vmatpush1.msra.mxu0 %v2856
    %v2858 = vand.u32 %v188, 4294901760
    %2859 = vmatprep.subr.mxu0 %v2858
    %v2860 = vand.u32 %v187, 4294901760
    %2861 = vmatpush1.msra.mxu0 %v2860
    %v2862 = vand.u32 %v200, 4294901760
    %2863 = vmatprep.subr.mxu0 %v2862
    %v2864 = vand.u32 %v199, 4294901760
    %2865 = vmatpush1.msra.mxu0 %v2864
    %v2866 = vand.u32 %v212, 4294901760
    %2867 = vmatprep.subr.mxu0 %v2866
    %v2868 = vand.u32 %v211, 4294901760
    %2869 = vmatpush1.msra.mxu0 %v2868
    %v2870 = vand.u32 %v224, 4294901760
    %2871 = vmatprep.subr.mxu0 %v2870
    %v2872 = vand.u32 %v223, 4294901760
    %2873 = vmatpush1.msra.mxu0 %v2872
    %v2874 = vand.u32 %v236, 4294901760
    %2875 = vmatprep.subr.mxu0 %v2874
    %v2876 = vand.u32 %v235, 4294901760
    %2877 = vmatpush1.msra.mxu0 %v2876
    %v2878 = vand.u32 %v248, 4294901760
    %2879 = vmatprep.subr.mxu0 %v2878
    %v2880 = vand.u32 %v247, 4294901760
    %2881 = vmatpush1.msra.mxu0 %v2880
    %2882 = vmatprep.subr.mxu0 0.0
    %2883 = vmatpush1.msra.mxu0 0.0
    %2884 = vmatprep.subr.mxu0 0.0
    %2885 = vmatpush1.msra.mxu0 0.0
    %2886 = vmatprep.subr.mxu0 0.0
    %2887 = vmatpush1.msra.mxu0 0.0
    %2888 = vmatprep.subr.mxu0 0.0
    %2889 = vmatpush1.msra.mxu0 0.0
    %2890 = vmatprep.subr.mxu0 0.0
    %2891 = vmatpush1.msra.mxu0 0.0
    %2892 = vmatprep.subr.mxu0 0.0
    %2893 = vmatpush1.msra.mxu0 0.0
    %2894 = vmatprep.subr.mxu0 0.0
    %2895 = vmatpush1.msra.mxu0 0.0
    %2896 = vmatprep.subr.mxu0 0.0
    %2897 = vmatpush1.msra.mxu0 0.0
    %2898 = vmatprep.subr.mxu0 0.0
    %2899 = vmatpush1.msra.mxu0 0.0
    %2900 = vmatprep.subr.mxu0 0.0
    %2901 = vmatpush1.msra.mxu0 0.0
    %2902 = vmatprep.subr.mxu0 0.0
    %2903 = vmatpush1.msra.mxu0 0.0
    %2904 = vmatprep.subr.mxu0 0.0
    %2905 = vmatpush1.msra.mxu0 0.0
    %2906 = vmatprep.subr.mxu0 0.0
    %2907 = vmatpush1.msra.mxu0 0.0
    %2908 = vmatprep.subr.mxu0 0.0
    %2909 = vmatpush1.msra.mxu0 0.0
    %2910 = vmatprep.subr.mxu0 0.0
    %2911 = vmatpush1.msra.mxu0 0.0
    %2912 = vmatprep.subr.mxu0 0.0
    %2913 = vmatpush1.msra.mxu0 0.0
    %2914 = vmatprep.mubr.f32.mxu0 0.0
    %v2915 = vand.u32 %v60, 4294901760
    %v2916 = vsub.f32 %v60, %v2915
    %v2917 = vand.u32 %v2916, 4294901760
    %v2918 = vsub.f32 %v2916, %v2917
    %v2919 = vand.u32 %v2918, 4294901760
    %2920 = vmatmul.mubr.f32.gmra.mrb[0].mxu0 %v2919
    %v2921 = vpop.f32.mrb[0].mxu0
    %v2922 = vadd.f32 0.0, %v2921
    %v2923 = vpop.f32.mrb[0].mxu0
    %v2924 = vadd.f32 0.0, %v2923
    %2925 = vdwg.mxu0
    %v2926 = vand.u32 %v68, 4294901760
    %v2927 = vsub.f32 %v68, %v2926
    %v2928 = vand.u32 %v2927, 4294901760
    %v2929 = vsub.f32 %v2927, %v2928
    %v2930 = vand.u32 %v2929, 4294901760
    %2931 = vmatprep.subr.mxu0 %v2930
    %v2932 = vand.u32 %v67, 4294901760
    %v2933 = vsub.f32 %v67, %v2932
    %v2934 = vand.u32 %v2933, 4294901760
    %v2935 = vsub.f32 %v2933, %v2934
    %v2936 = vand.u32 %v2935, 4294901760
    %2937 = vmatpush1.msra.mxu0 %v2936
    %v2938 = vand.u32 %v80, 4294901760
    %v2939 = vsub.f32 %v80, %v2938
    %v2940 = vand.u32 %v2939, 4294901760
    %v2941 = vsub.f32 %v2939, %v2940
    %v2942 = vand.u32 %v2941, 4294901760
    %2943 = vmatprep.subr.mxu0 %v2942
    %v2944 = vand.u32 %v79, 4294901760
    %v2945 = vsub.f32 %v79, %v2944
    %v2946 = vand.u32 %v2945, 4294901760
    %v2947 = vsub.f32 %v2945, %v2946
    %v2948 = vand.u32 %v2947, 4294901760
    %2949 = vmatpush1.msra.mxu0 %v2948
    %v2950 = vand.u32 %v92, 4294901760
    %v2951 = vsub.f32 %v92, %v2950
    %v2952 = vand.u32 %v2951, 4294901760
    %v2953 = vsub.f32 %v2951, %v2952
    %v2954 = vand.u32 %v2953, 4294901760
    %2955 = vmatprep.subr.mxu0 %v2954
    %v2956 = vand.u32 %v91, 4294901760
    %v2957 = vsub.f32 %v91, %v2956
    %v2958 = vand.u32 %v2957, 4294901760
    %v2959 = vsub.f32 %v2957, %v2958
    %v2960 = vand.u32 %v2959, 4294901760
    %2961 = vmatpush1.msra.mxu0 %v2960
    %v2962 = vand.u32 %v104, 4294901760
    %v2963 = vsub.f32 %v104, %v2962
    %v2964 = vand.u32 %v2963, 4294901760
    %v2965 = vsub.f32 %v2963, %v2964
    %v2966 = vand.u32 %v2965, 4294901760
    %2967 = vmatprep.subr.mxu0 %v2966
    %v2968 = vand.u32 %v103, 4294901760
    %v2969 = vsub.f32 %v103, %v2968
    %v2970 = vand.u32 %v2969, 4294901760
    %v2971 = vsub.f32 %v2969, %v2970
    %v2972 = vand.u32 %v2971, 4294901760
    %2973 = vmatpush1.msra.mxu0 %v2972
    %v2974 = vand.u32 %v116, 4294901760
    %v2975 = vsub.f32 %v116, %v2974
    %v2976 = vand.u32 %v2975, 4294901760
    %v2977 = vsub.f32 %v2975, %v2976
    %v2978 = vand.u32 %v2977, 4294901760
    %2979 = vmatprep.subr.mxu0 %v2978
    %v2980 = vand.u32 %v115, 4294901760
    %v2981 = vsub.f32 %v115, %v2980
    %v2982 = vand.u32 %v2981, 4294901760
    %v2983 = vsub.f32 %v2981, %v2982
    %v2984 = vand.u32 %v2983, 4294901760
    %2985 = vmatpush1.msra.mxu0 %v2984
    %v2986 = vand.u32 %v128, 4294901760
    %v2987 = vsub.f32 %v128, %v2986
    %v2988 = vand.u32 %v2987, 4294901760
    %v2989 = vsub.f32 %v2987, %v2988
    %v2990 = vand.u32 %v2989, 4294901760
    %2991 = vmatprep.subr.mxu0 %v2990
    %v2992 = vand.u32 %v127, 4294901760
    %v2993 = vsub.f32 %v127, %v2992
    %v2994 = vand.u32 %v2993, 4294901760
    %v2995 = vsub.f32 %v2993, %v2994
    %v2996 = vand.u32 %v2995, 4294901760
    %2997 = vmatpush1.msra.mxu0 %v2996
    %v2998 = vand.u32 %v140, 4294901760
    %v2999 = vsub.f32 %v140, %v2998
    %v3000 = vand.u32 %v2999, 4294901760
    %v3001 = vsub.f32 %v2999, %v3000
    %v3002 = vand.u32 %v3001, 4294901760
    %3003 = vmatprep.subr.mxu0 %v3002
    %v3004 = vand.u32 %v139, 4294901760
    %v3005 = vsub.f32 %v139, %v3004
    %v3006 = vand.u32 %v3005, 4294901760
    %v3007 = vsub.f32 %v3005, %v3006
    %v3008 = vand.u32 %v3007, 4294901760
    %3009 = vmatpush1.msra.mxu0 %v3008
    %v3010 = vand.u32 %v152, 4294901760
    %v3011 = vsub.f32 %v152, %v3010
    %v3012 = vand.u32 %v3011, 4294901760
    %v3013 = vsub.f32 %v3011, %v3012
    %v3014 = vand.u32 %v3013, 4294901760
    %3015 = vmatprep.subr.mxu0 %v3014
    %v3016 = vand.u32 %v151, 4294901760
    %v3017 = vsub.f32 %v151, %v3016
    %v3018 = vand.u32 %v3017, 4294901760
    %v3019 = vsub.f32 %v3017, %v3018
    %v3020 = vand.u32 %v3019, 4294901760
    %3021 = vmatpush1.msra.mxu0 %v3020
    %v3022 = vand.u32 %v164, 4294901760
    %v3023 = vsub.f32 %v164, %v3022
    %v3024 = vand.u32 %v3023, 4294901760
    %v3025 = vsub.f32 %v3023, %v3024
    %v3026 = vand.u32 %v3025, 4294901760
    %3027 = vmatprep.subr.mxu0 %v3026
    %v3028 = vand.u32 %v163, 4294901760
    %v3029 = vsub.f32 %v163, %v3028
    %v3030 = vand.u32 %v3029, 4294901760
    %v3031 = vsub.f32 %v3029, %v3030
    %v3032 = vand.u32 %v3031, 4294901760
    %3033 = vmatpush1.msra.mxu0 %v3032
    %v3034 = vand.u32 %v176, 4294901760
    %v3035 = vsub.f32 %v176, %v3034
    %v3036 = vand.u32 %v3035, 4294901760
    %v3037 = vsub.f32 %v3035, %v3036
    %v3038 = vand.u32 %v3037, 4294901760
    %3039 = vmatprep.subr.mxu0 %v3038
    %v3040 = vand.u32 %v175, 4294901760
    %v3041 = vsub.f32 %v175, %v3040
    %v3042 = vand.u32 %v3041, 4294901760
    %v3043 = vsub.f32 %v3041, %v3042
    %v3044 = vand.u32 %v3043, 4294901760
    %3045 = vmatpush1.msra.mxu0 %v3044
    %v3046 = vand.u32 %v188, 4294901760
    %v3047 = vsub.f32 %v188, %v3046
    %v3048 = vand.u32 %v3047, 4294901760
    %v3049 = vsub.f32 %v3047, %v3048
    %v3050 = vand.u32 %v3049, 4294901760
    %3051 = vmatprep.subr.mxu0 %v3050
    %v3052 = vand.u32 %v187, 4294901760
    %v3053 = vsub.f32 %v187, %v3052
    %v3054 = vand.u32 %v3053, 4294901760
    %v3055 = vsub.f32 %v3053, %v3054
    %v3056 = vand.u32 %v3055, 4294901760
    %3057 = vmatpush1.msra.mxu0 %v3056
    %v3058 = vand.u32 %v200, 4294901760
    %v3059 = vsub.f32 %v200, %v3058
    %v3060 = vand.u32 %v3059, 4294901760
    %v3061 = vsub.f32 %v3059, %v3060
    %v3062 = vand.u32 %v3061, 4294901760
    %3063 = vmatprep.subr.mxu0 %v3062
    %v3064 = vand.u32 %v199, 4294901760
    %v3065 = vsub.f32 %v199, %v3064
    %v3066 = vand.u32 %v3065, 4294901760
    %v3067 = vsub.f32 %v3065, %v3066
    %v3068 = vand.u32 %v3067, 4294901760
    %3069 = vmatpush1.msra.mxu0 %v3068
    %v3070 = vand.u32 %v212, 4294901760
    %v3071 = vsub.f32 %v212, %v3070
    %v3072 = vand.u32 %v3071, 4294901760
    %v3073 = vsub.f32 %v3071, %v3072
    %v3074 = vand.u32 %v3073, 4294901760
    %3075 = vmatprep.subr.mxu0 %v3074
    %v3076 = vand.u32 %v211, 4294901760
    %v3077 = vsub.f32 %v211, %v3076
    %v3078 = vand.u32 %v3077, 4294901760
    %v3079 = vsub.f32 %v3077, %v3078
    %v3080 = vand.u32 %v3079, 4294901760
    %3081 = vmatpush1.msra.mxu0 %v3080
    %v3082 = vand.u32 %v224, 4294901760
    %v3083 = vsub.f32 %v224, %v3082
    %v3084 = vand.u32 %v3083, 4294901760
    %v3085 = vsub.f32 %v3083, %v3084
    %v3086 = vand.u32 %v3085, 4294901760
    %3087 = vmatprep.subr.mxu0 %v3086
    %v3088 = vand.u32 %v223, 4294901760
    %v3089 = vsub.f32 %v223, %v3088
    %v3090 = vand.u32 %v3089, 4294901760
    %v3091 = vsub.f32 %v3089, %v3090
    %v3092 = vand.u32 %v3091, 4294901760
    %3093 = vmatpush1.msra.mxu0 %v3092
    %v3094 = vand.u32 %v236, 4294901760
    %v3095 = vsub.f32 %v236, %v3094
    %v3096 = vand.u32 %v3095, 4294901760
    %v3097 = vsub.f32 %v3095, %v3096
    %v3098 = vand.u32 %v3097, 4294901760
    %3099 = vmatprep.subr.mxu0 %v3098
    %v3100 = vand.u32 %v235, 4294901760
    %v3101 = vsub.f32 %v235, %v3100
    %v3102 = vand.u32 %v3101, 4294901760
    %v3103 = vsub.f32 %v3101, %v3102
    %v3104 = vand.u32 %v3103, 4294901760
    %3105 = vmatpush1.msra.mxu0 %v3104
    %v3106 = vand.u32 %v248, 4294901760
    %v3107 = vsub.f32 %v248, %v3106
    %v3108 = vand.u32 %v3107, 4294901760
    %v3109 = vsub.f32 %v3107, %v3108
    %v3110 = vand.u32 %v3109, 4294901760
    %3111 = vmatprep.subr.mxu0 %v3110
    %v3112 = vand.u32 %v247, 4294901760
    %v3113 = vsub.f32 %v247, %v3112
    %v3114 = vand.u32 %v3113, 4294901760
    %v3115 = vsub.f32 %v3113, %v3114
    %v3116 = vand.u32 %v3115, 4294901760
    %3117 = vmatpush1.msra.mxu0 %v3116
    %3118 = vmatprep.subr.mxu0 0.0
    %3119 = vmatpush1.msra.mxu0 0.0
    %3120 = vmatprep.subr.mxu0 0.0
    %3121 = vmatpush1.msra.mxu0 0.0
    %3122 = vmatprep.subr.mxu0 0.0
    %3123 = vmatpush1.msra.mxu0 0.0
    %3124 = vmatprep.subr.mxu0 0.0
    %3125 = vmatpush1.msra.mxu0 0.0
    %3126 = vmatprep.subr.mxu0 0.0
    %3127 = vmatpush1.msra.mxu0 0.0
    %3128 = vmatprep.subr.mxu0 0.0
    %3129 = vmatpush1.msra.mxu0 0.0
    %3130 = vmatprep.subr.mxu0 0.0
    %3131 = vmatpush1.msra.mxu0 0.0
    %3132 = vmatprep.subr.mxu0 0.0
    %3133 = vmatpush1.msra.mxu0 0.0
    %3134 = vmatprep.subr.mxu0 0.0
    %3135 = vmatpush1.msra.mxu0 0.0
    %3136 = vmatprep.subr.mxu0 0.0
    %3137 = vmatpush1.msra.mxu0 0.0
    %3138 = vmatprep.subr.mxu0 0.0
    %3139 = vmatpush1.msra.mxu0 0.0
    %3140 = vmatprep.subr.mxu0 0.0
    %3141 = vmatpush1.msra.mxu0 0.0
    %3142 = vmatprep.subr.mxu0 0.0
    %3143 = vmatpush1.msra.mxu0 0.0
    %3144 = vmatprep.subr.mxu0 0.0
    %3145 = vmatpush1.msra.mxu0 0.0
    %3146 = vmatprep.subr.mxu0 0.0
    %3147 = vmatpush1.msra.mxu0 0.0
    %3148 = vmatprep.subr.mxu0 0.0
    %3149 = vmatpush1.msra.mxu0 0.0
    %3150 = vmatprep.mubr.f32.mxu0 0.0
    %v3151 = vand.u32 %v60, 4294901760
    %3152 = vmatmul.mubr.f32.gmra.mrb[0].mxu0 %v3151
    %v3153 = vpop.f32.mrb[0].mxu0
    %v3154 = vadd.f32 %v2922, %v3153
    %v3155 = vpop.f32.mrb[0].mxu0
    %v3156 = vadd.f32 %v2924, %v3155
    %3157 = vdwg.mxu0
    %v3158 = vand.u32 %v68, 4294901760
    %v3159 = vsub.f32 %v68, %v3158
    %3160 = vmatprep.subr.mxu0 %v3159
    %v3161 = vand.u32 %v67, 4294901760
    %v3162 = vsub.f32 %v67, %v3161
    %3163 = vmatpush1.msra.mxu0 %v3162
    %v3164 = vand.u32 %v80, 4294901760
    %v3165 = vsub.f32 %v80, %v3164
    %3166 = vmatprep.subr.mxu0 %v3165
    %v3167 = vand.u32 %v79, 4294901760
    %v3168 = vsub.f32 %v79, %v3167
    %3169 = vmatpush1.msra.mxu0 %v3168
    %v3170 = vand.u32 %v92, 4294901760
    %v3171 = vsub.f32 %v92, %v3170
    %3172 = vmatprep.subr.mxu0 %v3171
    %v3173 = vand.u32 %v91, 4294901760
    %v3174 = vsub.f32 %v91, %v3173
    %3175 = vmatpush1.msra.mxu0 %v3174
    %v3176 = vand.u32 %v104, 4294901760
    %v3177 = vsub.f32 %v104, %v3176
    %3178 = vmatprep.subr.mxu0 %v3177
    %v3179 = vand.u32 %v103, 4294901760
    %v3180 = vsub.f32 %v103, %v3179
    %3181 = vmatpush1.msra.mxu0 %v3180
    %v3182 = vand.u32 %v116, 4294901760
    %v3183 = vsub.f32 %v116, %v3182
    %3184 = vmatprep.subr.mxu0 %v3183
    %v3185 = vand.u32 %v115, 4294901760
    %v3186 = vsub.f32 %v115, %v3185
    %3187 = vmatpush1.msra.mxu0 %v3186
    %v3188 = vand.u32 %v128, 4294901760
    %v3189 = vsub.f32 %v128, %v3188
    %3190 = vmatprep.subr.mxu0 %v3189
    %v3191 = vand.u32 %v127, 4294901760
    %v3192 = vsub.f32 %v127, %v3191
    %3193 = vmatpush1.msra.mxu0 %v3192
    %v3194 = vand.u32 %v140, 4294901760
    %v3195 = vsub.f32 %v140, %v3194
    %3196 = vmatprep.subr.mxu0 %v3195
    %v3197 = vand.u32 %v139, 4294901760
    %v3198 = vsub.f32 %v139, %v3197
    %3199 = vmatpush1.msra.mxu0 %v3198
    %v3200 = vand.u32 %v152, 4294901760
    %v3201 = vsub.f32 %v152, %v3200
    %3202 = vmatprep.subr.mxu0 %v3201
    %v3203 = vand.u32 %v151, 4294901760
    %v3204 = vsub.f32 %v151, %v3203
    %3205 = vmatpush1.msra.mxu0 %v3204
    %v3206 = vand.u32 %v164, 4294901760
    %v3207 = vsub.f32 %v164, %v3206
    %3208 = vmatprep.subr.mxu0 %v3207
    %v3209 = vand.u32 %v163, 4294901760
    %v3210 = vsub.f32 %v163, %v3209
    %3211 = vmatpush1.msra.mxu0 %v3210
    %v3212 = vand.u32 %v176, 4294901760
    %v3213 = vsub.f32 %v176, %v3212
    %3214 = vmatprep.subr.mxu0 %v3213
    %v3215 = vand.u32 %v175, 4294901760
    %v3216 = vsub.f32 %v175, %v3215
    %3217 = vmatpush1.msra.mxu0 %v3216
    %v3218 = vand.u32 %v188, 4294901760
    %v3219 = vsub.f32 %v188, %v3218
    %3220 = vmatprep.subr.mxu0 %v3219
    %v3221 = vand.u32 %v187, 4294901760
    %v3222 = vsub.f32 %v187, %v3221
    %3223 = vmatpush1.msra.mxu0 %v3222
    %v3224 = vand.u32 %v200, 4294901760
    %v3225 = vsub.f32 %v200, %v3224
    %3226 = vmatprep.subr.mxu0 %v3225
    %v3227 = vand.u32 %v199, 4294901760
    %v3228 = vsub.f32 %v199, %v3227
    %3229 = vmatpush1.msra.mxu0 %v3228
    %v3230 = vand.u32 %v212, 4294901760
    %v3231 = vsub.f32 %v212, %v3230
    %3232 = vmatprep.subr.mxu0 %v3231
    %v3233 = vand.u32 %v211, 4294901760
    %v3234 = vsub.f32 %v211, %v3233
    %3235 = vmatpush1.msra.mxu0 %v3234
    %v3236 = vand.u32 %v224, 4294901760
    %v3237 = vsub.f32 %v224, %v3236
    %3238 = vmatprep.subr.mxu0 %v3237
    %v3239 = vand.u32 %v223, 4294901760
    %v3240 = vsub.f32 %v223, %v3239
    %3241 = vmatpush1.msra.mxu0 %v3240
    %v3242 = vand.u32 %v236, 4294901760
    %v3243 = vsub.f32 %v236, %v3242
    %3244 = vmatprep.subr.mxu0 %v3243
    %v3245 = vand.u32 %v235, 4294901760
    %v3246 = vsub.f32 %v235, %v3245
    %3247 = vmatpush1.msra.mxu0 %v3246
    %v3248 = vand.u32 %v248, 4294901760
    %v3249 = vsub.f32 %v248, %v3248
    %3250 = vmatprep.subr.mxu0 %v3249
    %v3251 = vand.u32 %v247, 4294901760
    %v3252 = vsub.f32 %v247, %v3251
    %3253 = vmatpush1.msra.mxu0 %v3252
    %3254 = vmatprep.subr.mxu0 0.0
    %3255 = vmatpush1.msra.mxu0 0.0
    %3256 = vmatprep.subr.mxu0 0.0
    %3257 = vmatpush1.msra.mxu0 0.0
    %3258 = vmatprep.subr.mxu0 0.0
    %3259 = vmatpush1.msra.mxu0 0.0
    %3260 = vmatprep.subr.mxu0 0.0
    %3261 = vmatpush1.msra.mxu0 0.0
    %3262 = vmatprep.subr.mxu0 0.0
    %3263 = vmatpush1.msra.mxu0 0.0
    %3264 = vmatprep.subr.mxu0 0.0
    %3265 = vmatpush1.msra.mxu0 0.0
    %3266 = vmatprep.subr.mxu0 0.0
    %3267 = vmatpush1.msra.mxu0 0.0
    %3268 = vmatprep.subr.mxu0 0.0
    %3269 = vmatpush1.msra.mxu0 0.0
    %3270 = vmatprep.subr.mxu0 0.0
    %3271 = vmatpush1.msra.mxu0 0.0
    %3272 = vmatprep.subr.mxu0 0.0
    %3273 = vmatpush1.msra.mxu0 0.0
    %3274 = vmatprep.subr.mxu0 0.0
    %3275 = vmatpush1.msra.mxu0 0.0
    %3276 = vmatprep.subr.mxu0 0.0
    %3277 = vmatpush1.msra.mxu0 0.0
    %3278 = vmatprep.subr.mxu0 0.0
    %3279 = vmatpush1.msra.mxu0 0.0
    %3280 = vmatprep.subr.mxu0 0.0
    %3281 = vmatpush1.msra.mxu0 0.0
    %3282 = vmatprep.subr.mxu0 0.0
    %3283 = vmatpush1.msra.mxu0 0.0
    %3284 = vmatprep.subr.mxu0 0.0
    %3285 = vmatpush1.msra.mxu0 0.0
    %3286 = vmatprep.mubr.f32.mxu0 0.0
    %v3287 = vand.u32 %v60, 4294901760
    %v3288 = vsub.f32 %v60, %v3287
    %3289 = vmatmul.mubr.f32.gmra.mrb[0].mxu0 %v3288
    %v3290 = vpop.f32.mrb[0].mxu0
    %v3291 = vadd.f32 %v3154, %v3290
    %v3292 = vpop.f32.mrb[0].mxu0
    %v3293 = vadd.f32 %v3156, %v3292
    %3294 = vdwg.mxu0
    %v3295 = vand.u32 %v68, 4294901760
    %3296 = vmatprep.subr.mxu0 %v3295
    %v3297 = vand.u32 %v67, 4294901760
    %3298 = vmatpush1.msra.mxu0 %v3297
    %v3299 = vand.u32 %v80, 4294901760
    %3300 = vmatprep.subr.mxu0 %v3299
    %v3301 = vand.u32 %v79, 4294901760
    %3302 = vmatpush1.msra.mxu0 %v3301
    %v3303 = vand.u32 %v92, 4294901760
    %3304 = vmatprep.subr.mxu0 %v3303
    %v3305 = vand.u32 %v91, 4294901760
    %3306 = vmatpush1.msra.mxu0 %v3305
    %v3307 = vand.u32 %v104, 4294901760
    %3308 = vmatprep.subr.mxu0 %v3307
    %v3309 = vand.u32 %v103, 4294901760
    %3310 = vmatpush1.msra.mxu0 %v3309
    %v3311 = vand.u32 %v116, 4294901760
    %3312 = vmatprep.subr.mxu0 %v3311
    %v3313 = vand.u32 %v115, 4294901760
    %3314 = vmatpush1.msra.mxu0 %v3313
    %v3315 = vand.u32 %v128, 4294901760
    %3316 = vmatprep.subr.mxu0 %v3315
    %v3317 = vand.u32 %v127, 4294901760
    %3318 = vmatpush1.msra.mxu0 %v3317
    %v3319 = vand.u32 %v140, 4294901760
    %3320 = vmatprep.subr.mxu0 %v3319
    %v3321 = vand.u32 %v139, 4294901760
    %3322 = vmatpush1.msra.mxu0 %v3321
    %v3323 = vand.u32 %v152, 4294901760
    %3324 = vmatprep.subr.mxu0 %v3323
    %v3325 = vand.u32 %v151, 4294901760
    %3326 = vmatpush1.msra.mxu0 %v3325
    %v3327 = vand.u32 %v164, 4294901760
    %3328 = vmatprep.subr.mxu0 %v3327
    %v3329 = vand.u32 %v163, 4294901760
    %3330 = vmatpush1.msra.mxu0 %v3329
    %v3331 = vand.u32 %v176, 4294901760
    %3332 = vmatprep.subr.mxu0 %v3331
    %v3333 = vand.u32 %v175, 4294901760
    %3334 = vmatpush1.msra.mxu0 %v3333
    %v3335 = vand.u32 %v188, 4294901760
    %3336 = vmatprep.subr.mxu0 %v3335
    %v3337 = vand.u32 %v187, 4294901760
    %3338 = vmatpush1.msra.mxu0 %v3337
    %v3339 = vand.u32 %v200, 4294901760
    %3340 = vmatprep.subr.mxu0 %v3339
    %v3341 = vand.u32 %v199, 4294901760
    %3342 = vmatpush1.msra.mxu0 %v3341
    %v3343 = vand.u32 %v212, 4294901760
    %3344 = vmatprep.subr.mxu0 %v3343
    %v3345 = vand.u32 %v211, 4294901760
    %3346 = vmatpush1.msra.mxu0 %v3345
    %v3347 = vand.u32 %v224, 4294901760
    %3348 = vmatprep.subr.mxu0 %v3347
    %v3349 = vand.u32 %v223, 4294901760
    %3350 = vmatpush1.msra.mxu0 %v3349
    %v3351 = vand.u32 %v236, 4294901760
    %3352 = vmatprep.subr.mxu0 %v3351
    %v3353 = vand.u32 %v235, 4294901760
    %3354 = vmatpush1.msra.mxu0 %v3353
    %v3355 = vand.u32 %v248, 4294901760
    %3356 = vmatprep.subr.mxu0 %v3355
    %v3357 = vand.u32 %v247, 4294901760
    %3358 = vmatpush1.msra.mxu0 %v3357
    %3359 = vmatprep.subr.mxu0 0.0
    %3360 = vmatpush1.msra.mxu0 0.0
    %3361 = vmatprep.subr.mxu0 0.0
    %3362 = vmatpush1.msra.mxu0 0.0
    %3363 = vmatprep.subr.mxu0 0.0
    %3364 = vmatpush1.msra.mxu0 0.0
    %3365 = vmatprep.subr.mxu0 0.0
    %3366 = vmatpush1.msra.mxu0 0.0
    %3367 = vmatprep.subr.mxu0 0.0
    %3368 = vmatpush1.msra.mxu0 0.0
    %3369 = vmatprep.subr.mxu0 0.0
    %3370 = vmatpush1.msra.mxu0 0.0
    %3371 = vmatprep.subr.mxu0 0.0
    %3372 = vmatpush1.msra.mxu0 0.0
    %3373 = vmatprep.subr.mxu0 0.0
    %3374 = vmatpush1.msra.mxu0 0.0
    %3375 = vmatprep.subr.mxu0 0.0
    %3376 = vmatpush1.msra.mxu0 0.0
    %3377 = vmatprep.subr.mxu0 0.0
    %3378 = vmatpush1.msra.mxu0 0.0
    %3379 = vmatprep.subr.mxu0 0.0
    %3380 = vmatpush1.msra.mxu0 0.0
    %3381 = vmatprep.subr.mxu0 0.0
    %3382 = vmatpush1.msra.mxu0 0.0
    %3383 = vmatprep.subr.mxu0 0.0
    %3384 = vmatpush1.msra.mxu0 0.0
    %3385 = vmatprep.subr.mxu0 0.0
    %3386 = vmatpush1.msra.mxu0 0.0
    %3387 = vmatprep.subr.mxu0 0.0
    %3388 = vmatpush1.msra.mxu0 0.0
    %3389 = vmatprep.subr.mxu0 0.0
    %3390 = vmatpush1.msra.mxu0 0.0
    %3391 = vmatprep.mubr.f32.mxu0 0.0
    %v3392 = vand.u32 %v60, 4294901760
    %v3393 = vsub.f32 %v60, %v3392
    %v3394 = vand.u32 %v3393, 4294901760
    %3395 = vmatmul.mubr.f32.gmra.mrb[0].mxu0 %v3394
    %v3396 = vpop.f32.mrb[0].mxu0
    %v3397 = vadd.f32 %v3291, %v3396
    %v3398 = vpop.f32.mrb[0].mxu0
    %v3399 = vadd.f32 %v3293, %v3398
    %3400 = vdwg.mxu0
    %v3401 = vand.u32 %v68, 4294901760
    %v3402 = vsub.f32 %v68, %v3401
    %v3403 = vand.u32 %v3402, 4294901760
    %3404 = vmatprep.subr.mxu0 %v3403
    %v3405 = vand.u32 %v67, 4294901760
    %v3406 = vsub.f32 %v67, %v3405
    %v3407 = vand.u32 %v3406, 4294901760
    %3408 = vmatpush1.msra.mxu0 %v3407
    %v3409 = vand.u32 %v80, 4294901760
    %v3410 = vsub.f32 %v80, %v3409
    %v3411 = vand.u32 %v3410, 4294901760
    %3412 = vmatprep.subr.mxu0 %v3411
    %v3413 = vand.u32 %v79, 4294901760
    %v3414 = vsub.f32 %v79, %v3413
    %v3415 = vand.u32 %v3414, 4294901760
    %3416 = vmatpush1.msra.mxu0 %v3415
    %v3417 = vand.u32 %v92, 4294901760
    %v3418 = vsub.f32 %v92, %v3417
    %v3419 = vand.u32 %v3418, 4294901760
    %3420 = vmatprep.subr.mxu0 %v3419
    %v3421 = vand.u32 %v91, 4294901760
    %v3422 = vsub.f32 %v91, %v3421
    %v3423 = vand.u32 %v3422, 4294901760
    %3424 = vmatpush1.msra.mxu0 %v3423
    %v3425 = vand.u32 %v104, 4294901760
    %v3426 = vsub.f32 %v104, %v3425
    %v3427 = vand.u32 %v3426, 4294901760
    %3428 = vmatprep.subr.mxu0 %v3427
    %v3429 = vand.u32 %v103, 4294901760
    %v3430 = vsub.f32 %v103, %v3429
    %v3431 = vand.u32 %v3430, 4294901760
    %3432 = vmatpush1.msra.mxu0 %v3431
    %v3433 = vand.u32 %v116, 4294901760
    %v3434 = vsub.f32 %v116, %v3433
    %v3435 = vand.u32 %v3434, 4294901760
    %3436 = vmatprep.subr.mxu0 %v3435
    %v3437 = vand.u32 %v115, 4294901760
    %v3438 = vsub.f32 %v115, %v3437
    %v3439 = vand.u32 %v3438, 4294901760
    %3440 = vmatpush1.msra.mxu0 %v3439
    %v3441 = vand.u32 %v128, 4294901760
    %v3442 = vsub.f32 %v128, %v3441
    %v3443 = vand.u32 %v3442, 4294901760
    %3444 = vmatprep.subr.mxu0 %v3443
    %v3445 = vand.u32 %v127, 4294901760
    %v3446 = vsub.f32 %v127, %v3445
    %v3447 = vand.u32 %v3446, 4294901760
    %3448 = vmatpush1.msra.mxu0 %v3447
    %v3449 = vand.u32 %v140, 4294901760
    %v3450 = vsub.f32 %v140, %v3449
    %v3451 = vand.u32 %v3450, 4294901760
    %3452 = vmatprep.subr.mxu0 %v3451
    %v3453 = vand.u32 %v139, 4294901760
    %v3454 = vsub.f32 %v139, %v3453
    %v3455 = vand.u32 %v3454, 4294901760
    %3456 = vmatpush1.msra.mxu0 %v3455
    %v3457 = vand.u32 %v152, 4294901760
    %v3458 = vsub.f32 %v152, %v3457
    %v3459 = vand.u32 %v3458, 4294901760
    %3460 = vmatprep.subr.mxu0 %v3459
    %v3461 = vand.u32 %v151, 4294901760
    %v3462 = vsub.f32 %v151, %v3461
    %v3463 = vand.u32 %v3462, 4294901760
    %3464 = vmatpush1.msra.mxu0 %v3463
    %v3465 = vand.u32 %v164, 4294901760
    %v3466 = vsub.f32 %v164, %v3465
    %v3467 = vand.u32 %v3466, 4294901760
    %3468 = vmatprep.subr.mxu0 %v3467
    %v3469 = vand.u32 %v163, 4294901760
    %v3470 = vsub.f32 %v163, %v3469
    %v3471 = vand.u32 %v3470, 4294901760
    %3472 = vmatpush1.msra.mxu0 %v3471
    %v3473 = vand.u32 %v176, 4294901760
    %v3474 = vsub.f32 %v176, %v3473
    %v3475 = vand.u32 %v3474, 4294901760
    %3476 = vmatprep.subr.mxu0 %v3475
    %v3477 = vand.u32 %v175, 4294901760
    %v3478 = vsub.f32 %v175, %v3477
    %v3479 = vand.u32 %v3478, 4294901760
    %3480 = vmatpush1.msra.mxu0 %v3479
    %v3481 = vand.u32 %v188, 4294901760
    %v3482 = vsub.f32 %v188, %v3481
    %v3483 = vand.u32 %v3482, 4294901760
    %3484 = vmatprep.subr.mxu0 %v3483
    %v3485 = vand.u32 %v187, 4294901760
    %v3486 = vsub.f32 %v187, %v3485
    %v3487 = vand.u32 %v3486, 4294901760
    %3488 = vmatpush1.msra.mxu0 %v3487
    %v3489 = vand.u32 %v200, 4294901760
    %v3490 = vsub.f32 %v200, %v3489
    %v3491 = vand.u32 %v3490, 4294901760
    %3492 = vmatprep.subr.mxu0 %v3491
    %v3493 = vand.u32 %v199, 4294901760
    %v3494 = vsub.f32 %v199, %v3493
    %v3495 = vand.u32 %v3494, 4294901760
    %3496 = vmatpush1.msra.mxu0 %v3495
    %v3497 = vand.u32 %v212, 4294901760
    %v3498 = vsub.f32 %v212, %v3497
    %v3499 = vand.u32 %v3498, 4294901760
    %3500 = vmatprep.subr.mxu0 %v3499
    %v3501 = vand.u32 %v211, 4294901760
    %v3502 = vsub.f32 %v211, %v3501
    %v3503 = vand.u32 %v3502, 4294901760
    %3504 = vmatpush1.msra.mxu0 %v3503
    %v3505 = vand.u32 %v224, 4294901760
    %v3506 = vsub.f32 %v224, %v3505
    %v3507 = vand.u32 %v3506, 4294901760
    %3508 = vmatprep.subr.mxu0 %v3507
    %v3509 = vand.u32 %v223, 4294901760
    %v3510 = vsub.f32 %v223, %v3509
    %v3511 = vand.u32 %v3510, 4294901760
    %3512 = vmatpush1.msra.mxu0 %v3511
    %v3513 = vand.u32 %v236, 4294901760
    %v3514 = vsub.f32 %v236, %v3513
    %v3515 = vand.u32 %v3514, 4294901760
    %3516 = vmatprep.subr.mxu0 %v3515
    %v3517 = vand.u32 %v235, 4294901760
    %v3518 = vsub.f32 %v235, %v3517
    %v3519 = vand.u32 %v3518, 4294901760
    %3520 = vmatpush1.msra.mxu0 %v3519
    %v3521 = vand.u32 %v248, 4294901760
    %v3522 = vsub.f32 %v248, %v3521
    %v3523 = vand.u32 %v3522, 4294901760
    %3524 = vmatprep.subr.mxu0 %v3523
    %v3525 = vand.u32 %v247, 4294901760
    %v3526 = vsub.f32 %v247, %v3525
    %v3527 = vand.u32 %v3526, 4294901760
    %3528 = vmatpush1.msra.mxu0 %v3527
    %3529 = vmatprep.subr.mxu0 0.0
    %3530 = vmatpush1.msra.mxu0 0.0
    %3531 = vmatprep.subr.mxu0 0.0
    %3532 = vmatpush1.msra.mxu0 0.0
    %3533 = vmatprep.subr.mxu0 0.0
    %3534 = vmatpush1.msra.mxu0 0.0
    %3535 = vmatprep.subr.mxu0 0.0
    %3536 = vmatpush1.msra.mxu0 0.0
    %3537 = vmatprep.subr.mxu0 0.0
    %3538 = vmatpush1.msra.mxu0 0.0
    %3539 = vmatprep.subr.mxu0 0.0
    %3540 = vmatpush1.msra.mxu0 0.0
    %3541 = vmatprep.subr.mxu0 0.0
    %3542 = vmatpush1.msra.mxu0 0.0
    %3543 = vmatprep.subr.mxu0 0.0
    %3544 = vmatpush1.msra.mxu0 0.0
    %3545 = vmatprep.subr.mxu0 0.0
    %3546 = vmatpush1.msra.mxu0 0.0
    %3547 = vmatprep.subr.mxu0 0.0
    %3548 = vmatpush1.msra.mxu0 0.0
    %3549 = vmatprep.subr.mxu0 0.0
    %3550 = vmatpush1.msra.mxu0 0.0
    %3551 = vmatprep.subr.mxu0 0.0
    %3552 = vmatpush1.msra.mxu0 0.0
    %3553 = vmatprep.subr.mxu0 0.0
    %3554 = vmatpush1.msra.mxu0 0.0
    %3555 = vmatprep.subr.mxu0 0.0
    %3556 = vmatpush1.msra.mxu0 0.0
    %3557 = vmatprep.subr.mxu0 0.0
    %3558 = vmatpush1.msra.mxu0 0.0
    %3559 = vmatprep.subr.mxu0 0.0
    %3560 = vmatpush1.msra.mxu0 0.0
    %3561 = vmatprep.mubr.f32.mxu0 0.0
    %v3562 = vand.u32 %v60, 4294901760
    %3563 = vmatmul.mubr.f32.gmra.mrb[0].mxu0 %v3562
    %v3564 = vpop.f32.mrb[0].mxu0
    %v3565 = vadd.f32 %v3397, %v3564
    %v3566 = vpop.f32.mrb[0].mxu0
    %v3567 = vadd.f32 %v3399, %v3566
    %3568 = vdwg.mxu0
    %v3569 = vand.u32 %v68, 4294901760
    %3570 = vmatprep.subr.mxu0 %v3569
    %v3571 = vand.u32 %v67, 4294901760
    %3572 = vmatpush1.msra.mxu0 %v3571
    %v3573 = vand.u32 %v80, 4294901760
    %3574 = vmatprep.subr.mxu0 %v3573
    %v3575 = vand.u32 %v79, 4294901760
    %3576 = vmatpush1.msra.mxu0 %v3575
    %v3577 = vand.u32 %v92, 4294901760
    %3578 = vmatprep.subr.mxu0 %v3577
    %v3579 = vand.u32 %v91, 4294901760
    %3580 = vmatpush1.msra.mxu0 %v3579
    %v3581 = vand.u32 %v104, 4294901760
    %3582 = vmatprep.subr.mxu0 %v3581
    %v3583 = vand.u32 %v103, 4294901760
    %3584 = vmatpush1.msra.mxu0 %v3583
    %v3585 = vand.u32 %v116, 4294901760
    %3586 = vmatprep.subr.mxu0 %v3585
    %v3587 = vand.u32 %v115, 4294901760
    %3588 = vmatpush1.msra.mxu0 %v3587
    %v3589 = vand.u32 %v128, 4294901760
    %3590 = vmatprep.subr.mxu0 %v3589
    %v3591 = vand.u32 %v127, 4294901760
    %3592 = vmatpush1.msra.mxu0 %v3591
    %v3593 = vand.u32 %v140, 4294901760
    %3594 = vmatprep.subr.mxu0 %v3593
    %v3595 = vand.u32 %v139, 4294901760
    %3596 = vmatpush1.msra.mxu0 %v3595
    %v3597 = vand.u32 %v152, 4294901760
    %3598 = vmatprep.subr.mxu0 %v3597
    %v3599 = vand.u32 %v151, 4294901760
    %3600 = vmatpush1.msra.mxu0 %v3599
    %v3601 = vand.u32 %v164, 4294901760
    %3602 = vmatprep.subr.mxu0 %v3601
    %v3603 = vand.u32 %v163, 4294901760
    %3604 = vmatpush1.msra.mxu0 %v3603
    %v3605 = vand.u32 %v176, 4294901760
    %3606 = vmatprep.subr.mxu0 %v3605
    %v3607 = vand.u32 %v175, 4294901760
    %3608 = vmatpush1.msra.mxu0 %v3607
    %v3609 = vand.u32 %v188, 4294901760
    %3610 = vmatprep.subr.mxu0 %v3609
    %v3611 = vand.u32 %v187, 4294901760
    %3612 = vmatpush1.msra.mxu0 %v3611
    %v3613 = vand.u32 %v200, 4294901760
    %3614 = vmatprep.subr.mxu0 %v3613
    %v3615 = vand.u32 %v199, 4294901760
    %3616 = vmatpush1.msra.mxu0 %v3615
    %v3617 = vand.u32 %v212, 4294901760
    %3618 = vmatprep.subr.mxu0 %v3617
    %v3619 = vand.u32 %v211, 4294901760
    %3620 = vmatpush1.msra.mxu0 %v3619
    %v3621 = vand.u32 %v224, 4294901760
    %3622 = vmatprep.subr.mxu0 %v3621
    %v3623 = vand.u32 %v223, 4294901760
    %3624 = vmatpush1.msra.mxu0 %v3623
    %v3625 = vand.u32 %v236, 4294901760
    %3626 = vmatprep.subr.mxu0 %v3625
    %v3627 = vand.u32 %v235, 4294901760
    %3628 = vmatpush1.msra.mxu0 %v3627
    %v3629 = vand.u32 %v248, 4294901760
    %3630 = vmatprep.subr.mxu0 %v3629
    %v3631 = vand.u32 %v247, 4294901760
    %3632 = vmatpush1.msra.mxu0 %v3631
    %3633 = vmatprep.subr.mxu0 0.0
    %3634 = vmatpush1.msra.mxu0 0.0
    %3635 = vmatprep.subr.mxu0 0.0
    %3636 = vmatpush1.msra.mxu0 0.0
    %3637 = vmatprep.subr.mxu0 0.0
    %3638 = vmatpush1.msra.mxu0 0.0
    %3639 = vmatprep.subr.mxu0 0.0
    %3640 = vmatpush1.msra.mxu0 0.0
    %3641 = vmatprep.subr.mxu0 0.0
    %3642 = vmatpush1.msra.mxu0 0.0
    %3643 = vmatprep.subr.mxu0 0.0
    %3644 = vmatpush1.msra.mxu0 0.0
    %3645 = vmatprep.subr.mxu0 0.0
    %3646 = vmatpush1.msra.mxu0 0.0
    %3647 = vmatprep.subr.mxu0 0.0
    %3648 = vmatpush1.msra.mxu0 0.0
    %3649 = vmatprep.subr.mxu0 0.0
    %3650 = vmatpush1.msra.mxu0 0.0
    %3651 = vmatprep.subr.mxu0 0.0
    %3652 = vmatpush1.msra.mxu0 0.0
    %3653 = vmatprep.subr.mxu0 0.0
    %3654 = vmatpush1.msra.mxu0 0.0
    %3655 = vmatprep.subr.mxu0 0.0
    %3656 = vmatpush1.msra.mxu0 0.0
    %3657 = vmatprep.subr.mxu0 0.0
    %3658 = vmatpush1.msra.mxu0 0.0
    %3659 = vmatprep.subr.mxu0 0.0
    %3660 = vmatpush1.msra.mxu0 0.0
    %3661 = vmatprep.subr.mxu0 0.0
    %3662 = vmatpush1.msra.mxu0 0.0
    %3663 = vmatprep.subr.mxu0 0.0
    %3664 = vmatpush1.msra.mxu0 0.0
    %3665 = vmatprep.mubr.f32.mxu0 0.0
    %v3666 = vand.u32 %v60, 4294901760
    %3667 = vmatmul.mubr.f32.gmra.mrb[0].mxu0 %v3666
    %v3668 = vpop.f32.mrb[0].mxu0
    %v3669 = vadd.f32 %v3565, %v3668
    %v3670 = vpop.f32.mrb[0].mxu0
    %v3671 = vadd.f32 %v3567, %v3670
    %3672 = vdwg.mxu0
    %v3673 = vand.u32 %v70, 4294901760
    %3674 = vmatprep.subr.mxu0 %v3673
    %v3675 = vand.u32 %v69, 4294901760
    %3676 = vmatpush1.msra.mxu0 %v3675
    %v3677 = vand.u32 %v82, 4294901760
    %3678 = vmatprep.subr.mxu0 %v3677
    %v3679 = vand.u32 %v81, 4294901760
    %3680 = vmatpush1.msra.mxu0 %v3679
    %v3681 = vand.u32 %v94, 4294901760
    %3682 = vmatprep.subr.mxu0 %v3681
    %v3683 = vand.u32 %v93, 4294901760
    %3684 = vmatpush1.msra.mxu0 %v3683
    %v3685 = vand.u32 %v106, 4294901760
    %3686 = vmatprep.subr.mxu0 %v3685
    %v3687 = vand.u32 %v105, 4294901760
    %3688 = vmatpush1.msra.mxu0 %v3687
    %v3689 = vand.u32 %v118, 4294901760
    %3690 = vmatprep.subr.mxu0 %v3689
    %v3691 = vand.u32 %v117, 4294901760
    %3692 = vmatpush1.msra.mxu0 %v3691
    %v3693 = vand.u32 %v130, 4294901760
    %3694 = vmatprep.subr.mxu0 %v3693
    %v3695 = vand.u32 %v129, 4294901760
    %3696 = vmatpush1.msra.mxu0 %v3695
    %v3697 = vand.u32 %v142, 4294901760
    %3698 = vmatprep.subr.mxu0 %v3697
    %v3699 = vand.u32 %v141, 4294901760
    %3700 = vmatpush1.msra.mxu0 %v3699
    %v3701 = vand.u32 %v154, 4294901760
    %3702 = vmatprep.subr.mxu0 %v3701
    %v3703 = vand.u32 %v153, 4294901760
    %3704 = vmatpush1.msra.mxu0 %v3703
    %v3705 = vand.u32 %v166, 4294901760
    %3706 = vmatprep.subr.mxu0 %v3705
    %v3707 = vand.u32 %v165, 4294901760
    %3708 = vmatpush1.msra.mxu0 %v3707
    %v3709 = vand.u32 %v178, 4294901760
    %3710 = vmatprep.subr.mxu0 %v3709
    %v3711 = vand.u32 %v177, 4294901760
    %3712 = vmatpush1.msra.mxu0 %v3711
    %v3713 = vand.u32 %v190, 4294901760
    %3714 = vmatprep.subr.mxu0 %v3713
    %v3715 = vand.u32 %v189, 4294901760
    %3716 = vmatpush1.msra.mxu0 %v3715
    %v3717 = vand.u32 %v202, 4294901760
    %3718 = vmatprep.subr.mxu0 %v3717
    %v3719 = vand.u32 %v201, 4294901760
    %3720 = vmatpush1.msra.mxu0 %v3719
    %v3721 = vand.u32 %v214, 4294901760
    %3722 = vmatprep.subr.mxu0 %v3721
    %v3723 = vand.u32 %v213, 4294901760
    %3724 = vmatpush1.msra.mxu0 %v3723
    %v3725 = vand.u32 %v226, 4294901760
    %3726 = vmatprep.subr.mxu0 %v3725
    %v3727 = vand.u32 %v225, 4294901760
    %3728 = vmatpush1.msra.mxu0 %v3727
    %v3729 = vand.u32 %v238, 4294901760
    %3730 = vmatprep.subr.mxu0 %v3729
    %v3731 = vand.u32 %v237, 4294901760
    %3732 = vmatpush1.msra.mxu0 %v3731
    %v3733 = vand.u32 %v250, 4294901760
    %3734 = vmatprep.subr.mxu0 %v3733
    %v3735 = vand.u32 %v249, 4294901760
    %3736 = vmatpush1.msra.mxu0 %v3735
    %3737 = vmatprep.subr.mxu0 0.0
    %3738 = vmatpush1.msra.mxu0 0.0
    %3739 = vmatprep.subr.mxu0 0.0
    %3740 = vmatpush1.msra.mxu0 0.0
    %3741 = vmatprep.subr.mxu0 0.0
    %3742 = vmatpush1.msra.mxu0 0.0
    %3743 = vmatprep.subr.mxu0 0.0
    %3744 = vmatpush1.msra.mxu0 0.0
    %3745 = vmatprep.subr.mxu0 0.0
    %3746 = vmatpush1.msra.mxu0 0.0
    %3747 = vmatprep.subr.mxu0 0.0
    %3748 = vmatpush1.msra.mxu0 0.0
    %3749 = vmatprep.subr.mxu0 0.0
    %3750 = vmatpush1.msra.mxu0 0.0
    %3751 = vmatprep.subr.mxu0 0.0
    %3752 = vmatpush1.msra.mxu0 0.0
    %3753 = vmatprep.subr.mxu0 0.0
    %3754 = vmatpush1.msra.mxu0 0.0
    %3755 = vmatprep.subr.mxu0 0.0
    %3756 = vmatpush1.msra.mxu0 0.0
    %3757 = vmatprep.subr.mxu0 0.0
    %3758 = vmatpush1.msra.mxu0 0.0
    %3759 = vmatprep.subr.mxu0 0.0
    %3760 = vmatpush1.msra.mxu0 0.0
    %3761 = vmatprep.subr.mxu0 0.0
    %3762 = vmatpush1.msra.mxu0 0.0
    %3763 = vmatprep.subr.mxu0 0.0
    %3764 = vmatpush1.msra.mxu0 0.0
    %3765 = vmatprep.subr.mxu0 0.0
    %3766 = vmatpush1.msra.mxu0 0.0
    %3767 = vmatprep.subr.mxu0 0.0
    %3768 = vmatpush1.msra.mxu0 0.0
    %3769 = vmatprep.mubr.f32.mxu0 0.0
    %v3770 = vand.u32 %v60, 4294901760
    %v3771 = vsub.f32 %v60, %v3770
    %v3772 = vand.u32 %v3771, 4294901760
    %v3773 = vsub.f32 %v3771, %v3772
    %v3774 = vand.u32 %v3773, 4294901760
    %3775 = vmatmul.mubr.f32.gmra.mrb[0].mxu0 %v3774
    %v3776 = vpop.f32.mrb[0].mxu0
    %v3777 = vadd.f32 0.0, %v3776
    %v3778 = vpop.f32.mrb[0].mxu0
    %v3779 = vadd.f32 0.0, %v3778
    %3780 = vdwg.mxu0
    %v3781 = vand.u32 %v70, 4294901760
    %v3782 = vsub.f32 %v70, %v3781
    %v3783 = vand.u32 %v3782, 4294901760
    %v3784 = vsub.f32 %v3782, %v3783
    %v3785 = vand.u32 %v3784, 4294901760
    %3786 = vmatprep.subr.mxu0 %v3785
    %v3787 = vand.u32 %v69, 4294901760
    %v3788 = vsub.f32 %v69, %v3787
    %v3789 = vand.u32 %v3788, 4294901760
    %v3790 = vsub.f32 %v3788, %v3789
    %v3791 = vand.u32 %v3790, 4294901760
    %3792 = vmatpush1.msra.mxu0 %v3791
    %v3793 = vand.u32 %v82, 4294901760
    %v3794 = vsub.f32 %v82, %v3793
    %v3795 = vand.u32 %v3794, 4294901760
    %v3796 = vsub.f32 %v3794, %v3795
    %v3797 = vand.u32 %v3796, 4294901760
    %3798 = vmatprep.subr.mxu0 %v3797
    %v3799 = vand.u32 %v81, 4294901760
    %v3800 = vsub.f32 %v81, %v3799
    %v3801 = vand.u32 %v3800, 4294901760
    %v3802 = vsub.f32 %v3800, %v3801
    %v3803 = vand.u32 %v3802, 4294901760
    %3804 = vmatpush1.msra.mxu0 %v3803
    %v3805 = vand.u32 %v94, 4294901760
    %v3806 = vsub.f32 %v94, %v3805
    %v3807 = vand.u32 %v3806, 4294901760
    %v3808 = vsub.f32 %v3806, %v3807
    %v3809 = vand.u32 %v3808, 4294901760
    %3810 = vmatprep.subr.mxu0 %v3809
    %v3811 = vand.u32 %v93, 4294901760
    %v3812 = vsub.f32 %v93, %v3811
    %v3813 = vand.u32 %v3812, 4294901760
    %v3814 = vsub.f32 %v3812, %v3813
    %v3815 = vand.u32 %v3814, 4294901760
    %3816 = vmatpush1.msra.mxu0 %v3815
    %v3817 = vand.u32 %v106, 4294901760
    %v3818 = vsub.f32 %v106, %v3817
    %v3819 = vand.u32 %v3818, 4294901760
    %v3820 = vsub.f32 %v3818, %v3819
    %v3821 = vand.u32 %v3820, 4294901760
    %3822 = vmatprep.subr.mxu0 %v3821
    %v3823 = vand.u32 %v105, 4294901760
    %v3824 = vsub.f32 %v105, %v3823
    %v3825 = vand.u32 %v3824, 4294901760
    %v3826 = vsub.f32 %v3824, %v3825
    %v3827 = vand.u32 %v3826, 4294901760
    %3828 = vmatpush1.msra.mxu0 %v3827
    %v3829 = vand.u32 %v118, 4294901760
    %v3830 = vsub.f32 %v118, %v3829
    %v3831 = vand.u32 %v3830, 4294901760
    %v3832 = vsub.f32 %v3830, %v3831
    %v3833 = vand.u32 %v3832, 4294901760
    %3834 = vmatprep.subr.mxu0 %v3833
    %v3835 = vand.u32 %v117, 4294901760
    %v3836 = vsub.f32 %v117, %v3835
    %v3837 = vand.u32 %v3836, 4294901760
    %v3838 = vsub.f32 %v3836, %v3837
    %v3839 = vand.u32 %v3838, 4294901760
    %3840 = vmatpush1.msra.mxu0 %v3839
    %v3841 = vand.u32 %v130, 4294901760
    %v3842 = vsub.f32 %v130, %v3841
    %v3843 = vand.u32 %v3842, 4294901760
    %v3844 = vsub.f32 %v3842, %v3843
    %v3845 = vand.u32 %v3844, 4294901760
    %3846 = vmatprep.subr.mxu0 %v3845
    %v3847 = vand.u32 %v129, 4294901760
    %v3848 = vsub.f32 %v129, %v3847
    %v3849 = vand.u32 %v3848, 4294901760
    %v3850 = vsub.f32 %v3848, %v3849
    %v3851 = vand.u32 %v3850, 4294901760
    %3852 = vmatpush1.msra.mxu0 %v3851
    %v3853 = vand.u32 %v142, 4294901760
    %v3854 = vsub.f32 %v142, %v3853
    %v3855 = vand.u32 %v3854, 4294901760
    %v3856 = vsub.f32 %v3854, %v3855
    %v3857 = vand.u32 %v3856, 4294901760
    %3858 = vmatprep.subr.mxu0 %v3857
    %v3859 = vand.u32 %v141, 4294901760
    %v3860 = vsub.f32 %v141, %v3859
    %v3861 = vand.u32 %v3860, 4294901760
    %v3862 = vsub.f32 %v3860, %v3861
    %v3863 = vand.u32 %v3862, 4294901760
    %3864 = vmatpush1.msra.mxu0 %v3863
    %v3865 = vand.u32 %v154, 4294901760
    %v3866 = vsub.f32 %v154, %v3865
    %v3867 = vand.u32 %v3866, 4294901760
    %v3868 = vsub.f32 %v3866, %v3867
    %v3869 = vand.u32 %v3868, 4294901760
    %3870 = vmatprep.subr.mxu0 %v3869
    %v3871 = vand.u32 %v153, 4294901760
    %v3872 = vsub.f32 %v153, %v3871
    %v3873 = vand.u32 %v3872, 4294901760
    %v3874 = vsub.f32 %v3872, %v3873
    %v3875 = vand.u32 %v3874, 4294901760
    %3876 = vmatpush1.msra.mxu0 %v3875
    %v3877 = vand.u32 %v166, 4294901760
    %v3878 = vsub.f32 %v166, %v3877
    %v3879 = vand.u32 %v3878, 4294901760
    %v3880 = vsub.f32 %v3878, %v3879
    %v3881 = vand.u32 %v3880, 4294901760
    %3882 = vmatprep.subr.mxu0 %v3881
    %v3883 = vand.u32 %v165, 4294901760
    %v3884 = vsub.f32 %v165, %v3883
    %v3885 = vand.u32 %v3884, 4294901760
    %v3886 = vsub.f32 %v3884, %v3885
    %v3887 = vand.u32 %v3886, 4294901760
    %3888 = vmatpush1.msra.mxu0 %v3887
    %v3889 = vand.u32 %v178, 4294901760
    %v3890 = vsub.f32 %v178, %v3889
    %v3891 = vand.u32 %v3890, 4294901760
    %v3892 = vsub.f32 %v3890, %v3891
    %v3893 = vand.u32 %v3892, 4294901760
    %3894 = vmatprep.subr.mxu0 %v3893
    %v3895 = vand.u32 %v177, 4294901760
    %v3896 = vsub.f32 %v177, %v3895
    %v3897 = vand.u32 %v3896, 4294901760
    %v3898 = vsub.f32 %v3896, %v3897
    %v3899 = vand.u32 %v3898, 4294901760
    %3900 = vmatpush1.msra.mxu0 %v3899
    %v3901 = vand.u32 %v190, 4294901760
    %v3902 = vsub.f32 %v190, %v3901
    %v3903 = vand.u32 %v3902, 4294901760
    %v3904 = vsub.f32 %v3902, %v3903
    %v3905 = vand.u32 %v3904, 4294901760
    %3906 = vmatprep.subr.mxu0 %v3905
    %v3907 = vand.u32 %v189, 4294901760
    %v3908 = vsub.f32 %v189, %v3907
    %v3909 = vand.u32 %v3908, 4294901760
    %v3910 = vsub.f32 %v3908, %v3909
    %v3911 = vand.u32 %v3910, 4294901760
    %3912 = vmatpush1.msra.mxu0 %v3911
    %v3913 = vand.u32 %v202, 4294901760
    %v3914 = vsub.f32 %v202, %v3913
    %v3915 = vand.u32 %v3914, 4294901760
    %v3916 = vsub.f32 %v3914, %v3915
    %v3917 = vand.u32 %v3916, 4294901760
    %3918 = vmatprep.subr.mxu0 %v3917
    %v3919 = vand.u32 %v201, 4294901760
    %v3920 = vsub.f32 %v201, %v3919
    %v3921 = vand.u32 %v3920, 4294901760
    %v3922 = vsub.f32 %v3920, %v3921
    %v3923 = vand.u32 %v3922, 4294901760
    %3924 = vmatpush1.msra.mxu0 %v3923
    %v3925 = vand.u32 %v214, 4294901760
    %v3926 = vsub.f32 %v214, %v3925
    %v3927 = vand.u32 %v3926, 4294901760
    %v3928 = vsub.f32 %v3926, %v3927
    %v3929 = vand.u32 %v3928, 4294901760
    %3930 = vmatprep.subr.mxu0 %v3929
    %v3931 = vand.u32 %v213, 4294901760
    %v3932 = vsub.f32 %v213, %v3931
    %v3933 = vand.u32 %v3932, 4294901760
    %v3934 = vsub.f32 %v3932, %v3933
    %v3935 = vand.u32 %v3934, 4294901760
    %3936 = vmatpush1.msra.mxu0 %v3935
    %v3937 = vand.u32 %v226, 4294901760
    %v3938 = vsub.f32 %v226, %v3937
    %v3939 = vand.u32 %v3938, 4294901760
    %v3940 = vsub.f32 %v3938, %v3939
    %v3941 = vand.u32 %v3940, 4294901760
    %3942 = vmatprep.subr.mxu0 %v3941
    %v3943 = vand.u32 %v225, 4294901760
    %v3944 = vsub.f32 %v225, %v3943
    %v3945 = vand.u32 %v3944, 4294901760
    %v3946 = vsub.f32 %v3944, %v3945
    %v3947 = vand.u32 %v3946, 4294901760
    %3948 = vmatpush1.msra.mxu0 %v3947
    %v3949 = vand.u32 %v238, 4294901760
    %v3950 = vsub.f32 %v238, %v3949
    %v3951 = vand.u32 %v3950, 4294901760
    %v3952 = vsub.f32 %v3950, %v3951
    %v3953 = vand.u32 %v3952, 4294901760
    %3954 = vmatprep.subr.mxu0 %v3953
    %v3955 = vand.u32 %v237, 4294901760
    %v3956 = vsub.f32 %v237, %v3955
    %v3957 = vand.u32 %v3956, 4294901760
    %v3958 = vsub.f32 %v3956, %v3957
    %v3959 = vand.u32 %v3958, 4294901760
    %3960 = vmatpush1.msra.mxu0 %v3959
    %v3961 = vand.u32 %v250, 4294901760
    %v3962 = vsub.f32 %v250, %v3961
    %v3963 = vand.u32 %v3962, 4294901760
    %v3964 = vsub.f32 %v3962, %v3963
    %v3965 = vand.u32 %v3964, 4294901760
    %3966 = vmatprep.subr.mxu0 %v3965
    %v3967 = vand.u32 %v249, 4294901760
    %v3968 = vsub.f32 %v249, %v3967
    %v3969 = vand.u32 %v3968, 4294901760
    %v3970 = vsub.f32 %v3968, %v3969
    %v3971 = vand.u32 %v3970, 4294901760
    %3972 = vmatpush1.msra.mxu0 %v3971
    %3973 = vmatprep.subr.mxu0 0.0
    %3974 = vmatpush1.msra.mxu0 0.0
    %3975 = vmatprep.subr.mxu0 0.0
    %3976 = vmatpush1.msra.mxu0 0.0
    %3977 = vmatprep.subr.mxu0 0.0
    %3978 = vmatpush1.msra.mxu0 0.0
    %3979 = vmatprep.subr.mxu0 0.0
    %3980 = vmatpush1.msra.mxu0 0.0
    %3981 = vmatprep.subr.mxu0 0.0
    %3982 = vmatpush1.msra.mxu0 0.0
    %3983 = vmatprep.subr.mxu0 0.0
    %3984 = vmatpush1.msra.mxu0 0.0
    %3985 = vmatprep.subr.mxu0 0.0
    %3986 = vmatpush1.msra.mxu0 0.0
    %3987 = vmatprep.subr.mxu0 0.0
    %3988 = vmatpush1.msra.mxu0 0.0
    %3989 = vmatprep.subr.mxu0 0.0
    %3990 = vmatpush1.msra.mxu0 0.0
    %3991 = vmatprep.subr.mxu0 0.0
    %3992 = vmatpush1.msra.mxu0 0.0
    %3993 = vmatprep.subr.mxu0 0.0
    %3994 = vmatpush1.msra.mxu0 0.0
    %3995 = vmatprep.subr.mxu0 0.0
    %3996 = vmatpush1.msra.mxu0 0.0
    %3997 = vmatprep.subr.mxu0 0.0
    %3998 = vmatpush1.msra.mxu0 0.0
    %3999 = vmatprep.subr.mxu0 0.0
    %4000 = vmatpush1.msra.mxu0 0.0
    %4001 = vmatprep.subr.mxu0 0.0
    %4002 = vmatpush1.msra.mxu0 0.0
    %4003 = vmatprep.subr.mxu0 0.0
    %4004 = vmatpush1.msra.mxu0 0.0
    %4005 = vmatprep.mubr.f32.mxu0 0.0
    %v4006 = vand.u32 %v60, 4294901760
    %4007 = vmatmul.mubr.f32.gmra.mrb[0].mxu0 %v4006
    %v4008 = vpop.f32.mrb[0].mxu0
    %v4009 = vadd.f32 %v3777, %v4008
    %v4010 = vpop.f32.mrb[0].mxu0
    %v4011 = vadd.f32 %v3779, %v4010
    %4012 = vdwg.mxu0
    %v4013 = vand.u32 %v70, 4294901760
    %v4014 = vsub.f32 %v70, %v4013
    %4015 = vmatprep.subr.mxu0 %v4014
    %v4016 = vand.u32 %v69, 4294901760
    %v4017 = vsub.f32 %v69, %v4016
    %4018 = vmatpush1.msra.mxu0 %v4017
    %v4019 = vand.u32 %v82, 4294901760
    %v4020 = vsub.f32 %v82, %v4019
    %4021 = vmatprep.subr.mxu0 %v4020
    %v4022 = vand.u32 %v81, 4294901760
    %v4023 = vsub.f32 %v81, %v4022
    %4024 = vmatpush1.msra.mxu0 %v4023
    %v4025 = vand.u32 %v94, 4294901760
    %v4026 = vsub.f32 %v94, %v4025
    %4027 = vmatprep.subr.mxu0 %v4026
    %v4028 = vand.u32 %v93, 4294901760
    %v4029 = vsub.f32 %v93, %v4028
    %4030 = vmatpush1.msra.mxu0 %v4029
    %v4031 = vand.u32 %v106, 4294901760
    %v4032 = vsub.f32 %v106, %v4031
    %4033 = vmatprep.subr.mxu0 %v4032
    %v4034 = vand.u32 %v105, 4294901760
    %v4035 = vsub.f32 %v105, %v4034
    %4036 = vmatpush1.msra.mxu0 %v4035
    %v4037 = vand.u32 %v118, 4294901760
    %v4038 = vsub.f32 %v118, %v4037
    %4039 = vmatprep.subr.mxu0 %v4038
    %v4040 = vand.u32 %v117, 4294901760
    %v4041 = vsub.f32 %v117, %v4040
    %4042 = vmatpush1.msra.mxu0 %v4041
    %v4043 = vand.u32 %v130, 4294901760
    %v4044 = vsub.f32 %v130, %v4043
    %4045 = vmatprep.subr.mxu0 %v4044
    %v4046 = vand.u32 %v129, 4294901760
    %v4047 = vsub.f32 %v129, %v4046
    %4048 = vmatpush1.msra.mxu0 %v4047
    %v4049 = vand.u32 %v142, 4294901760
    %v4050 = vsub.f32 %v142, %v4049
    %4051 = vmatprep.subr.mxu0 %v4050
    %v4052 = vand.u32 %v141, 4294901760
    %v4053 = vsub.f32 %v141, %v4052
    %4054 = vmatpush1.msra.mxu0 %v4053
    %v4055 = vand.u32 %v154, 4294901760
    %v4056 = vsub.f32 %v154, %v4055
    %4057 = vmatprep.subr.mxu0 %v4056
    %v4058 = vand.u32 %v153, 4294901760
    %v4059 = vsub.f32 %v153, %v4058
    %4060 = vmatpush1.msra.mxu0 %v4059
    %v4061 = vand.u32 %v166, 4294901760
    %v4062 = vsub.f32 %v166, %v4061
    %4063 = vmatprep.subr.mxu0 %v4062
    %v4064 = vand.u32 %v165, 4294901760
    %v4065 = vsub.f32 %v165, %v4064
    %4066 = vmatpush1.msra.mxu0 %v4065
    %v4067 = vand.u32 %v178, 4294901760
    %v4068 = vsub.f32 %v178, %v4067
    %4069 = vmatprep.subr.mxu0 %v4068
    %v4070 = vand.u32 %v177, 4294901760
    %v4071 = vsub.f32 %v177, %v4070
    %4072 = vmatpush1.msra.mxu0 %v4071
    %v4073 = vand.u32 %v190, 4294901760
    %v4074 = vsub.f32 %v190, %v4073
    %4075 = vmatprep.subr.mxu0 %v4074
    %v4076 = vand.u32 %v189, 4294901760
    %v4077 = vsub.f32 %v189, %v4076
    %4078 = vmatpush1.msra.mxu0 %v4077
    %v4079 = vand.u32 %v202, 4294901760
    %v4080 = vsub.f32 %v202, %v4079
    %4081 = vmatprep.subr.mxu0 %v4080
    %v4082 = vand.u32 %v201, 4294901760
    %v4083 = vsub.f32 %v201, %v4082
    %4084 = vmatpush1.msra.mxu0 %v4083
    %v4085 = vand.u32 %v214, 4294901760
    %v4086 = vsub.f32 %v214, %v4085
    %4087 = vmatprep.subr.mxu0 %v4086
    %v4088 = vand.u32 %v213, 4294901760
    %v4089 = vsub.f32 %v213, %v4088
    %4090 = vmatpush1.msra.mxu0 %v4089
    %v4091 = vand.u32 %v226, 4294901760
    %v4092 = vsub.f32 %v226, %v4091
    %4093 = vmatprep.subr.mxu0 %v4092
    %v4094 = vand.u32 %v225, 4294901760
    %v4095 = vsub.f32 %v225, %v4094
    %4096 = vmatpush1.msra.mxu0 %v4095
    %v4097 = vand.u32 %v238, 4294901760
    %v4098 = vsub.f32 %v238, %v4097
    %4099 = vmatprep.subr.mxu0 %v4098
    %v4100 = vand.u32 %v237, 4294901760
    %v4101 = vsub.f32 %v237, %v4100
    %4102 = vmatpush1.msra.mxu0 %v4101
    %v4103 = vand.u32 %v250, 4294901760
    %v4104 = vsub.f32 %v250, %v4103
    %4105 = vmatprep.subr.mxu0 %v4104
    %v4106 = vand.u32 %v249, 4294901760
    %v4107 = vsub.f32 %v249, %v4106
    %4108 = vmatpush1.msra.mxu0 %v4107
    %4109 = vmatprep.subr.mxu0 0.0
    %4110 = vmatpush1.msra.mxu0 0.0
    %4111 = vmatprep.subr.mxu0 0.0
    %4112 = vmatpush1.msra.mxu0 0.0
    %4113 = vmatprep.subr.mxu0 0.0
    %4114 = vmatpush1.msra.mxu0 0.0
    %4115 = vmatprep.subr.mxu0 0.0
    %4116 = vmatpush1.msra.mxu0 0.0
    %4117 = vmatprep.subr.mxu0 0.0
    %4118 = vmatpush1.msra.mxu0 0.0
    %4119 = vmatprep.subr.mxu0 0.0
    %4120 = vmatpush1.msra.mxu0 0.0
    %4121 = vmatprep.subr.mxu0 0.0
    %4122 = vmatpush1.msra.mxu0 0.0
    %4123 = vmatprep.subr.mxu0 0.0
    %4124 = vmatpush1.msra.mxu0 0.0
    %4125 = vmatprep.subr.mxu0 0.0
    %4126 = vmatpush1.msra.mxu0 0.0
    %4127 = vmatprep.subr.mxu0 0.0
    %4128 = vmatpush1.msra.mxu0 0.0
    %4129 = vmatprep.subr.mxu0 0.0
    %4130 = vmatpush1.msra.mxu0 0.0
    %4131 = vmatprep.subr.mxu0 0.0
    %4132 = vmatpush1.msra.mxu0 0.0
    %4133 = vmatprep.subr.mxu0 0.0
    %4134 = vmatpush1.msra.mxu0 0.0
    %4135 = vmatprep.subr.mxu0 0.0
    %4136 = vmatpush1.msra.mxu0 0.0
    %4137 = vmatprep.subr.mxu0 0.0
    %4138 = vmatpush1.msra.mxu0 0.0
    %4139 = vmatprep.subr.mxu0 0.0
    %4140 = vmatpush1.msra.mxu0 0.0
    %4141 = vmatprep.mubr.f32.mxu0 0.0
    %v4142 = vand.u32 %v60, 4294901760
    %v4143 = vsub.f32 %v60, %v4142
    %4144 = vmatmul.mubr.f32.gmra.mrb[0].mxu0 %v4143
    %v4145 = vpop.f32.mrb[0].mxu0
    %v4146 = vadd.f32 %v4009, %v4145
    %v4147 = vpop.f32.mrb[0].mxu0
    %v4148 = vadd.f32 %v4011, %v4147
    %4149 = vdwg.mxu0
    %v4150 = vand.u32 %v70, 4294901760
    %4151 = vmatprep.subr.mxu0 %v4150
    %v4152 = vand.u32 %v69, 4294901760
    %4153 = vmatpush1.msra.mxu0 %v4152
    %v4154 = vand.u32 %v82, 4294901760
    %4155 = vmatprep.subr.mxu0 %v4154
    %v4156 = vand.u32 %v81, 4294901760
    %4157 = vmatpush1.msra.mxu0 %v4156
    %v4158 = vand.u32 %v94, 4294901760
    %4159 = vmatprep.subr.mxu0 %v4158
    %v4160 = vand.u32 %v93, 4294901760
    %4161 = vmatpush1.msra.mxu0 %v4160
    %v4162 = vand.u32 %v106, 4294901760
    %4163 = vmatprep.subr.mxu0 %v4162
    %v4164 = vand.u32 %v105, 4294901760
    %4165 = vmatpush1.msra.mxu0 %v4164
    %v4166 = vand.u32 %v118, 4294901760
    %4167 = vmatprep.subr.mxu0 %v4166
    %v4168 = vand.u32 %v117, 4294901760
    %4169 = vmatpush1.msra.mxu0 %v4168
    %v4170 = vand.u32 %v130, 4294901760
    %4171 = vmatprep.subr.mxu0 %v4170
    %v4172 = vand.u32 %v129, 4294901760
    %4173 = vmatpush1.msra.mxu0 %v4172
    %v4174 = vand.u32 %v142, 4294901760
    %4175 = vmatprep.subr.mxu0 %v4174
    %v4176 = vand.u32 %v141, 4294901760
    %4177 = vmatpush1.msra.mxu0 %v4176
    %v4178 = vand.u32 %v154, 4294901760
    %4179 = vmatprep.subr.mxu0 %v4178
    %v4180 = vand.u32 %v153, 4294901760
    %4181 = vmatpush1.msra.mxu0 %v4180
    %v4182 = vand.u32 %v166, 4294901760
    %4183 = vmatprep.subr.mxu0 %v4182
    %v4184 = vand.u32 %v165, 4294901760
    %4185 = vmatpush1.msra.mxu0 %v4184
    %v4186 = vand.u32 %v178, 4294901760
    %4187 = vmatprep.subr.mxu0 %v4186
    %v4188 = vand.u32 %v177, 4294901760
    %4189 = vmatpush1.msra.mxu0 %v4188
    %v4190 = vand.u32 %v190, 4294901760
    %4191 = vmatprep.subr.mxu0 %v4190
    %v4192 = vand.u32 %v189, 4294901760
    %4193 = vmatpush1.msra.mxu0 %v4192
    %v4194 = vand.u32 %v202, 4294901760
    %4195 = vmatprep.subr.mxu0 %v4194
    %v4196 = vand.u32 %v201, 4294901760
    %4197 = vmatpush1.msra.mxu0 %v4196
    %v4198 = vand.u32 %v214, 4294901760
    %4199 = vmatprep.subr.mxu0 %v4198
    %v4200 = vand.u32 %v213, 4294901760
    %4201 = vmatpush1.msra.mxu0 %v4200
    %v4202 = vand.u32 %v226, 4294901760
    %4203 = vmatprep.subr.mxu0 %v4202
    %v4204 = vand.u32 %v225, 4294901760
    %4205 = vmatpush1.msra.mxu0 %v4204
    %v4206 = vand.u32 %v238, 4294901760
    %4207 = vmatprep.subr.mxu0 %v4206
    %v4208 = vand.u32 %v237, 4294901760
    %4209 = vmatpush1.msra.mxu0 %v4208
    %v4210 = vand.u32 %v250, 4294901760
    %4211 = vmatprep.subr.mxu0 %v4210
    %v4212 = vand.u32 %v249, 4294901760
    %4213 = vmatpush1.msra.mxu0 %v4212
    %4214 = vmatprep.subr.mxu0 0.0
    %4215 = vmatpush1.msra.mxu0 0.0
    %4216 = vmatprep.subr.mxu0 0.0
    %4217 = vmatpush1.msra.mxu0 0.0
    %4218 = vmatprep.subr.mxu0 0.0
    %4219 = vmatpush1.msra.mxu0 0.0
    %4220 = vmatprep.subr.mxu0 0.0
    %4221 = vmatpush1.msra.mxu0 0.0
    %4222 = vmatprep.subr.mxu0 0.0
    %4223 = vmatpush1.msra.mxu0 0.0
    %4224 = vmatprep.subr.mxu0 0.0
    %4225 = vmatpush1.msra.mxu0 0.0
    %4226 = vmatprep.subr.mxu0 0.0
    %4227 = vmatpush1.msra.mxu0 0.0
    %4228 = vmatprep.subr.mxu0 0.0
    %4229 = vmatpush1.msra.mxu0 0.0
    %4230 = vmatprep.subr.mxu0 0.0
    %4231 = vmatpush1.msra.mxu0 0.0
    %4232 = vmatprep.subr.mxu0 0.0
    %4233 = vmatpush1.msra.mxu0 0.0
    %4234 = vmatprep.subr.mxu0 0.0
    %4235 = vmatpush1.msra.mxu0 0.0
    %4236 = vmatprep.subr.mxu0 0.0
    %4237 = vmatpush1.msra.mxu0 0.0
    %4238 = vmatprep.subr.mxu0 0.0
    %4239 = vmatpush1.msra.mxu0 0.0
    %4240 = vmatprep.subr.mxu0 0.0
    %4241 = vmatpush1.msra.mxu0 0.0
    %4242 = vmatprep.subr.mxu0 0.0
    %4243 = vmatpush1.msra.mxu0 0.0
    %4244 = vmatprep.subr.mxu0 0.0
    %4245 = vmatpush1.msra.mxu0 0.0
    %4246 = vmatprep.mubr.f32.mxu0 0.0
    %v4247 = vand.u32 %v60, 4294901760
    %v4248 = vsub.f32 %v60, %v4247
    %v4249 = vand.u32 %v4248, 4294901760
    %4250 = vmatmul.mubr.f32.gmra.mrb[0].mxu0 %v4249
    %v4251 = vpop.f32.mrb[0].mxu0
    %v4252 = vadd.f32 %v4146, %v4251
    %v4253 = vpop.f32.mrb[0].mxu0
    %v4254 = vadd.f32 %v4148, %v4253
    %4255 = vdwg.mxu0
    %v4256 = vand.u32 %v70, 4294901760
    %v4257 = vsub.f32 %v70, %v4256
    %v4258 = vand.u32 %v4257, 4294901760
    %4259 = vmatprep.subr.mxu0 %v4258
    %v4260 = vand.u32 %v69, 4294901760
    %v4261 = vsub.f32 %v69, %v4260
    %v4262 = vand.u32 %v4261, 4294901760
    %4263 = vmatpush1.msra.mxu0 %v4262
    %v4264 = vand.u32 %v82, 4294901760
    %v4265 = vsub.f32 %v82, %v4264
    %v4266 = vand.u32 %v4265, 4294901760
    %4267 = vmatprep.subr.mxu0 %v4266
    %v4268 = vand.u32 %v81, 4294901760
    %v4269 = vsub.f32 %v81, %v4268
    %v4270 = vand.u32 %v4269, 4294901760
    %4271 = vmatpush1.msra.mxu0 %v4270
    %v4272 = vand.u32 %v94, 4294901760
    %v4273 = vsub.f32 %v94, %v4272
    %v4274 = vand.u32 %v4273, 4294901760
    %4275 = vmatprep.subr.mxu0 %v4274
    %v4276 = vand.u32 %v93, 4294901760
    %v4277 = vsub.f32 %v93, %v4276
    %v4278 = vand.u32 %v4277, 4294901760
    %4279 = vmatpush1.msra.mxu0 %v4278
    %v4280 = vand.u32 %v106, 4294901760
    %v4281 = vsub.f32 %v106, %v4280
    %v4282 = vand.u32 %v4281, 4294901760
    %4283 = vmatprep.subr.mxu0 %v4282
    %v4284 = vand.u32 %v105, 4294901760
    %v4285 = vsub.f32 %v105, %v4284
    %v4286 = vand.u32 %v4285, 4294901760
    %4287 = vmatpush1.msra.mxu0 %v4286
    %v4288 = vand.u32 %v118, 4294901760
    %v4289 = vsub.f32 %v118, %v4288
    %v4290 = vand.u32 %v4289, 4294901760
    %4291 = vmatprep.subr.mxu0 %v4290
    %v4292 = vand.u32 %v117, 4294901760
    %v4293 = vsub.f32 %v117, %v4292
    %v4294 = vand.u32 %v4293, 4294901760
    %4295 = vmatpush1.msra.mxu0 %v4294
    %v4296 = vand.u32 %v130, 4294901760
    %v4297 = vsub.f32 %v130, %v4296
    %v4298 = vand.u32 %v4297, 4294901760
    %4299 = vmatprep.subr.mxu0 %v4298
    %v4300 = vand.u32 %v129, 4294901760
    %v4301 = vsub.f32 %v129, %v4300
    %v4302 = vand.u32 %v4301, 4294901760
    %4303 = vmatpush1.msra.mxu0 %v4302
    %v4304 = vand.u32 %v142, 4294901760
    %v4305 = vsub.f32 %v142, %v4304
    %v4306 = vand.u32 %v4305, 4294901760
    %4307 = vmatprep.subr.mxu0 %v4306
    %v4308 = vand.u32 %v141, 4294901760
    %v4309 = vsub.f32 %v141, %v4308
    %v4310 = vand.u32 %v4309, 4294901760
    %4311 = vmatpush1.msra.mxu0 %v4310
    %v4312 = vand.u32 %v154, 4294901760
    %v4313 = vsub.f32 %v154, %v4312
    %v4314 = vand.u32 %v4313, 4294901760
    %4315 = vmatprep.subr.mxu0 %v4314
    %v4316 = vand.u32 %v153, 4294901760
    %v4317 = vsub.f32 %v153, %v4316
    %v4318 = vand.u32 %v4317, 4294901760
    %4319 = vmatpush1.msra.mxu0 %v4318
    %v4320 = vand.u32 %v166, 4294901760
    %v4321 = vsub.f32 %v166, %v4320
    %v4322 = vand.u32 %v4321, 4294901760
    %4323 = vmatprep.subr.mxu0 %v4322
    %v4324 = vand.u32 %v165, 4294901760
    %v4325 = vsub.f32 %v165, %v4324
    %v4326 = vand.u32 %v4325, 4294901760
    %4327 = vmatpush1.msra.mxu0 %v4326
    %v4328 = vand.u32 %v178, 4294901760
    %v4329 = vsub.f32 %v178, %v4328
    %v4330 = vand.u32 %v4329, 4294901760
    %4331 = vmatprep.subr.mxu0 %v4330
    %v4332 = vand.u32 %v177, 4294901760
    %v4333 = vsub.f32 %v177, %v4332
    %v4334 = vand.u32 %v4333, 4294901760
    %4335 = vmatpush1.msra.mxu0 %v4334
    %v4336 = vand.u32 %v190, 4294901760
    %v4337 = vsub.f32 %v190, %v4336
    %v4338 = vand.u32 %v4337, 4294901760
    %4339 = vmatprep.subr.mxu0 %v4338
    %v4340 = vand.u32 %v189, 4294901760
    %v4341 = vsub.f32 %v189, %v4340
    %v4342 = vand.u32 %v4341, 4294901760
    %4343 = vmatpush1.msra.mxu0 %v4342
    %v4344 = vand.u32 %v202, 4294901760
    %v4345 = vsub.f32 %v202, %v4344
    %v4346 = vand.u32 %v4345, 4294901760
    %4347 = vmatprep.subr.mxu0 %v4346
    %v4348 = vand.u32 %v201, 4294901760
    %v4349 = vsub.f32 %v201, %v4348
    %v4350 = vand.u32 %v4349, 4294901760
    %4351 = vmatpush1.msra.mxu0 %v4350
    %v4352 = vand.u32 %v214, 4294901760
    %v4353 = vsub.f32 %v214, %v4352
    %v4354 = vand.u32 %v4353, 4294901760
    %4355 = vmatprep.subr.mxu0 %v4354
    %v4356 = vand.u32 %v213, 4294901760
    %v4357 = vsub.f32 %v213, %v4356
    %v4358 = vand.u32 %v4357, 4294901760
    %4359 = vmatpush1.msra.mxu0 %v4358
    %v4360 = vand.u32 %v226, 4294901760
    %v4361 = vsub.f32 %v226, %v4360
    %v4362 = vand.u32 %v4361, 4294901760
    %4363 = vmatprep.subr.mxu0 %v4362
    %v4364 = vand.u32 %v225, 4294901760
    %v4365 = vsub.f32 %v225, %v4364
    %v4366 = vand.u32 %v4365, 4294901760
    %4367 = vmatpush1.msra.mxu0 %v4366
    %v4368 = vand.u32 %v238, 4294901760
    %v4369 = vsub.f32 %v238, %v4368
    %v4370 = vand.u32 %v4369, 4294901760
    %4371 = vmatprep.subr.mxu0 %v4370
    %v4372 = vand.u32 %v237, 4294901760
    %v4373 = vsub.f32 %v237, %v4372
    %v4374 = vand.u32 %v4373, 4294901760
    %4375 = vmatpush1.msra.mxu0 %v4374
    %v4376 = vand.u32 %v250, 4294901760
    %v4377 = vsub.f32 %v250, %v4376
    %v4378 = vand.u32 %v4377, 4294901760
    %4379 = vmatprep.subr.mxu0 %v4378
    %v4380 = vand.u32 %v249, 4294901760
    %v4381 = vsub.f32 %v249, %v4380
    %v4382 = vand.u32 %v4381, 4294901760
    %4383 = vmatpush1.msra.mxu0 %v4382
    %4384 = vmatprep.subr.mxu0 0.0
    %4385 = vmatpush1.msra.mxu0 0.0
    %4386 = vmatprep.subr.mxu0 0.0
    %4387 = vmatpush1.msra.mxu0 0.0
    %4388 = vmatprep.subr.mxu0 0.0
    %4389 = vmatpush1.msra.mxu0 0.0
    %4390 = vmatprep.subr.mxu0 0.0
    %4391 = vmatpush1.msra.mxu0 0.0
    %4392 = vmatprep.subr.mxu0 0.0
    %4393 = vmatpush1.msra.mxu0 0.0
    %4394 = vmatprep.subr.mxu0 0.0
    %4395 = vmatpush1.msra.mxu0 0.0
    %4396 = vmatprep.subr.mxu0 0.0
    %4397 = vmatpush1.msra.mxu0 0.0
    %4398 = vmatprep.subr.mxu0 0.0
    %4399 = vmatpush1.msra.mxu0 0.0
    %4400 = vmatprep.subr.mxu0 0.0
    %4401 = vmatpush1.msra.mxu0 0.0
    %4402 = vmatprep.subr.mxu0 0.0
    %4403 = vmatpush1.msra.mxu0 0.0
    %4404 = vmatprep.subr.mxu0 0.0
    %4405 = vmatpush1.msra.mxu0 0.0
    %4406 = vmatprep.subr.mxu0 0.0
    %4407 = vmatpush1.msra.mxu0 0.0
    %4408 = vmatprep.subr.mxu0 0.0
    %4409 = vmatpush1.msra.mxu0 0.0
    %4410 = vmatprep.subr.mxu0 0.0
    %4411 = vmatpush1.msra.mxu0 0.0
    %4412 = vmatprep.subr.mxu0 0.0
    %4413 = vmatpush1.msra.mxu0 0.0
    %4414 = vmatprep.subr.mxu0 0.0
    %4415 = vmatpush1.msra.mxu0 0.0
    %4416 = vmatprep.mubr.f32.mxu0 0.0
    %v4417 = vand.u32 %v60, 4294901760
    %4418 = vmatmul.mubr.f32.gmra.mrb[0].mxu0 %v4417
    %v4419 = vpop.f32.mrb[0].mxu0
    %v4420 = vadd.f32 %v4252, %v4419
    %v4421 = vpop.f32.mrb[0].mxu0
    %v4422 = vadd.f32 %v4254, %v4421
    %4423 = vdwg.mxu0
    %v4424 = vand.u32 %v70, 4294901760
    %4425 = vmatprep.subr.mxu0 %v4424
    %v4426 = vand.u32 %v69, 4294901760
    %4427 = vmatpush1.msra.mxu0 %v4426
    %v4428 = vand.u32 %v82, 4294901760
    %4429 = vmatprep.subr.mxu0 %v4428
    %v4430 = vand.u32 %v81, 4294901760
    %4431 = vmatpush1.msra.mxu0 %v4430
    %v4432 = vand.u32 %v94, 4294901760
    %4433 = vmatprep.subr.mxu0 %v4432
    %v4434 = vand.u32 %v93, 4294901760
    %4435 = vmatpush1.msra.mxu0 %v4434
    %v4436 = vand.u32 %v106, 4294901760
    %4437 = vmatprep.subr.mxu0 %v4436
    %v4438 = vand.u32 %v105, 4294901760
    %4439 = vmatpush1.msra.mxu0 %v4438
    %v4440 = vand.u32 %v118, 4294901760
    %4441 = vmatprep.subr.mxu0 %v4440
    %v4442 = vand.u32 %v117, 4294901760
    %4443 = vmatpush1.msra.mxu0 %v4442
    %v4444 = vand.u32 %v130, 4294901760
    %4445 = vmatprep.subr.mxu0 %v4444
    %v4446 = vand.u32 %v129, 4294901760
    %4447 = vmatpush1.msra.mxu0 %v4446
    %v4448 = vand.u32 %v142, 4294901760
    %4449 = vmatprep.subr.mxu0 %v4448
    %v4450 = vand.u32 %v141, 4294901760
    %4451 = vmatpush1.msra.mxu0 %v4450
    %v4452 = vand.u32 %v154, 4294901760
    %4453 = vmatprep.subr.mxu0 %v4452
    %v4454 = vand.u32 %v153, 4294901760
    %4455 = vmatpush1.msra.mxu0 %v4454
    %v4456 = vand.u32 %v166, 4294901760
    %4457 = vmatprep.subr.mxu0 %v4456
    %v4458 = vand.u32 %v165, 4294901760
    %4459 = vmatpush1.msra.mxu0 %v4458
    %v4460 = vand.u32 %v178, 4294901760
    %4461 = vmatprep.subr.mxu0 %v4460
    %v4462 = vand.u32 %v177, 4294901760
    %4463 = vmatpush1.msra.mxu0 %v4462
    %v4464 = vand.u32 %v190, 4294901760
    %4465 = vmatprep.subr.mxu0 %v4464
    %v4466 = vand.u32 %v189, 4294901760
    %4467 = vmatpush1.msra.mxu0 %v4466
    %v4468 = vand.u32 %v202, 4294901760
    %4469 = vmatprep.subr.mxu0 %v4468
    %v4470 = vand.u32 %v201, 4294901760
    %4471 = vmatpush1.msra.mxu0 %v4470
    %v4472 = vand.u32 %v214, 4294901760
    %4473 = vmatprep.subr.mxu0 %v4472
    %v4474 = vand.u32 %v213, 4294901760
    %4475 = vmatpush1.msra.mxu0 %v4474
    %v4476 = vand.u32 %v226, 4294901760
    %4477 = vmatprep.subr.mxu0 %v4476
    %v4478 = vand.u32 %v225, 4294901760
    %4479 = vmatpush1.msra.mxu0 %v4478
    %v4480 = vand.u32 %v238, 4294901760
    %4481 = vmatprep.subr.mxu0 %v4480
    %v4482 = vand.u32 %v237, 4294901760
    %4483 = vmatpush1.msra.mxu0 %v4482
    %v4484 = vand.u32 %v250, 4294901760
    %4485 = vmatprep.subr.mxu0 %v4484
    %v4486 = vand.u32 %v249, 4294901760
    %4487 = vmatpush1.msra.mxu0 %v4486
    %4488 = vmatprep.subr.mxu0 0.0
    %4489 = vmatpush1.msra.mxu0 0.0
    %4490 = vmatprep.subr.mxu0 0.0
    %4491 = vmatpush1.msra.mxu0 0.0
    %4492 = vmatprep.subr.mxu0 0.0
    %4493 = vmatpush1.msra.mxu0 0.0
    %4494 = vmatprep.subr.mxu0 0.0
    %4495 = vmatpush1.msra.mxu0 0.0
    %4496 = vmatprep.subr.mxu0 0.0
    %4497 = vmatpush1.msra.mxu0 0.0
    %4498 = vmatprep.subr.mxu0 0.0
    %4499 = vmatpush1.msra.mxu0 0.0
    %4500 = vmatprep.subr.mxu0 0.0
    %4501 = vmatpush1.msra.mxu0 0.0
    %4502 = vmatprep.subr.mxu0 0.0
    %4503 = vmatpush1.msra.mxu0 0.0
    %4504 = vmatprep.subr.mxu0 0.0
    %4505 = vmatpush1.msra.mxu0 0.0
    %4506 = vmatprep.subr.mxu0 0.0
    %4507 = vmatpush1.msra.mxu0 0.0
    %4508 = vmatprep.subr.mxu0 0.0
    %4509 = vmatpush1.msra.mxu0 0.0
    %4510 = vmatprep.subr.mxu0 0.0
    %4511 = vmatpush1.msra.mxu0 0.0
    %4512 = vmatprep.subr.mxu0 0.0
    %4513 = vmatpush1.msra.mxu0 0.0
    %4514 = vmatprep.subr.mxu0 0.0
    %4515 = vmatpush1.msra.mxu0 0.0
    %4516 = vmatprep.subr.mxu0 0.0
    %4517 = vmatpush1.msra.mxu0 0.0
    %4518 = vmatprep.subr.mxu0 0.0
    %4519 = vmatpush1.msra.mxu0 0.0
    %4520 = vmatprep.mubr.f32.mxu0 0.0
    %v4521 = vand.u32 %v60, 4294901760
    %4522 = vmatmul.mubr.f32.gmra.mrb[0].mxu0 %v4521
    %v4523 = vpop.f32.mrb[0].mxu0
    %v4524 = vadd.f32 %v4420, %v4523
    %v4525 = vpop.f32.mrb[0].mxu0
    %v4526 = vadd.f32 %v4422, %v4525
    %4527 = vdwg.mxu0
    %v4528 = vand.u32 %v72, 4294901760
    %4529 = vmatprep.subr.mxu0 %v4528
    %v4530 = vand.u32 %v71, 4294901760
    %4531 = vmatpush1.msra.mxu0 %v4530
    %v4532 = vand.u32 %v84, 4294901760
    %4533 = vmatprep.subr.mxu0 %v4532
    %v4534 = vand.u32 %v83, 4294901760
    %4535 = vmatpush1.msra.mxu0 %v4534
    %v4536 = vand.u32 %v96, 4294901760
    %4537 = vmatprep.subr.mxu0 %v4536
    %v4538 = vand.u32 %v95, 4294901760
    %4539 = vmatpush1.msra.mxu0 %v4538
    %v4540 = vand.u32 %v108, 4294901760
    %4541 = vmatprep.subr.mxu0 %v4540
    %v4542 = vand.u32 %v107, 4294901760
    %4543 = vmatpush1.msra.mxu0 %v4542
    %v4544 = vand.u32 %v120, 4294901760
    %4545 = vmatprep.subr.mxu0 %v4544
    %v4546 = vand.u32 %v119, 4294901760
    %4547 = vmatpush1.msra.mxu0 %v4546
    %v4548 = vand.u32 %v132, 4294901760
    %4549 = vmatprep.subr.mxu0 %v4548
    %v4550 = vand.u32 %v131, 4294901760
    %4551 = vmatpush1.msra.mxu0 %v4550
    %v4552 = vand.u32 %v144, 4294901760
    %4553 = vmatprep.subr.mxu0 %v4552
    %v4554 = vand.u32 %v143, 4294901760
    %4555 = vmatpush1.msra.mxu0 %v4554
    %v4556 = vand.u32 %v156, 4294901760
    %4557 = vmatprep.subr.mxu0 %v4556
    %v4558 = vand.u32 %v155, 4294901760
    %4559 = vmatpush1.msra.mxu0 %v4558
    %v4560 = vand.u32 %v168, 4294901760
    %4561 = vmatprep.subr.mxu0 %v4560
    %v4562 = vand.u32 %v167, 4294901760
    %4563 = vmatpush1.msra.mxu0 %v4562
    %v4564 = vand.u32 %v180, 4294901760
    %4565 = vmatprep.subr.mxu0 %v4564
    %v4566 = vand.u32 %v179, 4294901760
    %4567 = vmatpush1.msra.mxu0 %v4566
    %v4568 = vand.u32 %v192, 4294901760
    %4569 = vmatprep.subr.mxu0 %v4568
    %v4570 = vand.u32 %v191, 4294901760
    %4571 = vmatpush1.msra.mxu0 %v4570
    %v4572 = vand.u32 %v204, 4294901760
    %4573 = vmatprep.subr.mxu0 %v4572
    %v4574 = vand.u32 %v203, 4294901760
    %4575 = vmatpush1.msra.mxu0 %v4574
    %v4576 = vand.u32 %v216, 4294901760
    %4577 = vmatprep.subr.mxu0 %v4576
    %v4578 = vand.u32 %v215, 4294901760
    %4579 = vmatpush1.msra.mxu0 %v4578
    %v4580 = vand.u32 %v228, 4294901760
    %4581 = vmatprep.subr.mxu0 %v4580
    %v4582 = vand.u32 %v227, 4294901760
    %4583 = vmatpush1.msra.mxu0 %v4582
    %v4584 = vand.u32 %v240, 4294901760
    %4585 = vmatprep.subr.mxu0 %v4584
    %v4586 = vand.u32 %v239, 4294901760
    %4587 = vmatpush1.msra.mxu0 %v4586
    %v4588 = vand.u32 %v252, 4294901760
    %4589 = vmatprep.subr.mxu0 %v4588
    %v4590 = vand.u32 %v251, 4294901760
    %4591 = vmatpush1.msra.mxu0 %v4590
    %4592 = vmatprep.subr.mxu0 0.0
    %4593 = vmatpush1.msra.mxu0 0.0
    %4594 = vmatprep.subr.mxu0 0.0
    %4595 = vmatpush1.msra.mxu0 0.0
    %4596 = vmatprep.subr.mxu0 0.0
    %4597 = vmatpush1.msra.mxu0 0.0
    %4598 = vmatprep.subr.mxu0 0.0
    %4599 = vmatpush1.msra.mxu0 0.0
    %4600 = vmatprep.subr.mxu0 0.0
    %4601 = vmatpush1.msra.mxu0 0.0
    %4602 = vmatprep.subr.mxu0 0.0
    %4603 = vmatpush1.msra.mxu0 0.0
    %4604 = vmatprep.subr.mxu0 0.0
    %4605 = vmatpush1.msra.mxu0 0.0
    %4606 = vmatprep.subr.mxu0 0.0
    %4607 = vmatpush1.msra.mxu0 0.0
    %4608 = vmatprep.subr.mxu0 0.0
    %4609 = vmatpush1.msra.mxu0 0.0
    %4610 = vmatprep.subr.mxu0 0.0
    %4611 = vmatpush1.msra.mxu0 0.0
    %4612 = vmatprep.subr.mxu0 0.0
    %4613 = vmatpush1.msra.mxu0 0.0
    %4614 = vmatprep.subr.mxu0 0.0
    %4615 = vmatpush1.msra.mxu0 0.0
    %4616 = vmatprep.subr.mxu0 0.0
    %4617 = vmatpush1.msra.mxu0 0.0
    %4618 = vmatprep.subr.mxu0 0.0
    %4619 = vmatpush1.msra.mxu0 0.0
    %4620 = vmatprep.subr.mxu0 0.0
    %4621 = vmatpush1.msra.mxu0 0.0
    %4622 = vmatprep.subr.mxu0 0.0
    %4623 = vmatpush1.msra.mxu0 0.0
    %4624 = vmatprep.mubr.f32.mxu0 0.0
    %v4625 = vand.u32 %v60, 4294901760
    %v4626 = vsub.f32 %v60, %v4625
    %v4627 = vand.u32 %v4626, 4294901760
    %v4628 = vsub.f32 %v4626, %v4627
    %v4629 = vand.u32 %v4628, 4294901760
    %4630 = vmatmul.mubr.f32.gmra.mrb[0].mxu0 %v4629
    %v4631 = vpop.f32.mrb[0].mxu0
    %v4632 = vadd.f32 0.0, %v4631
    %v4633 = vpop.f32.mrb[0].mxu0
    %v4634 = vadd.f32 0.0, %v4633
    %4635 = vdwg.mxu0
    %v4636 = vand.u32 %v72, 4294901760
    %v4637 = vsub.f32 %v72, %v4636
    %v4638 = vand.u32 %v4637, 4294901760
    %v4639 = vsub.f32 %v4637, %v4638
    %v4640 = vand.u32 %v4639, 4294901760
    %4641 = vmatprep.subr.mxu0 %v4640
    %v4642 = vand.u32 %v71, 4294901760
    %v4643 = vsub.f32 %v71, %v4642
    %v4644 = vand.u32 %v4643, 4294901760
    %v4645 = vsub.f32 %v4643, %v4644
    %v4646 = vand.u32 %v4645, 4294901760
    %4647 = vmatpush1.msra.mxu0 %v4646
    %v4648 = vand.u32 %v84, 4294901760
    %v4649 = vsub.f32 %v84, %v4648
    %v4650 = vand.u32 %v4649, 4294901760
    %v4651 = vsub.f32 %v4649, %v4650
    %v4652 = vand.u32 %v4651, 4294901760
    %4653 = vmatprep.subr.mxu0 %v4652
    %v4654 = vand.u32 %v83, 4294901760
    %v4655 = vsub.f32 %v83, %v4654
    %v4656 = vand.u32 %v4655, 4294901760
    %v4657 = vsub.f32 %v4655, %v4656
    %v4658 = vand.u32 %v4657, 4294901760
    %4659 = vmatpush1.msra.mxu0 %v4658
    %v4660 = vand.u32 %v96, 4294901760
    %v4661 = vsub.f32 %v96, %v4660
    %v4662 = vand.u32 %v4661, 4294901760
    %v4663 = vsub.f32 %v4661, %v4662
    %v4664 = vand.u32 %v4663, 4294901760
    %4665 = vmatprep.subr.mxu0 %v4664
    %v4666 = vand.u32 %v95, 4294901760
    %v4667 = vsub.f32 %v95, %v4666
    %v4668 = vand.u32 %v4667, 4294901760
    %v4669 = vsub.f32 %v4667, %v4668
    %v4670 = vand.u32 %v4669, 4294901760
    %4671 = vmatpush1.msra.mxu0 %v4670
    %v4672 = vand.u32 %v108, 4294901760
    %v4673 = vsub.f32 %v108, %v4672
    %v4674 = vand.u32 %v4673, 4294901760
    %v4675 = vsub.f32 %v4673, %v4674
    %v4676 = vand.u32 %v4675, 4294901760
    %4677 = vmatprep.subr.mxu0 %v4676
    %v4678 = vand.u32 %v107, 4294901760
    %v4679 = vsub.f32 %v107, %v4678
    %v4680 = vand.u32 %v4679, 4294901760
    %v4681 = vsub.f32 %v4679, %v4680
    %v4682 = vand.u32 %v4681, 4294901760
    %4683 = vmatpush1.msra.mxu0 %v4682
    %v4684 = vand.u32 %v120, 4294901760
    %v4685 = vsub.f32 %v120, %v4684
    %v4686 = vand.u32 %v4685, 4294901760
    %v4687 = vsub.f32 %v4685, %v4686
    %v4688 = vand.u32 %v4687, 4294901760
    %4689 = vmatprep.subr.mxu0 %v4688
    %v4690 = vand.u32 %v119, 4294901760
    %v4691 = vsub.f32 %v119, %v4690
    %v4692 = vand.u32 %v4691, 4294901760
    %v4693 = vsub.f32 %v4691, %v4692
    %v4694 = vand.u32 %v4693, 4294901760
    %4695 = vmatpush1.msra.mxu0 %v4694
    %v4696 = vand.u32 %v132, 4294901760
    %v4697 = vsub.f32 %v132, %v4696
    %v4698 = vand.u32 %v4697, 4294901760
    %v4699 = vsub.f32 %v4697, %v4698
    %v4700 = vand.u32 %v4699, 4294901760
    %4701 = vmatprep.subr.mxu0 %v4700
    %v4702 = vand.u32 %v131, 4294901760
    %v4703 = vsub.f32 %v131, %v4702
    %v4704 = vand.u32 %v4703, 4294901760
    %v4705 = vsub.f32 %v4703, %v4704
    %v4706 = vand.u32 %v4705, 4294901760
    %4707 = vmatpush1.msra.mxu0 %v4706
    %v4708 = vand.u32 %v144, 4294901760
    %v4709 = vsub.f32 %v144, %v4708
    %v4710 = vand.u32 %v4709, 4294901760
    %v4711 = vsub.f32 %v4709, %v4710
    %v4712 = vand.u32 %v4711, 4294901760
    %4713 = vmatprep.subr.mxu0 %v4712
    %v4714 = vand.u32 %v143, 4294901760
    %v4715 = vsub.f32 %v143, %v4714
    %v4716 = vand.u32 %v4715, 4294901760
    %v4717 = vsub.f32 %v4715, %v4716
    %v4718 = vand.u32 %v4717, 4294901760
    %4719 = vmatpush1.msra.mxu0 %v4718
    %v4720 = vand.u32 %v156, 4294901760
    %v4721 = vsub.f32 %v156, %v4720
    %v4722 = vand.u32 %v4721, 4294901760
    %v4723 = vsub.f32 %v4721, %v4722
    %v4724 = vand.u32 %v4723, 4294901760
    %4725 = vmatprep.subr.mxu0 %v4724
    %v4726 = vand.u32 %v155, 4294901760
    %v4727 = vsub.f32 %v155, %v4726
    %v4728 = vand.u32 %v4727, 4294901760
    %v4729 = vsub.f32 %v4727, %v4728
    %v4730 = vand.u32 %v4729, 4294901760
    %4731 = vmatpush1.msra.mxu0 %v4730
    %v4732 = vand.u32 %v168, 4294901760
    %v4733 = vsub.f32 %v168, %v4732
    %v4734 = vand.u32 %v4733, 4294901760
    %v4735 = vsub.f32 %v4733, %v4734
    %v4736 = vand.u32 %v4735, 4294901760
    %4737 = vmatprep.subr.mxu0 %v4736
    %v4738 = vand.u32 %v167, 4294901760
    %v4739 = vsub.f32 %v167, %v4738
    %v4740 = vand.u32 %v4739, 4294901760
    %v4741 = vsub.f32 %v4739, %v4740
    %v4742 = vand.u32 %v4741, 4294901760
    %4743 = vmatpush1.msra.mxu0 %v4742
    %v4744 = vand.u32 %v180, 4294901760
    %v4745 = vsub.f32 %v180, %v4744
    %v4746 = vand.u32 %v4745, 4294901760
    %v4747 = vsub.f32 %v4745, %v4746
    %v4748 = vand.u32 %v4747, 4294901760
    %4749 = vmatprep.subr.mxu0 %v4748
    %v4750 = vand.u32 %v179, 4294901760
    %v4751 = vsub.f32 %v179, %v4750
    %v4752 = vand.u32 %v4751, 4294901760
    %v4753 = vsub.f32 %v4751, %v4752
    %v4754 = vand.u32 %v4753, 4294901760
    %4755 = vmatpush1.msra.mxu0 %v4754
    %v4756 = vand.u32 %v192, 4294901760
    %v4757 = vsub.f32 %v192, %v4756
    %v4758 = vand.u32 %v4757, 4294901760
    %v4759 = vsub.f32 %v4757, %v4758
    %v4760 = vand.u32 %v4759, 4294901760
    %4761 = vmatprep.subr.mxu0 %v4760
    %v4762 = vand.u32 %v191, 4294901760
    %v4763 = vsub.f32 %v191, %v4762
    %v4764 = vand.u32 %v4763, 4294901760
    %v4765 = vsub.f32 %v4763, %v4764
    %v4766 = vand.u32 %v4765, 4294901760
    %4767 = vmatpush1.msra.mxu0 %v4766
    %v4768 = vand.u32 %v204, 4294901760
    %v4769 = vsub.f32 %v204, %v4768
    %v4770 = vand.u32 %v4769, 4294901760
    %v4771 = vsub.f32 %v4769, %v4770
    %v4772 = vand.u32 %v4771, 4294901760
    %4773 = vmatprep.subr.mxu0 %v4772
    %v4774 = vand.u32 %v203, 4294901760
    %v4775 = vsub.f32 %v203, %v4774
    %v4776 = vand.u32 %v4775, 4294901760
    %v4777 = vsub.f32 %v4775, %v4776
    %v4778 = vand.u32 %v4777, 4294901760
    %4779 = vmatpush1.msra.mxu0 %v4778
    %v4780 = vand.u32 %v216, 4294901760
    %v4781 = vsub.f32 %v216, %v4780
    %v4782 = vand.u32 %v4781, 4294901760
    %v4783 = vsub.f32 %v4781, %v4782
    %v4784 = vand.u32 %v4783, 4294901760
    %4785 = vmatprep.subr.mxu0 %v4784
    %v4786 = vand.u32 %v215, 4294901760
    %v4787 = vsub.f32 %v215, %v4786
    %v4788 = vand.u32 %v4787, 4294901760
    %v4789 = vsub.f32 %v4787, %v4788
    %v4790 = vand.u32 %v4789, 4294901760
    %4791 = vmatpush1.msra.mxu0 %v4790
    %v4792 = vand.u32 %v228, 4294901760
    %v4793 = vsub.f32 %v228, %v4792
    %v4794 = vand.u32 %v4793, 4294901760
    %v4795 = vsub.f32 %v4793, %v4794
    %v4796 = vand.u32 %v4795, 4294901760
    %4797 = vmatprep.subr.mxu0 %v4796
    %v4798 = vand.u32 %v227, 4294901760
    %v4799 = vsub.f32 %v227, %v4798
    %v4800 = vand.u32 %v4799, 4294901760
    %v4801 = vsub.f32 %v4799, %v4800
    %v4802 = vand.u32 %v4801, 4294901760
    %4803 = vmatpush1.msra.mxu0 %v4802
    %v4804 = vand.u32 %v240, 4294901760
    %v4805 = vsub.f32 %v240, %v4804
    %v4806 = vand.u32 %v4805, 4294901760
    %v4807 = vsub.f32 %v4805, %v4806
    %v4808 = vand.u32 %v4807, 4294901760
    %4809 = vmatprep.subr.mxu0 %v4808
    %v4810 = vand.u32 %v239, 4294901760
    %v4811 = vsub.f32 %v239, %v4810
    %v4812 = vand.u32 %v4811, 4294901760
    %v4813 = vsub.f32 %v4811, %v4812
    %v4814 = vand.u32 %v4813, 4294901760
    %4815 = vmatpush1.msra.mxu0 %v4814
    %v4816 = vand.u32 %v252, 4294901760
    %v4817 = vsub.f32 %v252, %v4816
    %v4818 = vand.u32 %v4817, 4294901760
    %v4819 = vsub.f32 %v4817, %v4818
    %v4820 = vand.u32 %v4819, 4294901760
    %4821 = vmatprep.subr.mxu0 %v4820
    %v4822 = vand.u32 %v251, 4294901760
    %v4823 = vsub.f32 %v251, %v4822
    %v4824 = vand.u32 %v4823, 4294901760
    %v4825 = vsub.f32 %v4823, %v4824
    %v4826 = vand.u32 %v4825, 4294901760
    %4827 = vmatpush1.msra.mxu0 %v4826
    %4828 = vmatprep.subr.mxu0 0.0
    %4829 = vmatpush1.msra.mxu0 0.0
    %4830 = vmatprep.subr.mxu0 0.0
    %4831 = vmatpush1.msra.mxu0 0.0
    %4832 = vmatprep.subr.mxu0 0.0
    %4833 = vmatpush1.msra.mxu0 0.0
    %4834 = vmatprep.subr.mxu0 0.0
    %4835 = vmatpush1.msra.mxu0 0.0
    %4836 = vmatprep.subr.mxu0 0.0
    %4837 = vmatpush1.msra.mxu0 0.0
    %4838 = vmatprep.subr.mxu0 0.0
    %4839 = vmatpush1.msra.mxu0 0.0
    %4840 = vmatprep.subr.mxu0 0.0
    %4841 = vmatpush1.msra.mxu0 0.0
    %4842 = vmatprep.subr.mxu0 0.0
    %4843 = vmatpush1.msra.mxu0 0.0
    %4844 = vmatprep.subr.mxu0 0.0
    %4845 = vmatpush1.msra.mxu0 0.0
    %4846 = vmatprep.subr.mxu0 0.0
    %4847 = vmatpush1.msra.mxu0 0.0
    %4848 = vmatprep.subr.mxu0 0.0
    %4849 = vmatpush1.msra.mxu0 0.0
    %4850 = vmatprep.subr.mxu0 0.0
    %4851 = vmatpush1.msra.mxu0 0.0
    %4852 = vmatprep.subr.mxu0 0.0
    %4853 = vmatpush1.msra.mxu0 0.0
    %4854 = vmatprep.subr.mxu0 0.0
    %4855 = vmatpush1.msra.mxu0 0.0
    %4856 = vmatprep.subr.mxu0 0.0
    %4857 = vmatpush1.msra.mxu0 0.0
    %4858 = vmatprep.subr.mxu0 0.0
    %4859 = vmatpush1.msra.mxu0 0.0
    %4860 = vmatprep.mubr.f32.mxu0 0.0
    %v4861 = vand.u32 %v60, 4294901760
    %4862 = vmatmul.mubr.f32.gmra.mrb[0].mxu0 %v4861
    %v4863 = vpop.f32.mrb[0].mxu0
    %v4864 = vadd.f32 %v4632, %v4863
    %v4865 = vpop.f32.mrb[0].mxu0
    %v4866 = vadd.f32 %v4634, %v4865
    %4867 = vdwg.mxu0
    %v4868 = vand.u32 %v72, 4294901760
    %v4869 = vsub.f32 %v72, %v4868
    %4870 = vmatprep.subr.mxu0 %v4869
    %v4871 = vand.u32 %v71, 4294901760
    %v4872 = vsub.f32 %v71, %v4871
    %4873 = vmatpush1.msra.mxu0 %v4872
    %v4874 = vand.u32 %v84, 4294901760
    %v4875 = vsub.f32 %v84, %v4874
    %4876 = vmatprep.subr.mxu0 %v4875
    %v4877 = vand.u32 %v83, 4294901760
    %v4878 = vsub.f32 %v83, %v4877
    %4879 = vmatpush1.msra.mxu0 %v4878
    %v4880 = vand.u32 %v96, 4294901760
    %v4881 = vsub.f32 %v96, %v4880
    %4882 = vmatprep.subr.mxu0 %v4881
    %v4883 = vand.u32 %v95, 4294901760
    %v4884 = vsub.f32 %v95, %v4883
    %4885 = vmatpush1.msra.mxu0 %v4884
    %v4886 = vand.u32 %v108, 4294901760
    %v4887 = vsub.f32 %v108, %v4886
    %4888 = vmatprep.subr.mxu0 %v4887
    %v4889 = vand.u32 %v107, 4294901760
    %v4890 = vsub.f32 %v107, %v4889
    %4891 = vmatpush1.msra.mxu0 %v4890
    %v4892 = vand.u32 %v120, 4294901760
    %v4893 = vsub.f32 %v120, %v4892
    %4894 = vmatprep.subr.mxu0 %v4893
    %v4895 = vand.u32 %v119, 4294901760
    %v4896 = vsub.f32 %v119, %v4895
    %4897 = vmatpush1.msra.mxu0 %v4896
    %v4898 = vand.u32 %v132, 4294901760
    %v4899 = vsub.f32 %v132, %v4898
    %4900 = vmatprep.subr.mxu0 %v4899
    %v4901 = vand.u32 %v131, 4294901760
    %v4902 = vsub.f32 %v131, %v4901
    %4903 = vmatpush1.msra.mxu0 %v4902
    %v4904 = vand.u32 %v144, 4294901760
    %v4905 = vsub.f32 %v144, %v4904
    %4906 = vmatprep.subr.mxu0 %v4905
    %v4907 = vand.u32 %v143, 4294901760
    %v4908 = vsub.f32 %v143, %v4907
    %4909 = vmatpush1.msra.mxu0 %v4908
    %v4910 = vand.u32 %v156, 4294901760
    %v4911 = vsub.f32 %v156, %v4910
    %4912 = vmatprep.subr.mxu0 %v4911
    %v4913 = vand.u32 %v155, 4294901760
    %v4914 = vsub.f32 %v155, %v4913
    %4915 = vmatpush1.msra.mxu0 %v4914
    %v4916 = vand.u32 %v168, 4294901760
    %v4917 = vsub.f32 %v168, %v4916
    %4918 = vmatprep.subr.mxu0 %v4917
    %v4919 = vand.u32 %v167, 4294901760
    %v4920 = vsub.f32 %v167, %v4919
    %4921 = vmatpush1.msra.mxu0 %v4920
    %v4922 = vand.u32 %v180, 4294901760
    %v4923 = vsub.f32 %v180, %v4922
    %4924 = vmatprep.subr.mxu0 %v4923
    %v4925 = vand.u32 %v179, 4294901760
    %v4926 = vsub.f32 %v179, %v4925
    %4927 = vmatpush1.msra.mxu0 %v4926
    %v4928 = vand.u32 %v192, 4294901760
    %v4929 = vsub.f32 %v192, %v4928
    %4930 = vmatprep.subr.mxu0 %v4929
    %v4931 = vand.u32 %v191, 4294901760
    %v4932 = vsub.f32 %v191, %v4931
    %4933 = vmatpush1.msra.mxu0 %v4932
    %v4934 = vand.u32 %v204, 4294901760
    %v4935 = vsub.f32 %v204, %v4934
    %4936 = vmatprep.subr.mxu0 %v4935
    %v4937 = vand.u32 %v203, 4294901760
    %v4938 = vsub.f32 %v203, %v4937
    %4939 = vmatpush1.msra.mxu0 %v4938
    %v4940 = vand.u32 %v216, 4294901760
    %v4941 = vsub.f32 %v216, %v4940
    %4942 = vmatprep.subr.mxu0 %v4941
    %v4943 = vand.u32 %v215, 4294901760
    %v4944 = vsub.f32 %v215, %v4943
    %4945 = vmatpush1.msra.mxu0 %v4944
    %v4946 = vand.u32 %v228, 4294901760
    %v4947 = vsub.f32 %v228, %v4946
    %4948 = vmatprep.subr.mxu0 %v4947
    %v4949 = vand.u32 %v227, 4294901760
    %v4950 = vsub.f32 %v227, %v4949
    %4951 = vmatpush1.msra.mxu0 %v4950
    %v4952 = vand.u32 %v240, 4294901760
    %v4953 = vsub.f32 %v240, %v4952
    %4954 = vmatprep.subr.mxu0 %v4953
    %v4955 = vand.u32 %v239, 4294901760
    %v4956 = vsub.f32 %v239, %v4955
    %4957 = vmatpush1.msra.mxu0 %v4956
    %v4958 = vand.u32 %v252, 4294901760
    %v4959 = vsub.f32 %v252, %v4958
    %4960 = vmatprep.subr.mxu0 %v4959
    %v4961 = vand.u32 %v251, 4294901760
    %v4962 = vsub.f32 %v251, %v4961
    %4963 = vmatpush1.msra.mxu0 %v4962
    %4964 = vmatprep.subr.mxu0 0.0
    %4965 = vmatpush1.msra.mxu0 0.0
    %4966 = vmatprep.subr.mxu0 0.0
    %4967 = vmatpush1.msra.mxu0 0.0
    %4968 = vmatprep.subr.mxu0 0.0
    %4969 = vmatpush1.msra.mxu0 0.0
    %4970 = vmatprep.subr.mxu0 0.0
    %4971 = vmatpush1.msra.mxu0 0.0
    %4972 = vmatprep.subr.mxu0 0.0
    %4973 = vmatpush1.msra.mxu0 0.0
    %4974 = vmatprep.subr.mxu0 0.0
    %4975 = vmatpush1.msra.mxu0 0.0
    %4976 = vmatprep.subr.mxu0 0.0
    %4977 = vmatpush1.msra.mxu0 0.0
    %4978 = vmatprep.subr.mxu0 0.0
    %4979 = vmatpush1.msra.mxu0 0.0
    %4980 = vmatprep.subr.mxu0 0.0
    %4981 = vmatpush1.msra.mxu0 0.0
    %4982 = vmatprep.subr.mxu0 0.0
    %4983 = vmatpush1.msra.mxu0 0.0
    %4984 = vmatprep.subr.mxu0 0.0
    %4985 = vmatpush1.msra.mxu0 0.0
    %4986 = vmatprep.subr.mxu0 0.0
    %4987 = vmatpush1.msra.mxu0 0.0
    %4988 = vmatprep.subr.mxu0 0.0
    %4989 = vmatpush1.msra.mxu0 0.0
    %4990 = vmatprep.subr.mxu0 0.0
    %4991 = vmatpush1.msra.mxu0 0.0
    %4992 = vmatprep.subr.mxu0 0.0
    %4993 = vmatpush1.msra.mxu0 0.0
    %4994 = vmatprep.subr.mxu0 0.0
    %4995 = vmatpush1.msra.mxu0 0.0
    %4996 = vmatprep.mubr.f32.mxu0 0.0
    %v4997 = vand.u32 %v60, 4294901760
    %v4998 = vsub.f32 %v60, %v4997
    %4999 = vmatmul.mubr.f32.gmra.mrb[0].mxu0 %v4998
    %v5000 = vpop.f32.mrb[0].mxu0
    %v5001 = vadd.f32 %v4864, %v5000
    %v5002 = vpop.f32.mrb[0].mxu0
    %v5003 = vadd.f32 %v4866, %v5002
    %5004 = vdwg.mxu0
    %v5005 = vand.u32 %v72, 4294901760
    %5006 = vmatprep.subr.mxu0 %v5005
    %v5007 = vand.u32 %v71, 4294901760
    %5008 = vmatpush1.msra.mxu0 %v5007
    %v5009 = vand.u32 %v84, 4294901760
    %5010 = vmatprep.subr.mxu0 %v5009
    %v5011 = vand.u32 %v83, 4294901760
    %5012 = vmatpush1.msra.mxu0 %v5011
    %v5013 = vand.u32 %v96, 4294901760
    %5014 = vmatprep.subr.mxu0 %v5013
    %v5015 = vand.u32 %v95, 4294901760
    %5016 = vmatpush1.msra.mxu0 %v5015
    %v5017 = vand.u32 %v108, 4294901760
    %5018 = vmatprep.subr.mxu0 %v5017
    %v5019 = vand.u32 %v107, 4294901760
    %5020 = vmatpush1.msra.mxu0 %v5019
    %v5021 = vand.u32 %v120, 4294901760
    %5022 = vmatprep.subr.mxu0 %v5021
    %v5023 = vand.u32 %v119, 4294901760
    %5024 = vmatpush1.msra.mxu0 %v5023
    %v5025 = vand.u32 %v132, 4294901760
    %5026 = vmatprep.subr.mxu0 %v5025
    %v5027 = vand.u32 %v131, 4294901760
    %5028 = vmatpush1.msra.mxu0 %v5027
    %v5029 = vand.u32 %v144, 4294901760
    %5030 = vmatprep.subr.mxu0 %v5029
    %v5031 = vand.u32 %v143, 4294901760
    %5032 = vmatpush1.msra.mxu0 %v5031
    %v5033 = vand.u32 %v156, 4294901760
    %5034 = vmatprep.subr.mxu0 %v5033
    %v5035 = vand.u32 %v155, 4294901760
    %5036 = vmatpush1.msra.mxu0 %v5035
    %v5037 = vand.u32 %v168, 4294901760
    %5038 = vmatprep.subr.mxu0 %v5037
    %v5039 = vand.u32 %v167, 4294901760
    %5040 = vmatpush1.msra.mxu0 %v5039
    %v5041 = vand.u32 %v180, 4294901760
    %5042 = vmatprep.subr.mxu0 %v5041
    %v5043 = vand.u32 %v179, 4294901760
    %5044 = vmatpush1.msra.mxu0 %v5043
    %v5045 = vand.u32 %v192, 4294901760
    %5046 = vmatprep.subr.mxu0 %v5045
    %v5047 = vand.u32 %v191, 4294901760
    %5048 = vmatpush1.msra.mxu0 %v5047
    %v5049 = vand.u32 %v204, 4294901760
    %5050 = vmatprep.subr.mxu0 %v5049
    %v5051 = vand.u32 %v203, 4294901760
    %5052 = vmatpush1.msra.mxu0 %v5051
    %v5053 = vand.u32 %v216, 4294901760
    %5054 = vmatprep.subr.mxu0 %v5053
    %v5055 = vand.u32 %v215, 4294901760
    %5056 = vmatpush1.msra.mxu0 %v5055
    %v5057 = vand.u32 %v228, 4294901760
    %5058 = vmatprep.subr.mxu0 %v5057
    %v5059 = vand.u32 %v227, 4294901760
    %5060 = vmatpush1.msra.mxu0 %v5059
    %v5061 = vand.u32 %v240, 4294901760
    %5062 = vmatprep.subr.mxu0 %v5061
    %v5063 = vand.u32 %v239, 4294901760
    %5064 = vmatpush1.msra.mxu0 %v5063
    %v5065 = vand.u32 %v252, 4294901760
    %5066 = vmatprep.subr.mxu0 %v5065
    %v5067 = vand.u32 %v251, 4294901760
    %5068 = vmatpush1.msra.mxu0 %v5067
    %5069 = vmatprep.subr.mxu0 0.0
    %5070 = vmatpush1.msra.mxu0 0.0
    %5071 = vmatprep.subr.mxu0 0.0
    %5072 = vmatpush1.msra.mxu0 0.0
    %5073 = vmatprep.subr.mxu0 0.0
    %5074 = vmatpush1.msra.mxu0 0.0
    %5075 = vmatprep.subr.mxu0 0.0
    %5076 = vmatpush1.msra.mxu0 0.0
    %5077 = vmatprep.subr.mxu0 0.0
    %5078 = vmatpush1.msra.mxu0 0.0
    %5079 = vmatprep.subr.mxu0 0.0
    %5080 = vmatpush1.msra.mxu0 0.0
    %5081 = vmatprep.subr.mxu0 0.0
    %5082 = vmatpush1.msra.mxu0 0.0
    %5083 = vmatprep.subr.mxu0 0.0
    %5084 = vmatpush1.msra.mxu0 0.0
    %5085 = vmatprep.subr.mxu0 0.0
    %5086 = vmatpush1.msra.mxu0 0.0
    %5087 = vmatprep.subr.mxu0 0.0
    %5088 = vmatpush1.msra.mxu0 0.0
    %5089 = vmatprep.subr.mxu0 0.0
    %5090 = vmatpush1.msra.mxu0 0.0
    %5091 = vmatprep.subr.mxu0 0.0
    %5092 = vmatpush1.msra.mxu0 0.0
    %5093 = vmatprep.subr.mxu0 0.0
    %5094 = vmatpush1.msra.mxu0 0.0
    %5095 = vmatprep.subr.mxu0 0.0
    %5096 = vmatpush1.msra.mxu0 0.0
    %5097 = vmatprep.subr.mxu0 0.0
    %5098 = vmatpush1.msra.mxu0 0.0
    %5099 = vmatprep.subr.mxu0 0.0
    %5100 = vmatpush1.msra.mxu0 0.0
    %5101 = vmatprep.mubr.f32.mxu0 0.0
    %v5102 = vand.u32 %v60, 4294901760
    %v5103 = vsub.f32 %v60, %v5102
    %v5104 = vand.u32 %v5103, 4294901760
    %5105 = vmatmul.mubr.f32.gmra.mrb[0].mxu0 %v5104
    %v5106 = vpop.f32.mrb[0].mxu0
    %v5107 = vadd.f32 %v5001, %v5106
    %v5108 = vpop.f32.mrb[0].mxu0
    %v5109 = vadd.f32 %v5003, %v5108
    %5110 = vdwg.mxu0
    %v5111 = vand.u32 %v72, 4294901760
    %v5112 = vsub.f32 %v72, %v5111
    %v5113 = vand.u32 %v5112, 4294901760
    %5114 = vmatprep.subr.mxu0 %v5113
    %v5115 = vand.u32 %v71, 4294901760
    %v5116 = vsub.f32 %v71, %v5115
    %v5117 = vand.u32 %v5116, 4294901760
    %5118 = vmatpush1.msra.mxu0 %v5117
    %v5119 = vand.u32 %v84, 4294901760
    %v5120 = vsub.f32 %v84, %v5119
    %v5121 = vand.u32 %v5120, 4294901760
    %5122 = vmatprep.subr.mxu0 %v5121
    %v5123 = vand.u32 %v83, 4294901760
    %v5124 = vsub.f32 %v83, %v5123
    %v5125 = vand.u32 %v5124, 4294901760
    %5126 = vmatpush1.msra.mxu0 %v5125
    %v5127 = vand.u32 %v96, 4294901760
    %v5128 = vsub.f32 %v96, %v5127
    %v5129 = vand.u32 %v5128, 4294901760
    %5130 = vmatprep.subr.mxu0 %v5129
    %v5131 = vand.u32 %v95, 4294901760
    %v5132 = vsub.f32 %v95, %v5131
    %v5133 = vand.u32 %v5132, 4294901760
    %5134 = vmatpush1.msra.mxu0 %v5133
    %v5135 = vand.u32 %v108, 4294901760
    %v5136 = vsub.f32 %v108, %v5135
    %v5137 = vand.u32 %v5136, 4294901760
    %5138 = vmatprep.subr.mxu0 %v5137
    %v5139 = vand.u32 %v107, 4294901760
    %v5140 = vsub.f32 %v107, %v5139
    %v5141 = vand.u32 %v5140, 4294901760
    %5142 = vmatpush1.msra.mxu0 %v5141
    %v5143 = vand.u32 %v120, 4294901760
    %v5144 = vsub.f32 %v120, %v5143
    %v5145 = vand.u32 %v5144, 4294901760
    %5146 = vmatprep.subr.mxu0 %v5145
    %v5147 = vand.u32 %v119, 4294901760
    %v5148 = vsub.f32 %v119, %v5147
    %v5149 = vand.u32 %v5148, 4294901760
    %5150 = vmatpush1.msra.mxu0 %v5149
    %v5151 = vand.u32 %v132, 4294901760
    %v5152 = vsub.f32 %v132, %v5151
    %v5153 = vand.u32 %v5152, 4294901760
    %5154 = vmatprep.subr.mxu0 %v5153
    %v5155 = vand.u32 %v131, 4294901760
    %v5156 = vsub.f32 %v131, %v5155
    %v5157 = vand.u32 %v5156, 4294901760
    %5158 = vmatpush1.msra.mxu0 %v5157
    %v5159 = vand.u32 %v144, 4294901760
    %v5160 = vsub.f32 %v144, %v5159
    %v5161 = vand.u32 %v5160, 4294901760
    %5162 = vmatprep.subr.mxu0 %v5161
    %v5163 = vand.u32 %v143, 4294901760
    %v5164 = vsub.f32 %v143, %v5163
    %v5165 = vand.u32 %v5164, 4294901760
    %5166 = vmatpush1.msra.mxu0 %v5165
    %v5167 = vand.u32 %v156, 4294901760
    %v5168 = vsub.f32 %v156, %v5167
    %v5169 = vand.u32 %v5168, 4294901760
    %5170 = vmatprep.subr.mxu0 %v5169
    %v5171 = vand.u32 %v155, 4294901760
    %v5172 = vsub.f32 %v155, %v5171
    %v5173 = vand.u32 %v5172, 4294901760
    %5174 = vmatpush1.msra.mxu0 %v5173
    %v5175 = vand.u32 %v168, 4294901760
    %v5176 = vsub.f32 %v168, %v5175
    %v5177 = vand.u32 %v5176, 4294901760
    %5178 = vmatprep.subr.mxu0 %v5177
    %v5179 = vand.u32 %v167, 4294901760
    %v5180 = vsub.f32 %v167, %v5179
    %v5181 = vand.u32 %v5180, 4294901760
    %5182 = vmatpush1.msra.mxu0 %v5181
    %v5183 = vand.u32 %v180, 4294901760
    %v5184 = vsub.f32 %v180, %v5183
    %v5185 = vand.u32 %v5184, 4294901760
    %5186 = vmatprep.subr.mxu0 %v5185
    %v5187 = vand.u32 %v179, 4294901760
    %v5188 = vsub.f32 %v179, %v5187
    %v5189 = vand.u32 %v5188, 4294901760
    %5190 = vmatpush1.msra.mxu0 %v5189
    %v5191 = vand.u32 %v192, 4294901760
    %v5192 = vsub.f32 %v192, %v5191
    %v5193 = vand.u32 %v5192, 4294901760
    %5194 = vmatprep.subr.mxu0 %v5193
    %v5195 = vand.u32 %v191, 4294901760
    %v5196 = vsub.f32 %v191, %v5195
    %v5197 = vand.u32 %v5196, 4294901760
    %5198 = vmatpush1.msra.mxu0 %v5197
    %v5199 = vand.u32 %v204, 4294901760
    %v5200 = vsub.f32 %v204, %v5199
    %v5201 = vand.u32 %v5200, 4294901760
    %5202 = vmatprep.subr.mxu0 %v5201
    %v5203 = vand.u32 %v203, 4294901760
    %v5204 = vsub.f32 %v203, %v5203
    %v5205 = vand.u32 %v5204, 4294901760
    %5206 = vmatpush1.msra.mxu0 %v5205
    %v5207 = vand.u32 %v216, 4294901760
    %v5208 = vsub.f32 %v216, %v5207
    %v5209 = vand.u32 %v5208, 4294901760
    %5210 = vmatprep.subr.mxu0 %v5209
    %v5211 = vand.u32 %v215, 4294901760
    %v5212 = vsub.f32 %v215, %v5211
    %v5213 = vand.u32 %v5212, 4294901760
    %5214 = vmatpush1.msra.mxu0 %v5213
    %v5215 = vand.u32 %v228, 4294901760
    %v5216 = vsub.f32 %v228, %v5215
    %v5217 = vand.u32 %v5216, 4294901760
    %5218 = vmatprep.subr.mxu0 %v5217
    %v5219 = vand.u32 %v227, 4294901760
    %v5220 = vsub.f32 %v227, %v5219
    %v5221 = vand.u32 %v5220, 4294901760
    %5222 = vmatpush1.msra.mxu0 %v5221
    %v5223 = vand.u32 %v240, 4294901760
    %v5224 = vsub.f32 %v240, %v5223
    %v5225 = vand.u32 %v5224, 4294901760
    %5226 = vmatprep.subr.mxu0 %v5225
    %v5227 = vand.u32 %v239, 4294901760
    %v5228 = vsub.f32 %v239, %v5227
    %v5229 = vand.u32 %v5228, 4294901760
    %5230 = vmatpush1.msra.mxu0 %v5229
    %v5231 = vand.u32 %v252, 4294901760
    %v5232 = vsub.f32 %v252, %v5231
    %v5233 = vand.u32 %v5232, 4294901760
    %5234 = vmatprep.subr.mxu0 %v5233
    %v5235 = vand.u32 %v251, 4294901760
    %v5236 = vsub.f32 %v251, %v5235
    %v5237 = vand.u32 %v5236, 4294901760
    %5238 = vmatpush1.msra.mxu0 %v5237
    %5239 = vmatprep.subr.mxu0 0.0
    %5240 = vmatpush1.msra.mxu0 0.0
    %5241 = vmatprep.subr.mxu0 0.0
    %5242 = vmatpush1.msra.mxu0 0.0
    %5243 = vmatprep.subr.mxu0 0.0
    %5244 = vmatpush1.msra.mxu0 0.0
    %5245 = vmatprep.subr.mxu0 0.0
    %5246 = vmatpush1.msra.mxu0 0.0
    %5247 = vmatprep.subr.mxu0 0.0
    %5248 = vmatpush1.msra.mxu0 0.0
    %5249 = vmatprep.subr.mxu0 0.0
    %5250 = vmatpush1.msra.mxu0 0.0
    %5251 = vmatprep.subr.mxu0 0.0
    %5252 = vmatpush1.msra.mxu0 0.0
    %5253 = vmatprep.subr.mxu0 0.0
    %5254 = vmatpush1.msra.mxu0 0.0
    %5255 = vmatprep.subr.mxu0 0.0
    %5256 = vmatpush1.msra.mxu0 0.0
    %5257 = vmatprep.subr.mxu0 0.0
    %5258 = vmatpush1.msra.mxu0 0.0
    %5259 = vmatprep.subr.mxu0 0.0
    %5260 = vmatpush1.msra.mxu0 0.0
    %5261 = vmatprep.subr.mxu0 0.0
    %5262 = vmatpush1.msra.mxu0 0.0
    %5263 = vmatprep.subr.mxu0 0.0
    %5264 = vmatpush1.msra.mxu0 0.0
    %5265 = vmatprep.subr.mxu0 0.0
    %5266 = vmatpush1.msra.mxu0 0.0
    %5267 = vmatprep.subr.mxu0 0.0
    %5268 = vmatpush1.msra.mxu0 0.0
    %5269 = vmatprep.subr.mxu0 0.0
    %5270 = vmatpush1.msra.mxu0 0.0
    %5271 = vmatprep.mubr.f32.mxu0 0.0
    %v5272 = vand.u32 %v60, 4294901760
    %5273 = vmatmul.mubr.f32.gmra.mrb[0].mxu0 %v5272
    %v5274 = vpop.f32.mrb[0].mxu0
    %v5275 = vadd.f32 %v5107, %v5274
    %v5276 = vpop.f32.mrb[0].mxu0
    %v5277 = vadd.f32 %v5109, %v5276
    %5278 = vdwg.mxu0
    %v5279 = vand.u32 %v72, 4294901760
    %5280 = vmatprep.subr.mxu0 %v5279
    %v5281 = vand.u32 %v71, 4294901760
    %5282 = vmatpush1.msra.mxu0 %v5281
    %v5283 = vand.u32 %v84, 4294901760
    %5284 = vmatprep.subr.mxu0 %v5283
    %v5285 = vand.u32 %v83, 4294901760
    %5286 = vmatpush1.msra.mxu0 %v5285
    %v5287 = vand.u32 %v96, 4294901760
    %5288 = vmatprep.subr.mxu0 %v5287
    %v5289 = vand.u32 %v95, 4294901760
    %5290 = vmatpush1.msra.mxu0 %v5289
    %v5291 = vand.u32 %v108, 4294901760
    %5292 = vmatprep.subr.mxu0 %v5291
    %v5293 = vand.u32 %v107, 4294901760
    %5294 = vmatpush1.msra.mxu0 %v5293
    %v5295 = vand.u32 %v120, 4294901760
    %5296 = vmatprep.subr.mxu0 %v5295
    %v5297 = vand.u32 %v119, 4294901760
    %5298 = vmatpush1.msra.mxu0 %v5297
    %v5299 = vand.u32 %v132, 4294901760
    %5300 = vmatprep.subr.mxu0 %v5299
    %v5301 = vand.u32 %v131, 4294901760
    %5302 = vmatpush1.msra.mxu0 %v5301
    %v5303 = vand.u32 %v144, 4294901760
    %5304 = vmatprep.subr.mxu0 %v5303
    %v5305 = vand.u32 %v143, 4294901760
    %5306 = vmatpush1.msra.mxu0 %v5305
    %v5307 = vand.u32 %v156, 4294901760
    %5308 = vmatprep.subr.mxu0 %v5307
    %v5309 = vand.u32 %v155, 4294901760
    %5310 = vmatpush1.msra.mxu0 %v5309
    %v5311 = vand.u32 %v168, 4294901760
    %5312 = vmatprep.subr.mxu0 %v5311
    %v5313 = vand.u32 %v167, 4294901760
    %5314 = vmatpush1.msra.mxu0 %v5313
    %v5315 = vand.u32 %v180, 4294901760
    %5316 = vmatprep.subr.mxu0 %v5315
    %v5317 = vand.u32 %v179, 4294901760
    %5318 = vmatpush1.msra.mxu0 %v5317
    %v5319 = vand.u32 %v192, 4294901760
    %5320 = vmatprep.subr.mxu0 %v5319
    %v5321 = vand.u32 %v191, 4294901760
    %5322 = vmatpush1.msra.mxu0 %v5321
    %v5323 = vand.u32 %v204, 4294901760
    %5324 = vmatprep.subr.mxu0 %v5323
    %v5325 = vand.u32 %v203, 4294901760
    %5326 = vmatpush1.msra.mxu0 %v5325
    %v5327 = vand.u32 %v216, 4294901760
    %5328 = vmatprep.subr.mxu0 %v5327
    %v5329 = vand.u32 %v215, 4294901760
    %5330 = vmatpush1.msra.mxu0 %v5329
    %v5331 = vand.u32 %v228, 4294901760
    %5332 = vmatprep.subr.mxu0 %v5331
    %v5333 = vand.u32 %v227, 4294901760
    %5334 = vmatpush1.msra.mxu0 %v5333
    %v5335 = vand.u32 %v240, 4294901760
    %5336 = vmatprep.subr.mxu0 %v5335
    %v5337 = vand.u32 %v239, 4294901760
    %5338 = vmatpush1.msra.mxu0 %v5337
    %v5339 = vand.u32 %v252, 4294901760
    %5340 = vmatprep.subr.mxu0 %v5339
    %v5341 = vand.u32 %v251, 4294901760
    %5342 = vmatpush1.msra.mxu0 %v5341
    %5343 = vmatprep.subr.mxu0 0.0
    %5344 = vmatpush1.msra.mxu0 0.0
    %5345 = vmatprep.subr.mxu0 0.0
    %5346 = vmatpush1.msra.mxu0 0.0
    %5347 = vmatprep.subr.mxu0 0.0
    %5348 = vmatpush1.msra.mxu0 0.0
    %5349 = vmatprep.subr.mxu0 0.0
    %5350 = vmatpush1.msra.mxu0 0.0
    %5351 = vmatprep.subr.mxu0 0.0
    %5352 = vmatpush1.msra.mxu0 0.0
    %5353 = vmatprep.subr.mxu0 0.0
    %5354 = vmatpush1.msra.mxu0 0.0
    %5355 = vmatprep.subr.mxu0 0.0
    %5356 = vmatpush1.msra.mxu0 0.0
    %5357 = vmatprep.subr.mxu0 0.0
    %5358 = vmatpush1.msra.mxu0 0.0
    %5359 = vmatprep.subr.mxu0 0.0
    %5360 = vmatpush1.msra.mxu0 0.0
    %5361 = vmatprep.subr.mxu0 0.0
    %5362 = vmatpush1.msra.mxu0 0.0
    %5363 = vmatprep.subr.mxu0 0.0
    %5364 = vmatpush1.msra.mxu0 0.0
    %5365 = vmatprep.subr.mxu0 0.0
    %5366 = vmatpush1.msra.mxu0 0.0
    %5367 = vmatprep.subr.mxu0 0.0
    %5368 = vmatpush1.msra.mxu0 0.0
    %5369 = vmatprep.subr.mxu0 0.0
    %5370 = vmatpush1.msra.mxu0 0.0
    %5371 = vmatprep.subr.mxu0 0.0
    %5372 = vmatpush1.msra.mxu0 0.0
    %5373 = vmatprep.subr.mxu0 0.0
    %5374 = vmatpush1.msra.mxu0 0.0
    %5375 = vmatprep.mubr.f32.mxu0 0.0
    %v5376 = vand.u32 %v60, 4294901760
    %5377 = vmatmul.mubr.f32.gmra.mrb[0].mxu0 %v5376
    %v5378 = vpop.f32.mrb[0].mxu0
    %v5379 = vadd.f32 %v5275, %v5378
    %v5380 = vpop.f32.mrb[0].mxu0
    %v5381 = vadd.f32 %v5277, %v5380
    %5382 = vdwg.mxu0
    %v5383 = vld [vmem:[#allocation7] sm:$0xff]
    %v5384 = vld [vmem:[#allocation7 + $0x8] sm:$0xf]
    %v5387 = vlaneseq
    %v5388 = vshrl.u32 %v5387, 7
    %v5389 = vsub.s32 0, %v5388
    %v5390 = vrot.slane %v5383, %v5389
    %v5391 = vlaneseq
    %v5392 = vshrl.u32 %v5391, 7
    %v5393 = vsub.s32 1, %v5392
    %v5394 = vrot.slane %v5383, %v5393
    %v5395 = vlaneseq
    %v5396 = vshrl.u32 %v5395, 7
    %v5397 = vsub.s32 2, %v5396
    %v5398 = vrot.slane %v5383, %v5397
    %v5399 = vlaneseq
    %v5400 = vshrl.u32 %v5399, 7
    %v5401 = vsub.s32 3, %v5400
    %v5402 = vrot.slane %v5383, %v5401
    %v5403 = vlaneseq
    %v5404 = vshrl.u32 %v5403, 7
    %v5405 = vsub.s32 4, %v5404
    %v5406 = vrot.slane %v5383, %v5405
    %v5407 = vlaneseq
    %v5408 = vshrl.u32 %v5407, 7
    %v5409 = vsub.s32 5, %v5408
    %v5410 = vrot.slane %v5383, %v5409
    %v5411 = vlaneseq
    %v5412 = vshrl.u32 %v5411, 7
    %v5413 = vsub.s32 6, %v5412
    %v5414 = vrot.slane %v5383, %v5413
    %v5415 = vlaneseq
    %v5416 = vshrl.u32 %v5415, 7
    %v5417 = vsub.s32 7, %v5416
    %v5418 = vrot.slane %v5383, %v5417
    %v5419 = vlaneseq
    %v5420 = vshrl.u32 %v5419, 7
    %v5421 = vsub.s32 0, %v5420
    %v5422 = vrot.slane %v5384, %v5421
    %v5423 = vlaneseq
    %v5424 = vshrl.u32 %v5423, 7
    %v5425 = vsub.s32 1, %v5424
    %v5426 = vrot.slane %v5384, %v5425
    %v5427 = vlaneseq
    %v5428 = vshrl.u32 %v5427, 7
    %v5429 = vsub.s32 2, %v5428
    %v5430 = vrot.slane %v5384, %v5429
    %v5431 = vlaneseq
    %v5432 = vshrl.u32 %v5431, 7
    %v5433 = vsub.s32 3, %v5432
    %v5434 = vrot.slane %v5384, %v5433
    %v5447 = vmul.f32 %v1104, %v5390
    %v5448 = vmul.f32 %v1106, %v5394
    %v5449 = vmul.f32 %v1959, %v5398
    %v5450 = vmul.f32 %v1961, %v5402
    %v5451 = vmul.f32 %v2814, %v5406
    %v5452 = vmul.f32 %v2816, %v5410
    %v5453 = vmul.f32 %v3669, %v5414
    %v5454 = vmul.f32 %v3671, %v5418
    %v5455 = vmul.f32 %v4524, %v5422
    %v5456 = vmul.f32 %v4526, %v5426
    %v5457 = vmul.f32 %v5379, %v5430
    %v5458 = vmul.f32 %v5381, %v5434
    %vm5459 = vcmp.gt.f32.partialorder %v5390, 0.0
    %vm5460 = vcmp.gt.f32.partialorder %v5394, 0.0
    %vm5461 = vcmp.gt.f32.partialorder %v5398, 0.0
    %vm5462 = vcmp.gt.f32.partialorder %v5402, 0.0
    %vm5463 = vcmp.gt.f32.partialorder %v5406, 0.0
    %vm5464 = vcmp.gt.f32.partialorder %v5410, 0.0
    %vm5465 = vcmp.gt.f32.partialorder %v5414, 0.0
    %vm5466 = vcmp.gt.f32.partialorder %v5418, 0.0
    %vm5467 = vcmp.gt.f32.partialorder %v5422, 0.0
    %vm5468 = vcmp.gt.f32.partialorder %v5426, 0.0
    %vm5469 = vcmp.gt.f32.partialorder %v5430, 0.0
    %vm5470 = vcmp.gt.f32.partialorder %v5434, 0.0
    %v5471 = vand.u32 2147483647, %v5447
    %vm5472 = vcmp.le.f32.partialorder %v5471, 0.7853982
    %vm5473 = vcmp.lt.s32.totalorder %v5447, 0
    %v5474 = vand.u32 %v5447, 2139095040
    %v5475 = vshrl.u32 %v5474, 23
    %v5476 = vsub.s32 %v5475, 127
    %v5477 = vand.u32 2147483647, %v5447
    %v5478 = vand.u32 %v5477, 8388607
    %v5479 = vor.u32 %v5478, 8388608
    %v5480 = vsub.s32 0, %v5479
    %v5481 = vadd.s32 %v5476, 1
    %vm5482 = vcmp.gt.s32.totalorder %v5481, 0
    %v5483 = vsel %vm5482, %v5481, 0
    %v5484 = vshrl.u32 %v5483, 5
    %v5485 = vand.u32 %v5483, 31
    %v5486 = vsub.s32 32, %v5485
    %v5487 = vshrl.u32 683565275, %v5486
    %v5488 = vshll.u32 683565275, %v5485
    %v5489 = vshrl.u32 2475754826, %v5486
    %v5490 = vor.u32 %v5488, %v5489
    %v5491 = vshll.u32 2475754826, %v5485
    %v5492 = vshrl.u32 2131351028, %v5486
    %v5493 = vor.u32 %v5491, %v5492
    %v5494 = vshll.u32 2131351028, %v5485
    %v5495 = vshrl.u32 2102212464, %v5486
    %v5496 = vor.u32 %v5494, %v5495
    %v5497 = vshll.u32 2102212464, %v5485
    %v5498 = vshrl.u32 920167782, %v5486
    %v5499 = vor.u32 %v5497, %v5498
    %v5500 = vshll.u32 920167782, %v5485
    %v5501 = vshrl.u32 1326507024, %v5486
    %v5502 = vor.u32 %v5500, %v5501
    %vm5503 = vcmp.lt.s32.totalorder %v5484, 1
    %vm5504 = vcmp.lt.s32.totalorder %v5484, 2
    %vm5505 = vcmp.lt.s32.totalorder %v5484, 3
    %vm5506 = vcmp.lt.s32.totalorder %v5484, 4
    %v5507 = vsel %vm5503, %v5487, %v5490
    %v5508 = vsel %vm5506, %v5496, 2102212464
    %v5509 = vsel %vm5505, %v5493, %v5508
    %v5510 = vsel %vm5504, %v5507, %v5509
    %v5511 = vsel %vm5503, %v5490, %v5493
    %v5512 = vsel %vm5506, %v5499, 920167782
    %v5513 = vsel %vm5505, %v5496, %v5512
    %v5514 = vsel %vm5504, %v5511, %v5513
    %v5515 = vsel %vm5503, %v5493, %v5496
    %v5516 = vsel %vm5506, %v5502, 1326507024
    %v5517 = vsel %vm5505, %v5499, %v5516
    %v5518 = vsel %vm5504, %v5515, %v5517
    %v5519 = vshll.u32 %v5479, 8
    %v5520 = vmul.u32.u64.compose %v5519, %v5518
    %v5521 = vextract.low.u32 %v5520
    %v5522 = vextract.high.u32 %v5520
    %v5523 = vmul.u32.u64.compose %v5519, %v5514
    %v5524 = vextract.low.u32 %v5523
    %v5525 = vextract.high.u32 %v5523
    %v5526 = vmul.u32 %v5519, %v5510
    %v5527 = vadd.s32 %v5522, %v5524
    %vm5528 = vc.u32 %v5522, %v5524
    %v5529 = vadd.s32 %v5525, 1
    %v5530 = vsel %vm5528, %v5529, %v5525
    %v5531 = vadd.s32 %v5526, %v5530
    %v5532 = vadd.s32 %v5531, 536870912
    %v5533 = vshrl.u32 %v5532, 30
    %v5534 = vshll.u32 %v5533, 30
    %v5535 = vsub.s32 %v5531, %v5534
    %vm5536 = vcmp.lt.s32.totalorder %v5535, 0
    %v5537 = vsub.s32 0, %v5535
    %v5538 = vsel %vm5536, %v5537, %v5535
    %v5539 = vclz %v5538
    %v5540 = vsub.s32 %v5539, 2
    %vm5541 = vcmp.gt.s32.totalorder 0, %v5540
    %v5542 = vsel %vm5541, 0, %v5540
    %v5543 = vsub.s32 32, %v5542
    %v5544 = vshll.u32 %v5535, %v5542
    %v5545 = vshrl.u32 %v5527, %v5543
    %v5546 = vor.u32 %v5544, %v5545
    %v5547 = vsub.s32 4294967266, %v5542
    %v5548 = vadd.s32 %v5547, 127
    %v5549 = vshll.u32 %v5548, 23
    %v5550 = vor.u32 4788187, %v5549
    %v5551 = vand.u32 2147483647, %v5550
    %v5553 = vcvt.s32.f32 %v5546
    %v5554 = vmul.f32 %v5553, %v5551
    %v5555 = vxor.u32 %v5554, 2147483648
    %v5556 = vsel %vm5473, %v5555, %v5554
    %v5557 = vsub.s32 4, %v5533
    %v5558 = vsel %vm5473, %v5557, %v5533
    %v5559 = vsel %vm5472, %v5447, %v5556
    %v5560 = vsel %vm5472, 0, %v5558
    %v5561 = vcosq.f32.pop %v5559
    %v5562 = vsinq.f32.pop %v5559
    %vm5563 = vweird.f32 %v5447
    %v5564 = vadd.s32 %v5560, 3
    %v5565 = vand.u32 %v5564, 3
    %vm5566 = vcmp.lt.s32.totalorder %v5565, 2
    %vm5567 = vcmp.eq.s32.totalorder %v5565, 0
    %v5568 = vxor.u32 %v5562, 2147483648
    %v5569 = vsel %vm5567, %v5561, %v5568
    %vm5570 = vcmp.eq.s32.totalorder %v5565, 2
    %v5571 = vxor.u32 %v5561, 2147483648
    %v5572 = vsel %vm5570, %v5571, %v5562
    %v5573 = vsel %vm5566, %v5569, %v5572
    %v5574 = vsel %vm5563, nan, %v5573
    %v5575 = vand.u32 2147483647, %v5448
    %vm5576 = vcmp.le.f32.partialorder %v5575, 0.7853982
    %vm5577 = vcmp.lt.s32.totalorder %v5448, 0
    %v5578 = vand.u32 %v5448, 2139095040
    %v5579 = vshrl.u32 %v5578, 23
    %v5580 = vsub.s32 %v5579, 127
    %v5581 = vand.u32 2147483647, %v5448
    %v5582 = vand.u32 %v5581, 8388607
    %v5583 = vor.u32 %v5582, 8388608
    %v5584 = vsub.s32 0, %v5583
    %v5585 = vadd.s32 %v5580, 1
    %vm5586 = vcmp.gt.s32.totalorder %v5585, 0
    %v5587 = vsel %vm5586, %v5585, 0
    %v5588 = vshrl.u32 %v5587, 5
    %v5589 = vand.u32 %v5587, 31
    %v5590 = vsub.s32 32, %v5589
    %v5591 = vshrl.u32 683565275, %v5590
    %v5592 = vshll.u32 683565275, %v5589
    %v5593 = vshrl.u32 2475754826, %v5590
    %v5594 = vor.u32 %v5592, %v5593
    %v5595 = vshll.u32 2475754826, %v5589
    %v5596 = vshrl.u32 2131351028, %v5590
    %v5597 = vor.u32 %v5595, %v5596
    %v5598 = vshll.u32 2131351028, %v5589
    %v5599 = vshrl.u32 2102212464, %v5590
    %v5600 = vor.u32 %v5598, %v5599
    %v5601 = vshll.u32 2102212464, %v5589
    %v5602 = vshrl.u32 920167782, %v5590
    %v5603 = vor.u32 %v5601, %v5602
    %v5604 = vshll.u32 920167782, %v5589
    %v5605 = vshrl.u32 1326507024, %v5590
    %v5606 = vor.u32 %v5604, %v5605
    %vm5607 = vcmp.lt.s32.totalorder %v5588, 1
    %vm5608 = vcmp.lt.s32.totalorder %v5588, 2
    %vm5609 = vcmp.lt.s32.totalorder %v5588, 3
    %vm5610 = vcmp.lt.s32.totalorder %v5588, 4
    %v5611 = vsel %vm5607, %v5591, %v5594
    %v5612 = vsel %vm5610, %v5600, 2102212464
    %v5613 = vsel %vm5609, %v5597, %v5612
    %v5614 = vsel %vm5608, %v5611, %v5613
    %v5615 = vsel %vm5607, %v5594, %v5597
    %v5616 = vsel %vm5610, %v5603, 920167782
    %v5617 = vsel %vm5609, %v5600, %v5616
    %v5618 = vsel %vm5608, %v5615, %v5617
    %v5619 = vsel %vm5607, %v5597, %v5600
    %v5620 = vsel %vm5610, %v5606, 1326507024
    %v5621 = vsel %vm5609, %v5603, %v5620
    %v5622 = vsel %vm5608, %v5619, %v5621
    %v5623 = vshll.u32 %v5583, 8
    %v5624 = vmul.u32.u64.compose %v5623, %v5622
    %v5625 = vextract.low.u32 %v5624
    %v5626 = vextract.high.u32 %v5624
    %v5627 = vmul.u32.u64.compose %v5623, %v5618
    %v5628 = vextract.low.u32 %v5627
    %v5629 = vextract.high.u32 %v5627
    %v5630 = vmul.u32 %v5623, %v5614
    %v5631 = vadd.s32 %v5626, %v5628
    %vm5632 = vc.u32 %v5626, %v5628
    %v5633 = vadd.s32 %v5629, 1
    %v5634 = vsel %vm5632, %v5633, %v5629
    %v5635 = vadd.s32 %v5630, %v5634
    %v5636 = vadd.s32 %v5635, 536870912
    %v5637 = vshrl.u32 %v5636, 30
    %v5638 = vshll.u32 %v5637, 30
    %v5639 = vsub.s32 %v5635, %v5638
    %vm5640 = vcmp.lt.s32.totalorder %v5639, 0
    %v5641 = vsub.s32 0, %v5639
    %v5642 = vsel %vm5640, %v5641, %v5639
    %v5643 = vclz %v5642
    %v5644 = vsub.s32 %v5643, 2
    %vm5645 = vcmp.gt.s32.totalorder 0, %v5644
    %v5646 = vsel %vm5645, 0, %v5644
    %v5647 = vsub.s32 32, %v5646
    %v5648 = vshll.u32 %v5639, %v5646
    %v5649 = vshrl.u32 %v5631, %v5647
    %v5650 = vor.u32 %v5648, %v5649
    %v5651 = vsub.s32 4294967266, %v5646
    %v5652 = vadd.s32 %v5651, 127
    %v5653 = vshll.u32 %v5652, 23
    %v5654 = vor.u32 4788187, %v5653
    %v5655 = vand.u32 2147483647, %v5654
    %v5657 = vcvt.s32.f32 %v5650
    %v5658 = vmul.f32 %v5657, %v5655
    %v5659 = vxor.u32 %v5658, 2147483648
    %v5660 = vsel %vm5577, %v5659, %v5658
    %v5661 = vsub.s32 4, %v5637
    %v5662 = vsel %vm5577, %v5661, %v5637
    %v5663 = vsel %vm5576, %v5448, %v5660
    %v5664 = vsel %vm5576, 0, %v5662
    %v5665 = vcosq.f32.pop %v5663
    %v5666 = vsinq.f32.pop %v5663
    %vm5667 = vweird.f32 %v5448
    %v5668 = vadd.s32 %v5664, 3
    %v5669 = vand.u32 %v5668, 3
    %vm5670 = vcmp.lt.s32.totalorder %v5669, 2
    %vm5671 = vcmp.eq.s32.totalorder %v5669, 0
    %v5672 = vxor.u32 %v5666, 2147483648
    %v5673 = vsel %vm5671, %v5665, %v5672
    %vm5674 = vcmp.eq.s32.totalorder %v5669, 2
    %v5675 = vxor.u32 %v5665, 2147483648
    %v5676 = vsel %vm5674, %v5675, %v5666
    %v5677 = vsel %vm5670, %v5673, %v5676
    %v5678 = vsel %vm5667, nan, %v5677
    %v5679 = vand.u32 2147483647, %v5449
    %vm5680 = vcmp.le.f32.partialorder %v5679, 0.7853982
    %vm5681 = vcmp.lt.s32.totalorder %v5449, 0
    %v5682 = vand.u32 %v5449, 2139095040
    %v5683 = vshrl.u32 %v5682, 23
    %v5684 = vsub.s32 %v5683, 127
    %v5685 = vand.u32 2147483647, %v5449
    %v5686 = vand.u32 %v5685, 8388607
    %v5687 = vor.u32 %v5686, 8388608
    %v5688 = vsub.s32 0, %v5687
    %v5689 = vadd.s32 %v5684, 1
    %vm5690 = vcmp.gt.s32.totalorder %v5689, 0
    %v5691 = vsel %vm5690, %v5689, 0
    %v5692 = vshrl.u32 %v5691, 5
    %v5693 = vand.u32 %v5691, 31
    %v5694 = vsub.s32 32, %v5693
    %v5695 = vshrl.u32 683565275, %v5694
    %v5696 = vshll.u32 683565275, %v5693
    %v5697 = vshrl.u32 2475754826, %v5694
    %v5698 = vor.u32 %v5696, %v5697
    %v5699 = vshll.u32 2475754826, %v5693
    %v5700 = vshrl.u32 2131351028, %v5694
    %v5701 = vor.u32 %v5699, %v5700
    %v5702 = vshll.u32 2131351028, %v5693
    %v5703 = vshrl.u32 2102212464, %v5694
    %v5704 = vor.u32 %v5702, %v5703
    %v5705 = vshll.u32 2102212464, %v5693
    %v5706 = vshrl.u32 920167782, %v5694
    %v5707 = vor.u32 %v5705, %v5706
    %v5708 = vshll.u32 920167782, %v5693
    %v5709 = vshrl.u32 1326507024, %v5694
    %v5710 = vor.u32 %v5708, %v5709
    %vm5711 = vcmp.lt.s32.totalorder %v5692, 1
    %vm5712 = vcmp.lt.s32.totalorder %v5692, 2
    %vm5713 = vcmp.lt.s32.totalorder %v5692, 3
    %vm5714 = vcmp.lt.s32.totalorder %v5692, 4
    %v5715 = vsel %vm5711, %v5695, %v5698
    %v5716 = vsel %vm5714, %v5704, 2102212464
    %v5717 = vsel %vm5713, %v5701, %v5716
    %v5718 = vsel %vm5712, %v5715, %v5717
    %v5719 = vsel %vm5711, %v5698, %v5701
    %v5720 = vsel %vm5714, %v5707, 920167782
    %v5721 = vsel %vm5713, %v5704, %v5720
    %v5722 = vsel %vm5712, %v5719, %v5721
    %v5723 = vsel %vm5711, %v5701, %v5704
    %v5724 = vsel %vm5714, %v5710, 1326507024
    %v5725 = vsel %vm5713, %v5707, %v5724
    %v5726 = vsel %vm5712, %v5723, %v5725
    %v5727 = vshll.u32 %v5687, 8
    %v5728 = vmul.u32.u64.compose %v5727, %v5726
    %v5729 = vextract.low.u32 %v5728
    %v5730 = vextract.high.u32 %v5728
    %v5731 = vmul.u32.u64.compose %v5727, %v5722
    %v5732 = vextract.low.u32 %v5731
    %v5733 = vextract.high.u32 %v5731
    %v5734 = vmul.u32 %v5727, %v5718
    %v5735 = vadd.s32 %v5730, %v5732
    %vm5736 = vc.u32 %v5730, %v5732
    %v5737 = vadd.s32 %v5733, 1
    %v5738 = vsel %vm5736, %v5737, %v5733
    %v5739 = vadd.s32 %v5734, %v5738
    %v5740 = vadd.s32 %v5739, 536870912
    %v5741 = vshrl.u32 %v5740, 30
    %v5742 = vshll.u32 %v5741, 30
    %v5743 = vsub.s32 %v5739, %v5742
    %vm5744 = vcmp.lt.s32.totalorder %v5743, 0
    %v5745 = vsub.s32 0, %v5743
    %v5746 = vsel %vm5744, %v5745, %v5743
    %v5747 = vclz %v5746
    %v5748 = vsub.s32 %v5747, 2
    %vm5749 = vcmp.gt.s32.totalorder 0, %v5748
    %v5750 = vsel %vm5749, 0, %v5748
    %v5751 = vsub.s32 32, %v5750
    %v5752 = vshll.u32 %v5743, %v5750
    %v5753 = vshrl.u32 %v5735, %v5751
    %v5754 = vor.u32 %v5752, %v5753
    %v5755 = vsub.s32 4294967266, %v5750
    %v5756 = vadd.s32 %v5755, 127
    %v5757 = vshll.u32 %v5756, 23
    %v5758 = vor.u32 4788187, %v5757
    %v5759 = vand.u32 2147483647, %v5758
    %v5761 = vcvt.s32.f32 %v5754
    %v5762 = vmul.f32 %v5761, %v5759
    %v5763 = vxor.u32 %v5762, 2147483648
    %v5764 = vsel %vm5681, %v5763, %v5762
    %v5765 = vsub.s32 4, %v5741
    %v5766 = vsel %vm5681, %v5765, %v5741
    %v5767 = vsel %vm5680, %v5449, %v5764
    %v5768 = vsel %vm5680, 0, %v5766
    %v5769 = vcosq.f32.pop %v5767
    %v5770 = vsinq.f32.pop %v5767
    %vm5771 = vweird.f32 %v5449
    %v5772 = vadd.s32 %v5768, 3
    %v5773 = vand.u32 %v5772, 3
    %vm5774 = vcmp.lt.s32.totalorder %v5773, 2
    %vm5775 = vcmp.eq.s32.totalorder %v5773, 0
    %v5776 = vxor.u32 %v5770, 2147483648
    %v5777 = vsel %vm5775, %v5769, %v5776
    %vm5778 = vcmp.eq.s32.totalorder %v5773, 2
    %v5779 = vxor.u32 %v5769, 2147483648
    %v5780 = vsel %vm5778, %v5779, %v5770
    %v5781 = vsel %vm5774, %v5777, %v5780
    %v5782 = vsel %vm5771, nan, %v5781
    %v5783 = vand.u32 2147483647, %v5450
    %vm5784 = vcmp.le.f32.partialorder %v5783, 0.7853982
    %vm5785 = vcmp.lt.s32.totalorder %v5450, 0
    %v5786 = vand.u32 %v5450, 2139095040
    %v5787 = vshrl.u32 %v5786, 23
    %v5788 = vsub.s32 %v5787, 127
    %v5789 = vand.u32 2147483647, %v5450
    %v5790 = vand.u32 %v5789, 8388607
    %v5791 = vor.u32 %v5790, 8388608
    %v5792 = vsub.s32 0, %v5791
    %v5793 = vadd.s32 %v5788, 1
    %vm5794 = vcmp.gt.s32.totalorder %v5793, 0
    %v5795 = vsel %vm5794, %v5793, 0
    %v5796 = vshrl.u32 %v5795, 5
    %v5797 = vand.u32 %v5795, 31
    %v5798 = vsub.s32 32, %v5797
    %v5799 = vshrl.u32 683565275, %v5798
    %v5800 = vshll.u32 683565275, %v5797
    %v5801 = vshrl.u32 2475754826, %v5798
    %v5802 = vor.u32 %v5800, %v5801
    %v5803 = vshll.u32 2475754826, %v5797
    %v5804 = vshrl.u32 2131351028, %v5798
    %v5805 = vor.u32 %v5803, %v5804
    %v5806 = vshll.u32 2131351028, %v5797
    %v5807 = vshrl.u32 2102212464, %v5798
    %v5808 = vor.u32 %v5806, %v5807
    %v5809 = vshll.u32 2102212464, %v5797
    %v5810 = vshrl.u32 920167782, %v5798
    %v5811 = vor.u32 %v5809, %v5810
    %v5812 = vshll.u32 920167782, %v5797
    %v5813 = vshrl.u32 1326507024, %v5798
    %v5814 = vor.u32 %v5812, %v5813
    %vm5815 = vcmp.lt.s32.totalorder %v5796, 1
    %vm5816 = vcmp.lt.s32.totalorder %v5796, 2
    %vm5817 = vcmp.lt.s32.totalorder %v5796, 3
    %vm5818 = vcmp.lt.s32.totalorder %v5796, 4
    %v5819 = vsel %vm5815, %v5799, %v5802
    %v5820 = vsel %vm5818, %v5808, 2102212464
    %v5821 = vsel %vm5817, %v5805, %v5820
    %v5822 = vsel %vm5816, %v5819, %v5821
    %v5823 = vsel %vm5815, %v5802, %v5805
    %v5824 = vsel %vm5818, %v5811, 920167782
    %v5825 = vsel %vm5817, %v5808, %v5824
    %v5826 = vsel %vm5816, %v5823, %v5825
    %v5827 = vsel %vm5815, %v5805, %v5808
    %v5828 = vsel %vm5818, %v5814, 1326507024
    %v5829 = vsel %vm5817, %v5811, %v5828
    %v5830 = vsel %vm5816, %v5827, %v5829
    %v5831 = vshll.u32 %v5791, 8
    %v5832 = vmul.u32.u64.compose %v5831, %v5830
    %v5833 = vextract.low.u32 %v5832
    %v5834 = vextract.high.u32 %v5832
    %v5835 = vmul.u32.u64.compose %v5831, %v5826
    %v5836 = vextract.low.u32 %v5835
    %v5837 = vextract.high.u32 %v5835
    %v5838 = vmul.u32 %v5831, %v5822
    %v5839 = vadd.s32 %v5834, %v5836
    %vm5840 = vc.u32 %v5834, %v5836
    %v5841 = vadd.s32 %v5837, 1
    %v5842 = vsel %vm5840, %v5841, %v5837
    %v5843 = vadd.s32 %v5838, %v5842
    %v5844 = vadd.s32 %v5843, 536870912
    %v5845 = vshrl.u32 %v5844, 30
    %v5846 = vshll.u32 %v5845, 30
    %v5847 = vsub.s32 %v5843, %v5846
    %vm5848 = vcmp.lt.s32.totalorder %v5847, 0
    %v5849 = vsub.s32 0, %v5847
    %v5850 = vsel %vm5848, %v5849, %v5847
    %v5851 = vclz %v5850
    %v5852 = vsub.s32 %v5851, 2
    %vm5853 = vcmp.gt.s32.totalorder 0, %v5852
    %v5854 = vsel %vm5853, 0, %v5852
    %v5855 = vsub.s32 32, %v5854
    %v5856 = vshll.u32 %v5847, %v5854
    %v5857 = vshrl.u32 %v5839, %v5855
    %v5858 = vor.u32 %v5856, %v5857
    %v5859 = vsub.s32 4294967266, %v5854
    %v5860 = vadd.s32 %v5859, 127
    %v5861 = vshll.u32 %v5860, 23
    %v5862 = vor.u32 4788187, %v5861
    %v5863 = vand.u32 2147483647, %v5862
    %v5865 = vcvt.s32.f32 %v5858
    %v5866 = vmul.f32 %v5865, %v5863
    %v5867 = vxor.u32 %v5866, 2147483648
    %v5868 = vsel %vm5785, %v5867, %v5866
    %v5869 = vsub.s32 4, %v5845
    %v5870 = vsel %vm5785, %v5869, %v5845
    %v5871 = vsel %vm5784, %v5450, %v5868
    %v5872 = vsel %vm5784, 0, %v5870
    %v5873 = vcosq.f32.pop %v5871
    %v5874 = vsinq.f32.pop %v5871
    %vm5875 = vweird.f32 %v5450
    %v5876 = vadd.s32 %v5872, 3
    %v5877 = vand.u32 %v5876, 3
    %vm5878 = vcmp.lt.s32.totalorder %v5877, 2
    %vm5879 = vcmp.eq.s32.totalorder %v5877, 0
    %v5880 = vxor.u32 %v5874, 2147483648
    %v5881 = vsel %vm5879, %v5873, %v5880
    %vm5882 = vcmp.eq.s32.totalorder %v5877, 2
    %v5883 = vxor.u32 %v5873, 2147483648
    %v5884 = vsel %vm5882, %v5883, %v5874
    %v5885 = vsel %vm5878, %v5881, %v5884
    %v5886 = vsel %vm5875, nan, %v5885
    %v5887 = vand.u32 2147483647, %v5451
    %vm5888 = vcmp.le.f32.partialorder %v5887, 0.7853982
    %vm5889 = vcmp.lt.s32.totalorder %v5451, 0
    %v5890 = vand.u32 %v5451, 2139095040
    %v5891 = vshrl.u32 %v5890, 23
    %v5892 = vsub.s32 %v5891, 127
    %v5893 = vand.u32 2147483647, %v5451
    %v5894 = vand.u32 %v5893, 8388607
    %v5895 = vor.u32 %v5894, 8388608
    %v5896 = vsub.s32 0, %v5895
    %v5897 = vadd.s32 %v5892, 1
    %vm5898 = vcmp.gt.s32.totalorder %v5897, 0
    %v5899 = vsel %vm5898, %v5897, 0
    %v5900 = vshrl.u32 %v5899, 5
    %v5901 = vand.u32 %v5899, 31
    %v5902 = vsub.s32 32, %v5901
    %v5903 = vshrl.u32 683565275, %v5902
    %v5904 = vshll.u32 683565275, %v5901
    %v5905 = vshrl.u32 2475754826, %v5902
    %v5906 = vor.u32 %v5904, %v5905
    %v5907 = vshll.u32 2475754826, %v5901
    %v5908 = vshrl.u32 2131351028, %v5902
    %v5909 = vor.u32 %v5907, %v5908
    %v5910 = vshll.u32 2131351028, %v5901
    %v5911 = vshrl.u32 2102212464, %v5902
    %v5912 = vor.u32 %v5910, %v5911
    %v5913 = vshll.u32 2102212464, %v5901
    %v5914 = vshrl.u32 920167782, %v5902
    %v5915 = vor.u32 %v5913, %v5914
    %v5916 = vshll.u32 920167782, %v5901
    %v5917 = vshrl.u32 1326507024, %v5902
    %v5918 = vor.u32 %v5916, %v5917
    %vm5919 = vcmp.lt.s32.totalorder %v5900, 1
    %vm5920 = vcmp.lt.s32.totalorder %v5900, 2
    %vm5921 = vcmp.lt.s32.totalorder %v5900, 3
    %vm5922 = vcmp.lt.s32.totalorder %v5900, 4
    %v5923 = vsel %vm5919, %v5903, %v5906
    %v5924 = vsel %vm5922, %v5912, 2102212464
    %v5925 = vsel %vm5921, %v5909, %v5924
    %v5926 = vsel %vm5920, %v5923, %v5925
    %v5927 = vsel %vm5919, %v5906, %v5909
    %v5928 = vsel %vm5922, %v5915, 920167782
    %v5929 = vsel %vm5921, %v5912, %v5928
    %v5930 = vsel %vm5920, %v5927, %v5929
    %v5931 = vsel %vm5919, %v5909, %v5912
    %v5932 = vsel %vm5922, %v5918, 1326507024
    %v5933 = vsel %vm5921, %v5915, %v5932
    %v5934 = vsel %vm5920, %v5931, %v5933
    %v5935 = vshll.u32 %v5895, 8
    %v5936 = vmul.u32.u64.compose %v5935, %v5934
    %v5937 = vextract.low.u32 %v5936
    %v5938 = vextract.high.u32 %v5936
    %v5939 = vmul.u32.u64.compose %v5935, %v5930
    %v5940 = vextract.low.u32 %v5939
    %v5941 = vextract.high.u32 %v5939
    %v5942 = vmul.u32 %v5935, %v5926
    %v5943 = vadd.s32 %v5938, %v5940
    %vm5944 = vc.u32 %v5938, %v5940
    %v5945 = vadd.s32 %v5941, 1
    %v5946 = vsel %vm5944, %v5945, %v5941
    %v5947 = vadd.s32 %v5942, %v5946
    %v5948 = vadd.s32 %v5947, 536870912
    %v5949 = vshrl.u32 %v5948, 30
    %v5950 = vshll.u32 %v5949, 30
    %v5951 = vsub.s32 %v5947, %v5950
    %vm5952 = vcmp.lt.s32.totalorder %v5951, 0
    %v5953 = vsub.s32 0, %v5951
    %v5954 = vsel %vm5952, %v5953, %v5951
    %v5955 = vclz %v5954
    %v5956 = vsub.s32 %v5955, 2
    %vm5957 = vcmp.gt.s32.totalorder 0, %v5956
    %v5958 = vsel %vm5957, 0, %v5956
    %v5959 = vsub.s32 32, %v5958
    %v5960 = vshll.u32 %v5951, %v5958
    %v5961 = vshrl.u32 %v5943, %v5959
    %v5962 = vor.u32 %v5960, %v5961
    %v5963 = vsub.s32 4294967266, %v5958
    %v5964 = vadd.s32 %v5963, 127
    %v5965 = vshll.u32 %v5964, 23
    %v5966 = vor.u32 4788187, %v5965
    %v5967 = vand.u32 2147483647, %v5966
    %v5969 = vcvt.s32.f32 %v5962
    %v5970 = vmul.f32 %v5969, %v5967
    %v5971 = vxor.u32 %v5970, 2147483648
    %v5972 = vsel %vm5889, %v5971, %v5970
    %v5973 = vsub.s32 4, %v5949
    %v5974 = vsel %vm5889, %v5973, %v5949
    %v5975 = vsel %vm5888, %v5451, %v5972
    %v5976 = vsel %vm5888, 0, %v5974
    %v5977 = vcosq.f32.pop %v5975
    %v5978 = vsinq.f32.pop %v5975
    %vm5979 = vweird.f32 %v5451
    %v5980 = vadd.s32 %v5976, 3
    %v5981 = vand.u32 %v5980, 3
    %vm5982 = vcmp.lt.s32.totalorder %v5981, 2
    %vm5983 = vcmp.eq.s32.totalorder %v5981, 0
    %v5984 = vxor.u32 %v5978, 2147483648
    %v5985 = vsel %vm5983, %v5977, %v5984
    %vm5986 = vcmp.eq.s32.totalorder %v5981, 2
    %v5987 = vxor.u32 %v5977, 2147483648
    %v5988 = vsel %vm5986, %v5987, %v5978
    %v5989 = vsel %vm5982, %v5985, %v5988
    %v5990 = vsel %vm5979, nan, %v5989
    %v5991 = vand.u32 2147483647, %v5452
    %vm5992 = vcmp.le.f32.partialorder %v5991, 0.7853982
    %vm5993 = vcmp.lt.s32.totalorder %v5452, 0
    %v5994 = vand.u32 %v5452, 2139095040
    %v5995 = vshrl.u32 %v5994, 23
    %v5996 = vsub.s32 %v5995, 127
    %v5997 = vand.u32 2147483647, %v5452
    %v5998 = vand.u32 %v5997, 8388607
    %v5999 = vor.u32 %v5998, 8388608
    %v6000 = vsub.s32 0, %v5999
    %v6001 = vadd.s32 %v5996, 1
    %vm6002 = vcmp.gt.s32.totalorder %v6001, 0
    %v6003 = vsel %vm6002, %v6001, 0
    %v6004 = vshrl.u32 %v6003, 5
    %v6005 = vand.u32 %v6003, 31
    %v6006 = vsub.s32 32, %v6005
    %v6007 = vshrl.u32 683565275, %v6006
    %v6008 = vshll.u32 683565275, %v6005
    %v6009 = vshrl.u32 2475754826, %v6006
    %v6010 = vor.u32 %v6008, %v6009
    %v6011 = vshll.u32 2475754826, %v6005
    %v6012 = vshrl.u32 2131351028, %v6006
    %v6013 = vor.u32 %v6011, %v6012
    %v6014 = vshll.u32 2131351028, %v6005
    %v6015 = vshrl.u32 2102212464, %v6006
    %v6016 = vor.u32 %v6014, %v6015
    %v6017 = vshll.u32 2102212464, %v6005
    %v6018 = vshrl.u32 920167782, %v6006
    %v6019 = vor.u32 %v6017, %v6018
    %v6020 = vshll.u32 920167782, %v6005
    %v6021 = vshrl.u32 1326507024, %v6006
    %v6022 = vor.u32 %v6020, %v6021
    %vm6023 = vcmp.lt.s32.totalorder %v6004, 1
    %vm6024 = vcmp.lt.s32.totalorder %v6004, 2
    %vm6025 = vcmp.lt.s32.totalorder %v6004, 3
    %vm6026 = vcmp.lt.s32.totalorder %v6004, 4
    %v6027 = vsel %vm6023, %v6007, %v6010
    %v6028 = vsel %vm6026, %v6016, 2102212464
    %v6029 = vsel %vm6025, %v6013, %v6028
    %v6030 = vsel %vm6024, %v6027, %v6029
    %v6031 = vsel %vm6023, %v6010, %v6013
    %v6032 = vsel %vm6026, %v6019, 920167782
    %v6033 = vsel %vm6025, %v6016, %v6032
    %v6034 = vsel %vm6024, %v6031, %v6033
    %v6035 = vsel %vm6023, %v6013, %v6016
    %v6036 = vsel %vm6026, %v6022, 1326507024
    %v6037 = vsel %vm6025, %v6019, %v6036
    %v6038 = vsel %vm6024, %v6035, %v6037
    %v6039 = vshll.u32 %v5999, 8
    %v6040 = vmul.u32.u64.compose %v6039, %v6038
    %v6041 = vextract.low.u32 %v6040
    %v6042 = vextract.high.u32 %v6040
    %v6043 = vmul.u32.u64.compose %v6039, %v6034
    %v6044 = vextract.low.u32 %v6043
    %v6045 = vextract.high.u32 %v6043
    %v6046 = vmul.u32 %v6039, %v6030
    %v6047 = vadd.s32 %v6042, %v6044
    %vm6048 = vc.u32 %v6042, %v6044
    %v6049 = vadd.s32 %v6045, 1
    %v6050 = vsel %vm6048, %v6049, %v6045
    %v6051 = vadd.s32 %v6046, %v6050
    %v6052 = vadd.s32 %v6051, 536870912
    %v6053 = vshrl.u32 %v6052, 30
    %v6054 = vshll.u32 %v6053, 30
    %v6055 = vsub.s32 %v6051, %v6054
    %vm6056 = vcmp.lt.s32.totalorder %v6055, 0
    %v6057 = vsub.s32 0, %v6055
    %v6058 = vsel %vm6056, %v6057, %v6055
    %v6059 = vclz %v6058
    %v6060 = vsub.s32 %v6059, 2
    %vm6061 = vcmp.gt.s32.totalorder 0, %v6060
    %v6062 = vsel %vm6061, 0, %v6060
    %v6063 = vsub.s32 32, %v6062
    %v6064 = vshll.u32 %v6055, %v6062
    %v6065 = vshrl.u32 %v6047, %v6063
    %v6066 = vor.u32 %v6064, %v6065
    %v6067 = vsub.s32 4294967266, %v6062
    %v6068 = vadd.s32 %v6067, 127
    %v6069 = vshll.u32 %v6068, 23
    %v6070 = vor.u32 4788187, %v6069
    %v6071 = vand.u32 2147483647, %v6070
    %v6073 = vcvt.s32.f32 %v6066
    %v6074 = vmul.f32 %v6073, %v6071
    %v6075 = vxor.u32 %v6074, 2147483648
    %v6076 = vsel %vm5993, %v6075, %v6074
    %v6077 = vsub.s32 4, %v6053
    %v6078 = vsel %vm5993, %v6077, %v6053
    %v6079 = vsel %vm5992, %v5452, %v6076
    %v6080 = vsel %vm5992, 0, %v6078
    %v6081 = vcosq.f32.pop %v6079
    %v6082 = vsinq.f32.pop %v6079
    %vm6083 = vweird.f32 %v5452
    %v6084 = vadd.s32 %v6080, 3
    %v6085 = vand.u32 %v6084, 3
    %vm6086 = vcmp.lt.s32.totalorder %v6085, 2
    %vm6087 = vcmp.eq.s32.totalorder %v6085, 0
    %v6088 = vxor.u32 %v6082, 2147483648
    %v6089 = vsel %vm6087, %v6081, %v6088
    %vm6090 = vcmp.eq.s32.totalorder %v6085, 2
    %v6091 = vxor.u32 %v6081, 2147483648
    %v6092 = vsel %vm6090, %v6091, %v6082
    %v6093 = vsel %vm6086, %v6089, %v6092
    %v6094 = vsel %vm6083, nan, %v6093
    %v6095 = vand.u32 2147483647, %v5453
    %vm6096 = vcmp.le.f32.partialorder %v6095, 0.7853982
    %vm6097 = vcmp.lt.s32.totalorder %v5453, 0
    %v6098 = vand.u32 %v5453, 2139095040
    %v6099 = vshrl.u32 %v6098, 23
    %v6100 = vsub.s32 %v6099, 127
    %v6101 = vand.u32 2147483647, %v5453
    %v6102 = vand.u32 %v6101, 8388607
    %v6103 = vor.u32 %v6102, 8388608
    %v6104 = vsub.s32 0, %v6103
    %v6105 = vadd.s32 %v6100, 1
    %vm6106 = vcmp.gt.s32.totalorder %v6105, 0
    %v6107 = vsel %vm6106, %v6105, 0
    %v6108 = vshrl.u32 %v6107, 5
    %v6109 = vand.u32 %v6107, 31
    %v6110 = vsub.s32 32, %v6109
    %v6111 = vshrl.u32 683565275, %v6110
    %v6112 = vshll.u32 683565275, %v6109
    %v6113 = vshrl.u32 2475754826, %v6110
    %v6114 = vor.u32 %v6112, %v6113
    %v6115 = vshll.u32 2475754826, %v6109
    %v6116 = vshrl.u32 2131351028, %v6110
    %v6117 = vor.u32 %v6115, %v6116
    %v6118 = vshll.u32 2131351028, %v6109
    %v6119 = vshrl.u32 2102212464, %v6110
    %v6120 = vor.u32 %v6118, %v6119
    %v6121 = vshll.u32 2102212464, %v6109
    %v6122 = vshrl.u32 920167782, %v6110
    %v6123 = vor.u32 %v6121, %v6122
    %v6124 = vshll.u32 920167782, %v6109
    %v6125 = vshrl.u32 1326507024, %v6110
    %v6126 = vor.u32 %v6124, %v6125
    %vm6127 = vcmp.lt.s32.totalorder %v6108, 1
    %vm6128 = vcmp.lt.s32.totalorder %v6108, 2
    %vm6129 = vcmp.lt.s32.totalorder %v6108, 3
    %vm6130 = vcmp.lt.s32.totalorder %v6108, 4
    %v6131 = vsel %vm6127, %v6111, %v6114
    %v6132 = vsel %vm6130, %v6120, 2102212464
    %v6133 = vsel %vm6129, %v6117, %v6132
    %v6134 = vsel %vm6128, %v6131, %v6133
    %v6135 = vsel %vm6127, %v6114, %v6117
    %v6136 = vsel %vm6130, %v6123, 920167782
    %v6137 = vsel %vm6129, %v6120, %v6136
    %v6138 = vsel %vm6128, %v6135, %v6137
    %v6139 = vsel %vm6127, %v6117, %v6120
    %v6140 = vsel %vm6130, %v6126, 1326507024
    %v6141 = vsel %vm6129, %v6123, %v6140
    %v6142 = vsel %vm6128, %v6139, %v6141
    %v6143 = vshll.u32 %v6103, 8
    %v6144 = vmul.u32.u64.compose %v6143, %v6142
    %v6145 = vextract.low.u32 %v6144
    %v6146 = vextract.high.u32 %v6144
    %v6147 = vmul.u32.u64.compose %v6143, %v6138
    %v6148 = vextract.low.u32 %v6147
    %v6149 = vextract.high.u32 %v6147
    %v6150 = vmul.u32 %v6143, %v6134
    %v6151 = vadd.s32 %v6146, %v6148
    %vm6152 = vc.u32 %v6146, %v6148
    %v6153 = vadd.s32 %v6149, 1
    %v6154 = vsel %vm6152, %v6153, %v6149
    %v6155 = vadd.s32 %v6150, %v6154
    %v6156 = vadd.s32 %v6155, 536870912
    %v6157 = vshrl.u32 %v6156, 30
    %v6158 = vshll.u32 %v6157, 30
    %v6159 = vsub.s32 %v6155, %v6158
    %vm6160 = vcmp.lt.s32.totalorder %v6159, 0
    %v6161 = vsub.s32 0, %v6159
    %v6162 = vsel %vm6160, %v6161, %v6159
    %v6163 = vclz %v6162
    %v6164 = vsub.s32 %v6163, 2
    %vm6165 = vcmp.gt.s32.totalorder 0, %v6164
    %v6166 = vsel %vm6165, 0, %v6164
    %v6167 = vsub.s32 32, %v6166
    %v6168 = vshll.u32 %v6159, %v6166
    %v6169 = vshrl.u32 %v6151, %v6167
    %v6170 = vor.u32 %v6168, %v6169
    %v6171 = vsub.s32 4294967266, %v6166
    %v6172 = vadd.s32 %v6171, 127
    %v6173 = vshll.u32 %v6172, 23
    %v6174 = vor.u32 4788187, %v6173
    %v6175 = vand.u32 2147483647, %v6174
    %v6177 = vcvt.s32.f32 %v6170
    %v6178 = vmul.f32 %v6177, %v6175
    %v6179 = vxor.u32 %v6178, 2147483648
    %v6180 = vsel %vm6097, %v6179, %v6178
    %v6181 = vsub.s32 4, %v6157
    %v6182 = vsel %vm6097, %v6181, %v6157
    %v6183 = vsel %vm6096, %v5453, %v6180
    %v6184 = vsel %vm6096, 0, %v6182
    %v6185 = vcosq.f32.pop %v6183
    %v6186 = vsinq.f32.pop %v6183
    %vm6187 = vweird.f32 %v5453
    %v6188 = vadd.s32 %v6184, 3
    %v6189 = vand.u32 %v6188, 3
    %vm6190 = vcmp.lt.s32.totalorder %v6189, 2
    %vm6191 = vcmp.eq.s32.totalorder %v6189, 0
    %v6192 = vxor.u32 %v6186, 2147483648
    %v6193 = vsel %vm6191, %v6185, %v6192
    %vm6194 = vcmp.eq.s32.totalorder %v6189, 2
    %v6195 = vxor.u32 %v6185, 2147483648
    %v6196 = vsel %vm6194, %v6195, %v6186
    %v6197 = vsel %vm6190, %v6193, %v6196
    %v6198 = vsel %vm6187, nan, %v6197
    %v6199 = vand.u32 2147483647, %v5454
    %vm6200 = vcmp.le.f32.partialorder %v6199, 0.7853982
    %vm6201 = vcmp.lt.s32.totalorder %v5454, 0
    %v6202 = vand.u32 %v5454, 2139095040
    %v6203 = vshrl.u32 %v6202, 23
    %v6204 = vsub.s32 %v6203, 127
    %v6205 = vand.u32 2147483647, %v5454
    %v6206 = vand.u32 %v6205, 8388607
    %v6207 = vor.u32 %v6206, 8388608
    %v6208 = vsub.s32 0, %v6207
    %v6209 = vadd.s32 %v6204, 1
    %vm6210 = vcmp.gt.s32.totalorder %v6209, 0
    %v6211 = vsel %vm6210, %v6209, 0
    %v6212 = vshrl.u32 %v6211, 5
    %v6213 = vand.u32 %v6211, 31
    %v6214 = vsub.s32 32, %v6213
    %v6215 = vshrl.u32 683565275, %v6214
    %v6216 = vshll.u32 683565275, %v6213
    %v6217 = vshrl.u32 2475754826, %v6214
    %v6218 = vor.u32 %v6216, %v6217
    %v6219 = vshll.u32 2475754826, %v6213
    %v6220 = vshrl.u32 2131351028, %v6214
    %v6221 = vor.u32 %v6219, %v6220
    %v6222 = vshll.u32 2131351028, %v6213
    %v6223 = vshrl.u32 2102212464, %v6214
    %v6224 = vor.u32 %v6222, %v6223
    %v6225 = vshll.u32 2102212464, %v6213
    %v6226 = vshrl.u32 920167782, %v6214
    %v6227 = vor.u32 %v6225, %v6226
    %v6228 = vshll.u32 920167782, %v6213
    %v6229 = vshrl.u32 1326507024, %v6214
    %v6230 = vor.u32 %v6228, %v6229
    %vm6231 = vcmp.lt.s32.totalorder %v6212, 1
    %vm6232 = vcmp.lt.s32.totalorder %v6212, 2
    %vm6233 = vcmp.lt.s32.totalorder %v6212, 3
    %vm6234 = vcmp.lt.s32.totalorder %v6212, 4
    %v6235 = vsel %vm6231, %v6215, %v6218
    %v6236 = vsel %vm6234, %v6224, 2102212464
    %v6237 = vsel %vm6233, %v6221, %v6236
    %v6238 = vsel %vm6232, %v6235, %v6237
    %v6239 = vsel %vm6231, %v6218, %v6221
    %v6240 = vsel %vm6234, %v6227, 920167782
    %v6241 = vsel %vm6233, %v6224, %v6240
    %v6242 = vsel %vm6232, %v6239, %v6241
    %v6243 = vsel %vm6231, %v6221, %v6224
    %v6244 = vsel %vm6234, %v6230, 1326507024
    %v6245 = vsel %vm6233, %v6227, %v6244
    %v6246 = vsel %vm6232, %v6243, %v6245
    %v6247 = vshll.u32 %v6207, 8
    %v6248 = vmul.u32.u64.compose %v6247, %v6246
    %v6249 = vextract.low.u32 %v6248
    %v6250 = vextract.high.u32 %v6248
    %v6251 = vmul.u32.u64.compose %v6247, %v6242
    %v6252 = vextract.low.u32 %v6251
    %v6253 = vextract.high.u32 %v6251
    %v6254 = vmul.u32 %v6247, %v6238
    %v6255 = vadd.s32 %v6250, %v6252
    %vm6256 = vc.u32 %v6250, %v6252
    %v6257 = vadd.s32 %v6253, 1
    %v6258 = vsel %vm6256, %v6257, %v6253
    %v6259 = vadd.s32 %v6254, %v6258
    %v6260 = vadd.s32 %v6259, 536870912
    %v6261 = vshrl.u32 %v6260, 30
    %v6262 = vshll.u32 %v6261, 30
    %v6263 = vsub.s32 %v6259, %v6262
    %vm6264 = vcmp.lt.s32.totalorder %v6263, 0
    %v6265 = vsub.s32 0, %v6263
    %v6266 = vsel %vm6264, %v6265, %v6263
    %v6267 = vclz %v6266
    %v6268 = vsub.s32 %v6267, 2
    %vm6269 = vcmp.gt.s32.totalorder 0, %v6268
    %v6270 = vsel %vm6269, 0, %v6268
    %v6271 = vsub.s32 32, %v6270
    %v6272 = vshll.u32 %v6263, %v6270
    %v6273 = vshrl.u32 %v6255, %v6271
    %v6274 = vor.u32 %v6272, %v6273
    %v6275 = vsub.s32 4294967266, %v6270
    %v6276 = vadd.s32 %v6275, 127
    %v6277 = vshll.u32 %v6276, 23
    %v6278 = vor.u32 4788187, %v6277
    %v6279 = vand.u32 2147483647, %v6278
    %v6281 = vcvt.s32.f32 %v6274
    %v6282 = vmul.f32 %v6281, %v6279
    %v6283 = vxor.u32 %v6282, 2147483648
    %v6284 = vsel %vm6201, %v6283, %v6282
    %v6285 = vsub.s32 4, %v6261
    %v6286 = vsel %vm6201, %v6285, %v6261
    %v6287 = vsel %vm6200, %v5454, %v6284
    %v6288 = vsel %vm6200, 0, %v6286
    %v6289 = vcosq.f32.pop %v6287
    %v6290 = vsinq.f32.pop %v6287
    %vm6291 = vweird.f32 %v5454
    %v6292 = vadd.s32 %v6288, 3
    %v6293 = vand.u32 %v6292, 3
    %vm6294 = vcmp.lt.s32.totalorder %v6293, 2
    %vm6295 = vcmp.eq.s32.totalorder %v6293, 0
    %v6296 = vxor.u32 %v6290, 2147483648
    %v6297 = vsel %vm6295, %v6289, %v6296
    %vm6298 = vcmp.eq.s32.totalorder %v6293, 2
    %v6299 = vxor.u32 %v6289, 2147483648
    %v6300 = vsel %vm6298, %v6299, %v6290
    %v6301 = vsel %vm6294, %v6297, %v6300
    %v6302 = vsel %vm6291, nan, %v6301
    %v6303 = vand.u32 2147483647, %v5455
    %vm6304 = vcmp.le.f32.partialorder %v6303, 0.7853982
    %vm6305 = vcmp.lt.s32.totalorder %v5455, 0
    %v6306 = vand.u32 %v5455, 2139095040
    %v6307 = vshrl.u32 %v6306, 23
    %v6308 = vsub.s32 %v6307, 127
    %v6309 = vand.u32 2147483647, %v5455
    %v6310 = vand.u32 %v6309, 8388607
    %v6311 = vor.u32 %v6310, 8388608
    %v6312 = vsub.s32 0, %v6311
    %v6313 = vadd.s32 %v6308, 1
    %vm6314 = vcmp.gt.s32.totalorder %v6313, 0
    %v6315 = vsel %vm6314, %v6313, 0
    %v6316 = vshrl.u32 %v6315, 5
    %v6317 = vand.u32 %v6315, 31
    %v6318 = vsub.s32 32, %v6317
    %v6319 = vshrl.u32 683565275, %v6318
    %v6320 = vshll.u32 683565275, %v6317
    %v6321 = vshrl.u32 2475754826, %v6318
    %v6322 = vor.u32 %v6320, %v6321
    %v6323 = vshll.u32 2475754826, %v6317
    %v6324 = vshrl.u32 2131351028, %v6318
    %v6325 = vor.u32 %v6323, %v6324
    %v6326 = vshll.u32 2131351028, %v6317
    %v6327 = vshrl.u32 2102212464, %v6318
    %v6328 = vor.u32 %v6326, %v6327
    %v6329 = vshll.u32 2102212464, %v6317
    %v6330 = vshrl.u32 920167782, %v6318
    %v6331 = vor.u32 %v6329, %v6330
    %v6332 = vshll.u32 920167782, %v6317
    %v6333 = vshrl.u32 1326507024, %v6318
    %v6334 = vor.u32 %v6332, %v6333
    %vm6335 = vcmp.lt.s32.totalorder %v6316, 1
    %vm6336 = vcmp.lt.s32.totalorder %v6316, 2
    %vm6337 = vcmp.lt.s32.totalorder %v6316, 3
    %vm6338 = vcmp.lt.s32.totalorder %v6316, 4
    %v6339 = vsel %vm6335, %v6319, %v6322
    %v6340 = vsel %vm6338, %v6328, 2102212464
    %v6341 = vsel %vm6337, %v6325, %v6340
    %v6342 = vsel %vm6336, %v6339, %v6341
    %v6343 = vsel %vm6335, %v6322, %v6325
    %v6344 = vsel %vm6338, %v6331, 920167782
    %v6345 = vsel %vm6337, %v6328, %v6344
    %v6346 = vsel %vm6336, %v6343, %v6345
    %v6347 = vsel %vm6335, %v6325, %v6328
    %v6348 = vsel %vm6338, %v6334, 1326507024
    %v6349 = vsel %vm6337, %v6331, %v6348
    %v6350 = vsel %vm6336, %v6347, %v6349
    %v6351 = vshll.u32 %v6311, 8
    %v6352 = vmul.u32.u64.compose %v6351, %v6350
    %v6353 = vextract.low.u32 %v6352
    %v6354 = vextract.high.u32 %v6352
    %v6355 = vmul.u32.u64.compose %v6351, %v6346
    %v6356 = vextract.low.u32 %v6355
    %v6357 = vextract.high.u32 %v6355
    %v6358 = vmul.u32 %v6351, %v6342
    %v6359 = vadd.s32 %v6354, %v6356
    %vm6360 = vc.u32 %v6354, %v6356
    %v6361 = vadd.s32 %v6357, 1
    %v6362 = vsel %vm6360, %v6361, %v6357
    %v6363 = vadd.s32 %v6358, %v6362
    %v6364 = vadd.s32 %v6363, 536870912
    %v6365 = vshrl.u32 %v6364, 30
    %v6366 = vshll.u32 %v6365, 30
    %v6367 = vsub.s32 %v6363, %v6366
    %vm6368 = vcmp.lt.s32.totalorder %v6367, 0
    %v6369 = vsub.s32 0, %v6367
    %v6370 = vsel %vm6368, %v6369, %v6367
    %v6371 = vclz %v6370
    %v6372 = vsub.s32 %v6371, 2
    %vm6373 = vcmp.gt.s32.totalorder 0, %v6372
    %v6374 = vsel %vm6373, 0, %v6372
    %v6375 = vsub.s32 32, %v6374
    %v6376 = vshll.u32 %v6367, %v6374
    %v6377 = vshrl.u32 %v6359, %v6375
    %v6378 = vor.u32 %v6376, %v6377
    %v6379 = vsub.s32 4294967266, %v6374
    %v6380 = vadd.s32 %v6379, 127
    %v6381 = vshll.u32 %v6380, 23
    %v6382 = vor.u32 4788187, %v6381
    %v6383 = vand.u32 2147483647, %v6382
    %v6385 = vcvt.s32.f32 %v6378
    %v6386 = vmul.f32 %v6385, %v6383
    %v6387 = vxor.u32 %v6386, 2147483648
    %v6388 = vsel %vm6305, %v6387, %v6386
    %v6389 = vsub.s32 4, %v6365
    %v6390 = vsel %vm6305, %v6389, %v6365
    %v6391 = vsel %vm6304, %v5455, %v6388
    %v6392 = vsel %vm6304, 0, %v6390
    %v6393 = vcosq.f32.pop %v6391
    %v6394 = vsinq.f32.pop %v6391
    %vm6395 = vweird.f32 %v5455
    %v6396 = vadd.s32 %v6392, 3
    %v6397 = vand.u32 %v6396, 3
    %vm6398 = vcmp.lt.s32.totalorder %v6397, 2
    %vm6399 = vcmp.eq.s32.totalorder %v6397, 0
    %v6400 = vxor.u32 %v6394, 2147483648
    %v6401 = vsel %vm6399, %v6393, %v6400
    %vm6402 = vcmp.eq.s32.totalorder %v6397, 2
    %v6403 = vxor.u32 %v6393, 2147483648
    %v6404 = vsel %vm6402, %v6403, %v6394
    %v6405 = vsel %vm6398, %v6401, %v6404
    %v6406 = vsel %vm6395, nan, %v6405
    %v6407 = vand.u32 2147483647, %v5456
    %vm6408 = vcmp.le.f32.partialorder %v6407, 0.7853982
    %vm6409 = vcmp.lt.s32.totalorder %v5456, 0
    %v6410 = vand.u32 %v5456, 2139095040
    %v6411 = vshrl.u32 %v6410, 23
    %v6412 = vsub.s32 %v6411, 127
    %v6413 = vand.u32 2147483647, %v5456
    %v6414 = vand.u32 %v6413, 8388607
    %v6415 = vor.u32 %v6414, 8388608
    %v6416 = vsub.s32 0, %v6415
    %v6417 = vadd.s32 %v6412, 1
    %vm6418 = vcmp.gt.s32.totalorder %v6417, 0
    %v6419 = vsel %vm6418, %v6417, 0
    %v6420 = vshrl.u32 %v6419, 5
    %v6421 = vand.u32 %v6419, 31
    %v6422 = vsub.s32 32, %v6421
    %v6423 = vshrl.u32 683565275, %v6422
    %v6424 = vshll.u32 683565275, %v6421
    %v6425 = vshrl.u32 2475754826, %v6422
    %v6426 = vor.u32 %v6424, %v6425
    %v6427 = vshll.u32 2475754826, %v6421
    %v6428 = vshrl.u32 2131351028, %v6422
    %v6429 = vor.u32 %v6427, %v6428
    %v6430 = vshll.u32 2131351028, %v6421
    %v6431 = vshrl.u32 2102212464, %v6422
    %v6432 = vor.u32 %v6430, %v6431
    %v6433 = vshll.u32 2102212464, %v6421
    %v6434 = vshrl.u32 920167782, %v6422
    %v6435 = vor.u32 %v6433, %v6434
    %v6436 = vshll.u32 920167782, %v6421
    %v6437 = vshrl.u32 1326507024, %v6422
    %v6438 = vor.u32 %v6436, %v6437
    %vm6439 = vcmp.lt.s32.totalorder %v6420, 1
    %vm6440 = vcmp.lt.s32.totalorder %v6420, 2
    %vm6441 = vcmp.lt.s32.totalorder %v6420, 3
    %vm6442 = vcmp.lt.s32.totalorder %v6420, 4
    %v6443 = vsel %vm6439, %v6423, %v6426
    %v6444 = vsel %vm6442, %v6432, 2102212464
    %v6445 = vsel %vm6441, %v6429, %v6444
    %v6446 = vsel %vm6440, %v6443, %v6445
    %v6447 = vsel %vm6439, %v6426, %v6429
    %v6448 = vsel %vm6442, %v6435, 920167782
    %v6449 = vsel %vm6441, %v6432, %v6448
    %v6450 = vsel %vm6440, %v6447, %v6449
    %v6451 = vsel %vm6439, %v6429, %v6432
    %v6452 = vsel %vm6442, %v6438, 1326507024
    %v6453 = vsel %vm6441, %v6435, %v6452
    %v6454 = vsel %vm6440, %v6451, %v6453
    %v6455 = vshll.u32 %v6415, 8
    %v6456 = vmul.u32.u64.compose %v6455, %v6454
    %v6457 = vextract.low.u32 %v6456
    %v6458 = vextract.high.u32 %v6456
    %v6459 = vmul.u32.u64.compose %v6455, %v6450
    %v6460 = vextract.low.u32 %v6459
    %v6461 = vextract.high.u32 %v6459
    %v6462 = vmul.u32 %v6455, %v6446
    %v6463 = vadd.s32 %v6458, %v6460
    %vm6464 = vc.u32 %v6458, %v6460
    %v6465 = vadd.s32 %v6461, 1
    %v6466 = vsel %vm6464, %v6465, %v6461
    %v6467 = vadd.s32 %v6462, %v6466
    %v6468 = vadd.s32 %v6467, 536870912
    %v6469 = vshrl.u32 %v6468, 30
    %v6470 = vshll.u32 %v6469, 30
    %v6471 = vsub.s32 %v6467, %v6470
    %vm6472 = vcmp.lt.s32.totalorder %v6471, 0
    %v6473 = vsub.s32 0, %v6471
    %v6474 = vsel %vm6472, %v6473, %v6471
    %v6475 = vclz %v6474
    %v6476 = vsub.s32 %v6475, 2
    %vm6477 = vcmp.gt.s32.totalorder 0, %v6476
    %v6478 = vsel %vm6477, 0, %v6476
    %v6479 = vsub.s32 32, %v6478
    %v6480 = vshll.u32 %v6471, %v6478
    %v6481 = vshrl.u32 %v6463, %v6479
    %v6482 = vor.u32 %v6480, %v6481
    %v6483 = vsub.s32 4294967266, %v6478
    %v6484 = vadd.s32 %v6483, 127
    %v6485 = vshll.u32 %v6484, 23
    %v6486 = vor.u32 4788187, %v6485
    %v6487 = vand.u32 2147483647, %v6486
    %v6489 = vcvt.s32.f32 %v6482
    %v6490 = vmul.f32 %v6489, %v6487
    %v6491 = vxor.u32 %v6490, 2147483648
    %v6492 = vsel %vm6409, %v6491, %v6490
    %v6493 = vsub.s32 4, %v6469
    %v6494 = vsel %vm6409, %v6493, %v6469
    %v6495 = vsel %vm6408, %v5456, %v6492
    %v6496 = vsel %vm6408, 0, %v6494
    %v6497 = vcosq.f32.pop %v6495
    %v6498 = vsinq.f32.pop %v6495
    %vm6499 = vweird.f32 %v5456
    %v6500 = vadd.s32 %v6496, 3
    %v6501 = vand.u32 %v6500, 3
    %vm6502 = vcmp.lt.s32.totalorder %v6501, 2
    %vm6503 = vcmp.eq.s32.totalorder %v6501, 0
    %v6504 = vxor.u32 %v6498, 2147483648
    %v6505 = vsel %vm6503, %v6497, %v6504
    %vm6506 = vcmp.eq.s32.totalorder %v6501, 2
    %v6507 = vxor.u32 %v6497, 2147483648
    %v6508 = vsel %vm6506, %v6507, %v6498
    %v6509 = vsel %vm6502, %v6505, %v6508
    %v6510 = vsel %vm6499, nan, %v6509
    %v6511 = vand.u32 2147483647, %v5457
    %vm6512 = vcmp.le.f32.partialorder %v6511, 0.7853982
    %vm6513 = vcmp.lt.s32.totalorder %v5457, 0
    %v6514 = vand.u32 %v5457, 2139095040
    %v6515 = vshrl.u32 %v6514, 23
    %v6516 = vsub.s32 %v6515, 127
    %v6517 = vand.u32 2147483647, %v5457
    %v6518 = vand.u32 %v6517, 8388607
    %v6519 = vor.u32 %v6518, 8388608
    %v6520 = vsub.s32 0, %v6519
    %v6521 = vadd.s32 %v6516, 1
    %vm6522 = vcmp.gt.s32.totalorder %v6521, 0
    %v6523 = vsel %vm6522, %v6521, 0
    %v6524 = vshrl.u32 %v6523, 5
    %v6525 = vand.u32 %v6523, 31
    %v6526 = vsub.s32 32, %v6525
    %v6527 = vshrl.u32 683565275, %v6526
    %v6528 = vshll.u32 683565275, %v6525
    %v6529 = vshrl.u32 2475754826, %v6526
    %v6530 = vor.u32 %v6528, %v6529
    %v6531 = vshll.u32 2475754826, %v6525
    %v6532 = vshrl.u32 2131351028, %v6526
    %v6533 = vor.u32 %v6531, %v6532
    %v6534 = vshll.u32 2131351028, %v6525
    %v6535 = vshrl.u32 2102212464, %v6526
    %v6536 = vor.u32 %v6534, %v6535
    %v6537 = vshll.u32 2102212464, %v6525
    %v6538 = vshrl.u32 920167782, %v6526
    %v6539 = vor.u32 %v6537, %v6538
    %v6540 = vshll.u32 920167782, %v6525
    %v6541 = vshrl.u32 1326507024, %v6526
    %v6542 = vor.u32 %v6540, %v6541
    %vm6543 = vcmp.lt.s32.totalorder %v6524, 1
    %vm6544 = vcmp.lt.s32.totalorder %v6524, 2
    %vm6545 = vcmp.lt.s32.totalorder %v6524, 3
    %vm6546 = vcmp.lt.s32.totalorder %v6524, 4
    %v6547 = vsel %vm6543, %v6527, %v6530
    %v6548 = vsel %vm6546, %v6536, 2102212464
    %v6549 = vsel %vm6545, %v6533, %v6548
    %v6550 = vsel %vm6544, %v6547, %v6549
    %v6551 = vsel %vm6543, %v6530, %v6533
    %v6552 = vsel %vm6546, %v6539, 920167782
    %v6553 = vsel %vm6545, %v6536, %v6552
    %v6554 = vsel %vm6544, %v6551, %v6553
    %v6555 = vsel %vm6543, %v6533, %v6536
    %v6556 = vsel %vm6546, %v6542, 1326507024
    %v6557 = vsel %vm6545, %v6539, %v6556
    %v6558 = vsel %vm6544, %v6555, %v6557
    %v6559 = vshll.u32 %v6519, 8
    %v6560 = vmul.u32.u64.compose %v6559, %v6558
    %v6561 = vextract.low.u32 %v6560
    %v6562 = vextract.high.u32 %v6560
    %v6563 = vmul.u32.u64.compose %v6559, %v6554
    %v6564 = vextract.low.u32 %v6563
    %v6565 = vextract.high.u32 %v6563
    %v6566 = vmul.u32 %v6559, %v6550
    %v6567 = vadd.s32 %v6562, %v6564
    %vm6568 = vc.u32 %v6562, %v6564
    %v6569 = vadd.s32 %v6565, 1
    %v6570 = vsel %vm6568, %v6569, %v6565
    %v6571 = vadd.s32 %v6566, %v6570
    %v6572 = vadd.s32 %v6571, 536870912
    %v6573 = vshrl.u32 %v6572, 30
    %v6574 = vshll.u32 %v6573, 30
    %v6575 = vsub.s32 %v6571, %v6574
    %vm6576 = vcmp.lt.s32.totalorder %v6575, 0
    %v6577 = vsub.s32 0, %v6575
    %v6578 = vsel %vm6576, %v6577, %v6575
    %v6579 = vclz %v6578
    %v6580 = vsub.s32 %v6579, 2
    %vm6581 = vcmp.gt.s32.totalorder 0, %v6580
    %v6582 = vsel %vm6581, 0, %v6580
    %v6583 = vsub.s32 32, %v6582
    %v6584 = vshll.u32 %v6575, %v6582
    %v6585 = vshrl.u32 %v6567, %v6583
    %v6586 = vor.u32 %v6584, %v6585
    %v6587 = vsub.s32 4294967266, %v6582
    %v6588 = vadd.s32 %v6587, 127
    %v6589 = vshll.u32 %v6588, 23
    %v6590 = vor.u32 4788187, %v6589
    %v6591 = vand.u32 2147483647, %v6590
    %v6593 = vcvt.s32.f32 %v6586
    %v6594 = vmul.f32 %v6593, %v6591
    %v6595 = vxor.u32 %v6594, 2147483648
    %v6596 = vsel %vm6513, %v6595, %v6594
    %v6597 = vsub.s32 4, %v6573
    %v6598 = vsel %vm6513, %v6597, %v6573
    %v6599 = vsel %vm6512, %v5457, %v6596
    %v6600 = vsel %vm6512, 0, %v6598
    %v6601 = vcosq.f32.pop %v6599
    %v6602 = vsinq.f32.pop %v6599
    %vm6603 = vweird.f32 %v5457
    %v6604 = vadd.s32 %v6600, 3
    %v6605 = vand.u32 %v6604, 3
    %vm6606 = vcmp.lt.s32.totalorder %v6605, 2
    %vm6607 = vcmp.eq.s32.totalorder %v6605, 0
    %v6608 = vxor.u32 %v6602, 2147483648
    %v6609 = vsel %vm6607, %v6601, %v6608
    %vm6610 = vcmp.eq.s32.totalorder %v6605, 2
    %v6611 = vxor.u32 %v6601, 2147483648
    %v6612 = vsel %vm6610, %v6611, %v6602
    %v6613 = vsel %vm6606, %v6609, %v6612
    %v6614 = vsel %vm6603, nan, %v6613
    %v6615 = vand.u32 2147483647, %v5458
    %vm6616 = vcmp.le.f32.partialorder %v6615, 0.7853982
    %vm6617 = vcmp.lt.s32.totalorder %v5458, 0
    %v6618 = vand.u32 %v5458, 2139095040
    %v6619 = vshrl.u32 %v6618, 23
    %v6620 = vsub.s32 %v6619, 127
    %v6621 = vand.u32 2147483647, %v5458
    %v6622 = vand.u32 %v6621, 8388607
    %v6623 = vor.u32 %v6622, 8388608
    %v6624 = vsub.s32 0, %v6623
    %v6625 = vadd.s32 %v6620, 1
    %vm6626 = vcmp.gt.s32.totalorder %v6625, 0
    %v6627 = vsel %vm6626, %v6625, 0
    %v6628 = vshrl.u32 %v6627, 5
    %v6629 = vand.u32 %v6627, 31
    %v6630 = vsub.s32 32, %v6629
    %v6631 = vshrl.u32 683565275, %v6630
    %v6632 = vshll.u32 683565275, %v6629
    %v6633 = vshrl.u32 2475754826, %v6630
    %v6634 = vor.u32 %v6632, %v6633
    %v6635 = vshll.u32 2475754826, %v6629
    %v6636 = vshrl.u32 2131351028, %v6630
    %v6637 = vor.u32 %v6635, %v6636
    %v6638 = vshll.u32 2131351028, %v6629
    %v6639 = vshrl.u32 2102212464, %v6630
    %v6640 = vor.u32 %v6638, %v6639
    %v6641 = vshll.u32 2102212464, %v6629
    %v6642 = vshrl.u32 920167782, %v6630
    %v6643 = vor.u32 %v6641, %v6642
    %v6644 = vshll.u32 920167782, %v6629
    %v6645 = vshrl.u32 1326507024, %v6630
    %v6646 = vor.u32 %v6644, %v6645
    %vm6647 = vcmp.lt.s32.totalorder %v6628, 1
    %vm6648 = vcmp.lt.s32.totalorder %v6628, 2
    %vm6649 = vcmp.lt.s32.totalorder %v6628, 3
    %vm6650 = vcmp.lt.s32.totalorder %v6628, 4
    %v6651 = vsel %vm6647, %v6631, %v6634
    %v6652 = vsel %vm6650, %v6640, 2102212464
    %v6653 = vsel %vm6649, %v6637, %v6652
    %v6654 = vsel %vm6648, %v6651, %v6653
    %v6655 = vsel %vm6647, %v6634, %v6637
    %v6656 = vsel %vm6650, %v6643, 920167782
    %v6657 = vsel %vm6649, %v6640, %v6656
    %v6658 = vsel %vm6648, %v6655, %v6657
    %v6659 = vsel %vm6647, %v6637, %v6640
    %v6660 = vsel %vm6650, %v6646, 1326507024
    %v6661 = vsel %vm6649, %v6643, %v6660
    %v6662 = vsel %vm6648, %v6659, %v6661
    %v6663 = vshll.u32 %v6623, 8
    %v6664 = vmul.u32.u64.compose %v6663, %v6662
    %v6665 = vextract.low.u32 %v6664
    %v6666 = vextract.high.u32 %v6664
    %v6667 = vmul.u32.u64.compose %v6663, %v6658
    %v6668 = vextract.low.u32 %v6667
    %v6669 = vextract.high.u32 %v6667
    %v6670 = vmul.u32 %v6663, %v6654
    %v6671 = vadd.s32 %v6666, %v6668
    %vm6672 = vc.u32 %v6666, %v6668
    %v6673 = vadd.s32 %v6669, 1
    %v6674 = vsel %vm6672, %v6673, %v6669
    %v6675 = vadd.s32 %v6670, %v6674
    %v6676 = vadd.s32 %v6675, 536870912
    %v6677 = vshrl.u32 %v6676, 30
    %v6678 = vshll.u32 %v6677, 30
    %v6679 = vsub.s32 %v6675, %v6678
    %vm6680 = vcmp.lt.s32.totalorder %v6679, 0
    %v6681 = vsub.s32 0, %v6679
    %v6682 = vsel %vm6680, %v6681, %v6679
    %v6683 = vclz %v6682
    %v6684 = vsub.s32 %v6683, 2
    %vm6685 = vcmp.gt.s32.totalorder 0, %v6684
    %v6686 = vsel %vm6685, 0, %v6684
    %v6687 = vsub.s32 32, %v6686
    %v6688 = vshll.u32 %v6679, %v6686
    %v6689 = vshrl.u32 %v6671, %v6687
    %v6690 = vor.u32 %v6688, %v6689
    %v6691 = vsub.s32 4294967266, %v6686
    %v6692 = vadd.s32 %v6691, 127
    %v6693 = vshll.u32 %v6692, 23
    %v6694 = vor.u32 4788187, %v6693
    %v6695 = vand.u32 2147483647, %v6694
    %v6697 = vcvt.s32.f32 %v6690
    %v6698 = vmul.f32 %v6697, %v6695
    %v6699 = vxor.u32 %v6698, 2147483648
    %v6700 = vsel %vm6617, %v6699, %v6698
    %v6701 = vsub.s32 4, %v6677
    %v6702 = vsel %vm6617, %v6701, %v6677
    %v6703 = vsel %vm6616, %v5458, %v6700
    %v6704 = vsel %vm6616, 0, %v6702
    %v6705 = vcosq.f32.pop %v6703
    %v6706 = vsinq.f32.pop %v6703
    %vm6707 = vweird.f32 %v5458
    %v6708 = vadd.s32 %v6704, 3
    %v6709 = vand.u32 %v6708, 3
    %vm6710 = vcmp.lt.s32.totalorder %v6709, 2
    %vm6711 = vcmp.eq.s32.totalorder %v6709, 0
    %v6712 = vxor.u32 %v6706, 2147483648
    %v6713 = vsel %vm6711, %v6705, %v6712
    %vm6714 = vcmp.eq.s32.totalorder %v6709, 2
    %v6715 = vxor.u32 %v6705, 2147483648
    %v6716 = vsel %vm6714, %v6715, %v6706
    %v6717 = vsel %vm6710, %v6713, %v6716
    %v6718 = vsel %vm6707, nan, %v6717
    %v6719 = vand.u32 2147483647, %v5447
    %vm6720 = vcmp.le.f32.partialorder %v6719, 0.7853982
    %vm6721 = vcmp.lt.s32.totalorder %v5447, 0
    %v6722 = vand.u32 %v5447, 2139095040
    %v6723 = vshrl.u32 %v6722, 23
    %v6724 = vsub.s32 %v6723, 127
    %v6725 = vand.u32 2147483647, %v5447
    %v6726 = vand.u32 %v6725, 8388607
    %v6727 = vor.u32 %v6726, 8388608
    %v6728 = vsub.s32 0, %v6727
    %v6729 = vadd.s32 %v6724, 1
    %vm6730 = vcmp.gt.s32.totalorder %v6729, 0
    %v6731 = vsel %vm6730, %v6729, 0
    %v6732 = vshrl.u32 %v6731, 5
    %v6733 = vand.u32 %v6731, 31
    %v6734 = vsub.s32 32, %v6733
    %v6735 = vshrl.u32 683565275, %v6734
    %v6736 = vshll.u32 683565275, %v6733
    %v6737 = vshrl.u32 2475754826, %v6734
    %v6738 = vor.u32 %v6736, %v6737
    %v6739 = vshll.u32 2475754826, %v6733
    %v6740 = vshrl.u32 2131351028, %v6734
    %v6741 = vor.u32 %v6739, %v6740
    %v6742 = vshll.u32 2131351028, %v6733
    %v6743 = vshrl.u32 2102212464, %v6734
    %v6744 = vor.u32 %v6742, %v6743
    %v6745 = vshll.u32 2102212464, %v6733
    %v6746 = vshrl.u32 920167782, %v6734
    %v6747 = vor.u32 %v6745, %v6746
    %v6748 = vshll.u32 920167782, %v6733
    %v6749 = vshrl.u32 1326507024, %v6734
    %v6750 = vor.u32 %v6748, %v6749
    %vm6751 = vcmp.lt.s32.totalorder %v6732, 1
    %vm6752 = vcmp.lt.s32.totalorder %v6732, 2
    %vm6753 = vcmp.lt.s32.totalorder %v6732, 3
    %vm6754 = vcmp.lt.s32.totalorder %v6732, 4
    %v6755 = vsel %vm6751, %v6735, %v6738
    %v6756 = vsel %vm6754, %v6744, 2102212464
    %v6757 = vsel %vm6753, %v6741, %v6756
    %v6758 = vsel %vm6752, %v6755, %v6757
    %v6759 = vsel %vm6751, %v6738, %v6741
    %v6760 = vsel %vm6754, %v6747, 920167782
    %v6761 = vsel %vm6753, %v6744, %v6760
    %v6762 = vsel %vm6752, %v6759, %v6761
    %v6763 = vsel %vm6751, %v6741, %v6744
    %v6764 = vsel %vm6754, %v6750, 1326507024
    %v6765 = vsel %vm6753, %v6747, %v6764
    %v6766 = vsel %vm6752, %v6763, %v6765
    %v6767 = vshll.u32 %v6727, 8
    %v6768 = vmul.u32.u64.compose %v6767, %v6766
    %v6769 = vextract.low.u32 %v6768
    %v6770 = vextract.high.u32 %v6768
    %v6771 = vmul.u32.u64.compose %v6767, %v6762
    %v6772 = vextract.low.u32 %v6771
    %v6773 = vextract.high.u32 %v6771
    %v6774 = vmul.u32 %v6767, %v6758
    %v6775 = vadd.s32 %v6770, %v6772
    %vm6776 = vc.u32 %v6770, %v6772
    %v6777 = vadd.s32 %v6773, 1
    %v6778 = vsel %vm6776, %v6777, %v6773
    %v6779 = vadd.s32 %v6774, %v6778
    %v6780 = vadd.s32 %v6779, 536870912
    %v6781 = vshrl.u32 %v6780, 30
    %v6782 = vshll.u32 %v6781, 30
    %v6783 = vsub.s32 %v6779, %v6782
    %vm6784 = vcmp.lt.s32.totalorder %v6783, 0
    %v6785 = vsub.s32 0, %v6783
    %v6786 = vsel %vm6784, %v6785, %v6783
    %v6787 = vclz %v6786
    %v6788 = vsub.s32 %v6787, 2
    %vm6789 = vcmp.gt.s32.totalorder 0, %v6788
    %v6790 = vsel %vm6789, 0, %v6788
    %v6791 = vsub.s32 32, %v6790
    %v6792 = vshll.u32 %v6783, %v6790
    %v6793 = vshrl.u32 %v6775, %v6791
    %v6794 = vor.u32 %v6792, %v6793
    %v6795 = vsub.s32 4294967266, %v6790
    %v6796 = vadd.s32 %v6795, 127
    %v6797 = vshll.u32 %v6796, 23
    %v6798 = vor.u32 4788187, %v6797
    %v6799 = vand.u32 2147483647, %v6798
    %v6801 = vcvt.s32.f32 %v6794
    %v6802 = vmul.f32 %v6801, %v6799
    %v6803 = vxor.u32 %v6802, 2147483648
    %v6804 = vsel %vm6721, %v6803, %v6802
    %v6805 = vsub.s32 4, %v6781
    %v6806 = vsel %vm6721, %v6805, %v6781
    %v6807 = vsel %vm6720, %v5447, %v6804
    %v6808 = vsel %vm6720, 0, %v6806
    %v6809 = vcosq.f32.pop %v6807
    %v6810 = vsinq.f32.pop %v6807
    %vm6811 = vweird.f32 %v5447
    %v6812 = vand.u32 %v6808, 3
    %vm6813 = vcmp.lt.s32.totalorder %v6812, 2
    %vm6814 = vcmp.eq.s32.totalorder %v6812, 0
    %v6815 = vxor.u32 %v6810, 2147483648
    %v6816 = vsel %vm6814, %v6809, %v6815
    %vm6817 = vcmp.eq.s32.totalorder %v6812, 2
    %v6818 = vxor.u32 %v6809, 2147483648
    %v6819 = vsel %vm6817, %v6818, %v6810
    %v6820 = vsel %vm6813, %v6816, %v6819
    %v6821 = vsel %vm6811, nan, %v6820
    %v6822 = vand.u32 2147483647, %v5448
    %vm6823 = vcmp.le.f32.partialorder %v6822, 0.7853982
    %vm6824 = vcmp.lt.s32.totalorder %v5448, 0
    %v6825 = vand.u32 %v5448, 2139095040
    %v6826 = vshrl.u32 %v6825, 23
    %v6827 = vsub.s32 %v6826, 127
    %v6828 = vand.u32 2147483647, %v5448
    %v6829 = vand.u32 %v6828, 8388607
    %v6830 = vor.u32 %v6829, 8388608
    %v6831 = vsub.s32 0, %v6830
    %v6832 = vadd.s32 %v6827, 1
    %vm6833 = vcmp.gt.s32.totalorder %v6832, 0
    %v6834 = vsel %vm6833, %v6832, 0
    %v6835 = vshrl.u32 %v6834, 5
    %v6836 = vand.u32 %v6834, 31
    %v6837 = vsub.s32 32, %v6836
    %v6838 = vshrl.u32 683565275, %v6837
    %v6839 = vshll.u32 683565275, %v6836
    %v6840 = vshrl.u32 2475754826, %v6837
    %v6841 = vor.u32 %v6839, %v6840
    %v6842 = vshll.u32 2475754826, %v6836
    %v6843 = vshrl.u32 2131351028, %v6837
    %v6844 = vor.u32 %v6842, %v6843
    %v6845 = vshll.u32 2131351028, %v6836
    %v6846 = vshrl.u32 2102212464, %v6837
    %v6847 = vor.u32 %v6845, %v6846
    %v6848 = vshll.u32 2102212464, %v6836
    %v6849 = vshrl.u32 920167782, %v6837
    %v6850 = vor.u32 %v6848, %v6849
    %v6851 = vshll.u32 920167782, %v6836
    %v6852 = vshrl.u32 1326507024, %v6837
    %v6853 = vor.u32 %v6851, %v6852
    %vm6854 = vcmp.lt.s32.totalorder %v6835, 1
    %vm6855 = vcmp.lt.s32.totalorder %v6835, 2
    %vm6856 = vcmp.lt.s32.totalorder %v6835, 3
    %vm6857 = vcmp.lt.s32.totalorder %v6835, 4
    %v6858 = vsel %vm6854, %v6838, %v6841
    %v6859 = vsel %vm6857, %v6847, 2102212464
    %v6860 = vsel %vm6856, %v6844, %v6859
    %v6861 = vsel %vm6855, %v6858, %v6860
    %v6862 = vsel %vm6854, %v6841, %v6844
    %v6863 = vsel %vm6857, %v6850, 920167782
    %v6864 = vsel %vm6856, %v6847, %v6863
    %v6865 = vsel %vm6855, %v6862, %v6864
    %v6866 = vsel %vm6854, %v6844, %v6847
    %v6867 = vsel %vm6857, %v6853, 1326507024
    %v6868 = vsel %vm6856, %v6850, %v6867
    %v6869 = vsel %vm6855, %v6866, %v6868
    %v6870 = vshll.u32 %v6830, 8
    %v6871 = vmul.u32.u64.compose %v6870, %v6869
    %v6872 = vextract.low.u32 %v6871
    %v6873 = vextract.high.u32 %v6871
    %v6874 = vmul.u32.u64.compose %v6870, %v6865
    %v6875 = vextract.low.u32 %v6874
    %v6876 = vextract.high.u32 %v6874
    %v6877 = vmul.u32 %v6870, %v6861
    %v6878 = vadd.s32 %v6873, %v6875
    %vm6879 = vc.u32 %v6873, %v6875
    %v6880 = vadd.s32 %v6876, 1
    %v6881 = vsel %vm6879, %v6880, %v6876
    %v6882 = vadd.s32 %v6877, %v6881
    %v6883 = vadd.s32 %v6882, 536870912
    %v6884 = vshrl.u32 %v6883, 30
    %v6885 = vshll.u32 %v6884, 30
    %v6886 = vsub.s32 %v6882, %v6885
    %vm6887 = vcmp.lt.s32.totalorder %v6886, 0
    %v6888 = vsub.s32 0, %v6886
    %v6889 = vsel %vm6887, %v6888, %v6886
    %v6890 = vclz %v6889
    %v6891 = vsub.s32 %v6890, 2
    %vm6892 = vcmp.gt.s32.totalorder 0, %v6891
    %v6893 = vsel %vm6892, 0, %v6891
    %v6894 = vsub.s32 32, %v6893
    %v6895 = vshll.u32 %v6886, %v6893
    %v6896 = vshrl.u32 %v6878, %v6894
    %v6897 = vor.u32 %v6895, %v6896
    %v6898 = vsub.s32 4294967266, %v6893
    %v6899 = vadd.s32 %v6898, 127
    %v6900 = vshll.u32 %v6899, 23
    %v6901 = vor.u32 4788187, %v6900
    %v6902 = vand.u32 2147483647, %v6901
    %v6904 = vcvt.s32.f32 %v6897
    %v6905 = vmul.f32 %v6904, %v6902
    %v6906 = vxor.u32 %v6905, 2147483648
    %v6907 = vsel %vm6824, %v6906, %v6905
    %v6908 = vsub.s32 4, %v6884
    %v6909 = vsel %vm6824, %v6908, %v6884
    %v6910 = vsel %vm6823, %v5448, %v6907
    %v6911 = vsel %vm6823, 0, %v6909
    %v6912 = vcosq.f32.pop %v6910
    %v6913 = vsinq.f32.pop %v6910
    %vm6914 = vweird.f32 %v5448
    %v6915 = vand.u32 %v6911, 3
    %vm6916 = vcmp.lt.s32.totalorder %v6915, 2
    %vm6917 = vcmp.eq.s32.totalorder %v6915, 0
    %v6918 = vxor.u32 %v6913, 2147483648
    %v6919 = vsel %vm6917, %v6912, %v6918
    %vm6920 = vcmp.eq.s32.totalorder %v6915, 2
    %v6921 = vxor.u32 %v6912, 2147483648
    %v6922 = vsel %vm6920, %v6921, %v6913
    %v6923 = vsel %vm6916, %v6919, %v6922
    %v6924 = vsel %vm6914, nan, %v6923
    %v6925 = vand.u32 2147483647, %v5449
    %vm6926 = vcmp.le.f32.partialorder %v6925, 0.7853982
    %vm6927 = vcmp.lt.s32.totalorder %v5449, 0
    %v6928 = vand.u32 %v5449, 2139095040
    %v6929 = vshrl.u32 %v6928, 23
    %v6930 = vsub.s32 %v6929, 127
    %v6931 = vand.u32 2147483647, %v5449
    %v6932 = vand.u32 %v6931, 8388607
    %v6933 = vor.u32 %v6932, 8388608
    %v6934 = vsub.s32 0, %v6933
    %v6935 = vadd.s32 %v6930, 1
    %vm6936 = vcmp.gt.s32.totalorder %v6935, 0
    %v6937 = vsel %vm6936, %v6935, 0
    %v6938 = vshrl.u32 %v6937, 5
    %v6939 = vand.u32 %v6937, 31
    %v6940 = vsub.s32 32, %v6939
    %v6941 = vshrl.u32 683565275, %v6940
    %v6942 = vshll.u32 683565275, %v6939
    %v6943 = vshrl.u32 2475754826, %v6940
    %v6944 = vor.u32 %v6942, %v6943
    %v6945 = vshll.u32 2475754826, %v6939
    %v6946 = vshrl.u32 2131351028, %v6940
    %v6947 = vor.u32 %v6945, %v6946
    %v6948 = vshll.u32 2131351028, %v6939
    %v6949 = vshrl.u32 2102212464, %v6940
    %v6950 = vor.u32 %v6948, %v6949
    %v6951 = vshll.u32 2102212464, %v6939
    %v6952 = vshrl.u32 920167782, %v6940
    %v6953 = vor.u32 %v6951, %v6952
    %v6954 = vshll.u32 920167782, %v6939
    %v6955 = vshrl.u32 1326507024, %v6940
    %v6956 = vor.u32 %v6954, %v6955
    %vm6957 = vcmp.lt.s32.totalorder %v6938, 1
    %vm6958 = vcmp.lt.s32.totalorder %v6938, 2
    %vm6959 = vcmp.lt.s32.totalorder %v6938, 3
    %vm6960 = vcmp.lt.s32.totalorder %v6938, 4
    %v6961 = vsel %vm6957, %v6941, %v6944
    %v6962 = vsel %vm6960, %v6950, 2102212464
    %v6963 = vsel %vm6959, %v6947, %v6962
    %v6964 = vsel %vm6958, %v6961, %v6963
    %v6965 = vsel %vm6957, %v6944, %v6947
    %v6966 = vsel %vm6960, %v6953, 920167782
    %v6967 = vsel %vm6959, %v6950, %v6966
    %v6968 = vsel %vm6958, %v6965, %v6967
    %v6969 = vsel %vm6957, %v6947, %v6950
    %v6970 = vsel %vm6960, %v6956, 1326507024
    %v6971 = vsel %vm6959, %v6953, %v6970
    %v6972 = vsel %vm6958, %v6969, %v6971
    %v6973 = vshll.u32 %v6933, 8
    %v6974 = vmul.u32.u64.compose %v6973, %v6972
    %v6975 = vextract.low.u32 %v6974
    %v6976 = vextract.high.u32 %v6974
    %v6977 = vmul.u32.u64.compose %v6973, %v6968
    %v6978 = vextract.low.u32 %v6977
    %v6979 = vextract.high.u32 %v6977
    %v6980 = vmul.u32 %v6973, %v6964
    %v6981 = vadd.s32 %v6976, %v6978
    %vm6982 = vc.u32 %v6976, %v6978
    %v6983 = vadd.s32 %v6979, 1
    %v6984 = vsel %vm6982, %v6983, %v6979
    %v6985 = vadd.s32 %v6980, %v6984
    %v6986 = vadd.s32 %v6985, 536870912
    %v6987 = vshrl.u32 %v6986, 30
    %v6988 = vshll.u32 %v6987, 30
    %v6989 = vsub.s32 %v6985, %v6988
    %vm6990 = vcmp.lt.s32.totalorder %v6989, 0
    %v6991 = vsub.s32 0, %v6989
    %v6992 = vsel %vm6990, %v6991, %v6989
    %v6993 = vclz %v6992
    %v6994 = vsub.s32 %v6993, 2
    %vm6995 = vcmp.gt.s32.totalorder 0, %v6994
    %v6996 = vsel %vm6995, 0, %v6994
    %v6997 = vsub.s32 32, %v6996
    %v6998 = vshll.u32 %v6989, %v6996
    %v6999 = vshrl.u32 %v6981, %v6997
    %v7000 = vor.u32 %v6998, %v6999
    %v7001 = vsub.s32 4294967266, %v6996
    %v7002 = vadd.s32 %v7001, 127
    %v7003 = vshll.u32 %v7002, 23
    %v7004 = vor.u32 4788187, %v7003
    %v7005 = vand.u32 2147483647, %v7004
    %v7007 = vcvt.s32.f32 %v7000
    %v7008 = vmul.f32 %v7007, %v7005
    %v7009 = vxor.u32 %v7008, 2147483648
    %v7010 = vsel %vm6927, %v7009, %v7008
    %v7011 = vsub.s32 4, %v6987
    %v7012 = vsel %vm6927, %v7011, %v6987
    %v7013 = vsel %vm6926, %v5449, %v7010
    %v7014 = vsel %vm6926, 0, %v7012
    %v7015 = vcosq.f32.pop %v7013
    %v7016 = vsinq.f32.pop %v7013
    %vm7017 = vweird.f32 %v5449
    %v7018 = vand.u32 %v7014, 3
    %vm7019 = vcmp.lt.s32.totalorder %v7018, 2
    %vm7020 = vcmp.eq.s32.totalorder %v7018, 0
    %v7021 = vxor.u32 %v7016, 2147483648
    %v7022 = vsel %vm7020, %v7015, %v7021
    %vm7023 = vcmp.eq.s32.totalorder %v7018, 2
    %v7024 = vxor.u32 %v7015, 2147483648
    %v7025 = vsel %vm7023, %v7024, %v7016
    %v7026 = vsel %vm7019, %v7022, %v7025
    %v7027 = vsel %vm7017, nan, %v7026
    %v7028 = vand.u32 2147483647, %v5450
    %vm7029 = vcmp.le.f32.partialorder %v7028, 0.7853982
    %vm7030 = vcmp.lt.s32.totalorder %v5450, 0
    %v7031 = vand.u32 %v5450, 2139095040
    %v7032 = vshrl.u32 %v7031, 23
    %v7033 = vsub.s32 %v7032, 127
    %v7034 = vand.u32 2147483647, %v5450
    %v7035 = vand.u32 %v7034, 8388607
    %v7036 = vor.u32 %v7035, 8388608
    %v7037 = vsub.s32 0, %v7036
    %v7038 = vadd.s32 %v7033, 1
    %vm7039 = vcmp.gt.s32.totalorder %v7038, 0
    %v7040 = vsel %vm7039, %v7038, 0
    %v7041 = vshrl.u32 %v7040, 5
    %v7042 = vand.u32 %v7040, 31
    %v7043 = vsub.s32 32, %v7042
    %v7044 = vshrl.u32 683565275, %v7043
    %v7045 = vshll.u32 683565275, %v7042
    %v7046 = vshrl.u32 2475754826, %v7043
    %v7047 = vor.u32 %v7045, %v7046
    %v7048 = vshll.u32 2475754826, %v7042
    %v7049 = vshrl.u32 2131351028, %v7043
    %v7050 = vor.u32 %v7048, %v7049
    %v7051 = vshll.u32 2131351028, %v7042
    %v7052 = vshrl.u32 2102212464, %v7043
    %v7053 = vor.u32 %v7051, %v7052
    %v7054 = vshll.u32 2102212464, %v7042
    %v7055 = vshrl.u32 920167782, %v7043
    %v7056 = vor.u32 %v7054, %v7055
    %v7057 = vshll.u32 920167782, %v7042
    %v7058 = vshrl.u32 1326507024, %v7043
    %v7059 = vor.u32 %v7057, %v7058
    %vm7060 = vcmp.lt.s32.totalorder %v7041, 1
    %vm7061 = vcmp.lt.s32.totalorder %v7041, 2
    %vm7062 = vcmp.lt.s32.totalorder %v7041, 3
    %vm7063 = vcmp.lt.s32.totalorder %v7041, 4
    %v7064 = vsel %vm7060, %v7044, %v7047
    %v7065 = vsel %vm7063, %v7053, 2102212464
    %v7066 = vsel %vm7062, %v7050, %v7065
    %v7067 = vsel %vm7061, %v7064, %v7066
    %v7068 = vsel %vm7060, %v7047, %v7050
    %v7069 = vsel %vm7063, %v7056, 920167782
    %v7070 = vsel %vm7062, %v7053, %v7069
    %v7071 = vsel %vm7061, %v7068, %v7070
    %v7072 = vsel %vm7060, %v7050, %v7053
    %v7073 = vsel %vm7063, %v7059, 1326507024
    %v7074 = vsel %vm7062, %v7056, %v7073
    %v7075 = vsel %vm7061, %v7072, %v7074
    %v7076 = vshll.u32 %v7036, 8
    %v7077 = vmul.u32.u64.compose %v7076, %v7075
    %v7078 = vextract.low.u32 %v7077
    %v7079 = vextract.high.u32 %v7077
    %v7080 = vmul.u32.u64.compose %v7076, %v7071
    %v7081 = vextract.low.u32 %v7080
    %v7082 = vextract.high.u32 %v7080
    %v7083 = vmul.u32 %v7076, %v7067
    %v7084 = vadd.s32 %v7079, %v7081
    %vm7085 = vc.u32 %v7079, %v7081
    %v7086 = vadd.s32 %v7082, 1
    %v7087 = vsel %vm7085, %v7086, %v7082
    %v7088 = vadd.s32 %v7083, %v7087
    %v7089 = vadd.s32 %v7088, 536870912
    %v7090 = vshrl.u32 %v7089, 30
    %v7091 = vshll.u32 %v7090, 30
    %v7092 = vsub.s32 %v7088, %v7091
    %vm7093 = vcmp.lt.s32.totalorder %v7092, 0
    %v7094 = vsub.s32 0, %v7092
    %v7095 = vsel %vm7093, %v7094, %v7092
    %v7096 = vclz %v7095
    %v7097 = vsub.s32 %v7096, 2
    %vm7098 = vcmp.gt.s32.totalorder 0, %v7097
    %v7099 = vsel %vm7098, 0, %v7097
    %v7100 = vsub.s32 32, %v7099
    %v7101 = vshll.u32 %v7092, %v7099
    %v7102 = vshrl.u32 %v7084, %v7100
    %v7103 = vor.u32 %v7101, %v7102
    %v7104 = vsub.s32 4294967266, %v7099
    %v7105 = vadd.s32 %v7104, 127
    %v7106 = vshll.u32 %v7105, 23
    %v7107 = vor.u32 4788187, %v7106
    %v7108 = vand.u32 2147483647, %v7107
    %v7110 = vcvt.s32.f32 %v7103
    %v7111 = vmul.f32 %v7110, %v7108
    %v7112 = vxor.u32 %v7111, 2147483648
    %v7113 = vsel %vm7030, %v7112, %v7111
    %v7114 = vsub.s32 4, %v7090
    %v7115 = vsel %vm7030, %v7114, %v7090
    %v7116 = vsel %vm7029, %v5450, %v7113
    %v7117 = vsel %vm7029, 0, %v7115
    %v7118 = vcosq.f32.pop %v7116
    %v7119 = vsinq.f32.pop %v7116
    %vm7120 = vweird.f32 %v5450
    %v7121 = vand.u32 %v7117, 3
    %vm7122 = vcmp.lt.s32.totalorder %v7121, 2
    %vm7123 = vcmp.eq.s32.totalorder %v7121, 0
    %v7124 = vxor.u32 %v7119, 2147483648
    %v7125 = vsel %vm7123, %v7118, %v7124
    %vm7126 = vcmp.eq.s32.totalorder %v7121, 2
    %v7127 = vxor.u32 %v7118, 2147483648
    %v7128 = vsel %vm7126, %v7127, %v7119
    %v7129 = vsel %vm7122, %v7125, %v7128
    %v7130 = vsel %vm7120, nan, %v7129
    %v7131 = vand.u32 2147483647, %v5451
    %vm7132 = vcmp.le.f32.partialorder %v7131, 0.7853982
    %vm7133 = vcmp.lt.s32.totalorder %v5451, 0
    %v7134 = vand.u32 %v5451, 2139095040
    %v7135 = vshrl.u32 %v7134, 23
    %v7136 = vsub.s32 %v7135, 127
    %v7137 = vand.u32 2147483647, %v5451
    %v7138 = vand.u32 %v7137, 8388607
    %v7139 = vor.u32 %v7138, 8388608
    %v7140 = vsub.s32 0, %v7139
    %v7141 = vadd.s32 %v7136, 1
    %vm7142 = vcmp.gt.s32.totalorder %v7141, 0
    %v7143 = vsel %vm7142, %v7141, 0
    %v7144 = vshrl.u32 %v7143, 5
    %v7145 = vand.u32 %v7143, 31
    %v7146 = vsub.s32 32, %v7145
    %v7147 = vshrl.u32 683565275, %v7146
    %v7148 = vshll.u32 683565275, %v7145
    %v7149 = vshrl.u32 2475754826, %v7146
    %v7150 = vor.u32 %v7148, %v7149
    %v7151 = vshll.u32 2475754826, %v7145
    %v7152 = vshrl.u32 2131351028, %v7146
    %v7153 = vor.u32 %v7151, %v7152
    %v7154 = vshll.u32 2131351028, %v7145
    %v7155 = vshrl.u32 2102212464, %v7146
    %v7156 = vor.u32 %v7154, %v7155
    %v7157 = vshll.u32 2102212464, %v7145
    %v7158 = vshrl.u32 920167782, %v7146
    %v7159 = vor.u32 %v7157, %v7158
    %v7160 = vshll.u32 920167782, %v7145
    %v7161 = vshrl.u32 1326507024, %v7146
    %v7162 = vor.u32 %v7160, %v7161
    %vm7163 = vcmp.lt.s32.totalorder %v7144, 1
    %vm7164 = vcmp.lt.s32.totalorder %v7144, 2
    %vm7165 = vcmp.lt.s32.totalorder %v7144, 3
    %vm7166 = vcmp.lt.s32.totalorder %v7144, 4
    %v7167 = vsel %vm7163, %v7147, %v7150
    %v7168 = vsel %vm7166, %v7156, 2102212464
    %v7169 = vsel %vm7165, %v7153, %v7168
    %v7170 = vsel %vm7164, %v7167, %v7169
    %v7171 = vsel %vm7163, %v7150, %v7153
    %v7172 = vsel %vm7166, %v7159, 920167782
    %v7173 = vsel %vm7165, %v7156, %v7172
    %v7174 = vsel %vm7164, %v7171, %v7173
    %v7175 = vsel %vm7163, %v7153, %v7156
    %v7176 = vsel %vm7166, %v7162, 1326507024
    %v7177 = vsel %vm7165, %v7159, %v7176
    %v7178 = vsel %vm7164, %v7175, %v7177
    %v7179 = vshll.u32 %v7139, 8
    %v7180 = vmul.u32.u64.compose %v7179, %v7178
    %v7181 = vextract.low.u32 %v7180
    %v7182 = vextract.high.u32 %v7180
    %v7183 = vmul.u32.u64.compose %v7179, %v7174
    %v7184 = vextract.low.u32 %v7183
    %v7185 = vextract.high.u32 %v7183
    %v7186 = vmul.u32 %v7179, %v7170
    %v7187 = vadd.s32 %v7182, %v7184
    %vm7188 = vc.u32 %v7182, %v7184
    %v7189 = vadd.s32 %v7185, 1
    %v7190 = vsel %vm7188, %v7189, %v7185
    %v7191 = vadd.s32 %v7186, %v7190
    %v7192 = vadd.s32 %v7191, 536870912
    %v7193 = vshrl.u32 %v7192, 30
    %v7194 = vshll.u32 %v7193, 30
    %v7195 = vsub.s32 %v7191, %v7194
    %vm7196 = vcmp.lt.s32.totalorder %v7195, 0
    %v7197 = vsub.s32 0, %v7195
    %v7198 = vsel %vm7196, %v7197, %v7195
    %v7199 = vclz %v7198
    %v7200 = vsub.s32 %v7199, 2
    %vm7201 = vcmp.gt.s32.totalorder 0, %v7200
    %v7202 = vsel %vm7201, 0, %v7200
    %v7203 = vsub.s32 32, %v7202
    %v7204 = vshll.u32 %v7195, %v7202
    %v7205 = vshrl.u32 %v7187, %v7203
    %v7206 = vor.u32 %v7204, %v7205
    %v7207 = vsub.s32 4294967266, %v7202
    %v7208 = vadd.s32 %v7207, 127
    %v7209 = vshll.u32 %v7208, 23
    %v7210 = vor.u32 4788187, %v7209
    %v7211 = vand.u32 2147483647, %v7210
    %v7213 = vcvt.s32.f32 %v7206
    %v7214 = vmul.f32 %v7213, %v7211
    %v7215 = vxor.u32 %v7214, 2147483648
    %v7216 = vsel %vm7133, %v7215, %v7214
    %v7217 = vsub.s32 4, %v7193
    %v7218 = vsel %vm7133, %v7217, %v7193
    %v7219 = vsel %vm7132, %v5451, %v7216
    %v7220 = vsel %vm7132, 0, %v7218
    %v7221 = vcosq.f32.pop %v7219
    %v7222 = vsinq.f32.pop %v7219
    %vm7223 = vweird.f32 %v5451
    %v7224 = vand.u32 %v7220, 3
    %vm7225 = vcmp.lt.s32.totalorder %v7224, 2
    %vm7226 = vcmp.eq.s32.totalorder %v7224, 0
    %v7227 = vxor.u32 %v7222, 2147483648
    %v7228 = vsel %vm7226, %v7221, %v7227
    %vm7229 = vcmp.eq.s32.totalorder %v7224, 2
    %v7230 = vxor.u32 %v7221, 2147483648
    %v7231 = vsel %vm7229, %v7230, %v7222
    %v7232 = vsel %vm7225, %v7228, %v7231
    %v7233 = vsel %vm7223, nan, %v7232
    %v7234 = vand.u32 2147483647, %v5452
    %vm7235 = vcmp.le.f32.partialorder %v7234, 0.7853982
    %vm7236 = vcmp.lt.s32.totalorder %v5452, 0
    %v7237 = vand.u32 %v5452, 2139095040
    %v7238 = vshrl.u32 %v7237, 23
    %v7239 = vsub.s32 %v7238, 127
    %v7240 = vand.u32 2147483647, %v5452
    %v7241 = vand.u32 %v7240, 8388607
    %v7242 = vor.u32 %v7241, 8388608
    %v7243 = vsub.s32 0, %v7242
    %v7244 = vadd.s32 %v7239, 1
    %vm7245 = vcmp.gt.s32.totalorder %v7244, 0
    %v7246 = vsel %vm7245, %v7244, 0
    %v7247 = vshrl.u32 %v7246, 5
    %v7248 = vand.u32 %v7246, 31
    %v7249 = vsub.s32 32, %v7248
    %v7250 = vshrl.u32 683565275, %v7249
    %v7251 = vshll.u32 683565275, %v7248
    %v7252 = vshrl.u32 2475754826, %v7249
    %v7253 = vor.u32 %v7251, %v7252
    %v7254 = vshll.u32 2475754826, %v7248
    %v7255 = vshrl.u32 2131351028, %v7249
    %v7256 = vor.u32 %v7254, %v7255
    %v7257 = vshll.u32 2131351028, %v7248
    %v7258 = vshrl.u32 2102212464, %v7249
    %v7259 = vor.u32 %v7257, %v7258
    %v7260 = vshll.u32 2102212464, %v7248
    %v7261 = vshrl.u32 920167782, %v7249
    %v7262 = vor.u32 %v7260, %v7261
    %v7263 = vshll.u32 920167782, %v7248
    %v7264 = vshrl.u32 1326507024, %v7249
    %v7265 = vor.u32 %v7263, %v7264
    %vm7266 = vcmp.lt.s32.totalorder %v7247, 1
    %vm7267 = vcmp.lt.s32.totalorder %v7247, 2
    %vm7268 = vcmp.lt.s32.totalorder %v7247, 3
    %vm7269 = vcmp.lt.s32.totalorder %v7247, 4
    %v7270 = vsel %vm7266, %v7250, %v7253
    %v7271 = vsel %vm7269, %v7259, 2102212464
    %v7272 = vsel %vm7268, %v7256, %v7271
    %v7273 = vsel %vm7267, %v7270, %v7272
    %v7274 = vsel %vm7266, %v7253, %v7256
    %v7275 = vsel %vm7269, %v7262, 920167782
    %v7276 = vsel %vm7268, %v7259, %v7275
    %v7277 = vsel %vm7267, %v7274, %v7276
    %v7278 = vsel %vm7266, %v7256, %v7259
    %v7279 = vsel %vm7269, %v7265, 1326507024
    %v7280 = vsel %vm7268, %v7262, %v7279
    %v7281 = vsel %vm7267, %v7278, %v7280
    %v7282 = vshll.u32 %v7242, 8
    %v7283 = vmul.u32.u64.compose %v7282, %v7281
    %v7284 = vextract.low.u32 %v7283
    %v7285 = vextract.high.u32 %v7283
    %v7286 = vmul.u32.u64.compose %v7282, %v7277
    %v7287 = vextract.low.u32 %v7286
    %v7288 = vextract.high.u32 %v7286
    %v7289 = vmul.u32 %v7282, %v7273
    %v7290 = vadd.s32 %v7285, %v7287
    %vm7291 = vc.u32 %v7285, %v7287
    %v7292 = vadd.s32 %v7288, 1
    %v7293 = vsel %vm7291, %v7292, %v7288
    %v7294 = vadd.s32 %v7289, %v7293
    %v7295 = vadd.s32 %v7294, 536870912
    %v7296 = vshrl.u32 %v7295, 30
    %v7297 = vshll.u32 %v7296, 30
    %v7298 = vsub.s32 %v7294, %v7297
    %vm7299 = vcmp.lt.s32.totalorder %v7298, 0
    %v7300 = vsub.s32 0, %v7298
    %v7301 = vsel %vm7299, %v7300, %v7298
    %v7302 = vclz %v7301
    %v7303 = vsub.s32 %v7302, 2
    %vm7304 = vcmp.gt.s32.totalorder 0, %v7303
    %v7305 = vsel %vm7304, 0, %v7303
    %v7306 = vsub.s32 32, %v7305
    %v7307 = vshll.u32 %v7298, %v7305
    %v7308 = vshrl.u32 %v7290, %v7306
    %v7309 = vor.u32 %v7307, %v7308
    %v7310 = vsub.s32 4294967266, %v7305
    %v7311 = vadd.s32 %v7310, 127
    %v7312 = vshll.u32 %v7311, 23
    %v7313 = vor.u32 4788187, %v7312
    %v7314 = vand.u32 2147483647, %v7313
    %v7316 = vcvt.s32.f32 %v7309
    %v7317 = vmul.f32 %v7316, %v7314
    %v7318 = vxor.u32 %v7317, 2147483648
    %v7319 = vsel %vm7236, %v7318, %v7317
    %v7320 = vsub.s32 4, %v7296
    %v7321 = vsel %vm7236, %v7320, %v7296
    %v7322 = vsel %vm7235, %v5452, %v7319
    %v7323 = vsel %vm7235, 0, %v7321
    %v7324 = vcosq.f32.pop %v7322
    %v7325 = vsinq.f32.pop %v7322
    %vm7326 = vweird.f32 %v5452
    %v7327 = vand.u32 %v7323, 3
    %vm7328 = vcmp.lt.s32.totalorder %v7327, 2
    %vm7329 = vcmp.eq.s32.totalorder %v7327, 0
    %v7330 = vxor.u32 %v7325, 2147483648
    %v7331 = vsel %vm7329, %v7324, %v7330
    %vm7332 = vcmp.eq.s32.totalorder %v7327, 2
    %v7333 = vxor.u32 %v7324, 2147483648
    %v7334 = vsel %vm7332, %v7333, %v7325
    %v7335 = vsel %vm7328, %v7331, %v7334
    %v7336 = vsel %vm7326, nan, %v7335
    %v7337 = vand.u32 2147483647, %v5453
    %vm7338 = vcmp.le.f32.partialorder %v7337, 0.7853982
    %vm7339 = vcmp.lt.s32.totalorder %v5453, 0
    %v7340 = vand.u32 %v5453, 2139095040
    %v7341 = vshrl.u32 %v7340, 23
    %v7342 = vsub.s32 %v7341, 127
    %v7343 = vand.u32 2147483647, %v5453
    %v7344 = vand.u32 %v7343, 8388607
    %v7345 = vor.u32 %v7344, 8388608
    %v7346 = vsub.s32 0, %v7345
    %v7347 = vadd.s32 %v7342, 1
    %vm7348 = vcmp.gt.s32.totalorder %v7347, 0
    %v7349 = vsel %vm7348, %v7347, 0
    %v7350 = vshrl.u32 %v7349, 5
    %v7351 = vand.u32 %v7349, 31
    %v7352 = vsub.s32 32, %v7351
    %v7353 = vshrl.u32 683565275, %v7352
    %v7354 = vshll.u32 683565275, %v7351
    %v7355 = vshrl.u32 2475754826, %v7352
    %v7356 = vor.u32 %v7354, %v7355
    %v7357 = vshll.u32 2475754826, %v7351
    %v7358 = vshrl.u32 2131351028, %v7352
    %v7359 = vor.u32 %v7357, %v7358
    %v7360 = vshll.u32 2131351028, %v7351
    %v7361 = vshrl.u32 2102212464, %v7352
    %v7362 = vor.u32 %v7360, %v7361
    %v7363 = vshll.u32 2102212464, %v7351
    %v7364 = vshrl.u32 920167782, %v7352
    %v7365 = vor.u32 %v7363, %v7364
    %v7366 = vshll.u32 920167782, %v7351
    %v7367 = vshrl.u32 1326507024, %v7352
    %v7368 = vor.u32 %v7366, %v7367
    %vm7369 = vcmp.lt.s32.totalorder %v7350, 1
    %vm7370 = vcmp.lt.s32.totalorder %v7350, 2
    %vm7371 = vcmp.lt.s32.totalorder %v7350, 3
    %vm7372 = vcmp.lt.s32.totalorder %v7350, 4
    %v7373 = vsel %vm7369, %v7353, %v7356
    %v7374 = vsel %vm7372, %v7362, 2102212464
    %v7375 = vsel %vm7371, %v7359, %v7374
    %v7376 = vsel %vm7370, %v7373, %v7375
    %v7377 = vsel %vm7369, %v7356, %v7359
    %v7378 = vsel %vm7372, %v7365, 920167782
    %v7379 = vsel %vm7371, %v7362, %v7378
    %v7380 = vsel %vm7370, %v7377, %v7379
    %v7381 = vsel %vm7369, %v7359, %v7362
    %v7382 = vsel %vm7372, %v7368, 1326507024
    %v7383 = vsel %vm7371, %v7365, %v7382
    %v7384 = vsel %vm7370, %v7381, %v7383
    %v7385 = vshll.u32 %v7345, 8
    %v7386 = vmul.u32.u64.compose %v7385, %v7384
    %v7387 = vextract.low.u32 %v7386
    %v7388 = vextract.high.u32 %v7386
    %v7389 = vmul.u32.u64.compose %v7385, %v7380
    %v7390 = vextract.low.u32 %v7389
    %v7391 = vextract.high.u32 %v7389
    %v7392 = vmul.u32 %v7385, %v7376
    %v7393 = vadd.s32 %v7388, %v7390
    %vm7394 = vc.u32 %v7388, %v7390
    %v7395 = vadd.s32 %v7391, 1
    %v7396 = vsel %vm7394, %v7395, %v7391
    %v7397 = vadd.s32 %v7392, %v7396
    %v7398 = vadd.s32 %v7397, 536870912
    %v7399 = vshrl.u32 %v7398, 30
    %v7400 = vshll.u32 %v7399, 30
    %v7401 = vsub.s32 %v7397, %v7400
    %vm7402 = vcmp.lt.s32.totalorder %v7401, 0
    %v7403 = vsub.s32 0, %v7401
    %v7404 = vsel %vm7402, %v7403, %v7401
    %v7405 = vclz %v7404
    %v7406 = vsub.s32 %v7405, 2
    %vm7407 = vcmp.gt.s32.totalorder 0, %v7406
    %v7408 = vsel %vm7407, 0, %v7406
    %v7409 = vsub.s32 32, %v7408
    %v7410 = vshll.u32 %v7401, %v7408
    %v7411 = vshrl.u32 %v7393, %v7409
    %v7412 = vor.u32 %v7410, %v7411
    %v7413 = vsub.s32 4294967266, %v7408
    %v7414 = vadd.s32 %v7413, 127
    %v7415 = vshll.u32 %v7414, 23
    %v7416 = vor.u32 4788187, %v7415
    %v7417 = vand.u32 2147483647, %v7416
    %v7419 = vcvt.s32.f32 %v7412
    %v7420 = vmul.f32 %v7419, %v7417
    %v7421 = vxor.u32 %v7420, 2147483648
    %v7422 = vsel %vm7339, %v7421, %v7420
    %v7423 = vsub.s32 4, %v7399
    %v7424 = vsel %vm7339, %v7423, %v7399
    %v7425 = vsel %vm7338, %v5453, %v7422
    %v7426 = vsel %vm7338, 0, %v7424
    %v7427 = vcosq.f32.pop %v7425
    %v7428 = vsinq.f32.pop %v7425
    %vm7429 = vweird.f32 %v5453
    %v7430 = vand.u32 %v7426, 3
    %vm7431 = vcmp.lt.s32.totalorder %v7430, 2
    %vm7432 = vcmp.eq.s32.totalorder %v7430, 0
    %v7433 = vxor.u32 %v7428, 2147483648
    %v7434 = vsel %vm7432, %v7427, %v7433
    %vm7435 = vcmp.eq.s32.totalorder %v7430, 2
    %v7436 = vxor.u32 %v7427, 2147483648
    %v7437 = vsel %vm7435, %v7436, %v7428
    %v7438 = vsel %vm7431, %v7434, %v7437
    %v7439 = vsel %vm7429, nan, %v7438
    %v7440 = vand.u32 2147483647, %v5454
    %vm7441 = vcmp.le.f32.partialorder %v7440, 0.7853982
    %vm7442 = vcmp.lt.s32.totalorder %v5454, 0
    %v7443 = vand.u32 %v5454, 2139095040
    %v7444 = vshrl.u32 %v7443, 23
    %v7445 = vsub.s32 %v7444, 127
    %v7446 = vand.u32 2147483647, %v5454
    %v7447 = vand.u32 %v7446, 8388607
    %v7448 = vor.u32 %v7447, 8388608
    %v7449 = vsub.s32 0, %v7448
    %v7450 = vadd.s32 %v7445, 1
    %vm7451 = vcmp.gt.s32.totalorder %v7450, 0
    %v7452 = vsel %vm7451, %v7450, 0
    %v7453 = vshrl.u32 %v7452, 5
    %v7454 = vand.u32 %v7452, 31
    %v7455 = vsub.s32 32, %v7454
    %v7456 = vshrl.u32 683565275, %v7455
    %v7457 = vshll.u32 683565275, %v7454
    %v7458 = vshrl.u32 2475754826, %v7455
    %v7459 = vor.u32 %v7457, %v7458
    %v7460 = vshll.u32 2475754826, %v7454
    %v7461 = vshrl.u32 2131351028, %v7455
    %v7462 = vor.u32 %v7460, %v7461
    %v7463 = vshll.u32 2131351028, %v7454
    %v7464 = vshrl.u32 2102212464, %v7455
    %v7465 = vor.u32 %v7463, %v7464
    %v7466 = vshll.u32 2102212464, %v7454
    %v7467 = vshrl.u32 920167782, %v7455
    %v7468 = vor.u32 %v7466, %v7467
    %v7469 = vshll.u32 920167782, %v7454
    %v7470 = vshrl.u32 1326507024, %v7455
    %v7471 = vor.u32 %v7469, %v7470
    %vm7472 = vcmp.lt.s32.totalorder %v7453, 1
    %vm7473 = vcmp.lt.s32.totalorder %v7453, 2
    %vm7474 = vcmp.lt.s32.totalorder %v7453, 3
    %vm7475 = vcmp.lt.s32.totalorder %v7453, 4
    %v7476 = vsel %vm7472, %v7456, %v7459
    %v7477 = vsel %vm7475, %v7465, 2102212464
    %v7478 = vsel %vm7474, %v7462, %v7477
    %v7479 = vsel %vm7473, %v7476, %v7478
    %v7480 = vsel %vm7472, %v7459, %v7462
    %v7481 = vsel %vm7475, %v7468, 920167782
    %v7482 = vsel %vm7474, %v7465, %v7481
    %v7483 = vsel %vm7473, %v7480, %v7482
    %v7484 = vsel %vm7472, %v7462, %v7465
    %v7485 = vsel %vm7475, %v7471, 1326507024
    %v7486 = vsel %vm7474, %v7468, %v7485
    %v7487 = vsel %vm7473, %v7484, %v7486
    %v7488 = vshll.u32 %v7448, 8
    %v7489 = vmul.u32.u64.compose %v7488, %v7487
    %v7490 = vextract.low.u32 %v7489
    %v7491 = vextract.high.u32 %v7489
    %v7492 = vmul.u32.u64.compose %v7488, %v7483
    %v7493 = vextract.low.u32 %v7492
    %v7494 = vextract.high.u32 %v7492
    %v7495 = vmul.u32 %v7488, %v7479
    %v7496 = vadd.s32 %v7491, %v7493
    %vm7497 = vc.u32 %v7491, %v7493
    %v7498 = vadd.s32 %v7494, 1
    %v7499 = vsel %vm7497, %v7498, %v7494
    %v7500 = vadd.s32 %v7495, %v7499
    %v7501 = vadd.s32 %v7500, 536870912
    %v7502 = vshrl.u32 %v7501, 30
    %v7503 = vshll.u32 %v7502, 30
    %v7504 = vsub.s32 %v7500, %v7503
    %vm7505 = vcmp.lt.s32.totalorder %v7504, 0
    %v7506 = vsub.s32 0, %v7504
    %v7507 = vsel %vm7505, %v7506, %v7504
    %v7508 = vclz %v7507
    %v7509 = vsub.s32 %v7508, 2
    %vm7510 = vcmp.gt.s32.totalorder 0, %v7509
    %v7511 = vsel %vm7510, 0, %v7509
    %v7512 = vsub.s32 32, %v7511
    %v7513 = vshll.u32 %v7504, %v7511
    %v7514 = vshrl.u32 %v7496, %v7512
    %v7515 = vor.u32 %v7513, %v7514
    %v7516 = vsub.s32 4294967266, %v7511
    %v7517 = vadd.s32 %v7516, 127
    %v7518 = vshll.u32 %v7517, 23
    %v7519 = vor.u32 4788187, %v7518
    %v7520 = vand.u32 2147483647, %v7519
    %v7522 = vcvt.s32.f32 %v7515
    %v7523 = vmul.f32 %v7522, %v7520
    %v7524 = vxor.u32 %v7523, 2147483648
    %v7525 = vsel %vm7442, %v7524, %v7523
    %v7526 = vsub.s32 4, %v7502
    %v7527 = vsel %vm7442, %v7526, %v7502
    %v7528 = vsel %vm7441, %v5454, %v7525
    %v7529 = vsel %vm7441, 0, %v7527
    %v7530 = vcosq.f32.pop %v7528
    %v7531 = vsinq.f32.pop %v7528
    %vm7532 = vweird.f32 %v5454
    %v7533 = vand.u32 %v7529, 3
    %vm7534 = vcmp.lt.s32.totalorder %v7533, 2
    %vm7535 = vcmp.eq.s32.totalorder %v7533, 0
    %v7536 = vxor.u32 %v7531, 2147483648
    %v7537 = vsel %vm7535, %v7530, %v7536
    %vm7538 = vcmp.eq.s32.totalorder %v7533, 2
    %v7539 = vxor.u32 %v7530, 2147483648
    %v7540 = vsel %vm7538, %v7539, %v7531
    %v7541 = vsel %vm7534, %v7537, %v7540
    %v7542 = vsel %vm7532, nan, %v7541
    %v7543 = vand.u32 2147483647, %v5455
    %vm7544 = vcmp.le.f32.partialorder %v7543, 0.7853982
    %vm7545 = vcmp.lt.s32.totalorder %v5455, 0
    %v7546 = vand.u32 %v5455, 2139095040
    %v7547 = vshrl.u32 %v7546, 23
    %v7548 = vsub.s32 %v7547, 127
    %v7549 = vand.u32 2147483647, %v5455
    %v7550 = vand.u32 %v7549, 8388607
    %v7551 = vor.u32 %v7550, 8388608
    %v7552 = vsub.s32 0, %v7551
    %v7553 = vadd.s32 %v7548, 1
    %vm7554 = vcmp.gt.s32.totalorder %v7553, 0
    %v7555 = vsel %vm7554, %v7553, 0
    %v7556 = vshrl.u32 %v7555, 5
    %v7557 = vand.u32 %v7555, 31
    %v7558 = vsub.s32 32, %v7557
    %v7559 = vshrl.u32 683565275, %v7558
    %v7560 = vshll.u32 683565275, %v7557
    %v7561 = vshrl.u32 2475754826, %v7558
    %v7562 = vor.u32 %v7560, %v7561
    %v7563 = vshll.u32 2475754826, %v7557
    %v7564 = vshrl.u32 2131351028, %v7558
    %v7565 = vor.u32 %v7563, %v7564
    %v7566 = vshll.u32 2131351028, %v7557
    %v7567 = vshrl.u32 2102212464, %v7558
    %v7568 = vor.u32 %v7566, %v7567
    %v7569 = vshll.u32 2102212464, %v7557
    %v7570 = vshrl.u32 920167782, %v7558
    %v7571 = vor.u32 %v7569, %v7570
    %v7572 = vshll.u32 920167782, %v7557
    %v7573 = vshrl.u32 1326507024, %v7558
    %v7574 = vor.u32 %v7572, %v7573
    %vm7575 = vcmp.lt.s32.totalorder %v7556, 1
    %vm7576 = vcmp.lt.s32.totalorder %v7556, 2
    %vm7577 = vcmp.lt.s32.totalorder %v7556, 3
    %vm7578 = vcmp.lt.s32.totalorder %v7556, 4
    %v7579 = vsel %vm7575, %v7559, %v7562
    %v7580 = vsel %vm7578, %v7568, 2102212464
    %v7581 = vsel %vm7577, %v7565, %v7580
    %v7582 = vsel %vm7576, %v7579, %v7581
    %v7583 = vsel %vm7575, %v7562, %v7565
    %v7584 = vsel %vm7578, %v7571, 920167782
    %v7585 = vsel %vm7577, %v7568, %v7584
    %v7586 = vsel %vm7576, %v7583, %v7585
    %v7587 = vsel %vm7575, %v7565, %v7568
    %v7588 = vsel %vm7578, %v7574, 1326507024
    %v7589 = vsel %vm7577, %v7571, %v7588
    %v7590 = vsel %vm7576, %v7587, %v7589
    %v7591 = vshll.u32 %v7551, 8
    %v7592 = vmul.u32.u64.compose %v7591, %v7590
    %v7593 = vextract.low.u32 %v7592
    %v7594 = vextract.high.u32 %v7592
    %v7595 = vmul.u32.u64.compose %v7591, %v7586
    %v7596 = vextract.low.u32 %v7595
    %v7597 = vextract.high.u32 %v7595
    %v7598 = vmul.u32 %v7591, %v7582
    %v7599 = vadd.s32 %v7594, %v7596
    %vm7600 = vc.u32 %v7594, %v7596
    %v7601 = vadd.s32 %v7597, 1
    %v7602 = vsel %vm7600, %v7601, %v7597
    %v7603 = vadd.s32 %v7598, %v7602
    %v7604 = vadd.s32 %v7603, 536870912
    %v7605 = vshrl.u32 %v7604, 30
    %v7606 = vshll.u32 %v7605, 30
    %v7607 = vsub.s32 %v7603, %v7606
    %vm7608 = vcmp.lt.s32.totalorder %v7607, 0
    %v7609 = vsub.s32 0, %v7607
    %v7610 = vsel %vm7608, %v7609, %v7607
    %v7611 = vclz %v7610
    %v7612 = vsub.s32 %v7611, 2
    %vm7613 = vcmp.gt.s32.totalorder 0, %v7612
    %v7614 = vsel %vm7613, 0, %v7612
    %v7615 = vsub.s32 32, %v7614
    %v7616 = vshll.u32 %v7607, %v7614
    %v7617 = vshrl.u32 %v7599, %v7615
    %v7618 = vor.u32 %v7616, %v7617
    %v7619 = vsub.s32 4294967266, %v7614
    %v7620 = vadd.s32 %v7619, 127
    %v7621 = vshll.u32 %v7620, 23
    %v7622 = vor.u32 4788187, %v7621
    %v7623 = vand.u32 2147483647, %v7622
    %v7625 = vcvt.s32.f32 %v7618
    %v7626 = vmul.f32 %v7625, %v7623
    %v7627 = vxor.u32 %v7626, 2147483648
    %v7628 = vsel %vm7545, %v7627, %v7626
    %v7629 = vsub.s32 4, %v7605
    %v7630 = vsel %vm7545, %v7629, %v7605
    %v7631 = vsel %vm7544, %v5455, %v7628
    %v7632 = vsel %vm7544, 0, %v7630
    %v7633 = vcosq.f32.pop %v7631
    %v7634 = vsinq.f32.pop %v7631
    %vm7635 = vweird.f32 %v5455
    %v7636 = vand.u32 %v7632, 3
    %vm7637 = vcmp.lt.s32.totalorder %v7636, 2
    %vm7638 = vcmp.eq.s32.totalorder %v7636, 0
    %v7639 = vxor.u32 %v7634, 2147483648
    %v7640 = vsel %vm7638, %v7633, %v7639
    %vm7641 = vcmp.eq.s32.totalorder %v7636, 2
    %v7642 = vxor.u32 %v7633, 2147483648
    %v7643 = vsel %vm7641, %v7642, %v7634
    %v7644 = vsel %vm7637, %v7640, %v7643
    %v7645 = vsel %vm7635, nan, %v7644
    %v7646 = vand.u32 2147483647, %v5456
    %vm7647 = vcmp.le.f32.partialorder %v7646, 0.7853982
    %vm7648 = vcmp.lt.s32.totalorder %v5456, 0
    %v7649 = vand.u32 %v5456, 2139095040
    %v7650 = vshrl.u32 %v7649, 23
    %v7651 = vsub.s32 %v7650, 127
    %v7652 = vand.u32 2147483647, %v5456
    %v7653 = vand.u32 %v7652, 8388607
    %v7654 = vor.u32 %v7653, 8388608
    %v7655 = vsub.s32 0, %v7654
    %v7656 = vadd.s32 %v7651, 1
    %vm7657 = vcmp.gt.s32.totalorder %v7656, 0
    %v7658 = vsel %vm7657, %v7656, 0
    %v7659 = vshrl.u32 %v7658, 5
    %v7660 = vand.u32 %v7658, 31
    %v7661 = vsub.s32 32, %v7660
    %v7662 = vshrl.u32 683565275, %v7661
    %v7663 = vshll.u32 683565275, %v7660
    %v7664 = vshrl.u32 2475754826, %v7661
    %v7665 = vor.u32 %v7663, %v7664
    %v7666 = vshll.u32 2475754826, %v7660
    %v7667 = vshrl.u32 2131351028, %v7661
    %v7668 = vor.u32 %v7666, %v7667
    %v7669 = vshll.u32 2131351028, %v7660
    %v7670 = vshrl.u32 2102212464, %v7661
    %v7671 = vor.u32 %v7669, %v7670
    %v7672 = vshll.u32 2102212464, %v7660
    %v7673 = vshrl.u32 920167782, %v7661
    %v7674 = vor.u32 %v7672, %v7673
    %v7675 = vshll.u32 920167782, %v7660
    %v7676 = vshrl.u32 1326507024, %v7661
    %v7677 = vor.u32 %v7675, %v7676
    %vm7678 = vcmp.lt.s32.totalorder %v7659, 1
    %vm7679 = vcmp.lt.s32.totalorder %v7659, 2
    %vm7680 = vcmp.lt.s32.totalorder %v7659, 3
    %vm7681 = vcmp.lt.s32.totalorder %v7659, 4
    %v7682 = vsel %vm7678, %v7662, %v7665
    %v7683 = vsel %vm7681, %v7671, 2102212464
    %v7684 = vsel %vm7680, %v7668, %v7683
    %v7685 = vsel %vm7679, %v7682, %v7684
    %v7686 = vsel %vm7678, %v7665, %v7668
    %v7687 = vsel %vm7681, %v7674, 920167782
    %v7688 = vsel %vm7680, %v7671, %v7687
    %v7689 = vsel %vm7679, %v7686, %v7688
    %v7690 = vsel %vm7678, %v7668, %v7671
    %v7691 = vsel %vm7681, %v7677, 1326507024
    %v7692 = vsel %vm7680, %v7674, %v7691
    %v7693 = vsel %vm7679, %v7690, %v7692
    %v7694 = vshll.u32 %v7654, 8
    %v7695 = vmul.u32.u64.compose %v7694, %v7693
    %v7696 = vextract.low.u32 %v7695
    %v7697 = vextract.high.u32 %v7695
    %v7698 = vmul.u32.u64.compose %v7694, %v7689
    %v7699 = vextract.low.u32 %v7698
    %v7700 = vextract.high.u32 %v7698
    %v7701 = vmul.u32 %v7694, %v7685
    %v7702 = vadd.s32 %v7697, %v7699
    %vm7703 = vc.u32 %v7697, %v7699
    %v7704 = vadd.s32 %v7700, 1
    %v7705 = vsel %vm7703, %v7704, %v7700
    %v7706 = vadd.s32 %v7701, %v7705
    %v7707 = vadd.s32 %v7706, 536870912
    %v7708 = vshrl.u32 %v7707, 30
    %v7709 = vshll.u32 %v7708, 30
    %v7710 = vsub.s32 %v7706, %v7709
    %vm7711 = vcmp.lt.s32.totalorder %v7710, 0
    %v7712 = vsub.s32 0, %v7710
    %v7713 = vsel %vm7711, %v7712, %v7710
    %v7714 = vclz %v7713
    %v7715 = vsub.s32 %v7714, 2
    %vm7716 = vcmp.gt.s32.totalorder 0, %v7715
    %v7717 = vsel %vm7716, 0, %v7715
    %v7718 = vsub.s32 32, %v7717
    %v7719 = vshll.u32 %v7710, %v7717
    %v7720 = vshrl.u32 %v7702, %v7718
    %v7721 = vor.u32 %v7719, %v7720
    %v7722 = vsub.s32 4294967266, %v7717
    %v7723 = vadd.s32 %v7722, 127
    %v7724 = vshll.u32 %v7723, 23
    %v7725 = vor.u32 4788187, %v7724
    %v7726 = vand.u32 2147483647, %v7725
    %v7728 = vcvt.s32.f32 %v7721
    %v7729 = vmul.f32 %v7728, %v7726
    %v7730 = vxor.u32 %v7729, 2147483648
    %v7731 = vsel %vm7648, %v7730, %v7729
    %v7732 = vsub.s32 4, %v7708
    %v7733 = vsel %vm7648, %v7732, %v7708
    %v7734 = vsel %vm7647, %v5456, %v7731
    %v7735 = vsel %vm7647, 0, %v7733
    %v7736 = vcosq.f32.pop %v7734
    %v7737 = vsinq.f32.pop %v7734
    %vm7738 = vweird.f32 %v5456
    %v7739 = vand.u32 %v7735, 3
    %vm7740 = vcmp.lt.s32.totalorder %v7739, 2
    %vm7741 = vcmp.eq.s32.totalorder %v7739, 0
    %v7742 = vxor.u32 %v7737, 2147483648
    %v7743 = vsel %vm7741, %v7736, %v7742
    %vm7744 = vcmp.eq.s32.totalorder %v7739, 2
    %v7745 = vxor.u32 %v7736, 2147483648
    %v7746 = vsel %vm7744, %v7745, %v7737
    %v7747 = vsel %vm7740, %v7743, %v7746
    %v7748 = vsel %vm7738, nan, %v7747
    %v7749 = vand.u32 2147483647, %v5457
    %vm7750 = vcmp.le.f32.partialorder %v7749, 0.7853982
    %vm7751 = vcmp.lt.s32.totalorder %v5457, 0
    %v7752 = vand.u32 %v5457, 2139095040
    %v7753 = vshrl.u32 %v7752, 23
    %v7754 = vsub.s32 %v7753, 127
    %v7755 = vand.u32 2147483647, %v5457
    %v7756 = vand.u32 %v7755, 8388607
    %v7757 = vor.u32 %v7756, 8388608
    %v7758 = vsub.s32 0, %v7757
    %v7759 = vadd.s32 %v7754, 1
    %vm7760 = vcmp.gt.s32.totalorder %v7759, 0
    %v7761 = vsel %vm7760, %v7759, 0
    %v7762 = vshrl.u32 %v7761, 5
    %v7763 = vand.u32 %v7761, 31
    %v7764 = vsub.s32 32, %v7763
    %v7765 = vshrl.u32 683565275, %v7764
    %v7766 = vshll.u32 683565275, %v7763
    %v7767 = vshrl.u32 2475754826, %v7764
    %v7768 = vor.u32 %v7766, %v7767
    %v7769 = vshll.u32 2475754826, %v7763
    %v7770 = vshrl.u32 2131351028, %v7764
    %v7771 = vor.u32 %v7769, %v7770
    %v7772 = vshll.u32 2131351028, %v7763
    %v7773 = vshrl.u32 2102212464, %v7764
    %v7774 = vor.u32 %v7772, %v7773
    %v7775 = vshll.u32 2102212464, %v7763
    %v7776 = vshrl.u32 920167782, %v7764
    %v7777 = vor.u32 %v7775, %v7776
    %v7778 = vshll.u32 920167782, %v7763
    %v7779 = vshrl.u32 1326507024, %v7764
    %v7780 = vor.u32 %v7778, %v7779
    %vm7781 = vcmp.lt.s32.totalorder %v7762, 1
    %vm7782 = vcmp.lt.s32.totalorder %v7762, 2
    %vm7783 = vcmp.lt.s32.totalorder %v7762, 3
    %vm7784 = vcmp.lt.s32.totalorder %v7762, 4
    %v7785 = vsel %vm7781, %v7765, %v7768
    %v7786 = vsel %vm7784, %v7774, 2102212464
    %v7787 = vsel %vm7783, %v7771, %v7786
    %v7788 = vsel %vm7782, %v7785, %v7787
    %v7789 = vsel %vm7781, %v7768, %v7771
    %v7790 = vsel %vm7784, %v7777, 920167782
    %v7791 = vsel %vm7783, %v7774, %v7790
    %v7792 = vsel %vm7782, %v7789, %v7791
    %v7793 = vsel %vm7781, %v7771, %v7774
    %v7794 = vsel %vm7784, %v7780, 1326507024
    %v7795 = vsel %vm7783, %v7777, %v7794
    %v7796 = vsel %vm7782, %v7793, %v7795
    %v7797 = vshll.u32 %v7757, 8
    %v7798 = vmul.u32.u64.compose %v7797, %v7796
    %v7799 = vextract.low.u32 %v7798
    %v7800 = vextract.high.u32 %v7798
    %v7801 = vmul.u32.u64.compose %v7797, %v7792
    %v7802 = vextract.low.u32 %v7801
    %v7803 = vextract.high.u32 %v7801
    %v7804 = vmul.u32 %v7797, %v7788
    %v7805 = vadd.s32 %v7800, %v7802
    %vm7806 = vc.u32 %v7800, %v7802
    %v7807 = vadd.s32 %v7803, 1
    %v7808 = vsel %vm7806, %v7807, %v7803
    %v7809 = vadd.s32 %v7804, %v7808
    %v7810 = vadd.s32 %v7809, 536870912
    %v7811 = vshrl.u32 %v7810, 30
    %v7812 = vshll.u32 %v7811, 30
    %v7813 = vsub.s32 %v7809, %v7812
    %vm7814 = vcmp.lt.s32.totalorder %v7813, 0
    %v7815 = vsub.s32 0, %v7813
    %v7816 = vsel %vm7814, %v7815, %v7813
    %v7817 = vclz %v7816
    %v7818 = vsub.s32 %v7817, 2
    %vm7819 = vcmp.gt.s32.totalorder 0, %v7818
    %v7820 = vsel %vm7819, 0, %v7818
    %v7821 = vsub.s32 32, %v7820
    %v7822 = vshll.u32 %v7813, %v7820
    %v7823 = vshrl.u32 %v7805, %v7821
    %v7824 = vor.u32 %v7822, %v7823
    %v7825 = vsub.s32 4294967266, %v7820
    %v7826 = vadd.s32 %v7825, 127
    %v7827 = vshll.u32 %v7826, 23
    %v7828 = vor.u32 4788187, %v7827
    %v7829 = vand.u32 2147483647, %v7828
    %v7831 = vcvt.s32.f32 %v7824
    %v7832 = vmul.f32 %v7831, %v7829
    %v7833 = vxor.u32 %v7832, 2147483648
    %v7834 = vsel %vm7751, %v7833, %v7832
    %v7835 = vsub.s32 4, %v7811
    %v7836 = vsel %vm7751, %v7835, %v7811
    %v7837 = vsel %vm7750, %v5457, %v7834
    %v7838 = vsel %vm7750, 0, %v7836
    %v7839 = vcosq.f32.pop %v7837
    %v7840 = vsinq.f32.pop %v7837
    %vm7841 = vweird.f32 %v5457
    %v7842 = vand.u32 %v7838, 3
    %vm7843 = vcmp.lt.s32.totalorder %v7842, 2
    %vm7844 = vcmp.eq.s32.totalorder %v7842, 0
    %v7845 = vxor.u32 %v7840, 2147483648
    %v7846 = vsel %vm7844, %v7839, %v7845
    %vm7847 = vcmp.eq.s32.totalorder %v7842, 2
    %v7848 = vxor.u32 %v7839, 2147483648
    %v7849 = vsel %vm7847, %v7848, %v7840
    %v7850 = vsel %vm7843, %v7846, %v7849
    %v7851 = vsel %vm7841, nan, %v7850
    %v7852 = vand.u32 2147483647, %v5458
    %vm7853 = vcmp.le.f32.partialorder %v7852, 0.7853982
    %vm7854 = vcmp.lt.s32.totalorder %v5458, 0
    %v7855 = vand.u32 %v5458, 2139095040
    %v7856 = vshrl.u32 %v7855, 23
    %v7857 = vsub.s32 %v7856, 127
    %v7858 = vand.u32 2147483647, %v5458
    %v7859 = vand.u32 %v7858, 8388607
    %v7860 = vor.u32 %v7859, 8388608
    %v7861 = vsub.s32 0, %v7860
    %v7862 = vadd.s32 %v7857, 1
    %vm7863 = vcmp.gt.s32.totalorder %v7862, 0
    %v7864 = vsel %vm7863, %v7862, 0
    %v7865 = vshrl.u32 %v7864, 5
    %v7866 = vand.u32 %v7864, 31
    %v7867 = vsub.s32 32, %v7866
    %v7868 = vshrl.u32 683565275, %v7867
    %v7869 = vshll.u32 683565275, %v7866
    %v7870 = vshrl.u32 2475754826, %v7867
    %v7871 = vor.u32 %v7869, %v7870
    %v7872 = vshll.u32 2475754826, %v7866
    %v7873 = vshrl.u32 2131351028, %v7867
    %v7874 = vor.u32 %v7872, %v7873
    %v7875 = vshll.u32 2131351028, %v7866
    %v7876 = vshrl.u32 2102212464, %v7867
    %v7877 = vor.u32 %v7875, %v7876
    %v7878 = vshll.u32 2102212464, %v7866
    %v7879 = vshrl.u32 920167782, %v7867
    %v7880 = vor.u32 %v7878, %v7879
    %v7881 = vshll.u32 920167782, %v7866
    %v7882 = vshrl.u32 1326507024, %v7867
    %v7883 = vor.u32 %v7881, %v7882
    %vm7884 = vcmp.lt.s32.totalorder %v7865, 1
    %vm7885 = vcmp.lt.s32.totalorder %v7865, 2
    %vm7886 = vcmp.lt.s32.totalorder %v7865, 3
    %vm7887 = vcmp.lt.s32.totalorder %v7865, 4
    %v7888 = vsel %vm7884, %v7868, %v7871
    %v7889 = vsel %vm7887, %v7877, 2102212464
    %v7890 = vsel %vm7886, %v7874, %v7889
    %v7891 = vsel %vm7885, %v7888, %v7890
    %v7892 = vsel %vm7884, %v7871, %v7874
    %v7893 = vsel %vm7887, %v7880, 920167782
    %v7894 = vsel %vm7886, %v7877, %v7893
    %v7895 = vsel %vm7885, %v7892, %v7894
    %v7896 = vsel %vm7884, %v7874, %v7877
    %v7897 = vsel %vm7887, %v7883, 1326507024
    %v7898 = vsel %vm7886, %v7880, %v7897
    %v7899 = vsel %vm7885, %v7896, %v7898
    %v7900 = vshll.u32 %v7860, 8
    %v7901 = vmul.u32.u64.compose %v7900, %v7899
    %v7902 = vextract.low.u32 %v7901
    %v7903 = vextract.high.u32 %v7901
    %v7904 = vmul.u32.u64.compose %v7900, %v7895
    %v7905 = vextract.low.u32 %v7904
    %v7906 = vextract.high.u32 %v7904
    %v7907 = vmul.u32 %v7900, %v7891
    %v7908 = vadd.s32 %v7903, %v7905
    %vm7909 = vc.u32 %v7903, %v7905
    %v7910 = vadd.s32 %v7906, 1
    %v7911 = vsel %vm7909, %v7910, %v7906
    %v7912 = vadd.s32 %v7907, %v7911
    %v7913 = vadd.s32 %v7912, 536870912
    %v7914 = vshrl.u32 %v7913, 30
    %v7915 = vshll.u32 %v7914, 30
    %v7916 = vsub.s32 %v7912, %v7915
    %vm7917 = vcmp.lt.s32.totalorder %v7916, 0
    %v7918 = vsub.s32 0, %v7916
    %v7919 = vsel %vm7917, %v7918, %v7916
    %v7920 = vclz %v7919
    %v7921 = vsub.s32 %v7920, 2
    %vm7922 = vcmp.gt.s32.totalorder 0, %v7921
    %v7923 = vsel %vm7922, 0, %v7921
    %v7924 = vsub.s32 32, %v7923
    %v7925 = vshll.u32 %v7916, %v7923
    %v7926 = vshrl.u32 %v7908, %v7924
    %v7927 = vor.u32 %v7925, %v7926
    %v7928 = vsub.s32 4294967266, %v7923
    %v7929 = vadd.s32 %v7928, 127
    %v7930 = vshll.u32 %v7929, 23
    %v7931 = vor.u32 4788187, %v7930
    %v7932 = vand.u32 2147483647, %v7931
    %v7934 = vcvt.s32.f32 %v7927
    %v7935 = vmul.f32 %v7934, %v7932
    %v7936 = vxor.u32 %v7935, 2147483648
    %v7937 = vsel %vm7854, %v7936, %v7935
    %v7938 = vsub.s32 4, %v7914
    %v7939 = vsel %vm7854, %v7938, %v7914
    %v7940 = vsel %vm7853, %v5458, %v7937
    %v7941 = vsel %vm7853, 0, %v7939
    %v7942 = vcosq.f32.pop %v7940
    %v7943 = vsinq.f32.pop %v7940
    %vm7944 = vweird.f32 %v5458
    %v7945 = vand.u32 %v7941, 3
    %vm7946 = vcmp.lt.s32.totalorder %v7945, 2
    %vm7947 = vcmp.eq.s32.totalorder %v7945, 0
    %v7948 = vxor.u32 %v7943, 2147483648
    %v7949 = vsel %vm7947, %v7942, %v7948
    %vm7950 = vcmp.eq.s32.totalorder %v7945, 2
    %v7951 = vxor.u32 %v7942, 2147483648
    %v7952 = vsel %vm7950, %v7951, %v7943
    %v7953 = vsel %vm7946, %v7949, %v7952
    %v7954 = vsel %vm7944, nan, %v7953
    %v7955 = vsel %vm5459, %v5574, %v6821
    %v7956 = vsel %vm5460, %v5678, %v6924
    %v7957 = vsel %vm5461, %v5782, %v7027
    %v7958 = vsel %vm5462, %v5886, %v7130
    %v7959 = vsel %vm5463, %v5990, %v7233
    %v7960 = vsel %vm5464, %v6094, %v7336
    %v7961 = vsel %vm5465, %v6198, %v7439
    %v7962 = vsel %vm5466, %v6302, %v7542
    %v7963 = vsel %vm5467, %v6406, %v7645
    %v7964 = vsel %vm5468, %v6510, %v7748
    %v7965 = vsel %vm5469, %v6614, %v7851
    %v7966 = vsel %vm5470, %v6718, %v7954
    %7967 = vst [vmem:[#allocation8] sm:$0xff] %v7955
    %7968 = vst [vmem:[#allocation8 + $0x8] sm:$0xff] %v7956
    %7969 = vst [vmem:[#allocation8 + $0x10] sm:$0xff] %v7957
    %7970 = vst [vmem:[#allocation8 + $0x18] sm:$0xff] %v7958
    %7971 = vst [vmem:[#allocation8 + $0x20] sm:$0xff] %v7959
    %7972 = vst [vmem:[#allocation8 + $0x28] sm:$0xff] %v7960
    %7973 = vst [vmem:[#allocation8 + $0x30] sm:$0xff] %v7961
    %7974 = vst [vmem:[#allocation8 + $0x38] sm:$0xff] %v7962
    %7975 = vst [vmem:[#allocation8 + $0x40] sm:$0xff] %v7963
    %7976 = vst [vmem:[#allocation8 + $0x48] sm:$0xff] %v7964
    %7977 = vst [vmem:[#allocation8 + $0x50] sm:$0xff] %v7965
    %7978 = vst [vmem:[#allocation8 + $0x58] sm:$0xff] %v7966
    // Predicated region
    $region26: #{tpu_custom_call.1} parent=1 // pred_check
      _
    $region27: #{tpu_custom_call.1} parent=1 // pred_check_branch
      %7980 = sbr.rel (0) target = $region29
    $region28: #{tpu_custom_call.1} parent=1 // pred_region
      %s7982 = ssub.s32 1536, 1536
      %7983 = vsyncadd [#allocation4], %s7982
      %s7985 = sshll.u32 [#allocation8], 4
      %s7986 = int_to_ptr.vmem [resolvable:$true] %s7985
      %7988 = dma.vmem_to_hbm [thread:$0]  %s7986, 1536, %s3, [#allocation4]
    $region29: #{tpu_custom_call.1} parent=1 // pred_fallthru
      _
    // Predicated region
    $region30: #{tpu_custom_call.1} parent=1 // pred_check
      _
    $region31: #{tpu_custom_call.1} parent=1 // pred_check_branch
      %7990 = sbr.rel (0) target = $region33
    $region32: #{tpu_custom_call.1} parent=1 // pred_region
      %7991 = dma.done [#allocation4], 1536
    $region33: #{tpu_custom_call.1} parent=1 // pred_fallthru
      _
    %7992 = vsyncpa [#allocation3], 1
    %7993 = vsyncpa [#allocation6], 1
    %7994 = vsyncpa [#allocation4], 1

</llo_original>
